<compile_context>
chip_gen: v7x
topology: tpu7x:2x2x1
jax: 0.10.0
libtpu: 0.0.40
codegen_flags: <defaults>
</compile_context>

<pallas_src>
import math
from functools import partial

import jax
import jax.numpy as jnp
from jax.experimental import pallas as pl
from jax.experimental.pallas import tpu as pltpu

_SQRT2 = math.sqrt(2.0)


# ----------------------------------------------------------------------------
# Helpers (host / trace-time)
# ----------------------------------------------------------------------------
def _make_masks(H, W, dilations):
    """Per-(dilation, tap) validity masks for a 3x3 depthwise conv acting on a
    row-major flattened (H*W,) spatial axis.  Shape: (len(dilations)*9, 1, H*W)."""
    hw = jnp.arange(H * W, dtype=jnp.int32)
    h = hw // W
    w = hw % W
    taps = []
    for d in dilations:
        for ky in (-1, 0, 1):
            for kx in (-1, 0, 1):
                m = ((h + ky * d >= 0) & (h + ky * d < H) &
                     (w + kx * d >= 0) & (w + kx * d < W))
                taps.append(m)
    return jnp.stack(taps).astype(jnp.float32)[:, None, :]


# ----------------------------------------------------------------------------
# The fused Pallas kernel (one grid step == one batch element)
# ----------------------------------------------------------------------------
def _msb_kernel(up_ref, en_ref, n1_ref, n2_ref, att_ref,
                c1m_ref, c1d_ref, c2m_ref, c2d_ref, imgs_ref,
                masks_ref, c1_wdw_ref, c1_wpwT_ref, c1_b_ref,
                c2_wdw_ref, c2_wpwT_ref, c2_b_ref,
                e_wprojT_ref, e_aproj_ref, e_wdw_ref, e_wexpT_ref,
                e_acat_ref, e_aout_ref, img_wT_ref, img_b_ref,
                h_out_ref, img_out_ref, *, W, HW, dils, nblk):
    nd = len(dils)

    def prelu(v, a):
        return jnp.where(v >= 0.0, v, v * a)

    def dw3x3(x, wdw_ref, wbase, mbase, dil):
        """Depthwise 3x3 (dilated) conv on (C, HW), HW on the lane axis.
        Each tap = masked lane-roll (XLU) + per-channel FMA (VPU)."""
        acc = None
        t = 0
        for ky in (-1, 0, 1):
            for kx in (-1, 0, 1):
                s = (ky * W + kx) * dil
                xt = x if s == 0 else pltpu.roll(x, shift=(-s) % HW, axis=1)
                term = xt * masks_ref[mbase + t] * wdw_ref[wbase + t]
                acc = term if acc is None else acc + term
                t += 1
        return acc

    def pw(wT, x):
        # 1x1 conv: (Cout, Cin) @ (Cin, HW); HW=256 keeps the MXU N axis full.
        return jnp.dot(wT, x, preferred_element_type=jnp.float32)

    # ---- conv1: modulated DW-sep 3x3 + demod + noise + bias + lrelu*sqrt(2)
    y = dw3x3(up_ref[0], c1_wdw_ref, 0, 0, 1) * c1m_ref[0]
    y = pw(c1_wpwT_ref[...], y) * c1d_ref[0] + n1_ref[0] + c1_b_ref[...]
    h = prelu(y, 0.2) * _SQRT2

    # ---- hidden + ECA-attended encoder features
    h = h + en_ref[0] * att_ref[0]

    # ---- 3 x EESP residual blocks (all intermediates stay on-chip)
    for blk in range(nblk):
        proj = prelu(pw(e_wprojT_ref[blk], h), e_aproj_ref[blk])
        prev = None
        exp = None
        for di, d in enumerate(dils):
            o = dw3x3(proj, e_wdw_ref, (blk * nd + di) * 9, di * 9, d)
            prev = o if prev is None else prev + o            # hierarchical fuse
            act = prelu(prev, e_acat_ref[blk * nd + di])      # PReLU on the "concat"
            term = pw(e_wexpT_ref[blk * nd + di], act)        # per-branch expand slice
            exp = term if exp is None else exp + term         # == concat-then-1x1
        h = prelu(exp + h, e_aout_ref[blk])                   # residual + PReLU

    # ---- conv2 (same structure as conv1)
    y = dw3x3(h, c2_wdw_ref, 0, 0, 1) * c2m_ref[0]
    y = pw(c2_wpwT_ref[...], y) * c2d_ref[0] + n2_ref[0] + c2_b_ref[...]
    h = prelu(y, 0.2) * _SQRT2
    h_out_ref[0] = h

    # ---- to_img: modulated 1x1 (no demod) + bias
    img_out_ref[0] = pw(img_wT_ref[...], h * imgs_ref[0]) + img_b_ref[...]


# ----------------------------------------------------------------------------
# Forward pass
# ----------------------------------------------------------------------------
def mobile_synthesis_block_v6(params, hidden, style, en_feat, noise):
    """hidden: (B, Cin, H, W) NCHW; style: (B, S) or (B, >=3, S);
    en_feat: (B, Cout, 2H, 2W) NCHW; noise: [n1, n2] each (B, 2H, 2W)."""
    f32 = jnp.float32
    hidden = hidden.astype(f32)
    en_feat = en_feat.astype(f32)
    style = style.astype(f32)

    B, Cin, H0, W0 = hidden.shape
    C1 = Cin // 4
    Hup, Wup, HW = 2 * H0, 2 * W0, 4 * H0 * W0
    Cout = params["c2"]["wpw_t"].shape[0]
    Cimg = params["img"]["w_t"].shape[0]
    S = style.shape[-1]
    dils = (1, 2, 4)
    nd = len(dils)
    nblk = params["eesp"]["a_out"].shape[0]
    n = params["eesp"]["a_proj"].shape[1]

    def sty(i):
        return style if style.ndim == 2 else style[:, i, :]

    # ----------------- plain-JAX prologue (tiny tensors only) -----------------
    # IDWTUpsaplme: style modulation + inverse Haar + 2x2 sub-pixel interleave.
    # TODO(synk): done in plain JAX (4 KB tensor) — one XLA fusion; a per-lane
    # 2x2 scatter has no clean Pallas expression at this layout.
    m_up = sty(0) @ params["up_wmod"] + 1.0                        # (B, Cin)
    xm = hidden * m_up[:, :, None, None]
    ll, lh = xm[:, 0:C1], xm[:, C1:2 * C1]
    hl, hh = xm[:, 2 * C1:3 * C1], xm[:, 3 * C1:4 * C1]
    p00 = 0.5 * (ll + lh + hl + hh)
    p01 = 0.5 * (ll - lh + hl - hh)
    p10 = 0.5 * (ll + lh - hl - hh)
    p11 = 0.5 * (ll - lh - hl + hh)
    up = jnp.stack([p00, p01, p10, p11], axis=-1)                  # (B,C1,H0,W0,4)
    up = up.reshape(B, C1, H0, W0, 2, 2).transpose(0, 1, 2, 4, 3, 5)
    up = up.reshape(B, C1, HW)                                     # (B, C1, 2H*2W)

    # ECAAttention scale: GAP -> k=3 channel conv -> sigmoid (per batch/channel)
    en = en_feat.reshape(B, Cout, HW)                              # NCHW == (C, HW) layout
    gap = jnp.mean(en, axis=2)                                     # (B, Cout)
    gp = jnp.pad(gap, ((0, 0), (1, 1)))
    w3, b3 = params["eca_w"], params["eca_b"]
    att = jax.nn.sigmoid(gp[:, 0:Cout] * w3[0] + gp[:, 1:Cout + 1] * w3[1]
                         + gp[:, 2:Cout + 2] * w3[2] + b3)         # (B, Cout)

    # StyledConv2d (ModulatedDWConv2d) per-batch scalars: modulation + demod
    def styled_scalars(prm, s_vec, cin):
        s = s_vec @ prm["wmod"] / math.sqrt(float(S)) + 1.0        # (B, cin)
        mod = s / math.sqrt(cin * 9.0)
        dw_sq = jnp.sum(prm["wdw"][..., 0] ** 2, axis=0)           # (cin,)
        comp = (mod ** 2 * dw_sq)[:, None, :] * (prm["wpw_t"] ** 2)[None]
        demod = jax.lax.rsqrt(jnp.sum(comp, axis=2) + 1e-8)        # (B, cout)
        return mod, demod

    c1_mod, c1_dem = styled_scalars(params["c1"], sty(0), C1)
    c2_mod, c2_dem = styled_scalars(params["c2"], sty(1), Cout)
    img_s = (sty(2) @ params["img"]["wmod"] / math.sqrt(float(S)) + 1.0) / math.sqrt(Cout)

    n1 = noise[0].astype(f32).reshape(B, 1, HW) * params["c1"]["noise_strength"]
    n2 = noise[1].astype(f32).reshape(B, 1, HW) * params["c2"]["noise_strength"]

    masks = _make_masks(Hup, Wup, dils)                            # (nd*9, 1, HW)

    # ----------------- one fused Pallas kernel for the whole block -----------
    def pb(shape):   # per-batch operand
        return pl.BlockSpec((1,) + shape, lambda b, _s=shape: (b,) + (0,) * len(_s))

    def ps(shape):   # shared (weights / masks)
        return pl.BlockSpec(shape, lambda b, _s=shape: (0,) * len(_s))

    out_h, out_img = pl.pallas_call(
        partial(_msb_kernel, W=Wup, HW=HW, dils=dils, nblk=nblk),
        out_shape=(jax.ShapeDtypeStruct((B, Cout, HW), f32),
                   jax.ShapeDtypeStruct((B, Cimg, HW), f32)),
        grid=(B,),
        in_specs=[
            pb((C1, HW)), pb((Cout, HW)), pb((1, HW)), pb((1, HW)),   # up, en, noise1, noise2
            pb((Cout, 1)), pb((C1, 1)), pb((Cout, 1)),                # att, c1 mod, c1 demod
            pb((Cout, 1)), pb((Cout, 1)), pb((Cout, 1)),              # c2 mod, c2 demod, img scale
            ps((nd * 9, 1, HW)),                                      # tap validity masks
            ps((9, C1, 1)), ps((Cout, C1)), ps((Cout, 1)),            # conv1 dw / pw^T / bias
            ps((9, Cout, 1)), ps((Cout, Cout)), ps((Cout, 1)),        # conv2 dw / pw^T / bias
            ps((nblk, n, Cout)), ps((nblk, n, 1)),                    # eesp proj^T / prelu
            ps((nblk * nd * 9, n, 1)),                                # eesp dw taps
            ps((nblk * nd, Cout, n)), ps((nblk * nd, n, 1)),          # eesp expand^T / cat-prelu
            ps((nblk, Cout, 1)),                                      # eesp out prelu
            ps((Cimg, Cout)), ps((Cimg, 1)),                          # to_img w^T / bias
        ],
        out_specs=(pb((Cout, HW)), pb((Cimg, HW))),
        compiler_params=pltpu.CompilerParams(
            dimension_semantics=("parallel",)),                       # both TCs on v7x
    )(up, en, n1, n2,
      att[:, :, None], c1_mod[:, :, None], c1_dem[:, :, None],
      c2_mod[:, :, None], c2_dem[:, :, None], img_s[:, :, None],
      masks,
      params["c1"]["wdw"], params["c1"]["wpw_t"], params["c1"]["bias"],
      params["c2"]["wdw"], params["c2"]["wpw_t"], params["c2"]["bias"],
      params["eesp"]["w_proj_t"], params["eesp"]["a_proj"],
      params["eesp"]["wdw"], params["eesp"]["w_exp_t"],
      params["eesp"]["a_cat"], params["eesp"]["a_out"],
      params["img"]["w_t"], params["img"]["bias"])

    return (out_h.reshape(B, Cout, Hup, Wup),
            out_img.reshape(B, Cimg, Hup, Wup))


# ----------------------------------------------------------------------------
# Deterministic parameter init (kernel-friendly layouts)
# ----------------------------------------------------------------------------
def init_params(key, channels_in, channels_out, style_dim,
                dilations=(1, 2, 4), n_blocks=3, img_channels=12):
    assert channels_in % 4 == 0 and channels_out % len(dilations) == 0
    c1_in = channels_in // 4
    nd = len(dilations)
    n = channels_out // nd
    keys = iter(jax.random.split(key, 64))

    def nrm(shape, fan_in):
        return jax.random.normal(next(keys), shape, jnp.float32) / math.sqrt(float(fan_in))

    params = {
        "up_wmod": nrm((style_dim, channels_in), style_dim),
        "c1": {"wmod": nrm((style_dim, c1_in), style_dim),
               "wdw": nrm((9, c1_in, 1), 9),                      # per-tap (C,1) columns
               "wpw_t": nrm((channels_out, c1_in), c1_in),        # transposed 1x1 weight
               "noise_strength": jnp.float32(0.1),
               "bias": nrm((channels_out, 1), channels_out)},
        "c2": {"wmod": nrm((style_dim, channels_out), style_dim),
               "wdw": nrm((9, channels_out, 1), 9),
               "wpw_t": nrm((channels_out, channels_out), channels_out),
               "noise_strength": jnp.float32(0.1),
               "bias": nrm((channels_out, 1), channels_out)},
        "eca_w": nrm((3,), 3),
        "eca_b": jnp.zeros((), jnp.float32),
        "eesp": {
            "w_proj_t": nrm((n_blocks, n, channels_out), channels_out),
            "a_proj": jnp.full((n_blocks, n, 1), 0.25, jnp.float32),
            "wdw": nrm((n_blocks * nd * 9, n, 1), 9),
            "w_exp_t": nrm((n_blocks * nd, channels_out, n), channels_out),
            "a_cat": jnp.full((n_blocks * nd, n, 1), 0.25, jnp.float32),
            "a_out": jnp.full((n_blocks, channels_out, 1), 0.25, jnp.float32),
        },
        "img": {"wmod": nrm((style_dim, channels_out), style_dim),
                "w_t": nrm((img_channels, channels_out), channels_out),
                "bias": nrm((img_channels, 1), img_channels)},
    }
    # TODO(synk): BatchNorm layers inside EESP are identity at default eval-time
    # init (zero-mean / unit-var stats) and are therefore folded away.
    return params


# ----------------------------------------------------------------------------
if __name__ == "__main__":
    key = jax.random.PRNGKey(0)
    B, Cin, Cout, S, H0 = 2, 8, 12, 16, 8
    kp, kh, ks, ke, kn1, kn2 = jax.random.split(key, 6)

    params = init_params(kp, Cin, Cout, S)
    hidden = jax.random.normal(kh, (B, Cin, H0, H0), jnp.float32)
    style = jax.random.normal(ks, (B, S), jnp.float32)
    en_feat = jax.random.normal(ke, (B, Cout, 2 * H0, 2 * H0), jnp.float32)
    # noise=[None, None] in PyTorch samples random noise; we pass deterministic
    # noise maps instead of hidden randomness.
    noise1 = jax.random.normal(kn1, (B, 2 * H0, 2 * H0), jnp.float32)
    noise2 = jax.random.normal(kn2, (B, 2 * H0, 2 * H0), jnp.float32)

    fwd = jax.jit(lambda p, h, s, e, n1, n2:
                  mobile_synthesis_block_v6(p, h, s, e, [n1, n2]))
    out_hidden, out_img = fwd(params, hidden, style, en_feat, noise1, noise2)
    jax.block_until_ready((out_hidden, out_img))

    assert out_hidden.shape == (B, Cout, 2 * H0, 2 * H0)
    assert out_img.shape == (B, 12, 2 * H0, 2 * H0)
    assert jnp.all(jnp.isfinite(out_hidden)) and jnp.all(jnp.isfinite(out_img))
    print("KERNEL_OK")
</pallas_src>

<mosaic_0001>
module attributes {stable_mosaic.version = 11 : i64} {
  func.func @_msb_kernel(%arg0: i32, %arg1: memref<1x2x256xf32, #tpu.memory_space<vmem>>, %arg2: memref<1x12x256xf32, #tpu.memory_space<vmem>>, %arg3: memref<1x1x256xf32, #tpu.memory_space<vmem>>, %arg4: memref<1x1x256xf32, #tpu.memory_space<vmem>>, %arg5: memref<1x12x1xf32, #tpu.memory_space<vmem>>, %arg6: memref<1x2x1xf32, #tpu.memory_space<vmem>>, %arg7: memref<1x12x1xf32, #tpu.memory_space<vmem>>, %arg8: memref<1x12x1xf32, #tpu.memory_space<vmem>>, %arg9: memref<1x12x1xf32, #tpu.memory_space<vmem>>, %arg10: memref<1x12x1xf32, #tpu.memory_space<vmem>>, %arg11: memref<27x1x256xf32, #tpu.memory_space<vmem>>, %arg12: memref<9x2x1xf32, #tpu.memory_space<vmem>>, %arg13: memref<12x2xf32, #tpu.memory_space<vmem>>, %arg14: memref<12x1xf32, #tpu.memory_space<vmem>>, %arg15: memref<9x12x1xf32, #tpu.memory_space<vmem>>, %arg16: memref<12x12xf32, #tpu.memory_space<vmem>>, %arg17: memref<12x1xf32, #tpu.memory_space<vmem>>, %arg18: memref<3x4x12xf32, #tpu.memory_space<vmem>>, %arg19: memref<3x4x1xf32, #tpu.memory_space<vmem>>, %arg20: memref<81x4x1xf32, #tpu.memory_space<vmem>>, %arg21: memref<9x12x4xf32, #tpu.memory_space<vmem>>, %arg22: memref<9x4x1xf32, #tpu.memory_space<vmem>>, %arg23: memref<3x12x1xf32, #tpu.memory_space<vmem>>, %arg24: memref<12x12xf32, #tpu.memory_space<vmem>>, %arg25: memref<12x1xf32, #tpu.memory_space<vmem>>, %arg26: memref<1x12x256xf32, #tpu.memory_space<vmem>>, %arg27: memref<1x12x256xf32, #tpu.memory_space<vmem>>) attributes {dimension_semantics = [#tpu.dimension_semantics<parallel>], iteration_bounds = array<i64: 2>, scalar_prefetch = 0 : i64, scratch_operands = 0 : i64, tpu.core_type = #tpu.core_type<tc>, window_params = [{transform_indices = @transform_0, window_bounds = array<i64: 1, 2, 256>}, {transform_indices = @transform_1, window_bounds = array<i64: 1, 12, 256>}, {transform_indices = @transform_2, window_bounds = array<i64: 1, 1, 256>}, {transform_indices = @transform_3, window_bounds = array<i64: 1, 1, 256>}, {transform_indices = @transform_4, window_bounds = array<i64: 1, 12, 1>}, {transform_indices = @transform_5, window_bounds = array<i64: 1, 2, 1>}, {transform_indices = @transform_6, window_bounds = array<i64: 1, 12, 1>}, {transform_indices = @transform_7, window_bounds = array<i64: 1, 12, 1>}, {transform_indices = @transform_8, window_bounds = array<i64: 1, 12, 1>}, {transform_indices = @transform_9, window_bounds = array<i64: 1, 12, 1>}, {pipeline_mode = #tpu.pipeline_mode<synchronous>, transform_indices = @transform_10, window_bounds = array<i64: 27, 1, 256>}, {pipeline_mode = #tpu.pipeline_mode<synchronous>, transform_indices = @transform_11, window_bounds = array<i64: 9, 2, 1>}, {pipeline_mode = #tpu.pipeline_mode<synchronous>, transform_indices = @transform_12, window_bounds = array<i64: 12, 2>}, {pipeline_mode = #tpu.pipeline_mode<synchronous>, transform_indices = @transform_13, window_bounds = array<i64: 12, 1>}, {pipeline_mode = #tpu.pipeline_mode<synchronous>, transform_indices = @transform_14, window_bounds = array<i64: 9, 12, 1>}, {pipeline_mode = #tpu.pipeline_mode<synchronous>, transform_indices = @transform_15, window_bounds = array<i64: 12, 12>}, {pipeline_mode = #tpu.pipeline_mode<synchronous>, transform_indices = @transform_16, window_bounds = array<i64: 12, 1>}, {pipeline_mode = #tpu.pipeline_mode<synchronous>, transform_indices = @transform_17, window_bounds = array<i64: 3, 4, 12>}, {pipeline_mode = #tpu.pipeline_mode<synchronous>, transform_indices = @transform_18, window_bounds = array<i64: 3, 4, 1>}, {pipeline_mode = #tpu.pipeline_mode<synchronous>, transform_indices = @transform_19, window_bounds = array<i64: 81, 4, 1>}, {pipeline_mode = #tpu.pipeline_mode<synchronous>, transform_indices = @transform_20, window_bounds = array<i64: 9, 12, 4>}, {pipeline_mode = #tpu.pipeline_mode<synchronous>, transform_indices = @transform_21, window_bounds = array<i64: 9, 4, 1>}, {pipeline_mode = #tpu.pipeline_mode<synchronous>, transform_indices = @transform_22, window_bounds = array<i64: 3, 12, 1>}, {pipeline_mode = #tpu.pipeline_mode<synchronous>, transform_indices = @transform_23, window_bounds = array<i64: 12, 12>}, {pipeline_mode = #tpu.pipeline_mode<synchronous>, transform_indices = @transform_24, window_bounds = array<i64: 12, 1>}, {transform_indices = @transform_25, window_bounds = array<i64: 1, 12, 256>}, {transform_indices = @transform_26, window_bounds = array<i64: 1, 12, 256>}]} {
    %c0 = arith.constant 0 : index
    %c0_0 = arith.constant 0 : index
    %c0_1 = arith.constant 0 : index
    %0 = vector.load %arg1[%c0, %c0_0, %c0_1] : memref<1x2x256xf32, #tpu.memory_space<vmem>>, vector<1x2x256xf32>
    %1 = vector.shape_cast %0 : vector<1x2x256xf32> to vector<2x256xf32>
    %c17_i32 = arith.constant 17 : i32
    %2 = tpu.dynamic_rotate %1 by %c17_i32 dim 1 : vector<2x256xf32>, i32 -> vector<2x256xf32>
    %c0_2 = arith.constant 0 : index
    %c0_3 = arith.constant 0 : index
    %c0_4 = arith.constant 0 : index
    %3 = vector.load %arg11[%c0_2, %c0_3, %c0_4] : memref<27x1x256xf32, #tpu.memory_space<vmem>>, vector<1x1x256xf32>
    %4 = vector.shape_cast %3 : vector<1x1x256xf32> to vector<1x256xf32>
    %5 = vector.broadcast %4 : vector<1x256xf32> to vector<2x256xf32>
    %6 = arith.mulf %2, %5 : vector<2x256xf32>
    %c0_5 = arith.constant 0 : index
    %c0_6 = arith.constant 0 : index
    %c0_7 = arith.constant 0 : index
    %7 = vector.load %arg12[%c0_5, %c0_6, %c0_7] : memref<9x2x1xf32, #tpu.memory_space<vmem>>, vector<1x2x1xf32>
    %8 = vector.shape_cast %7 : vector<1x2x1xf32> to vector<2x1xf32>
    %9 = vector.broadcast %8 : vector<2x1xf32> to vector<2x256xf32>
    %10 = arith.mulf %6, %9 : vector<2x256xf32>
    %c16_i32 = arith.constant 16 : i32
    %11 = tpu.dynamic_rotate %1 by %c16_i32 dim 1 : vector<2x256xf32>, i32 -> vector<2x256xf32>
    %c1 = arith.constant 1 : index
    %c0_8 = arith.constant 0 : index
    %c0_9 = arith.constant 0 : index
    %12 = vector.load %arg11[%c1, %c0_8, %c0_9] : memref<27x1x256xf32, #tpu.memory_space<vmem>>, vector<1x1x256xf32>
    %13 = vector.shape_cast %12 : vector<1x1x256xf32> to vector<1x256xf32>
    %14 = vector.broadcast %13 : vector<1x256xf32> to vector<2x256xf32>
    %15 = arith.mulf %11, %14 : vector<2x256xf32>
    %c1_10 = arith.constant 1 : index
    %c0_11 = arith.constant 0 : index
    %c0_12 = arith.constant 0 : index
    %16 = vector.load %arg12[%c1_10, %c0_11, %c0_12] : memref<9x2x1xf32, #tpu.memory_space<vmem>>, vector<1x2x1xf32>
    %17 = vector.shape_cast %16 : vector<1x2x1xf32> to vector<2x1xf32>
    %18 = vector.broadcast %17 : vector<2x1xf32> to vector<2x256xf32>
    %19 = arith.mulf %15, %18 : vector<2x256xf32>
    %20 = arith.addf %10, %19 : vector<2x256xf32>
    %c15_i32 = arith.constant 15 : i32
    %21 = tpu.dynamic_rotate %1 by %c15_i32 dim 1 : vector<2x256xf32>, i32 -> vector<2x256xf32>
    %c2 = arith.constant 2 : index
    %c0_13 = arith.constant 0 : index
    %c0_14 = arith.constant 0 : index
    %22 = vector.load %arg11[%c2, %c0_13, %c0_14] : memref<27x1x256xf32, #tpu.memory_space<vmem>>, vector<1x1x256xf32>
    %23 = vector.shape_cast %22 : vector<1x1x256xf32> to vector<1x256xf32>
    %24 = vector.broadcast %23 : vector<1x256xf32> to vector<2x256xf32>
    %25 = arith.mulf %21, %24 : vector<2x256xf32>
    %c2_15 = arith.constant 2 : index
    %c0_16 = arith.constant 0 : index
    %c0_17 = arith.constant 0 : index
    %26 = vector.load %arg12[%c2_15, %c0_16, %c0_17] : memref<9x2x1xf32, #tpu.memory_space<vmem>>, vector<1x2x1xf32>
    %27 = vector.shape_cast %26 : vector<1x2x1xf32> to vector<2x1xf32>
    %28 = vector.broadcast %27 : vector<2x1xf32> to vector<2x256xf32>
    %29 = arith.mulf %25, %28 : vector<2x256xf32>
    %30 = arith.addf %20, %29 : vector<2x256xf32>
    %c1_i32 = arith.constant 1 : i32
    %31 = tpu.dynamic_rotate %1 by %c1_i32 dim 1 : vector<2x256xf32>, i32 -> vector<2x256xf32>
    %c3 = arith.constant 3 : index
    %c0_18 = arith.constant 0 : index
    %c0_19 = arith.constant 0 : index
    %32 = vector.load %arg11[%c3, %c0_18, %c0_19] : memref<27x1x256xf32, #tpu.memory_space<vmem>>, vector<1x1x256xf32>
    %33 = vector.shape_cast %32 : vector<1x1x256xf32> to vector<1x256xf32>
    %34 = vector.broadcast %33 : vector<1x256xf32> to vector<2x256xf32>
    %35 = arith.mulf %31, %34 : vector<2x256xf32>
    %c3_20 = arith.constant 3 : index
    %c0_21 = arith.constant 0 : index
    %c0_22 = arith.constant 0 : index
    %36 = vector.load %arg12[%c3_20, %c0_21, %c0_22] : memref<9x2x1xf32, #tpu.memory_space<vmem>>, vector<1x2x1xf32>
    %37 = vector.shape_cast %36 : vector<1x2x1xf32> to vector<2x1xf32>
    %38 = vector.broadcast %37 : vector<2x1xf32> to vector<2x256xf32>
    %39 = arith.mulf %35, %38 : vector<2x256xf32>
    %40 = arith.addf %30, %39 : vector<2x256xf32>
    %c4 = arith.constant 4 : index
    %c0_23 = arith.constant 0 : index
    %c0_24 = arith.constant 0 : index
    %41 = vector.load %arg11[%c4, %c0_23, %c0_24] : memref<27x1x256xf32, #tpu.memory_space<vmem>>, vector<1x1x256xf32>
    %42 = vector.shape_cast %41 : vector<1x1x256xf32> to vector<1x256xf32>
    %43 = vector.broadcast %42 : vector<1x256xf32> to vector<2x256xf32>
    %44 = arith.mulf %1, %43 : vector<2x256xf32>
    %c4_25 = arith.constant 4 : index
    %c0_26 = arith.constant 0 : index
    %c0_27 = arith.constant 0 : index
    %45 = vector.load %arg12[%c4_25, %c0_26, %c0_27] : memref<9x2x1xf32, #tpu.memory_space<vmem>>, vector<1x2x1xf32>
    %46 = vector.shape_cast %45 : vector<1x2x1xf32> to vector<2x1xf32>
    %47 = vector.broadcast %46 : vector<2x1xf32> to vector<2x256xf32>
    %48 = arith.mulf %44, %47 : vector<2x256xf32>
    %49 = arith.addf %40, %48 : vector<2x256xf32>
    %c255_i32 = arith.constant 255 : i32
    %50 = tpu.dynamic_rotate %1 by %c255_i32 dim 1 : vector<2x256xf32>, i32 -> vector<2x256xf32>
    %c5 = arith.constant 5 : index
    %c0_28 = arith.constant 0 : index
    %c0_29 = arith.constant 0 : index
    %51 = vector.load %arg11[%c5, %c0_28, %c0_29] : memref<27x1x256xf32, #tpu.memory_space<vmem>>, vector<1x1x256xf32>
    %52 = vector.shape_cast %51 : vector<1x1x256xf32> to vector<1x256xf32>
    %53 = vector.broadcast %52 : vector<1x256xf32> to vector<2x256xf32>
    %54 = arith.mulf %50, %53 : vector<2x256xf32>
    %c5_30 = arith.constant 5 : index
    %c0_31 = arith.constant 0 : index
    %c0_32 = arith.constant 0 : index
    %55 = vector.load %arg12[%c5_30, %c0_31, %c0_32] : memref<9x2x1xf32, #tpu.memory_space<vmem>>, vector<1x2x1xf32>
    %56 = vector.shape_cast %55 : vector<1x2x1xf32> to vector<2x1xf32>
    %57 = vector.broadcast %56 : vector<2x1xf32> to vector<2x256xf32>
    %58 = arith.mulf %54, %57 : vector<2x256xf32>
    %59 = arith.addf %49, %58 : vector<2x256xf32>
    %c241_i32 = arith.constant 241 : i32
    %60 = tpu.dynamic_rotate %1 by %c241_i32 dim 1 : vector<2x256xf32>, i32 -> vector<2x256xf32>
    %c6 = arith.constant 6 : index
    %c0_33 = arith.constant 0 : index
    %c0_34 = arith.constant 0 : index
    %61 = vector.load %arg11[%c6, %c0_33, %c0_34] : memref<27x1x256xf32, #tpu.memory_space<vmem>>, vector<1x1x256xf32>
    %62 = vector.shape_cast %61 : vector<1x1x256xf32> to vector<1x256xf32>
    %63 = vector.broadcast %62 : vector<1x256xf32> to vector<2x256xf32>
    %64 = arith.mulf %60, %63 : vector<2x256xf32>
    %c6_35 = arith.constant 6 : index
    %c0_36 = arith.constant 0 : index
    %c0_37 = arith.constant 0 : index
    %65 = vector.load %arg12[%c6_35, %c0_36, %c0_37] : memref<9x2x1xf32, #tpu.memory_space<vmem>>, vector<1x2x1xf32>
    %66 = vector.shape_cast %65 : vector<1x2x1xf32> to vector<2x1xf32>
    %67 = vector.broadcast %66 : vector<2x1xf32> to vector<2x256xf32>
    %68 = arith.mulf %64, %67 : vector<2x256xf32>
    %69 = arith.addf %59, %68 : vector<2x256xf32>
    %c240_i32 = arith.constant 240 : i32
    %70 = tpu.dynamic_rotate %1 by %c240_i32 dim 1 : vector<2x256xf32>, i32 -> vector<2x256xf32>
    %c7 = arith.constant 7 : index
    %c0_38 = arith.constant 0 : index
    %c0_39 = arith.constant 0 : index
    %71 = vector.load %arg11[%c7, %c0_38, %c0_39] : memref<27x1x256xf32, #tpu.memory_space<vmem>>, vector<1x1x256xf32>
    %72 = vector.shape_cast %71 : vector<1x1x256xf32> to vector<1x256xf32>
    %73 = vector.broadcast %72 : vector<1x256xf32> to vector<2x256xf32>
    %74 = arith.mulf %70, %73 : vector<2x256xf32>
    %c7_40 = arith.constant 7 : index
    %c0_41 = arith.constant 0 : index
    %c0_42 = arith.constant 0 : index
    %75 = vector.load %arg12[%c7_40, %c0_41, %c0_42] : memref<9x2x1xf32, #tpu.memory_space<vmem>>, vector<1x2x1xf32>
    %76 = vector.shape_cast %75 : vector<1x2x1xf32> to vector<2x1xf32>
    %77 = vector.broadcast %76 : vector<2x1xf32> to vector<2x256xf32>
    %78 = arith.mulf %74, %77 : vector<2x256xf32>
    %79 = arith.addf %69, %78 : vector<2x256xf32>
    %c239_i32 = arith.constant 239 : i32
    %80 = tpu.dynamic_rotate %1 by %c239_i32 dim 1 : vector<2x256xf32>, i32 -> vector<2x256xf32>
    %c8 = arith.constant 8 : index
    %c0_43 = arith.constant 0 : index
    %c0_44 = arith.constant 0 : index
    %81 = vector.load %arg11[%c8, %c0_43, %c0_44] : memref<27x1x256xf32, #tpu.memory_space<vmem>>, vector<1x1x256xf32>
    %82 = vector.shape_cast %81 : vector<1x1x256xf32> to vector<1x256xf32>
    %83 = vector.broadcast %82 : vector<1x256xf32> to vector<2x256xf32>
    %84 = arith.mulf %80, %83 : vector<2x256xf32>
    %c8_45 = arith.constant 8 : index
    %c0_46 = arith.constant 0 : index
    %c0_47 = arith.constant 0 : index
    %85 = vector.load %arg12[%c8_45, %c0_46, %c0_47] : memref<9x2x1xf32, #tpu.memory_space<vmem>>, vector<1x2x1xf32>
    %86 = vector.shape_cast %85 : vector<1x2x1xf32> to vector<2x1xf32>
    %87 = vector.broadcast %86 : vector<2x1xf32> to vector<2x256xf32>
    %88 = arith.mulf %84, %87 : vector<2x256xf32>
    %89 = arith.addf %79, %88 : vector<2x256xf32>
    %c0_48 = arith.constant 0 : index
    %c0_49 = arith.constant 0 : index
    %c0_50 = arith.constant 0 : index
    %90 = vector.load %arg6[%c0_48, %c0_49, %c0_50] : memref<1x2x1xf32, #tpu.memory_space<vmem>>, vector<1x2x1xf32>
    %91 = vector.shape_cast %90 : vector<1x2x1xf32> to vector<2x1xf32>
    %92 = vector.broadcast %91 : vector<2x1xf32> to vector<2x256xf32>
    %93 = arith.mulf %89, %92 : vector<2x256xf32>
    %c0_51 = arith.constant 0 : index
    %c0_52 = arith.constant 0 : index
    %94 = vector.load %arg13[%c0_51, %c0_52] : memref<12x2xf32, #tpu.memory_space<vmem>>, vector<12x2xf32>
    %cst = arith.constant dense<0.000000e+00> : vector<12x256xf32>
    %95 = tpu.matmul %94, %93, %cst {dimension_numbers = #tpu.dot_dimension_numbers<[1], [0], [0], [1], [0, 0, 1, 1], [], []>} : vector<12x2xf32>, vector<2x256xf32>, vector<12x256xf32> -> vector<12x256xf32>
    %c0_53 = arith.constant 0 : index
    %c0_54 = arith.constant 0 : index
    %c0_55 = arith.constant 0 : index
    %96 = vector.load %arg7[%c0_53, %c0_54, %c0_55] : memref<1x12x1xf32, #tpu.memory_space<vmem>>, vector<1x12x1xf32>
    %97 = vector.shape_cast %96 : vector<1x12x1xf32> to vector<12x1xf32>
    %98 = vector.broadcast %97 : vector<12x1xf32> to vector<12x256xf32>
    %99 = arith.mulf %95, %98 : vector<12x256xf32>
    %c0_56 = arith.constant 0 : index
    %c0_57 = arith.constant 0 : index
    %c0_58 = arith.constant 0 : index
    %100 = vector.load %arg3[%c0_56, %c0_57, %c0_58] : memref<1x1x256xf32, #tpu.memory_space<vmem>>, vector<1x1x256xf32>
    %101 = vector.shape_cast %100 : vector<1x1x256xf32> to vector<1x256xf32>
    %102 = vector.broadcast %101 : vector<1x256xf32> to vector<12x256xf32>
    %103 = arith.addf %99, %102 : vector<12x256xf32>
    %c0_59 = arith.constant 0 : index
    %c0_60 = arith.constant 0 : index
    %104 = vector.load %arg14[%c0_59, %c0_60] : memref<12x1xf32, #tpu.memory_space<vmem>>, vector<12x1xf32>
    %105 = vector.broadcast %104 : vector<12x1xf32> to vector<12x256xf32>
    %106 = arith.addf %103, %105 : vector<12x256xf32>
    %cst_61 = arith.constant 0.000000e+00 : f32
    %107 = vector.broadcast %cst_61 : f32 to vector<12x256xf32>
    %108 = arith.cmpf oge, %106, %107 : vector<12x256xf32>
    %cst_62 = arith.constant 2.000000e-01 : f32
    %109 = vector.broadcast %cst_62 : f32 to vector<12x256xf32>
    %110 = arith.mulf %106, %109 : vector<12x256xf32>
    %111 = arith.select %108, %106, %110 : vector<12x256xi1>, vector<12x256xf32>
    %cst_63 = arith.constant 1.41421354 : f32
    %112 = vector.broadcast %cst_63 : f32 to vector<12x256xf32>
    %113 = arith.mulf %111, %112 : vector<12x256xf32>
    %c0_64 = arith.constant 0 : index
    %c0_65 = arith.constant 0 : index
    %c0_66 = arith.constant 0 : index
    %114 = vector.load %arg2[%c0_64, %c0_65, %c0_66] : memref<1x12x256xf32, #tpu.memory_space<vmem>>, vector<1x12x256xf32>
    %115 = vector.shape_cast %114 : vector<1x12x256xf32> to vector<12x256xf32>
    %c0_67 = arith.constant 0 : index
    %c0_68 = arith.constant 0 : index
    %c0_69 = arith.constant 0 : index
    %116 = vector.load %arg5[%c0_67, %c0_68, %c0_69] : memref<1x12x1xf32, #tpu.memory_space<vmem>>, vector<1x12x1xf32>
    %117 = vector.shape_cast %116 : vector<1x12x1xf32> to vector<12x1xf32>
    %118 = vector.broadcast %117 : vector<12x1xf32> to vector<12x256xf32>
    %119 = arith.mulf %115, %118 : vector<12x256xf32>
    %120 = arith.addf %113, %119 : vector<12x256xf32>
    %c0_70 = arith.constant 0 : index
    %c0_71 = arith.constant 0 : index
    %c0_72 = arith.constant 0 : index
    %121 = vector.load %arg18[%c0_70, %c0_71, %c0_72] : memref<3x4x12xf32, #tpu.memory_space<vmem>>, vector<1x4x12xf32>
    %122 = vector.shape_cast %121 : vector<1x4x12xf32> to vector<4x12xf32>
    %cst_73 = arith.constant dense<0.000000e+00> : vector<4x256xf32>
    %123 = tpu.matmul %122, %120, %cst_73 {dimension_numbers = #tpu.dot_dimension_numbers<[1], [0], [0], [1], [0, 0, 1, 1], [], []>} : vector<4x12xf32>, vector<12x256xf32>, vector<4x256xf32> -> vector<4x256xf32>
    %c0_74 = arith.constant 0 : index
    %c0_75 = arith.constant 0 : index
    %c0_76 = arith.constant 0 : index
    %124 = vector.load %arg19[%c0_74, %c0_75, %c0_76] : memref<3x4x1xf32, #tpu.memory_space<vmem>>, vector<1x4x1xf32>
    %125 = vector.shape_cast %124 : vector<1x4x1xf32> to vector<4x1xf32>
    %cst_77 = arith.constant 0.000000e+00 : f32
    %126 = vector.broadcast %cst_77 : f32 to vector<4x256xf32>
    %127 = arith.cmpf oge, %123, %126 : vector<4x256xf32>
    %128 = vector.broadcast %125 : vector<4x1xf32> to vector<4x256xf32>
    %129 = arith.mulf %123, %128 : vector<4x256xf32>
    %130 = arith.select %127, %123, %129 : vector<4x256xi1>, vector<4x256xf32>
    %c17_i32_78 = arith.constant 17 : i32
    %131 = tpu.dynamic_rotate %130 by %c17_i32_78 dim 1 : vector<4x256xf32>, i32 -> vector<4x256xf32>
    %c0_79 = arith.constant 0 : index
    %c0_80 = arith.constant 0 : index
    %c0_81 = arith.constant 0 : index
    %132 = vector.load %arg11[%c0_79, %c0_80, %c0_81] : memref<27x1x256xf32, #tpu.memory_space<vmem>>, vector<1x1x256xf32>
    %133 = vector.shape_cast %132 : vector<1x1x256xf32> to vector<1x256xf32>
    %134 = vector.broadcast %133 : vector<1x256xf32> to vector<4x256xf32>
    %135 = arith.mulf %131, %134 : vector<4x256xf32>
    %c0_82 = arith.constant 0 : index
    %c0_83 = arith.constant 0 : index
    %c0_84 = arith.constant 0 : index
    %136 = vector.load %arg20[%c0_82, %c0_83, %c0_84] : memref<81x4x1xf32, #tpu.memory_space<vmem>>, vector<1x4x1xf32>
    %137 = vector.shape_cast %136 : vector<1x4x1xf32> to vector<4x1xf32>
    %138 = vector.broadcast %137 : vector<4x1xf32> to vector<4x256xf32>
    %139 = arith.mulf %135, %138 : vector<4x256xf32>
    %c16_i32_85 = arith.constant 16 : i32
    %140 = tpu.dynamic_rotate %130 by %c16_i32_85 dim 1 : vector<4x256xf32>, i32 -> vector<4x256xf32>
    %c1_86 = arith.constant 1 : index
    %c0_87 = arith.constant 0 : index
    %c0_88 = arith.constant 0 : index
    %141 = vector.load %arg11[%c1_86, %c0_87, %c0_88] : memref<27x1x256xf32, #tpu.memory_space<vmem>>, vector<1x1x256xf32>
    %142 = vector.shape_cast %141 : vector<1x1x256xf32> to vector<1x256xf32>
    %143 = vector.broadcast %142 : vector<1x256xf32> to vector<4x256xf32>
    %144 = arith.mulf %140, %143 : vector<4x256xf32>
    %c1_89 = arith.constant 1 : index
    %c0_90 = arith.constant 0 : index
    %c0_91 = arith.constant 0 : index
    %145 = vector.load %arg20[%c1_89, %c0_90, %c0_91] : memref<81x4x1xf32, #tpu.memory_space<vmem>>, vector<1x4x1xf32>
    %146 = vector.shape_cast %145 : vector<1x4x1xf32> to vector<4x1xf32>
    %147 = vector.broadcast %146 : vector<4x1xf32> to vector<4x256xf32>
    %148 = arith.mulf %144, %147 : vector<4x256xf32>
    %149 = arith.addf %139, %148 : vector<4x256xf32>
    %c15_i32_92 = arith.constant 15 : i32
    %150 = tpu.dynamic_rotate %130 by %c15_i32_92 dim 1 : vector<4x256xf32>, i32 -> vector<4x256xf32>
    %c2_93 = arith.constant 2 : index
    %c0_94 = arith.constant 0 : index
    %c0_95 = arith.constant 0 : index
    %151 = vector.load %arg11[%c2_93, %c0_94, %c0_95] : memref<27x1x256xf32, #tpu.memory_space<vmem>>, vector<1x1x256xf32>
    %152 = vector.shape_cast %151 : vector<1x1x256xf32> to vector<1x256xf32>
    %153 = vector.broadcast %152 : vector<1x256xf32> to vector<4x256xf32>
    %154 = arith.mulf %150, %153 : vector<4x256xf32>
    %c2_96 = arith.constant 2 : index
    %c0_97 = arith.constant 0 : index
    %c0_98 = arith.constant 0 : index
    %155 = vector.load %arg20[%c2_96, %c0_97, %c0_98] : memref<81x4x1xf32, #tpu.memory_space<vmem>>, vector<1x4x1xf32>
    %156 = vector.shape_cast %155 : vector<1x4x1xf32> to vector<4x1xf32>
    %157 = vector.broadcast %156 : vector<4x1xf32> to vector<4x256xf32>
    %158 = arith.mulf %154, %157 : vector<4x256xf32>
    %159 = arith.addf %149, %158 : vector<4x256xf32>
    %c1_i32_99 = arith.constant 1 : i32
    %160 = tpu.dynamic_rotate %130 by %c1_i32_99 dim 1 : vector<4x256xf32>, i32 -> vector<4x256xf32>
    %c3_100 = arith.constant 3 : index
    %c0_101 = arith.constant 0 : index
    %c0_102 = arith.constant 0 : index
    %161 = vector.load %arg11[%c3_100, %c0_101, %c0_102] : memref<27x1x256xf32, #tpu.memory_space<vmem>>, vector<1x1x256xf32>
    %162 = vector.shape_cast %161 : vector<1x1x256xf32> to vector<1x256xf32>
    %163 = vector.broadcast %162 : vector<1x256xf32> to vector<4x256xf32>
    %164 = arith.mulf %160, %163 : vector<4x256xf32>
    %c3_103 = arith.constant 3 : index
    %c0_104 = arith.constant 0 : index
    %c0_105 = arith.constant 0 : index
    %165 = vector.load %arg20[%c3_103, %c0_104, %c0_105] : memref<81x4x1xf32, #tpu.memory_space<vmem>>, vector<1x4x1xf32>
    %166 = vector.shape_cast %165 : vector<1x4x1xf32> to vector<4x1xf32>
    %167 = vector.broadcast %166 : vector<4x1xf32> to vector<4x256xf32>
    %168 = arith.mulf %164, %167 : vector<4x256xf32>
    %169 = arith.addf %159, %168 : vector<4x256xf32>
    %c4_106 = arith.constant 4 : index
    %c0_107 = arith.constant 0 : index
    %c0_108 = arith.constant 0 : index
    %170 = vector.load %arg11[%c4_106, %c0_107, %c0_108] : memref<27x1x256xf32, #tpu.memory_space<vmem>>, vector<1x1x256xf32>
    %171 = vector.shape_cast %170 : vector<1x1x256xf32> to vector<1x256xf32>
    %172 = vector.broadcast %171 : vector<1x256xf32> to vector<4x256xf32>
    %173 = arith.mulf %130, %172 : vector<4x256xf32>
    %c4_109 = arith.constant 4 : index
    %c0_110 = arith.constant 0 : index
    %c0_111 = arith.constant 0 : index
    %174 = vector.load %arg20[%c4_109, %c0_110, %c0_111] : memref<81x4x1xf32, #tpu.memory_space<vmem>>, vector<1x4x1xf32>
    %175 = vector.shape_cast %174 : vector<1x4x1xf32> to vector<4x1xf32>
    %176 = vector.broadcast %175 : vector<4x1xf32> to vector<4x256xf32>
    %177 = arith.mulf %173, %176 : vector<4x256xf32>
    %178 = arith.addf %169, %177 : vector<4x256xf32>
    %c255_i32_112 = arith.constant 255 : i32
    %179 = tpu.dynamic_rotate %130 by %c255_i32_112 dim 1 : vector<4x256xf32>, i32 -> vector<4x256xf32>
    %c5_113 = arith.constant 5 : index
    %c0_114 = arith.constant 0 : index
    %c0_115 = arith.constant 0 : index
    %180 = vector.load %arg11[%c5_113, %c0_114, %c0_115] : memref<27x1x256xf32, #tpu.memory_space<vmem>>, vector<1x1x256xf32>
    %181 = vector.shape_cast %180 : vector<1x1x256xf32> to vector<1x256xf32>
    %182 = vector.broadcast %181 : vector<1x256xf32> to vector<4x256xf32>
    %183 = arith.mulf %179, %182 : vector<4x256xf32>
    %c5_116 = arith.constant 5 : index
    %c0_117 = arith.constant 0 : index
    %c0_118 = arith.constant 0 : index
    %184 = vector.load %arg20[%c5_116, %c0_117, %c0_118] : memref<81x4x1xf32, #tpu.memory_space<vmem>>, vector<1x4x1xf32>
    %185 = vector.shape_cast %184 : vector<1x4x1xf32> to vector<4x1xf32>
    %186 = vector.broadcast %185 : vector<4x1xf32> to vector<4x256xf32>
    %187 = arith.mulf %183, %186 : vector<4x256xf32>
    %188 = arith.addf %178, %187 : vector<4x256xf32>
    %c241_i32_119 = arith.constant 241 : i32
    %189 = tpu.dynamic_rotate %130 by %c241_i32_119 dim 1 : vector<4x256xf32>, i32 -> vector<4x256xf32>
    %c6_120 = arith.constant 6 : index
    %c0_121 = arith.constant 0 : index
    %c0_122 = arith.constant 0 : index
    %190 = vector.load %arg11[%c6_120, %c0_121, %c0_122] : memref<27x1x256xf32, #tpu.memory_space<vmem>>, vector<1x1x256xf32>
    %191 = vector.shape_cast %190 : vector<1x1x256xf32> to vector<1x256xf32>
    %192 = vector.broadcast %191 : vector<1x256xf32> to vector<4x256xf32>
    %193 = arith.mulf %189, %192 : vector<4x256xf32>
    %c6_123 = arith.constant 6 : index
    %c0_124 = arith.constant 0 : index
    %c0_125 = arith.constant 0 : index
    %194 = vector.load %arg20[%c6_123, %c0_124, %c0_125] : memref<81x4x1xf32, #tpu.memory_space<vmem>>, vector<1x4x1xf32>
    %195 = vector.shape_cast %194 : vector<1x4x1xf32> to vector<4x1xf32>
    %196 = vector.broadcast %195 : vector<4x1xf32> to vector<4x256xf32>
    %197 = arith.mulf %193, %196 : vector<4x256xf32>
    %198 = arith.addf %188, %197 : vector<4x256xf32>
    %c240_i32_126 = arith.constant 240 : i32
    %199 = tpu.dynamic_rotate %130 by %c240_i32_126 dim 1 : vector<4x256xf32>, i32 -> vector<4x256xf32>
    %c7_127 = arith.constant 7 : index
    %c0_128 = arith.constant 0 : index
    %c0_129 = arith.constant 0 : index
    %200 = vector.load %arg11[%c7_127, %c0_128, %c0_129] : memref<27x1x256xf32, #tpu.memory_space<vmem>>, vector<1x1x256xf32>
    %201 = vector.shape_cast %200 : vector<1x1x256xf32> to vector<1x256xf32>
    %202 = vector.broadcast %201 : vector<1x256xf32> to vector<4x256xf32>
    %203 = arith.mulf %199, %202 : vector<4x256xf32>
    %c7_130 = arith.constant 7 : index
    %c0_131 = arith.constant 0 : index
    %c0_132 = arith.constant 0 : index
    %204 = vector.load %arg20[%c7_130, %c0_131, %c0_132] : memref<81x4x1xf32, #tpu.memory_space<vmem>>, vector<1x4x1xf32>
    %205 = vector.shape_cast %204 : vector<1x4x1xf32> to vector<4x1xf32>
    %206 = vector.broadcast %205 : vector<4x1xf32> to vector<4x256xf32>
    %207 = arith.mulf %203, %206 : vector<4x256xf32>
    %208 = arith.addf %198, %207 : vector<4x256xf32>
    %c239_i32_133 = arith.constant 239 : i32
    %209 = tpu.dynamic_rotate %130 by %c239_i32_133 dim 1 : vector<4x256xf32>, i32 -> vector<4x256xf32>
    %c8_134 = arith.constant 8 : index
    %c0_135 = arith.constant 0 : index
    %c0_136 = arith.constant 0 : index
    %210 = vector.load %arg11[%c8_134, %c0_135, %c0_136] : memref<27x1x256xf32, #tpu.memory_space<vmem>>, vector<1x1x256xf32>
    %211 = vector.shape_cast %210 : vector<1x1x256xf32> to vector<1x256xf32>
    %212 = vector.broadcast %211 : vector<1x256xf32> to vector<4x256xf32>
    %213 = arith.mulf %209, %212 : vector<4x256xf32>
    %c8_137 = arith.constant 8 : index
    %c0_138 = arith.constant 0 : index
    %c0_139 = arith.constant 0 : index
    %214 = vector.load %arg20[%c8_137, %c0_138, %c0_139] : memref<81x4x1xf32, #tpu.memory_space<vmem>>, vector<1x4x1xf32>
    %215 = vector.shape_cast %214 : vector<1x4x1xf32> to vector<4x1xf32>
    %216 = vector.broadcast %215 : vector<4x1xf32> to vector<4x256xf32>
    %217 = arith.mulf %213, %216 : vector<4x256xf32>
    %218 = arith.addf %208, %217 : vector<4x256xf32>
    %c0_140 = arith.constant 0 : index
    %c0_141 = arith.constant 0 : index
    %c0_142 = arith.constant 0 : index
    %219 = vector.load %arg22[%c0_140, %c0_141, %c0_142] : memref<9x4x1xf32, #tpu.memory_space<vmem>>, vector<1x4x1xf32>
    %220 = vector.shape_cast %219 : vector<1x4x1xf32> to vector<4x1xf32>
    %cst_143 = arith.constant 0.000000e+00 : f32
    %221 = vector.broadcast %cst_143 : f32 to vector<4x256xf32>
    %222 = arith.cmpf oge, %218, %221 : vector<4x256xf32>
    %223 = vector.broadcast %220 : vector<4x1xf32> to vector<4x256xf32>
    %224 = arith.mulf %218, %223 : vector<4x256xf32>
    %225 = arith.select %222, %218, %224 : vector<4x256xi1>, vector<4x256xf32>
    %c0_144 = arith.constant 0 : index
    %c0_145 = arith.constant 0 : index
    %c0_146 = arith.constant 0 : index
    %226 = vector.load %arg21[%c0_144, %c0_145, %c0_146] : memref<9x12x4xf32, #tpu.memory_space<vmem>>, vector<1x12x4xf32>
    %227 = vector.shape_cast %226 : vector<1x12x4xf32> to vector<12x4xf32>
    %cst_147 = arith.constant dense<0.000000e+00> : vector<12x256xf32>
    %228 = tpu.matmul %227, %225, %cst_147 {dimension_numbers = #tpu.dot_dimension_numbers<[1], [0], [0], [1], [0, 0, 1, 1], [], []>} : vector<12x4xf32>, vector<4x256xf32>, vector<12x256xf32> -> vector<12x256xf32>
    %c34_i32 = arith.constant 34 : i32
    %229 = tpu.dynamic_rotate %130 by %c34_i32 dim 1 : vector<4x256xf32>, i32 -> vector<4x256xf32>
    %c9 = arith.constant 9 : index
    %c0_148 = arith.constant 0 : index
    %c0_149 = arith.constant 0 : index
    %230 = vector.load %arg11[%c9, %c0_148, %c0_149] : memref<27x1x256xf32, #tpu.memory_space<vmem>>, vector<1x1x256xf32>
    %231 = vector.shape_cast %230 : vector<1x1x256xf32> to vector<1x256xf32>
    %232 = vector.broadcast %231 : vector<1x256xf32> to vector<4x256xf32>
    %233 = arith.mulf %229, %232 : vector<4x256xf32>
    %c9_150 = arith.constant 9 : index
    %c0_151 = arith.constant 0 : index
    %c0_152 = arith.constant 0 : index
    %234 = vector.load %arg20[%c9_150, %c0_151, %c0_152] : memref<81x4x1xf32, #tpu.memory_space<vmem>>, vector<1x4x1xf32>
    %235 = vector.shape_cast %234 : vector<1x4x1xf32> to vector<4x1xf32>
    %236 = vector.broadcast %235 : vector<4x1xf32> to vector<4x256xf32>
    %237 = arith.mulf %233, %236 : vector<4x256xf32>
    %c32_i32 = arith.constant 32 : i32
    %238 = tpu.dynamic_rotate %130 by %c32_i32 dim 1 : vector<4x256xf32>, i32 -> vector<4x256xf32>
    %c10 = arith.constant 10 : index
    %c0_153 = arith.constant 0 : index
    %c0_154 = arith.constant 0 : index
    %239 = vector.load %arg11[%c10, %c0_153, %c0_154] : memref<27x1x256xf32, #tpu.memory_space<vmem>>, vector<1x1x256xf32>
    %240 = vector.shape_cast %239 : vector<1x1x256xf32> to vector<1x256xf32>
    %241 = vector.broadcast %240 : vector<1x256xf32> to vector<4x256xf32>
    %242 = arith.mulf %238, %241 : vector<4x256xf32>
    %c10_155 = arith.constant 10 : index
    %c0_156 = arith.constant 0 : index
    %c0_157 = arith.constant 0 : index
    %243 = vector.load %arg20[%c10_155, %c0_156, %c0_157] : memref<81x4x1xf32, #tpu.memory_space<vmem>>, vector<1x4x1xf32>
    %244 = vector.shape_cast %243 : vector<1x4x1xf32> to vector<4x1xf32>
    %245 = vector.broadcast %244 : vector<4x1xf32> to vector<4x256xf32>
    %246 = arith.mulf %242, %245 : vector<4x256xf32>
    %247 = arith.addf %237, %246 : vector<4x256xf32>
    %c30_i32 = arith.constant 30 : i32
    %248 = tpu.dynamic_rotate %130 by %c30_i32 dim 1 : vector<4x256xf32>, i32 -> vector<4x256xf32>
    %c11 = arith.constant 11 : index
    %c0_158 = arith.constant 0 : index
    %c0_159 = arith.constant 0 : index
    %249 = vector.load %arg11[%c11, %c0_158, %c0_159] : memref<27x1x256xf32, #tpu.memory_space<vmem>>, vector<1x1x256xf32>
    %250 = vector.shape_cast %249 : vector<1x1x256xf32> to vector<1x256xf32>
    %251 = vector.broadcast %250 : vector<1x256xf32> to vector<4x256xf32>
    %252 = arith.mulf %248, %251 : vector<4x256xf32>
    %c11_160 = arith.constant 11 : index
    %c0_161 = arith.constant 0 : index
    %c0_162 = arith.constant 0 : index
    %253 = vector.load %arg20[%c11_160, %c0_161, %c0_162] : memref<81x4x1xf32, #tpu.memory_space<vmem>>, vector<1x4x1xf32>
    %254 = vector.shape_cast %253 : vector<1x4x1xf32> to vector<4x1xf32>
    %255 = vector.broadcast %254 : vector<4x1xf32> to vector<4x256xf32>
    %256 = arith.mulf %252, %255 : vector<4x256xf32>
    %257 = arith.addf %247, %256 : vector<4x256xf32>
    %c2_i32 = arith.constant 2 : i32
    %258 = tpu.dynamic_rotate %130 by %c2_i32 dim 1 : vector<4x256xf32>, i32 -> vector<4x256xf32>
    %c12 = arith.constant 12 : index
    %c0_163 = arith.constant 0 : index
    %c0_164 = arith.constant 0 : index
    %259 = vector.load %arg11[%c12, %c0_163, %c0_164] : memref<27x1x256xf32, #tpu.memory_space<vmem>>, vector<1x1x256xf32>
    %260 = vector.shape_cast %259 : vector<1x1x256xf32> to vector<1x256xf32>
    %261 = vector.broadcast %260 : vector<1x256xf32> to vector<4x256xf32>
    %262 = arith.mulf %258, %261 : vector<4x256xf32>
    %c12_165 = arith.constant 12 : index
    %c0_166 = arith.constant 0 : index
    %c0_167 = arith.constant 0 : index
    %263 = vector.load %arg20[%c12_165, %c0_166, %c0_167] : memref<81x4x1xf32, #tpu.memory_space<vmem>>, vector<1x4x1xf32>
    %264 = vector.shape_cast %263 : vector<1x4x1xf32> to vector<4x1xf32>
    %265 = vector.broadcast %264 : vector<4x1xf32> to vector<4x256xf32>
    %266 = arith.mulf %262, %265 : vector<4x256xf32>
    %267 = arith.addf %257, %266 : vector<4x256xf32>
    %c13 = arith.constant 13 : index
    %c0_168 = arith.constant 0 : index
    %c0_169 = arith.constant 0 : index
    %268 = vector.load %arg11[%c13, %c0_168, %c0_169] : memref<27x1x256xf32, #tpu.memory_space<vmem>>, vector<1x1x256xf32>
    %269 = vector.shape_cast %268 : vector<1x1x256xf32> to vector<1x256xf32>
    %270 = vector.broadcast %269 : vector<1x256xf32> to vector<4x256xf32>
    %271 = arith.mulf %130, %270 : vector<4x256xf32>
    %c13_170 = arith.constant 13 : index
    %c0_171 = arith.constant 0 : index
    %c0_172 = arith.constant 0 : index
    %272 = vector.load %arg20[%c13_170, %c0_171, %c0_172] : memref<81x4x1xf32, #tpu.memory_space<vmem>>, vector<1x4x1xf32>
    %273 = vector.shape_cast %272 : vector<1x4x1xf32> to vector<4x1xf32>
    %274 = vector.broadcast %273 : vector<4x1xf32> to vector<4x256xf32>
    %275 = arith.mulf %271, %274 : vector<4x256xf32>
    %276 = arith.addf %267, %275 : vector<4x256xf32>
    %c254_i32 = arith.constant 254 : i32
    %277 = tpu.dynamic_rotate %130 by %c254_i32 dim 1 : vector<4x256xf32>, i32 -> vector<4x256xf32>
    %c14 = arith.constant 14 : index
    %c0_173 = arith.constant 0 : index
    %c0_174 = arith.constant 0 : index
    %278 = vector.load %arg11[%c14, %c0_173, %c0_174] : memref<27x1x256xf32, #tpu.memory_space<vmem>>, vector<1x1x256xf32>
    %279 = vector.shape_cast %278 : vector<1x1x256xf32> to vector<1x256xf32>
    %280 = vector.broadcast %279 : vector<1x256xf32> to vector<4x256xf32>
    %281 = arith.mulf %277, %280 : vector<4x256xf32>
    %c14_175 = arith.constant 14 : index
    %c0_176 = arith.constant 0 : index
    %c0_177 = arith.constant 0 : index
    %282 = vector.load %arg20[%c14_175, %c0_176, %c0_177] : memref<81x4x1xf32, #tpu.memory_space<vmem>>, vector<1x4x1xf32>
    %283 = vector.shape_cast %282 : vector<1x4x1xf32> to vector<4x1xf32>
    %284 = vector.broadcast %283 : vector<4x1xf32> to vector<4x256xf32>
    %285 = arith.mulf %281, %284 : vector<4x256xf32>
    %286 = arith.addf %276, %285 : vector<4x256xf32>
    %c226_i32 = arith.constant 226 : i32
    %287 = tpu.dynamic_rotate %130 by %c226_i32 dim 1 : vector<4x256xf32>, i32 -> vector<4x256xf32>
    %c15 = arith.constant 15 : index
    %c0_178 = arith.constant 0 : index
    %c0_179 = arith.constant 0 : index
    %288 = vector.load %arg11[%c15, %c0_178, %c0_179] : memref<27x1x256xf32, #tpu.memory_space<vmem>>, vector<1x1x256xf32>
    %289 = vector.shape_cast %288 : vector<1x1x256xf32> to vector<1x256xf32>
    %290 = vector.broadcast %289 : vector<1x256xf32> to vector<4x256xf32>
    %291 = arith.mulf %287, %290 : vector<4x256xf32>
    %c15_180 = arith.constant 15 : index
    %c0_181 = arith.constant 0 : index
    %c0_182 = arith.constant 0 : index
    %292 = vector.load %arg20[%c15_180, %c0_181, %c0_182] : memref<81x4x1xf32, #tpu.memory_space<vmem>>, vector<1x4x1xf32>
    %293 = vector.shape_cast %292 : vector<1x4x1xf32> to vector<4x1xf32>
    %294 = vector.broadcast %293 : vector<4x1xf32> to vector<4x256xf32>
    %295 = arith.mulf %291, %294 : vector<4x256xf32>
    %296 = arith.addf %286, %295 : vector<4x256xf32>
    %c224_i32 = arith.constant 224 : i32
    %297 = tpu.dynamic_rotate %130 by %c224_i32 dim 1 : vector<4x256xf32>, i32 -> vector<4x256xf32>
    %c16 = arith.constant 16 : index
    %c0_183 = arith.constant 0 : index
    %c0_184 = arith.constant 0 : index
    %298 = vector.load %arg11[%c16, %c0_183, %c0_184] : memref<27x1x256xf32, #tpu.memory_space<vmem>>, vector<1x1x256xf32>
    %299 = vector.shape_cast %298 : vector<1x1x256xf32> to vector<1x256xf32>
    %300 = vector.broadcast %299 : vector<1x256xf32> to vector<4x256xf32>
    %301 = arith.mulf %297, %300 : vector<4x256xf32>
    %c16_185 = arith.constant 16 : index
    %c0_186 = arith.constant 0 : index
    %c0_187 = arith.constant 0 : index
    %302 = vector.load %arg20[%c16_185, %c0_186, %c0_187] : memref<81x4x1xf32, #tpu.memory_space<vmem>>, vector<1x4x1xf32>
    %303 = vector.shape_cast %302 : vector<1x4x1xf32> to vector<4x1xf32>
    %304 = vector.broadcast %303 : vector<4x1xf32> to vector<4x256xf32>
    %305 = arith.mulf %301, %304 : vector<4x256xf32>
    %306 = arith.addf %296, %305 : vector<4x256xf32>
    %c222_i32 = arith.constant 222 : i32
    %307 = tpu.dynamic_rotate %130 by %c222_i32 dim 1 : vector<4x256xf32>, i32 -> vector<4x256xf32>
    %c17 = arith.constant 17 : index
    %c0_188 = arith.constant 0 : index
    %c0_189 = arith.constant 0 : index
    %308 = vector.load %arg11[%c17, %c0_188, %c0_189] : memref<27x1x256xf32, #tpu.memory_space<vmem>>, vector<1x1x256xf32>
    %309 = vector.shape_cast %308 : vector<1x1x256xf32> to vector<1x256xf32>
    %310 = vector.broadcast %309 : vector<1x256xf32> to vector<4x256xf32>
    %311 = arith.mulf %307, %310 : vector<4x256xf32>
    %c17_190 = arith.constant 17 : index
    %c0_191 = arith.constant 0 : index
    %c0_192 = arith.constant 0 : index
    %312 = vector.load %arg20[%c17_190, %c0_191, %c0_192] : memref<81x4x1xf32, #tpu.memory_space<vmem>>, vector<1x4x1xf32>
    %313 = vector.shape_cast %312 : vector<1x4x1xf32> to vector<4x1xf32>
    %314 = vector.broadcast %313 : vector<4x1xf32> to vector<4x256xf32>
    %315 = arith.mulf %311, %314 : vector<4x256xf32>
    %316 = arith.addf %306, %315 : vector<4x256xf32>
    %317 = arith.addf %218, %316 : vector<4x256xf32>
    %c1_193 = arith.constant 1 : index
    %c0_194 = arith.constant 0 : index
    %c0_195 = arith.constant 0 : index
    %318 = vector.load %arg22[%c1_193, %c0_194, %c0_195] : memref<9x4x1xf32, #tpu.memory_space<vmem>>, vector<1x4x1xf32>
    %319 = vector.shape_cast %318 : vector<1x4x1xf32> to vector<4x1xf32>
    %cst_196 = arith.constant 0.000000e+00 : f32
    %320 = vector.broadcast %cst_196 : f32 to vector<4x256xf32>
    %321 = arith.cmpf oge, %317, %320 : vector<4x256xf32>
    %322 = vector.broadcast %319 : vector<4x1xf32> to vector<4x256xf32>
    %323 = arith.mulf %317, %322 : vector<4x256xf32>
    %324 = arith.select %321, %317, %323 : vector<4x256xi1>, vector<4x256xf32>
    %c1_197 = arith.constant 1 : index
    %c0_198 = arith.constant 0 : index
    %c0_199 = arith.constant 0 : index
    %325 = vector.load %arg21[%c1_197, %c0_198, %c0_199] : memref<9x12x4xf32, #tpu.memory_space<vmem>>, vector<1x12x4xf32>
    %326 = vector.shape_cast %325 : vector<1x12x4xf32> to vector<12x4xf32>
    %cst_200 = arith.constant dense<0.000000e+00> : vector<12x256xf32>
    %327 = tpu.matmul %326, %324, %cst_200 {dimension_numbers = #tpu.dot_dimension_numbers<[1], [0], [0], [1], [0, 0, 1, 1], [], []>} : vector<12x4xf32>, vector<4x256xf32>, vector<12x256xf32> -> vector<12x256xf32>
    %328 = arith.addf %228, %327 : vector<12x256xf32>
    %c68_i32 = arith.constant 68 : i32
    %329 = tpu.dynamic_rotate %130 by %c68_i32 dim 1 : vector<4x256xf32>, i32 -> vector<4x256xf32>
    %c18 = arith.constant 18 : index
    %c0_201 = arith.constant 0 : index
    %c0_202 = arith.constant 0 : index
    %330 = vector.load %arg11[%c18, %c0_201, %c0_202] : memref<27x1x256xf32, #tpu.memory_space<vmem>>, vector<1x1x256xf32>
    %331 = vector.shape_cast %330 : vector<1x1x256xf32> to vector<1x256xf32>
    %332 = vector.broadcast %331 : vector<1x256xf32> to vector<4x256xf32>
    %333 = arith.mulf %329, %332 : vector<4x256xf32>
    %c18_203 = arith.constant 18 : index
    %c0_204 = arith.constant 0 : index
    %c0_205 = arith.constant 0 : index
    %334 = vector.load %arg20[%c18_203, %c0_204, %c0_205] : memref<81x4x1xf32, #tpu.memory_space<vmem>>, vector<1x4x1xf32>
    %335 = vector.shape_cast %334 : vector<1x4x1xf32> to vector<4x1xf32>
    %336 = vector.broadcast %335 : vector<4x1xf32> to vector<4x256xf32>
    %337 = arith.mulf %333, %336 : vector<4x256xf32>
    %c64_i32 = arith.constant 64 : i32
    %338 = tpu.dynamic_rotate %130 by %c64_i32 dim 1 : vector<4x256xf32>, i32 -> vector<4x256xf32>
    %c19 = arith.constant 19 : index
    %c0_206 = arith.constant 0 : index
    %c0_207 = arith.constant 0 : index
    %339 = vector.load %arg11[%c19, %c0_206, %c0_207] : memref<27x1x256xf32, #tpu.memory_space<vmem>>, vector<1x1x256xf32>
    %340 = vector.shape_cast %339 : vector<1x1x256xf32> to vector<1x256xf32>
    %341 = vector.broadcast %340 : vector<1x256xf32> to vector<4x256xf32>
    %342 = arith.mulf %338, %341 : vector<4x256xf32>
    %c19_208 = arith.constant 19 : index
    %c0_209 = arith.constant 0 : index
    %c0_210 = arith.constant 0 : index
    %343 = vector.load %arg20[%c19_208, %c0_209, %c0_210] : memref<81x4x1xf32, #tpu.memory_space<vmem>>, vector<1x4x1xf32>
    %344 = vector.shape_cast %343 : vector<1x4x1xf32> to vector<4x1xf32>
    %345 = vector.broadcast %344 : vector<4x1xf32> to vector<4x256xf32>
    %346 = arith.mulf %342, %345 : vector<4x256xf32>
    %347 = arith.addf %337, %346 : vector<4x256xf32>
    %c60_i32 = arith.constant 60 : i32
    %348 = tpu.dynamic_rotate %130 by %c60_i32 dim 1 : vector<4x256xf32>, i32 -> vector<4x256xf32>
    %c20 = arith.constant 20 : index
    %c0_211 = arith.constant 0 : index
    %c0_212 = arith.constant 0 : index
    %349 = vector.load %arg11[%c20, %c0_211, %c0_212] : memref<27x1x256xf32, #tpu.memory_space<vmem>>, vector<1x1x256xf32>
    %350 = vector.shape_cast %349 : vector<1x1x256xf32> to vector<1x256xf32>
    %351 = vector.broadcast %350 : vector<1x256xf32> to vector<4x256xf32>
    %352 = arith.mulf %348, %351 : vector<4x256xf32>
    %c20_213 = arith.constant 20 : index
    %c0_214 = arith.constant 0 : index
    %c0_215 = arith.constant 0 : index
    %353 = vector.load %arg20[%c20_213, %c0_214, %c0_215] : memref<81x4x1xf32, #tpu.memory_space<vmem>>, vector<1x4x1xf32>
    %354 = vector.shape_cast %353 : vector<1x4x1xf32> to vector<4x1xf32>
    %355 = vector.broadcast %354 : vector<4x1xf32> to vector<4x256xf32>
    %356 = arith.mulf %352, %355 : vector<4x256xf32>
    %357 = arith.addf %347, %356 : vector<4x256xf32>
    %c4_i32 = arith.constant 4 : i32
    %358 = tpu.dynamic_rotate %130 by %c4_i32 dim 1 : vector<4x256xf32>, i32 -> vector<4x256xf32>
    %c21 = arith.constant 21 : index
    %c0_216 = arith.constant 0 : index
    %c0_217 = arith.constant 0 : index
    %359 = vector.load %arg11[%c21, %c0_216, %c0_217] : memref<27x1x256xf32, #tpu.memory_space<vmem>>, vector<1x1x256xf32>
    %360 = vector.shape_cast %359 : vector<1x1x256xf32> to vector<1x256xf32>
    %361 = vector.broadcast %360 : vector<1x256xf32> to vector<4x256xf32>
    %362 = arith.mulf %358, %361 : vector<4x256xf32>
    %c21_218 = arith.constant 21 : index
    %c0_219 = arith.constant 0 : index
    %c0_220 = arith.constant 0 : index
    %363 = vector.load %arg20[%c21_218, %c0_219, %c0_220] : memref<81x4x1xf32, #tpu.memory_space<vmem>>, vector<1x4x1xf32>
    %364 = vector.shape_cast %363 : vector<1x4x1xf32> to vector<4x1xf32>
    %365 = vector.broadcast %364 : vector<4x1xf32> to vector<4x256xf32>
    %366 = arith.mulf %362, %365 : vector<4x256xf32>
    %367 = arith.addf %357, %366 : vector<4x256xf32>
    %c22 = arith.constant 22 : index
    %c0_221 = arith.constant 0 : index
    %c0_222 = arith.constant 0 : index
    %368 = vector.load %arg11[%c22, %c0_221, %c0_222] : memref<27x1x256xf32, #tpu.memory_space<vmem>>, vector<1x1x256xf32>
    %369 = vector.shape_cast %368 : vector<1x1x256xf32> to vector<1x256xf32>
    %370 = vector.broadcast %369 : vector<1x256xf32> to vector<4x256xf32>
    %371 = arith.mulf %130, %370 : vector<4x256xf32>
    %c22_223 = arith.constant 22 : index
    %c0_224 = arith.constant 0 : index
    %c0_225 = arith.constant 0 : index
    %372 = vector.load %arg20[%c22_223, %c0_224, %c0_225] : memref<81x4x1xf32, #tpu.memory_space<vmem>>, vector<1x4x1xf32>
    %373 = vector.shape_cast %372 : vector<1x4x1xf32> to vector<4x1xf32>
    %374 = vector.broadcast %373 : vector<4x1xf32> to vector<4x256xf32>
    %375 = arith.mulf %371, %374 : vector<4x256xf32>
    %376 = arith.addf %367, %375 : vector<4x256xf32>
    %c252_i32 = arith.constant 252 : i32
    %377 = tpu.dynamic_rotate %130 by %c252_i32 dim 1 : vector<4x256xf32>, i32 -> vector<4x256xf32>
    %c23 = arith.constant 23 : index
    %c0_226 = arith.constant 0 : index
    %c0_227 = arith.constant 0 : index
    %378 = vector.load %arg11[%c23, %c0_226, %c0_227] : memref<27x1x256xf32, #tpu.memory_space<vmem>>, vector<1x1x256xf32>
    %379 = vector.shape_cast %378 : vector<1x1x256xf32> to vector<1x256xf32>
    %380 = vector.broadcast %379 : vector<1x256xf32> to vector<4x256xf32>
    %381 = arith.mulf %377, %380 : vector<4x256xf32>
    %c23_228 = arith.constant 23 : index
    %c0_229 = arith.constant 0 : index
    %c0_230 = arith.constant 0 : index
    %382 = vector.load %arg20[%c23_228, %c0_229, %c0_230] : memref<81x4x1xf32, #tpu.memory_space<vmem>>, vector<1x4x1xf32>
    %383 = vector.shape_cast %382 : vector<1x4x1xf32> to vector<4x1xf32>
    %384 = vector.broadcast %383 : vector<4x1xf32> to vector<4x256xf32>
    %385 = arith.mulf %381, %384 : vector<4x256xf32>
    %386 = arith.addf %376, %385 : vector<4x256xf32>
    %c196_i32 = arith.constant 196 : i32
    %387 = tpu.dynamic_rotate %130 by %c196_i32 dim 1 : vector<4x256xf32>, i32 -> vector<4x256xf32>
    %c24 = arith.constant 24 : index
    %c0_231 = arith.constant 0 : index
    %c0_232 = arith.constant 0 : index
    %388 = vector.load %arg11[%c24, %c0_231, %c0_232] : memref<27x1x256xf32, #tpu.memory_space<vmem>>, vector<1x1x256xf32>
    %389 = vector.shape_cast %388 : vector<1x1x256xf32> to vector<1x256xf32>
    %390 = vector.broadcast %389 : vector<1x256xf32> to vector<4x256xf32>
    %391 = arith.mulf %387, %390 : vector<4x256xf32>
    %c24_233 = arith.constant 24 : index
    %c0_234 = arith.constant 0 : index
    %c0_235 = arith.constant 0 : index
    %392 = vector.load %arg20[%c24_233, %c0_234, %c0_235] : memref<81x4x1xf32, #tpu.memory_space<vmem>>, vector<1x4x1xf32>
    %393 = vector.shape_cast %392 : vector<1x4x1xf32> to vector<4x1xf32>
    %394 = vector.broadcast %393 : vector<4x1xf32> to vector<4x256xf32>
    %395 = arith.mulf %391, %394 : vector<4x256xf32>
    %396 = arith.addf %386, %395 : vector<4x256xf32>
    %c192_i32 = arith.constant 192 : i32
    %397 = tpu.dynamic_rotate %130 by %c192_i32 dim 1 : vector<4x256xf32>, i32 -> vector<4x256xf32>
    %c25 = arith.constant 25 : index
    %c0_236 = arith.constant 0 : index
    %c0_237 = arith.constant 0 : index
    %398 = vector.load %arg11[%c25, %c0_236, %c0_237] : memref<27x1x256xf32, #tpu.memory_space<vmem>>, vector<1x1x256xf32>
    %399 = vector.shape_cast %398 : vector<1x1x256xf32> to vector<1x256xf32>
    %400 = vector.broadcast %399 : vector<1x256xf32> to vector<4x256xf32>
    %401 = arith.mulf %397, %400 : vector<4x256xf32>
    %c25_238 = arith.constant 25 : index
    %c0_239 = arith.constant 0 : index
    %c0_240 = arith.constant 0 : index
    %402 = vector.load %arg20[%c25_238, %c0_239, %c0_240] : memref<81x4x1xf32, #tpu.memory_space<vmem>>, vector<1x4x1xf32>
    %403 = vector.shape_cast %402 : vector<1x4x1xf32> to vector<4x1xf32>
    %404 = vector.broadcast %403 : vector<4x1xf32> to vector<4x256xf32>
    %405 = arith.mulf %401, %404 : vector<4x256xf32>
    %406 = arith.addf %396, %405 : vector<4x256xf32>
    %c188_i32 = arith.constant 188 : i32
    %407 = tpu.dynamic_rotate %130 by %c188_i32 dim 1 : vector<4x256xf32>, i32 -> vector<4x256xf32>
    %c26 = arith.constant 26 : index
    %c0_241 = arith.constant 0 : index
    %c0_242 = arith.constant 0 : index
    %408 = vector.load %arg11[%c26, %c0_241, %c0_242] : memref<27x1x256xf32, #tpu.memory_space<vmem>>, vector<1x1x256xf32>
    %409 = vector.shape_cast %408 : vector<1x1x256xf32> to vector<1x256xf32>
    %410 = vector.broadcast %409 : vector<1x256xf32> to vector<4x256xf32>
    %411 = arith.mulf %407, %410 : vector<4x256xf32>
    %c26_243 = arith.constant 26 : index
    %c0_244 = arith.constant 0 : index
    %c0_245 = arith.constant 0 : index
    %412 = vector.load %arg20[%c26_243, %c0_244, %c0_245] : memref<81x4x1xf32, #tpu.memory_space<vmem>>, vector<1x4x1xf32>
    %413 = vector.shape_cast %412 : vector<1x4x1xf32> to vector<4x1xf32>
    %414 = vector.broadcast %413 : vector<4x1xf32> to vector<4x256xf32>
    %415 = arith.mulf %411, %414 : vector<4x256xf32>
    %416 = arith.addf %406, %415 : vector<4x256xf32>
    %417 = arith.addf %317, %416 : vector<4x256xf32>
    %c2_246 = arith.constant 2 : index
    %c0_247 = arith.constant 0 : index
    %c0_248 = arith.constant 0 : index
    %418 = vector.load %arg22[%c2_246, %c0_247, %c0_248] : memref<9x4x1xf32, #tpu.memory_space<vmem>>, vector<1x4x1xf32>
    %419 = vector.shape_cast %418 : vector<1x4x1xf32> to vector<4x1xf32>
    %cst_249 = arith.constant 0.000000e+00 : f32
    %420 = vector.broadcast %cst_249 : f32 to vector<4x256xf32>
    %421 = arith.cmpf oge, %417, %420 : vector<4x256xf32>
    %422 = vector.broadcast %419 : vector<4x1xf32> to vector<4x256xf32>
    %423 = arith.mulf %417, %422 : vector<4x256xf32>
    %424 = arith.select %421, %417, %423 : vector<4x256xi1>, vector<4x256xf32>
    %c2_250 = arith.constant 2 : index
    %c0_251 = arith.constant 0 : index
    %c0_252 = arith.constant 0 : index
    %425 = vector.load %arg21[%c2_250, %c0_251, %c0_252] : memref<9x12x4xf32, #tpu.memory_space<vmem>>, vector<1x12x4xf32>
    %426 = vector.shape_cast %425 : vector<1x12x4xf32> to vector<12x4xf32>
    %cst_253 = arith.constant dense<0.000000e+00> : vector<12x256xf32>
    %427 = tpu.matmul %426, %424, %cst_253 {dimension_numbers = #tpu.dot_dimension_numbers<[1], [0], [0], [1], [0, 0, 1, 1], [], []>} : vector<12x4xf32>, vector<4x256xf32>, vector<12x256xf32> -> vector<12x256xf32>
    %428 = arith.addf %328, %427 : vector<12x256xf32>
    %429 = arith.addf %428, %120 : vector<12x256xf32>
    %c0_254 = arith.constant 0 : index
    %c0_255 = arith.constant 0 : index
    %c0_256 = arith.constant 0 : index
    %430 = vector.load %arg23[%c0_254, %c0_255, %c0_256] : memref<3x12x1xf32, #tpu.memory_space<vmem>>, vector<1x12x1xf32>
    %431 = vector.shape_cast %430 : vector<1x12x1xf32> to vector<12x1xf32>
    %cst_257 = arith.constant 0.000000e+00 : f32
    %432 = vector.broadcast %cst_257 : f32 to vector<12x256xf32>
    %433 = arith.cmpf oge, %429, %432 : vector<12x256xf32>
    %434 = vector.broadcast %431 : vector<12x1xf32> to vector<12x256xf32>
    %435 = arith.mulf %429, %434 : vector<12x256xf32>
    %436 = arith.select %433, %429, %435 : vector<12x256xi1>, vector<12x256xf32>
    %c1_258 = arith.constant 1 : index
    %c0_259 = arith.constant 0 : index
    %c0_260 = arith.constant 0 : index
    %437 = vector.load %arg18[%c1_258, %c0_259, %c0_260] : memref<3x4x12xf32, #tpu.memory_space<vmem>>, vector<1x4x12xf32>
    %438 = vector.shape_cast %437 : vector<1x4x12xf32> to vector<4x12xf32>
    %cst_261 = arith.constant dense<0.000000e+00> : vector<4x256xf32>
    %439 = tpu.matmul %438, %436, %cst_261 {dimension_numbers = #tpu.dot_dimension_numbers<[1], [0], [0], [1], [0, 0, 1, 1], [], []>} : vector<4x12xf32>, vector<12x256xf32>, vector<4x256xf32> -> vector<4x256xf32>
    %c1_262 = arith.constant 1 : index
    %c0_263 = arith.constant 0 : index
    %c0_264 = arith.constant 0 : index
    %440 = vector.load %arg19[%c1_262, %c0_263, %c0_264] : memref<3x4x1xf32, #tpu.memory_space<vmem>>, vector<1x4x1xf32>
    %441 = vector.shape_cast %440 : vector<1x4x1xf32> to vector<4x1xf32>
    %cst_265 = arith.constant 0.000000e+00 : f32
    %442 = vector.broadcast %cst_265 : f32 to vector<4x256xf32>
    %443 = arith.cmpf oge, %439, %442 : vector<4x256xf32>
    %444 = vector.broadcast %441 : vector<4x1xf32> to vector<4x256xf32>
    %445 = arith.mulf %439, %444 : vector<4x256xf32>
    %446 = arith.select %443, %439, %445 : vector<4x256xi1>, vector<4x256xf32>
    %c17_i32_266 = arith.constant 17 : i32
    %447 = tpu.dynamic_rotate %446 by %c17_i32_266 dim 1 : vector<4x256xf32>, i32 -> vector<4x256xf32>
    %c0_267 = arith.constant 0 : index
    %c0_268 = arith.constant 0 : index
    %c0_269 = arith.constant 0 : index
    %448 = vector.load %arg11[%c0_267, %c0_268, %c0_269] : memref<27x1x256xf32, #tpu.memory_space<vmem>>, vector<1x1x256xf32>
    %449 = vector.shape_cast %448 : vector<1x1x256xf32> to vector<1x256xf32>
    %450 = vector.broadcast %449 : vector<1x256xf32> to vector<4x256xf32>
    %451 = arith.mulf %447, %450 : vector<4x256xf32>
    %c27 = arith.constant 27 : index
    %c0_270 = arith.constant 0 : index
    %c0_271 = arith.constant 0 : index
    %452 = vector.load %arg20[%c27, %c0_270, %c0_271] : memref<81x4x1xf32, #tpu.memory_space<vmem>>, vector<1x4x1xf32>
    %453 = vector.shape_cast %452 : vector<1x4x1xf32> to vector<4x1xf32>
    %454 = vector.broadcast %453 : vector<4x1xf32> to vector<4x256xf32>
    %455 = arith.mulf %451, %454 : vector<4x256xf32>
    %c16_i32_272 = arith.constant 16 : i32
    %456 = tpu.dynamic_rotate %446 by %c16_i32_272 dim 1 : vector<4x256xf32>, i32 -> vector<4x256xf32>
    %c1_273 = arith.constant 1 : index
    %c0_274 = arith.constant 0 : index
    %c0_275 = arith.constant 0 : index
    %457 = vector.load %arg11[%c1_273, %c0_274, %c0_275] : memref<27x1x256xf32, #tpu.memory_space<vmem>>, vector<1x1x256xf32>
    %458 = vector.shape_cast %457 : vector<1x1x256xf32> to vector<1x256xf32>
    %459 = vector.broadcast %458 : vector<1x256xf32> to vector<4x256xf32>
    %460 = arith.mulf %456, %459 : vector<4x256xf32>
    %c28 = arith.constant 28 : index
    %c0_276 = arith.constant 0 : index
    %c0_277 = arith.constant 0 : index
    %461 = vector.load %arg20[%c28, %c0_276, %c0_277] : memref<81x4x1xf32, #tpu.memory_space<vmem>>, vector<1x4x1xf32>
    %462 = vector.shape_cast %461 : vector<1x4x1xf32> to vector<4x1xf32>
    %463 = vector.broadcast %462 : vector<4x1xf32> to vector<4x256xf32>
    %464 = arith.mulf %460, %463 : vector<4x256xf32>
    %465 = arith.addf %455, %464 : vector<4x256xf32>
    %c15_i32_278 = arith.constant 15 : i32
    %466 = tpu.dynamic_rotate %446 by %c15_i32_278 dim 1 : vector<4x256xf32>, i32 -> vector<4x256xf32>
    %c2_279 = arith.constant 2 : index
    %c0_280 = arith.constant 0 : index
    %c0_281 = arith.constant 0 : index
    %467 = vector.load %arg11[%c2_279, %c0_280, %c0_281] : memref<27x1x256xf32, #tpu.memory_space<vmem>>, vector<1x1x256xf32>
    %468 = vector.shape_cast %467 : vector<1x1x256xf32> to vector<1x256xf32>
    %469 = vector.broadcast %468 : vector<1x256xf32> to vector<4x256xf32>
    %470 = arith.mulf %466, %469 : vector<4x256xf32>
    %c29 = arith.constant 29 : index
    %c0_282 = arith.constant 0 : index
    %c0_283 = arith.constant 0 : index
    %471 = vector.load %arg20[%c29, %c0_282, %c0_283] : memref<81x4x1xf32, #tpu.memory_space<vmem>>, vector<1x4x1xf32>
    %472 = vector.shape_cast %471 : vector<1x4x1xf32> to vector<4x1xf32>
    %473 = vector.broadcast %472 : vector<4x1xf32> to vector<4x256xf32>
    %474 = arith.mulf %470, %473 : vector<4x256xf32>
    %475 = arith.addf %465, %474 : vector<4x256xf32>
    %c1_i32_284 = arith.constant 1 : i32
    %476 = tpu.dynamic_rotate %446 by %c1_i32_284 dim 1 : vector<4x256xf32>, i32 -> vector<4x256xf32>
    %c3_285 = arith.constant 3 : index
    %c0_286 = arith.constant 0 : index
    %c0_287 = arith.constant 0 : index
    %477 = vector.load %arg11[%c3_285, %c0_286, %c0_287] : memref<27x1x256xf32, #tpu.memory_space<vmem>>, vector<1x1x256xf32>
    %478 = vector.shape_cast %477 : vector<1x1x256xf32> to vector<1x256xf32>
    %479 = vector.broadcast %478 : vector<1x256xf32> to vector<4x256xf32>
    %480 = arith.mulf %476, %479 : vector<4x256xf32>
    %c30 = arith.constant 30 : index
    %c0_288 = arith.constant 0 : index
    %c0_289 = arith.constant 0 : index
    %481 = vector.load %arg20[%c30, %c0_288, %c0_289] : memref<81x4x1xf32, #tpu.memory_space<vmem>>, vector<1x4x1xf32>
    %482 = vector.shape_cast %481 : vector<1x4x1xf32> to vector<4x1xf32>
    %483 = vector.broadcast %482 : vector<4x1xf32> to vector<4x256xf32>
    %484 = arith.mulf %480, %483 : vector<4x256xf32>
    %485 = arith.addf %475, %484 : vector<4x256xf32>
    %c4_290 = arith.constant 4 : index
    %c0_291 = arith.constant 0 : index
    %c0_292 = arith.constant 0 : index
    %486 = vector.load %arg11[%c4_290, %c0_291, %c0_292] : memref<27x1x256xf32, #tpu.memory_space<vmem>>, vector<1x1x256xf32>
    %487 = vector.shape_cast %486 : vector<1x1x256xf32> to vector<1x256xf32>
    %488 = vector.broadcast %487 : vector<1x256xf32> to vector<4x256xf32>
    %489 = arith.mulf %446, %488 : vector<4x256xf32>
    %c31 = arith.constant 31 : index
    %c0_293 = arith.constant 0 : index
    %c0_294 = arith.constant 0 : index
    %490 = vector.load %arg20[%c31, %c0_293, %c0_294] : memref<81x4x1xf32, #tpu.memory_space<vmem>>, vector<1x4x1xf32>
    %491 = vector.shape_cast %490 : vector<1x4x1xf32> to vector<4x1xf32>
    %492 = vector.broadcast %491 : vector<4x1xf32> to vector<4x256xf32>
    %493 = arith.mulf %489, %492 : vector<4x256xf32>
    %494 = arith.addf %485, %493 : vector<4x256xf32>
    %c255_i32_295 = arith.constant 255 : i32
    %495 = tpu.dynamic_rotate %446 by %c255_i32_295 dim 1 : vector<4x256xf32>, i32 -> vector<4x256xf32>
    %c5_296 = arith.constant 5 : index
    %c0_297 = arith.constant 0 : index
    %c0_298 = arith.constant 0 : index
    %496 = vector.load %arg11[%c5_296, %c0_297, %c0_298] : memref<27x1x256xf32, #tpu.memory_space<vmem>>, vector<1x1x256xf32>
    %497 = vector.shape_cast %496 : vector<1x1x256xf32> to vector<1x256xf32>
    %498 = vector.broadcast %497 : vector<1x256xf32> to vector<4x256xf32>
    %499 = arith.mulf %495, %498 : vector<4x256xf32>
    %c32 = arith.constant 32 : index
    %c0_299 = arith.constant 0 : index
    %c0_300 = arith.constant 0 : index
    %500 = vector.load %arg20[%c32, %c0_299, %c0_300] : memref<81x4x1xf32, #tpu.memory_space<vmem>>, vector<1x4x1xf32>
    %501 = vector.shape_cast %500 : vector<1x4x1xf32> to vector<4x1xf32>
    %502 = vector.broadcast %501 : vector<4x1xf32> to vector<4x256xf32>
    %503 = arith.mulf %499, %502 : vector<4x256xf32>
    %504 = arith.addf %494, %503 : vector<4x256xf32>
    %c241_i32_301 = arith.constant 241 : i32
    %505 = tpu.dynamic_rotate %446 by %c241_i32_301 dim 1 : vector<4x256xf32>, i32 -> vector<4x256xf32>
    %c6_302 = arith.constant 6 : index
    %c0_303 = arith.constant 0 : index
    %c0_304 = arith.constant 0 : index
    %506 = vector.load %arg11[%c6_302, %c0_303, %c0_304] : memref<27x1x256xf32, #tpu.memory_space<vmem>>, vector<1x1x256xf32>
    %507 = vector.shape_cast %506 : vector<1x1x256xf32> to vector<1x256xf32>
    %508 = vector.broadcast %507 : vector<1x256xf32> to vector<4x256xf32>
    %509 = arith.mulf %505, %508 : vector<4x256xf32>
    %c33 = arith.constant 33 : index
    %c0_305 = arith.constant 0 : index
    %c0_306 = arith.constant 0 : index
    %510 = vector.load %arg20[%c33, %c0_305, %c0_306] : memref<81x4x1xf32, #tpu.memory_space<vmem>>, vector<1x4x1xf32>
    %511 = vector.shape_cast %510 : vector<1x4x1xf32> to vector<4x1xf32>
    %512 = vector.broadcast %511 : vector<4x1xf32> to vector<4x256xf32>
    %513 = arith.mulf %509, %512 : vector<4x256xf32>
    %514 = arith.addf %504, %513 : vector<4x256xf32>
    %c240_i32_307 = arith.constant 240 : i32
    %515 = tpu.dynamic_rotate %446 by %c240_i32_307 dim 1 : vector<4x256xf32>, i32 -> vector<4x256xf32>
    %c7_308 = arith.constant 7 : index
    %c0_309 = arith.constant 0 : index
    %c0_310 = arith.constant 0 : index
    %516 = vector.load %arg11[%c7_308, %c0_309, %c0_310] : memref<27x1x256xf32, #tpu.memory_space<vmem>>, vector<1x1x256xf32>
    %517 = vector.shape_cast %516 : vector<1x1x256xf32> to vector<1x256xf32>
    %518 = vector.broadcast %517 : vector<1x256xf32> to vector<4x256xf32>
    %519 = arith.mulf %515, %518 : vector<4x256xf32>
    %c34 = arith.constant 34 : index
    %c0_311 = arith.constant 0 : index
    %c0_312 = arith.constant 0 : index
    %520 = vector.load %arg20[%c34, %c0_311, %c0_312] : memref<81x4x1xf32, #tpu.memory_space<vmem>>, vector<1x4x1xf32>
    %521 = vector.shape_cast %520 : vector<1x4x1xf32> to vector<4x1xf32>
    %522 = vector.broadcast %521 : vector<4x1xf32> to vector<4x256xf32>
    %523 = arith.mulf %519, %522 : vector<4x256xf32>
    %524 = arith.addf %514, %523 : vector<4x256xf32>
    %c239_i32_313 = arith.constant 239 : i32
    %525 = tpu.dynamic_rotate %446 by %c239_i32_313 dim 1 : vector<4x256xf32>, i32 -> vector<4x256xf32>
    %c8_314 = arith.constant 8 : index
    %c0_315 = arith.constant 0 : index
    %c0_316 = arith.constant 0 : index
    %526 = vector.load %arg11[%c8_314, %c0_315, %c0_316] : memref<27x1x256xf32, #tpu.memory_space<vmem>>, vector<1x1x256xf32>
    %527 = vector.shape_cast %526 : vector<1x1x256xf32> to vector<1x256xf32>
    %528 = vector.broadcast %527 : vector<1x256xf32> to vector<4x256xf32>
    %529 = arith.mulf %525, %528 : vector<4x256xf32>
    %c35 = arith.constant 35 : index
    %c0_317 = arith.constant 0 : index
    %c0_318 = arith.constant 0 : index
    %530 = vector.load %arg20[%c35, %c0_317, %c0_318] : memref<81x4x1xf32, #tpu.memory_space<vmem>>, vector<1x4x1xf32>
    %531 = vector.shape_cast %530 : vector<1x4x1xf32> to vector<4x1xf32>
    %532 = vector.broadcast %531 : vector<4x1xf32> to vector<4x256xf32>
    %533 = arith.mulf %529, %532 : vector<4x256xf32>
    %534 = arith.addf %524, %533 : vector<4x256xf32>
    %c3_319 = arith.constant 3 : index
    %c0_320 = arith.constant 0 : index
    %c0_321 = arith.constant 0 : index
    %535 = vector.load %arg22[%c3_319, %c0_320, %c0_321] : memref<9x4x1xf32, #tpu.memory_space<vmem>>, vector<1x4x1xf32>
    %536 = vector.shape_cast %535 : vector<1x4x1xf32> to vector<4x1xf32>
    %cst_322 = arith.constant 0.000000e+00 : f32
    %537 = vector.broadcast %cst_322 : f32 to vector<4x256xf32>
    %538 = arith.cmpf oge, %534, %537 : vector<4x256xf32>
    %539 = vector.broadcast %536 : vector<4x1xf32> to vector<4x256xf32>
    %540 = arith.mulf %534, %539 : vector<4x256xf32>
    %541 = arith.select %538, %534, %540 : vector<4x256xi1>, vector<4x256xf32>
    %c3_323 = arith.constant 3 : index
    %c0_324 = arith.constant 0 : index
    %c0_325 = arith.constant 0 : index
    %542 = vector.load %arg21[%c3_323, %c0_324, %c0_325] : memref<9x12x4xf32, #tpu.memory_space<vmem>>, vector<1x12x4xf32>
    %543 = vector.shape_cast %542 : vector<1x12x4xf32> to vector<12x4xf32>
    %cst_326 = arith.constant dense<0.000000e+00> : vector<12x256xf32>
    %544 = tpu.matmul %543, %541, %cst_326 {dimension_numbers = #tpu.dot_dimension_numbers<[1], [0], [0], [1], [0, 0, 1, 1], [], []>} : vector<12x4xf32>, vector<4x256xf32>, vector<12x256xf32> -> vector<12x256xf32>
    %c34_i32_327 = arith.constant 34 : i32
    %545 = tpu.dynamic_rotate %446 by %c34_i32_327 dim 1 : vector<4x256xf32>, i32 -> vector<4x256xf32>
    %c9_328 = arith.constant 9 : index
    %c0_329 = arith.constant 0 : index
    %c0_330 = arith.constant 0 : index
    %546 = vector.load %arg11[%c9_328, %c0_329, %c0_330] : memref<27x1x256xf32, #tpu.memory_space<vmem>>, vector<1x1x256xf32>
    %547 = vector.shape_cast %546 : vector<1x1x256xf32> to vector<1x256xf32>
    %548 = vector.broadcast %547 : vector<1x256xf32> to vector<4x256xf32>
    %549 = arith.mulf %545, %548 : vector<4x256xf32>
    %c36 = arith.constant 36 : index
    %c0_331 = arith.constant 0 : index
    %c0_332 = arith.constant 0 : index
    %550 = vector.load %arg20[%c36, %c0_331, %c0_332] : memref<81x4x1xf32, #tpu.memory_space<vmem>>, vector<1x4x1xf32>
    %551 = vector.shape_cast %550 : vector<1x4x1xf32> to vector<4x1xf32>
    %552 = vector.broadcast %551 : vector<4x1xf32> to vector<4x256xf32>
    %553 = arith.mulf %549, %552 : vector<4x256xf32>
    %c32_i32_333 = arith.constant 32 : i32
    %554 = tpu.dynamic_rotate %446 by %c32_i32_333 dim 1 : vector<4x256xf32>, i32 -> vector<4x256xf32>
    %c10_334 = arith.constant 10 : index
    %c0_335 = arith.constant 0 : index
    %c0_336 = arith.constant 0 : index
    %555 = vector.load %arg11[%c10_334, %c0_335, %c0_336] : memref<27x1x256xf32, #tpu.memory_space<vmem>>, vector<1x1x256xf32>
    %556 = vector.shape_cast %555 : vector<1x1x256xf32> to vector<1x256xf32>
    %557 = vector.broadcast %556 : vector<1x256xf32> to vector<4x256xf32>
    %558 = arith.mulf %554, %557 : vector<4x256xf32>
    %c37 = arith.constant 37 : index
    %c0_337 = arith.constant 0 : index
    %c0_338 = arith.constant 0 : index
    %559 = vector.load %arg20[%c37, %c0_337, %c0_338] : memref<81x4x1xf32, #tpu.memory_space<vmem>>, vector<1x4x1xf32>
    %560 = vector.shape_cast %559 : vector<1x4x1xf32> to vector<4x1xf32>
    %561 = vector.broadcast %560 : vector<4x1xf32> to vector<4x256xf32>
    %562 = arith.mulf %558, %561 : vector<4x256xf32>
    %563 = arith.addf %553, %562 : vector<4x256xf32>
    %c30_i32_339 = arith.constant 30 : i32
    %564 = tpu.dynamic_rotate %446 by %c30_i32_339 dim 1 : vector<4x256xf32>, i32 -> vector<4x256xf32>
    %c11_340 = arith.constant 11 : index
    %c0_341 = arith.constant 0 : index
    %c0_342 = arith.constant 0 : index
    %565 = vector.load %arg11[%c11_340, %c0_341, %c0_342] : memref<27x1x256xf32, #tpu.memory_space<vmem>>, vector<1x1x256xf32>
    %566 = vector.shape_cast %565 : vector<1x1x256xf32> to vector<1x256xf32>
    %567 = vector.broadcast %566 : vector<1x256xf32> to vector<4x256xf32>
    %568 = arith.mulf %564, %567 : vector<4x256xf32>
    %c38 = arith.constant 38 : index
    %c0_343 = arith.constant 0 : index
    %c0_344 = arith.constant 0 : index
    %569 = vector.load %arg20[%c38, %c0_343, %c0_344] : memref<81x4x1xf32, #tpu.memory_space<vmem>>, vector<1x4x1xf32>
    %570 = vector.shape_cast %569 : vector<1x4x1xf32> to vector<4x1xf32>
    %571 = vector.broadcast %570 : vector<4x1xf32> to vector<4x256xf32>
    %572 = arith.mulf %568, %571 : vector<4x256xf32>
    %573 = arith.addf %563, %572 : vector<4x256xf32>
    %c2_i32_345 = arith.constant 2 : i32
    %574 = tpu.dynamic_rotate %446 by %c2_i32_345 dim 1 : vector<4x256xf32>, i32 -> vector<4x256xf32>
    %c12_346 = arith.constant 12 : index
    %c0_347 = arith.constant 0 : index
    %c0_348 = arith.constant 0 : index
    %575 = vector.load %arg11[%c12_346, %c0_347, %c0_348] : memref<27x1x256xf32, #tpu.memory_space<vmem>>, vector<1x1x256xf32>
    %576 = vector.shape_cast %575 : vector<1x1x256xf32> to vector<1x256xf32>
    %577 = vector.broadcast %576 : vector<1x256xf32> to vector<4x256xf32>
    %578 = arith.mulf %574, %577 : vector<4x256xf32>
    %c39 = arith.constant 39 : index
    %c0_349 = arith.constant 0 : index
    %c0_350 = arith.constant 0 : index
    %579 = vector.load %arg20[%c39, %c0_349, %c0_350] : memref<81x4x1xf32, #tpu.memory_space<vmem>>, vector<1x4x1xf32>
    %580 = vector.shape_cast %579 : vector<1x4x1xf32> to vector<4x1xf32>
    %581 = vector.broadcast %580 : vector<4x1xf32> to vector<4x256xf32>
    %582 = arith.mulf %578, %581 : vector<4x256xf32>
    %583 = arith.addf %573, %582 : vector<4x256xf32>
    %c13_351 = arith.constant 13 : index
    %c0_352 = arith.constant 0 : index
    %c0_353 = arith.constant 0 : index
    %584 = vector.load %arg11[%c13_351, %c0_352, %c0_353] : memref<27x1x256xf32, #tpu.memory_space<vmem>>, vector<1x1x256xf32>
    %585 = vector.shape_cast %584 : vector<1x1x256xf32> to vector<1x256xf32>
    %586 = vector.broadcast %585 : vector<1x256xf32> to vector<4x256xf32>
    %587 = arith.mulf %446, %586 : vector<4x256xf32>
    %c40 = arith.constant 40 : index
    %c0_354 = arith.constant 0 : index
    %c0_355 = arith.constant 0 : index
    %588 = vector.load %arg20[%c40, %c0_354, %c0_355] : memref<81x4x1xf32, #tpu.memory_space<vmem>>, vector<1x4x1xf32>
    %589 = vector.shape_cast %588 : vector<1x4x1xf32> to vector<4x1xf32>
    %590 = vector.broadcast %589 : vector<4x1xf32> to vector<4x256xf32>
    %591 = arith.mulf %587, %590 : vector<4x256xf32>
    %592 = arith.addf %583, %591 : vector<4x256xf32>
    %c254_i32_356 = arith.constant 254 : i32
    %593 = tpu.dynamic_rotate %446 by %c254_i32_356 dim 1 : vector<4x256xf32>, i32 -> vector<4x256xf32>
    %c14_357 = arith.constant 14 : index
    %c0_358 = arith.constant 0 : index
    %c0_359 = arith.constant 0 : index
    %594 = vector.load %arg11[%c14_357, %c0_358, %c0_359] : memref<27x1x256xf32, #tpu.memory_space<vmem>>, vector<1x1x256xf32>
    %595 = vector.shape_cast %594 : vector<1x1x256xf32> to vector<1x256xf32>
    %596 = vector.broadcast %595 : vector<1x256xf32> to vector<4x256xf32>
    %597 = arith.mulf %593, %596 : vector<4x256xf32>
    %c41 = arith.constant 41 : index
    %c0_360 = arith.constant 0 : index
    %c0_361 = arith.constant 0 : index
    %598 = vector.load %arg20[%c41, %c0_360, %c0_361] : memref<81x4x1xf32, #tpu.memory_space<vmem>>, vector<1x4x1xf32>
    %599 = vector.shape_cast %598 : vector<1x4x1xf32> to vector<4x1xf32>
    %600 = vector.broadcast %599 : vector<4x1xf32> to vector<4x256xf32>
    %601 = arith.mulf %597, %600 : vector<4x256xf32>
    %602 = arith.addf %592, %601 : vector<4x256xf32>
    %c226_i32_362 = arith.constant 226 : i32
    %603 = tpu.dynamic_rotate %446 by %c226_i32_362 dim 1 : vector<4x256xf32>, i32 -> vector<4x256xf32>
    %c15_363 = arith.constant 15 : index
    %c0_364 = arith.constant 0 : index
    %c0_365 = arith.constant 0 : index
    %604 = vector.load %arg11[%c15_363, %c0_364, %c0_365] : memref<27x1x256xf32, #tpu.memory_space<vmem>>, vector<1x1x256xf32>
    %605 = vector.shape_cast %604 : vector<1x1x256xf32> to vector<1x256xf32>
    %606 = vector.broadcast %605 : vector<1x256xf32> to vector<4x256xf32>
    %607 = arith.mulf %603, %606 : vector<4x256xf32>
    %c42 = arith.constant 42 : index
    %c0_366 = arith.constant 0 : index
    %c0_367 = arith.constant 0 : index
    %608 = vector.load %arg20[%c42, %c0_366, %c0_367] : memref<81x4x1xf32, #tpu.memory_space<vmem>>, vector<1x4x1xf32>
    %609 = vector.shape_cast %608 : vector<1x4x1xf32> to vector<4x1xf32>
    %610 = vector.broadcast %609 : vector<4x1xf32> to vector<4x256xf32>
    %611 = arith.mulf %607, %610 : vector<4x256xf32>
    %612 = arith.addf %602, %611 : vector<4x256xf32>
    %c224_i32_368 = arith.constant 224 : i32
    %613 = tpu.dynamic_rotate %446 by %c224_i32_368 dim 1 : vector<4x256xf32>, i32 -> vector<4x256xf32>
    %c16_369 = arith.constant 16 : index
    %c0_370 = arith.constant 0 : index
    %c0_371 = arith.constant 0 : index
    %614 = vector.load %arg11[%c16_369, %c0_370, %c0_371] : memref<27x1x256xf32, #tpu.memory_space<vmem>>, vector<1x1x256xf32>
    %615 = vector.shape_cast %614 : vector<1x1x256xf32> to vector<1x256xf32>
    %616 = vector.broadcast %615 : vector<1x256xf32> to vector<4x256xf32>
    %617 = arith.mulf %613, %616 : vector<4x256xf32>
    %c43 = arith.constant 43 : index
    %c0_372 = arith.constant 0 : index
    %c0_373 = arith.constant 0 : index
    %618 = vector.load %arg20[%c43, %c0_372, %c0_373] : memref<81x4x1xf32, #tpu.memory_space<vmem>>, vector<1x4x1xf32>
    %619 = vector.shape_cast %618 : vector<1x4x1xf32> to vector<4x1xf32>
    %620 = vector.broadcast %619 : vector<4x1xf32> to vector<4x256xf32>
    %621 = arith.mulf %617, %620 : vector<4x256xf32>
    %622 = arith.addf %612, %621 : vector<4x256xf32>
    %c222_i32_374 = arith.constant 222 : i32
    %623 = tpu.dynamic_rotate %446 by %c222_i32_374 dim 1 : vector<4x256xf32>, i32 -> vector<4x256xf32>
    %c17_375 = arith.constant 17 : index
    %c0_376 = arith.constant 0 : index
    %c0_377 = arith.constant 0 : index
    %624 = vector.load %arg11[%c17_375, %c0_376, %c0_377] : memref<27x1x256xf32, #tpu.memory_space<vmem>>, vector<1x1x256xf32>
    %625 = vector.shape_cast %624 : vector<1x1x256xf32> to vector<1x256xf32>
    %626 = vector.broadcast %625 : vector<1x256xf32> to vector<4x256xf32>
    %627 = arith.mulf %623, %626 : vector<4x256xf32>
    %c44 = arith.constant 44 : index
    %c0_378 = arith.constant 0 : index
    %c0_379 = arith.constant 0 : index
    %628 = vector.load %arg20[%c44, %c0_378, %c0_379] : memref<81x4x1xf32, #tpu.memory_space<vmem>>, vector<1x4x1xf32>
    %629 = vector.shape_cast %628 : vector<1x4x1xf32> to vector<4x1xf32>
    %630 = vector.broadcast %629 : vector<4x1xf32> to vector<4x256xf32>
    %631 = arith.mulf %627, %630 : vector<4x256xf32>
    %632 = arith.addf %622, %631 : vector<4x256xf32>
    %633 = arith.addf %534, %632 : vector<4x256xf32>
    %c4_380 = arith.constant 4 : index
    %c0_381 = arith.constant 0 : index
    %c0_382 = arith.constant 0 : index
    %634 = vector.load %arg22[%c4_380, %c0_381, %c0_382] : memref<9x4x1xf32, #tpu.memory_space<vmem>>, vector<1x4x1xf32>
    %635 = vector.shape_cast %634 : vector<1x4x1xf32> to vector<4x1xf32>
    %cst_383 = arith.constant 0.000000e+00 : f32
    %636 = vector.broadcast %cst_383 : f32 to vector<4x256xf32>
    %637 = arith.cmpf oge, %633, %636 : vector<4x256xf32>
    %638 = vector.broadcast %635 : vector<4x1xf32> to vector<4x256xf32>
    %639 = arith.mulf %633, %638 : vector<4x256xf32>
    %640 = arith.select %637, %633, %639 : vector<4x256xi1>, vector<4x256xf32>
    %c4_384 = arith.constant 4 : index
    %c0_385 = arith.constant 0 : index
    %c0_386 = arith.constant 0 : index
    %641 = vector.load %arg21[%c4_384, %c0_385, %c0_386] : memref<9x12x4xf32, #tpu.memory_space<vmem>>, vector<1x12x4xf32>
    %642 = vector.shape_cast %641 : vector<1x12x4xf32> to vector<12x4xf32>
    %cst_387 = arith.constant dense<0.000000e+00> : vector<12x256xf32>
    %643 = tpu.matmul %642, %640, %cst_387 {dimension_numbers = #tpu.dot_dimension_numbers<[1], [0], [0], [1], [0, 0, 1, 1], [], []>} : vector<12x4xf32>, vector<4x256xf32>, vector<12x256xf32> -> vector<12x256xf32>
    %644 = arith.addf %544, %643 : vector<12x256xf32>
    %c68_i32_388 = arith.constant 68 : i32
    %645 = tpu.dynamic_rotate %446 by %c68_i32_388 dim 1 : vector<4x256xf32>, i32 -> vector<4x256xf32>
    %c18_389 = arith.constant 18 : index
    %c0_390 = arith.constant 0 : index
    %c0_391 = arith.constant 0 : index
    %646 = vector.load %arg11[%c18_389, %c0_390, %c0_391] : memref<27x1x256xf32, #tpu.memory_space<vmem>>, vector<1x1x256xf32>
    %647 = vector.shape_cast %646 : vector<1x1x256xf32> to vector<1x256xf32>
    %648 = vector.broadcast %647 : vector<1x256xf32> to vector<4x256xf32>
    %649 = arith.mulf %645, %648 : vector<4x256xf32>
    %c45 = arith.constant 45 : index
    %c0_392 = arith.constant 0 : index
    %c0_393 = arith.constant 0 : index
    %650 = vector.load %arg20[%c45, %c0_392, %c0_393] : memref<81x4x1xf32, #tpu.memory_space<vmem>>, vector<1x4x1xf32>
    %651 = vector.shape_cast %650 : vector<1x4x1xf32> to vector<4x1xf32>
    %652 = vector.broadcast %651 : vector<4x1xf32> to vector<4x256xf32>
    %653 = arith.mulf %649, %652 : vector<4x256xf32>
    %c64_i32_394 = arith.constant 64 : i32
    %654 = tpu.dynamic_rotate %446 by %c64_i32_394 dim 1 : vector<4x256xf32>, i32 -> vector<4x256xf32>
    %c19_395 = arith.constant 19 : index
    %c0_396 = arith.constant 0 : index
    %c0_397 = arith.constant 0 : index
    %655 = vector.load %arg11[%c19_395, %c0_396, %c0_397] : memref<27x1x256xf32, #tpu.memory_space<vmem>>, vector<1x1x256xf32>
    %656 = vector.shape_cast %655 : vector<1x1x256xf32> to vector<1x256xf32>
    %657 = vector.broadcast %656 : vector<1x256xf32> to vector<4x256xf32>
    %658 = arith.mulf %654, %657 : vector<4x256xf32>
    %c46 = arith.constant 46 : index
    %c0_398 = arith.constant 0 : index
    %c0_399 = arith.constant 0 : index
    %659 = vector.load %arg20[%c46, %c0_398, %c0_399] : memref<81x4x1xf32, #tpu.memory_space<vmem>>, vector<1x4x1xf32>
    %660 = vector.shape_cast %659 : vector<1x4x1xf32> to vector<4x1xf32>
    %661 = vector.broadcast %660 : vector<4x1xf32> to vector<4x256xf32>
    %662 = arith.mulf %658, %661 : vector<4x256xf32>
    %663 = arith.addf %653, %662 : vector<4x256xf32>
    %c60_i32_400 = arith.constant 60 : i32
    %664 = tpu.dynamic_rotate %446 by %c60_i32_400 dim 1 : vector<4x256xf32>, i32 -> vector<4x256xf32>
    %c20_401 = arith.constant 20 : index
    %c0_402 = arith.constant 0 : index
    %c0_403 = arith.constant 0 : index
    %665 = vector.load %arg11[%c20_401, %c0_402, %c0_403] : memref<27x1x256xf32, #tpu.memory_space<vmem>>, vector<1x1x256xf32>
    %666 = vector.shape_cast %665 : vector<1x1x256xf32> to vector<1x256xf32>
    %667 = vector.broadcast %666 : vector<1x256xf32> to vector<4x256xf32>
    %668 = arith.mulf %664, %667 : vector<4x256xf32>
    %c47 = arith.constant 47 : index
    %c0_404 = arith.constant 0 : index
    %c0_405 = arith.constant 0 : index
    %669 = vector.load %arg20[%c47, %c0_404, %c0_405] : memref<81x4x1xf32, #tpu.memory_space<vmem>>, vector<1x4x1xf32>
    %670 = vector.shape_cast %669 : vector<1x4x1xf32> to vector<4x1xf32>
    %671 = vector.broadcast %670 : vector<4x1xf32> to vector<4x256xf32>
    %672 = arith.mulf %668, %671 : vector<4x256xf32>
    %673 = arith.addf %663, %672 : vector<4x256xf32>
    %c4_i32_406 = arith.constant 4 : i32
    %674 = tpu.dynamic_rotate %446 by %c4_i32_406 dim 1 : vector<4x256xf32>, i32 -> vector<4x256xf32>
    %c21_407 = arith.constant 21 : index
    %c0_408 = arith.constant 0 : index
    %c0_409 = arith.constant 0 : index
    %675 = vector.load %arg11[%c21_407, %c0_408, %c0_409] : memref<27x1x256xf32, #tpu.memory_space<vmem>>, vector<1x1x256xf32>
    %676 = vector.shape_cast %675 : vector<1x1x256xf32> to vector<1x256xf32>
    %677 = vector.broadcast %676 : vector<1x256xf32> to vector<4x256xf32>
    %678 = arith.mulf %674, %677 : vector<4x256xf32>
    %c48 = arith.constant 48 : index
    %c0_410 = arith.constant 0 : index
    %c0_411 = arith.constant 0 : index
    %679 = vector.load %arg20[%c48, %c0_410, %c0_411] : memref<81x4x1xf32, #tpu.memory_space<vmem>>, vector<1x4x1xf32>
    %680 = vector.shape_cast %679 : vector<1x4x1xf32> to vector<4x1xf32>
    %681 = vector.broadcast %680 : vector<4x1xf32> to vector<4x256xf32>
    %682 = arith.mulf %678, %681 : vector<4x256xf32>
    %683 = arith.addf %673, %682 : vector<4x256xf32>
    %c22_412 = arith.constant 22 : index
    %c0_413 = arith.constant 0 : index
    %c0_414 = arith.constant 0 : index
    %684 = vector.load %arg11[%c22_412, %c0_413, %c0_414] : memref<27x1x256xf32, #tpu.memory_space<vmem>>, vector<1x1x256xf32>
    %685 = vector.shape_cast %684 : vector<1x1x256xf32> to vector<1x256xf32>
    %686 = vector.broadcast %685 : vector<1x256xf32> to vector<4x256xf32>
    %687 = arith.mulf %446, %686 : vector<4x256xf32>
    %c49 = arith.constant 49 : index
    %c0_415 = arith.constant 0 : index
    %c0_416 = arith.constant 0 : index
    %688 = vector.load %arg20[%c49, %c0_415, %c0_416] : memref<81x4x1xf32, #tpu.memory_space<vmem>>, vector<1x4x1xf32>
    %689 = vector.shape_cast %688 : vector<1x4x1xf32> to vector<4x1xf32>
    %690 = vector.broadcast %689 : vector<4x1xf32> to vector<4x256xf32>
    %691 = arith.mulf %687, %690 : vector<4x256xf32>
    %692 = arith.addf %683, %691 : vector<4x256xf32>
    %c252_i32_417 = arith.constant 252 : i32
    %693 = tpu.dynamic_rotate %446 by %c252_i32_417 dim 1 : vector<4x256xf32>, i32 -> vector<4x256xf32>
    %c23_418 = arith.constant 23 : index
    %c0_419 = arith.constant 0 : index
    %c0_420 = arith.constant 0 : index
    %694 = vector.load %arg11[%c23_418, %c0_419, %c0_420] : memref<27x1x256xf32, #tpu.memory_space<vmem>>, vector<1x1x256xf32>
    %695 = vector.shape_cast %694 : vector<1x1x256xf32> to vector<1x256xf32>
    %696 = vector.broadcast %695 : vector<1x256xf32> to vector<4x256xf32>
    %697 = arith.mulf %693, %696 : vector<4x256xf32>
    %c50 = arith.constant 50 : index
    %c0_421 = arith.constant 0 : index
    %c0_422 = arith.constant 0 : index
    %698 = vector.load %arg20[%c50, %c0_421, %c0_422] : memref<81x4x1xf32, #tpu.memory_space<vmem>>, vector<1x4x1xf32>
    %699 = vector.shape_cast %698 : vector<1x4x1xf32> to vector<4x1xf32>
    %700 = vector.broadcast %699 : vector<4x1xf32> to vector<4x256xf32>
    %701 = arith.mulf %697, %700 : vector<4x256xf32>
    %702 = arith.addf %692, %701 : vector<4x256xf32>
    %c196_i32_423 = arith.constant 196 : i32
    %703 = tpu.dynamic_rotate %446 by %c196_i32_423 dim 1 : vector<4x256xf32>, i32 -> vector<4x256xf32>
    %c24_424 = arith.constant 24 : index
    %c0_425 = arith.constant 0 : index
    %c0_426 = arith.constant 0 : index
    %704 = vector.load %arg11[%c24_424, %c0_425, %c0_426] : memref<27x1x256xf32, #tpu.memory_space<vmem>>, vector<1x1x256xf32>
    %705 = vector.shape_cast %704 : vector<1x1x256xf32> to vector<1x256xf32>
    %706 = vector.broadcast %705 : vector<1x256xf32> to vector<4x256xf32>
    %707 = arith.mulf %703, %706 : vector<4x256xf32>
    %c51 = arith.constant 51 : index
    %c0_427 = arith.constant 0 : index
    %c0_428 = arith.constant 0 : index
    %708 = vector.load %arg20[%c51, %c0_427, %c0_428] : memref<81x4x1xf32, #tpu.memory_space<vmem>>, vector<1x4x1xf32>
    %709 = vector.shape_cast %708 : vector<1x4x1xf32> to vector<4x1xf32>
    %710 = vector.broadcast %709 : vector<4x1xf32> to vector<4x256xf32>
    %711 = arith.mulf %707, %710 : vector<4x256xf32>
    %712 = arith.addf %702, %711 : vector<4x256xf32>
    %c192_i32_429 = arith.constant 192 : i32
    %713 = tpu.dynamic_rotate %446 by %c192_i32_429 dim 1 : vector<4x256xf32>, i32 -> vector<4x256xf32>
    %c25_430 = arith.constant 25 : index
    %c0_431 = arith.constant 0 : index
    %c0_432 = arith.constant 0 : index
    %714 = vector.load %arg11[%c25_430, %c0_431, %c0_432] : memref<27x1x256xf32, #tpu.memory_space<vmem>>, vector<1x1x256xf32>
    %715 = vector.shape_cast %714 : vector<1x1x256xf32> to vector<1x256xf32>
    %716 = vector.broadcast %715 : vector<1x256xf32> to vector<4x256xf32>
    %717 = arith.mulf %713, %716 : vector<4x256xf32>
    %c52 = arith.constant 52 : index
    %c0_433 = arith.constant 0 : index
    %c0_434 = arith.constant 0 : index
    %718 = vector.load %arg20[%c52, %c0_433, %c0_434] : memref<81x4x1xf32, #tpu.memory_space<vmem>>, vector<1x4x1xf32>
    %719 = vector.shape_cast %718 : vector<1x4x1xf32> to vector<4x1xf32>
    %720 = vector.broadcast %719 : vector<4x1xf32> to vector<4x256xf32>
    %721 = arith.mulf %717, %720 : vector<4x256xf32>
    %722 = arith.addf %712, %721 : vector<4x256xf32>
    %c188_i32_435 = arith.constant 188 : i32
    %723 = tpu.dynamic_rotate %446 by %c188_i32_435 dim 1 : vector<4x256xf32>, i32 -> vector<4x256xf32>
    %c26_436 = arith.constant 26 : index
    %c0_437 = arith.constant 0 : index
    %c0_438 = arith.constant 0 : index
    %724 = vector.load %arg11[%c26_436, %c0_437, %c0_438] : memref<27x1x256xf32, #tpu.memory_space<vmem>>, vector<1x1x256xf32>
    %725 = vector.shape_cast %724 : vector<1x1x256xf32> to vector<1x256xf32>
    %726 = vector.broadcast %725 : vector<1x256xf32> to vector<4x256xf32>
    %727 = arith.mulf %723, %726 : vector<4x256xf32>
    %c53 = arith.constant 53 : index
    %c0_439 = arith.constant 0 : index
    %c0_440 = arith.constant 0 : index
    %728 = vector.load %arg20[%c53, %c0_439, %c0_440] : memref<81x4x1xf32, #tpu.memory_space<vmem>>, vector<1x4x1xf32>
    %729 = vector.shape_cast %728 : vector<1x4x1xf32> to vector<4x1xf32>
    %730 = vector.broadcast %729 : vector<4x1xf32> to vector<4x256xf32>
    %731 = arith.mulf %727, %730 : vector<4x256xf32>
    %732 = arith.addf %722, %731 : vector<4x256xf32>
    %733 = arith.addf %633, %732 : vector<4x256xf32>
    %c5_441 = arith.constant 5 : index
    %c0_442 = arith.constant 0 : index
    %c0_443 = arith.constant 0 : index
    %734 = vector.load %arg22[%c5_441, %c0_442, %c0_443] : memref<9x4x1xf32, #tpu.memory_space<vmem>>, vector<1x4x1xf32>
    %735 = vector.shape_cast %734 : vector<1x4x1xf32> to vector<4x1xf32>
    %cst_444 = arith.constant 0.000000e+00 : f32
    %736 = vector.broadcast %cst_444 : f32 to vector<4x256xf32>
    %737 = arith.cmpf oge, %733, %736 : vector<4x256xf32>
    %738 = vector.broadcast %735 : vector<4x1xf32> to vector<4x256xf32>
    %739 = arith.mulf %733, %738 : vector<4x256xf32>
    %740 = arith.select %737, %733, %739 : vector<4x256xi1>, vector<4x256xf32>
    %c5_445 = arith.constant 5 : index
    %c0_446 = arith.constant 0 : index
    %c0_447 = arith.constant 0 : index
    %741 = vector.load %arg21[%c5_445, %c0_446, %c0_447] : memref<9x12x4xf32, #tpu.memory_space<vmem>>, vector<1x12x4xf32>
    %742 = vector.shape_cast %741 : vector<1x12x4xf32> to vector<12x4xf32>
    %cst_448 = arith.constant dense<0.000000e+00> : vector<12x256xf32>
    %743 = tpu.matmul %742, %740, %cst_448 {dimension_numbers = #tpu.dot_dimension_numbers<[1], [0], [0], [1], [0, 0, 1, 1], [], []>} : vector<12x4xf32>, vector<4x256xf32>, vector<12x256xf32> -> vector<12x256xf32>
    %744 = arith.addf %644, %743 : vector<12x256xf32>
    %745 = arith.addf %744, %436 : vector<12x256xf32>
    %c1_449 = arith.constant 1 : index
    %c0_450 = arith.constant 0 : index
    %c0_451 = arith.constant 0 : index
    %746 = vector.load %arg23[%c1_449, %c0_450, %c0_451] : memref<3x12x1xf32, #tpu.memory_space<vmem>>, vector<1x12x1xf32>
    %747 = vector.shape_cast %746 : vector<1x12x1xf32> to vector<12x1xf32>
    %cst_452 = arith.constant 0.000000e+00 : f32
    %748 = vector.broadcast %cst_452 : f32 to vector<12x256xf32>
    %749 = arith.cmpf oge, %745, %748 : vector<12x256xf32>
    %750 = vector.broadcast %747 : vector<12x1xf32> to vector<12x256xf32>
    %751 = arith.mulf %745, %750 : vector<12x256xf32>
    %752 = arith.select %749, %745, %751 : vector<12x256xi1>, vector<12x256xf32>
    %c2_453 = arith.constant 2 : index
    %c0_454 = arith.constant 0 : index
    %c0_455 = arith.constant 0 : index
    %753 = vector.load %arg18[%c2_453, %c0_454, %c0_455] : memref<3x4x12xf32, #tpu.memory_space<vmem>>, vector<1x4x12xf32>
    %754 = vector.shape_cast %753 : vector<1x4x12xf32> to vector<4x12xf32>
    %cst_456 = arith.constant dense<0.000000e+00> : vector<4x256xf32>
    %755 = tpu.matmul %754, %752, %cst_456 {dimension_numbers = #tpu.dot_dimension_numbers<[1], [0], [0], [1], [0, 0, 1, 1], [], []>} : vector<4x12xf32>, vector<12x256xf32>, vector<4x256xf32> -> vector<4x256xf32>
    %c2_457 = arith.constant 2 : index
    %c0_458 = arith.constant 0 : index
    %c0_459 = arith.constant 0 : index
    %756 = vector.load %arg19[%c2_457, %c0_458, %c0_459] : memref<3x4x1xf32, #tpu.memory_space<vmem>>, vector<1x4x1xf32>
    %757 = vector.shape_cast %756 : vector<1x4x1xf32> to vector<4x1xf32>
    %cst_460 = arith.constant 0.000000e+00 : f32
    %758 = vector.broadcast %cst_460 : f32 to vector<4x256xf32>
    %759 = arith.cmpf oge, %755, %758 : vector<4x256xf32>
    %760 = vector.broadcast %757 : vector<4x1xf32> to vector<4x256xf32>
    %761 = arith.mulf %755, %760 : vector<4x256xf32>
    %762 = arith.select %759, %755, %761 : vector<4x256xi1>, vector<4x256xf32>
    %c17_i32_461 = arith.constant 17 : i32
    %763 = tpu.dynamic_rotate %762 by %c17_i32_461 dim 1 : vector<4x256xf32>, i32 -> vector<4x256xf32>
    %c0_462 = arith.constant 0 : index
    %c0_463 = arith.constant 0 : index
    %c0_464 = arith.constant 0 : index
    %764 = vector.load %arg11[%c0_462, %c0_463, %c0_464] : memref<27x1x256xf32, #tpu.memory_space<vmem>>, vector<1x1x256xf32>
    %765 = vector.shape_cast %764 : vector<1x1x256xf32> to vector<1x256xf32>
    %766 = vector.broadcast %765 : vector<1x256xf32> to vector<4x256xf32>
    %767 = arith.mulf %763, %766 : vector<4x256xf32>
    %c54 = arith.constant 54 : index
    %c0_465 = arith.constant 0 : index
    %c0_466 = arith.constant 0 : index
    %768 = vector.load %arg20[%c54, %c0_465, %c0_466] : memref<81x4x1xf32, #tpu.memory_space<vmem>>, vector<1x4x1xf32>
    %769 = vector.shape_cast %768 : vector<1x4x1xf32> to vector<4x1xf32>
    %770 = vector.broadcast %769 : vector<4x1xf32> to vector<4x256xf32>
    %771 = arith.mulf %767, %770 : vector<4x256xf32>
    %c16_i32_467 = arith.constant 16 : i32
    %772 = tpu.dynamic_rotate %762 by %c16_i32_467 dim 1 : vector<4x256xf32>, i32 -> vector<4x256xf32>
    %c1_468 = arith.constant 1 : index
    %c0_469 = arith.constant 0 : index
    %c0_470 = arith.constant 0 : index
    %773 = vector.load %arg11[%c1_468, %c0_469, %c0_470] : memref<27x1x256xf32, #tpu.memory_space<vmem>>, vector<1x1x256xf32>
    %774 = vector.shape_cast %773 : vector<1x1x256xf32> to vector<1x256xf32>
    %775 = vector.broadcast %774 : vector<1x256xf32> to vector<4x256xf32>
    %776 = arith.mulf %772, %775 : vector<4x256xf32>
    %c55 = arith.constant 55 : index
    %c0_471 = arith.constant 0 : index
    %c0_472 = arith.constant 0 : index
    %777 = vector.load %arg20[%c55, %c0_471, %c0_472] : memref<81x4x1xf32, #tpu.memory_space<vmem>>, vector<1x4x1xf32>
    %778 = vector.shape_cast %777 : vector<1x4x1xf32> to vector<4x1xf32>
    %779 = vector.broadcast %778 : vector<4x1xf32> to vector<4x256xf32>
    %780 = arith.mulf %776, %779 : vector<4x256xf32>
    %781 = arith.addf %771, %780 : vector<4x256xf32>
    %c15_i32_473 = arith.constant 15 : i32
    %782 = tpu.dynamic_rotate %762 by %c15_i32_473 dim 1 : vector<4x256xf32>, i32 -> vector<4x256xf32>
    %c2_474 = arith.constant 2 : index
    %c0_475 = arith.constant 0 : index
    %c0_476 = arith.constant 0 : index
    %783 = vector.load %arg11[%c2_474, %c0_475, %c0_476] : memref<27x1x256xf32, #tpu.memory_space<vmem>>, vector<1x1x256xf32>
    %784 = vector.shape_cast %783 : vector<1x1x256xf32> to vector<1x256xf32>
    %785 = vector.broadcast %784 : vector<1x256xf32> to vector<4x256xf32>
    %786 = arith.mulf %782, %785 : vector<4x256xf32>
    %c56 = arith.constant 56 : index
    %c0_477 = arith.constant 0 : index
    %c0_478 = arith.constant 0 : index
    %787 = vector.load %arg20[%c56, %c0_477, %c0_478] : memref<81x4x1xf32, #tpu.memory_space<vmem>>, vector<1x4x1xf32>
    %788 = vector.shape_cast %787 : vector<1x4x1xf32> to vector<4x1xf32>
    %789 = vector.broadcast %788 : vector<4x1xf32> to vector<4x256xf32>
    %790 = arith.mulf %786, %789 : vector<4x256xf32>
    %791 = arith.addf %781, %790 : vector<4x256xf32>
    %c1_i32_479 = arith.constant 1 : i32
    %792 = tpu.dynamic_rotate %762 by %c1_i32_479 dim 1 : vector<4x256xf32>, i32 -> vector<4x256xf32>
    %c3_480 = arith.constant 3 : index
    %c0_481 = arith.constant 0 : index
    %c0_482 = arith.constant 0 : index
    %793 = vector.load %arg11[%c3_480, %c0_481, %c0_482] : memref<27x1x256xf32, #tpu.memory_space<vmem>>, vector<1x1x256xf32>
    %794 = vector.shape_cast %793 : vector<1x1x256xf32> to vector<1x256xf32>
    %795 = vector.broadcast %794 : vector<1x256xf32> to vector<4x256xf32>
    %796 = arith.mulf %792, %795 : vector<4x256xf32>
    %c57 = arith.constant 57 : index
    %c0_483 = arith.constant 0 : index
    %c0_484 = arith.constant 0 : index
    %797 = vector.load %arg20[%c57, %c0_483, %c0_484] : memref<81x4x1xf32, #tpu.memory_space<vmem>>, vector<1x4x1xf32>
    %798 = vector.shape_cast %797 : vector<1x4x1xf32> to vector<4x1xf32>
    %799 = vector.broadcast %798 : vector<4x1xf32> to vector<4x256xf32>
    %800 = arith.mulf %796, %799 : vector<4x256xf32>
    %801 = arith.addf %791, %800 : vector<4x256xf32>
    %c4_485 = arith.constant 4 : index
    %c0_486 = arith.constant 0 : index
    %c0_487 = arith.constant 0 : index
    %802 = vector.load %arg11[%c4_485, %c0_486, %c0_487] : memref<27x1x256xf32, #tpu.memory_space<vmem>>, vector<1x1x256xf32>
    %803 = vector.shape_cast %802 : vector<1x1x256xf32> to vector<1x256xf32>
    %804 = vector.broadcast %803 : vector<1x256xf32> to vector<4x256xf32>
    %805 = arith.mulf %762, %804 : vector<4x256xf32>
    %c58 = arith.constant 58 : index
    %c0_488 = arith.constant 0 : index
    %c0_489 = arith.constant 0 : index
    %806 = vector.load %arg20[%c58, %c0_488, %c0_489] : memref<81x4x1xf32, #tpu.memory_space<vmem>>, vector<1x4x1xf32>
    %807 = vector.shape_cast %806 : vector<1x4x1xf32> to vector<4x1xf32>
    %808 = vector.broadcast %807 : vector<4x1xf32> to vector<4x256xf32>
    %809 = arith.mulf %805, %808 : vector<4x256xf32>
    %810 = arith.addf %801, %809 : vector<4x256xf32>
    %c255_i32_490 = arith.constant 255 : i32
    %811 = tpu.dynamic_rotate %762 by %c255_i32_490 dim 1 : vector<4x256xf32>, i32 -> vector<4x256xf32>
    %c5_491 = arith.constant 5 : index
    %c0_492 = arith.constant 0 : index
    %c0_493 = arith.constant 0 : index
    %812 = vector.load %arg11[%c5_491, %c0_492, %c0_493] : memref<27x1x256xf32, #tpu.memory_space<vmem>>, vector<1x1x256xf32>
    %813 = vector.shape_cast %812 : vector<1x1x256xf32> to vector<1x256xf32>
    %814 = vector.broadcast %813 : vector<1x256xf32> to vector<4x256xf32>
    %815 = arith.mulf %811, %814 : vector<4x256xf32>
    %c59 = arith.constant 59 : index
    %c0_494 = arith.constant 0 : index
    %c0_495 = arith.constant 0 : index
    %816 = vector.load %arg20[%c59, %c0_494, %c0_495] : memref<81x4x1xf32, #tpu.memory_space<vmem>>, vector<1x4x1xf32>
    %817 = vector.shape_cast %816 : vector<1x4x1xf32> to vector<4x1xf32>
    %818 = vector.broadcast %817 : vector<4x1xf32> to vector<4x256xf32>
    %819 = arith.mulf %815, %818 : vector<4x256xf32>
    %820 = arith.addf %810, %819 : vector<4x256xf32>
    %c241_i32_496 = arith.constant 241 : i32
    %821 = tpu.dynamic_rotate %762 by %c241_i32_496 dim 1 : vector<4x256xf32>, i32 -> vector<4x256xf32>
    %c6_497 = arith.constant 6 : index
    %c0_498 = arith.constant 0 : index
    %c0_499 = arith.constant 0 : index
    %822 = vector.load %arg11[%c6_497, %c0_498, %c0_499] : memref<27x1x256xf32, #tpu.memory_space<vmem>>, vector<1x1x256xf32>
    %823 = vector.shape_cast %822 : vector<1x1x256xf32> to vector<1x256xf32>
    %824 = vector.broadcast %823 : vector<1x256xf32> to vector<4x256xf32>
    %825 = arith.mulf %821, %824 : vector<4x256xf32>
    %c60 = arith.constant 60 : index
    %c0_500 = arith.constant 0 : index
    %c0_501 = arith.constant 0 : index
    %826 = vector.load %arg20[%c60, %c0_500, %c0_501] : memref<81x4x1xf32, #tpu.memory_space<vmem>>, vector<1x4x1xf32>
    %827 = vector.shape_cast %826 : vector<1x4x1xf32> to vector<4x1xf32>
    %828 = vector.broadcast %827 : vector<4x1xf32> to vector<4x256xf32>
    %829 = arith.mulf %825, %828 : vector<4x256xf32>
    %830 = arith.addf %820, %829 : vector<4x256xf32>
    %c240_i32_502 = arith.constant 240 : i32
    %831 = tpu.dynamic_rotate %762 by %c240_i32_502 dim 1 : vector<4x256xf32>, i32 -> vector<4x256xf32>
    %c7_503 = arith.constant 7 : index
    %c0_504 = arith.constant 0 : index
    %c0_505 = arith.constant 0 : index
    %832 = vector.load %arg11[%c7_503, %c0_504, %c0_505] : memref<27x1x256xf32, #tpu.memory_space<vmem>>, vector<1x1x256xf32>
    %833 = vector.shape_cast %832 : vector<1x1x256xf32> to vector<1x256xf32>
    %834 = vector.broadcast %833 : vector<1x256xf32> to vector<4x256xf32>
    %835 = arith.mulf %831, %834 : vector<4x256xf32>
    %c61 = arith.constant 61 : index
    %c0_506 = arith.constant 0 : index
    %c0_507 = arith.constant 0 : index
    %836 = vector.load %arg20[%c61, %c0_506, %c0_507] : memref<81x4x1xf32, #tpu.memory_space<vmem>>, vector<1x4x1xf32>
    %837 = vector.shape_cast %836 : vector<1x4x1xf32> to vector<4x1xf32>
    %838 = vector.broadcast %837 : vector<4x1xf32> to vector<4x256xf32>
    %839 = arith.mulf %835, %838 : vector<4x256xf32>
    %840 = arith.addf %830, %839 : vector<4x256xf32>
    %c239_i32_508 = arith.constant 239 : i32
    %841 = tpu.dynamic_rotate %762 by %c239_i32_508 dim 1 : vector<4x256xf32>, i32 -> vector<4x256xf32>
    %c8_509 = arith.constant 8 : index
    %c0_510 = arith.constant 0 : index
    %c0_511 = arith.constant 0 : index
    %842 = vector.load %arg11[%c8_509, %c0_510, %c0_511] : memref<27x1x256xf32, #tpu.memory_space<vmem>>, vector<1x1x256xf32>
    %843 = vector.shape_cast %842 : vector<1x1x256xf32> to vector<1x256xf32>
    %844 = vector.broadcast %843 : vector<1x256xf32> to vector<4x256xf32>
    %845 = arith.mulf %841, %844 : vector<4x256xf32>
    %c62 = arith.constant 62 : index
    %c0_512 = arith.constant 0 : index
    %c0_513 = arith.constant 0 : index
    %846 = vector.load %arg20[%c62, %c0_512, %c0_513] : memref<81x4x1xf32, #tpu.memory_space<vmem>>, vector<1x4x1xf32>
    %847 = vector.shape_cast %846 : vector<1x4x1xf32> to vector<4x1xf32>
    %848 = vector.broadcast %847 : vector<4x1xf32> to vector<4x256xf32>
    %849 = arith.mulf %845, %848 : vector<4x256xf32>
    %850 = arith.addf %840, %849 : vector<4x256xf32>
    %c6_514 = arith.constant 6 : index
    %c0_515 = arith.constant 0 : index
    %c0_516 = arith.constant 0 : index
    %851 = vector.load %arg22[%c6_514, %c0_515, %c0_516] : memref<9x4x1xf32, #tpu.memory_space<vmem>>, vector<1x4x1xf32>
    %852 = vector.shape_cast %851 : vector<1x4x1xf32> to vector<4x1xf32>
    %cst_517 = arith.constant 0.000000e+00 : f32
    %853 = vector.broadcast %cst_517 : f32 to vector<4x256xf32>
    %854 = arith.cmpf oge, %850, %853 : vector<4x256xf32>
    %855 = vector.broadcast %852 : vector<4x1xf32> to vector<4x256xf32>
    %856 = arith.mulf %850, %855 : vector<4x256xf32>
    %857 = arith.select %854, %850, %856 : vector<4x256xi1>, vector<4x256xf32>
    %c6_518 = arith.constant 6 : index
    %c0_519 = arith.constant 0 : index
    %c0_520 = arith.constant 0 : index
    %858 = vector.load %arg21[%c6_518, %c0_519, %c0_520] : memref<9x12x4xf32, #tpu.memory_space<vmem>>, vector<1x12x4xf32>
    %859 = vector.shape_cast %858 : vector<1x12x4xf32> to vector<12x4xf32>
    %cst_521 = arith.constant dense<0.000000e+00> : vector<12x256xf32>
    %860 = tpu.matmul %859, %857, %cst_521 {dimension_numbers = #tpu.dot_dimension_numbers<[1], [0], [0], [1], [0, 0, 1, 1], [], []>} : vector<12x4xf32>, vector<4x256xf32>, vector<12x256xf32> -> vector<12x256xf32>
    %c34_i32_522 = arith.constant 34 : i32
    %861 = tpu.dynamic_rotate %762 by %c34_i32_522 dim 1 : vector<4x256xf32>, i32 -> vector<4x256xf32>
    %c9_523 = arith.constant 9 : index
    %c0_524 = arith.constant 0 : index
    %c0_525 = arith.constant 0 : index
    %862 = vector.load %arg11[%c9_523, %c0_524, %c0_525] : memref<27x1x256xf32, #tpu.memory_space<vmem>>, vector<1x1x256xf32>
    %863 = vector.shape_cast %862 : vector<1x1x256xf32> to vector<1x256xf32>
    %864 = vector.broadcast %863 : vector<1x256xf32> to vector<4x256xf32>
    %865 = arith.mulf %861, %864 : vector<4x256xf32>
    %c63 = arith.constant 63 : index
    %c0_526 = arith.constant 0 : index
    %c0_527 = arith.constant 0 : index
    %866 = vector.load %arg20[%c63, %c0_526, %c0_527] : memref<81x4x1xf32, #tpu.memory_space<vmem>>, vector<1x4x1xf32>
    %867 = vector.shape_cast %866 : vector<1x4x1xf32> to vector<4x1xf32>
    %868 = vector.broadcast %867 : vector<4x1xf32> to vector<4x256xf32>
    %869 = arith.mulf %865, %868 : vector<4x256xf32>
    %c32_i32_528 = arith.constant 32 : i32
    %870 = tpu.dynamic_rotate %762 by %c32_i32_528 dim 1 : vector<4x256xf32>, i32 -> vector<4x256xf32>
    %c10_529 = arith.constant 10 : index
    %c0_530 = arith.constant 0 : index
    %c0_531 = arith.constant 0 : index
    %871 = vector.load %arg11[%c10_529, %c0_530, %c0_531] : memref<27x1x256xf32, #tpu.memory_space<vmem>>, vector<1x1x256xf32>
    %872 = vector.shape_cast %871 : vector<1x1x256xf32> to vector<1x256xf32>
    %873 = vector.broadcast %872 : vector<1x256xf32> to vector<4x256xf32>
    %874 = arith.mulf %870, %873 : vector<4x256xf32>
    %c64 = arith.constant 64 : index
    %c0_532 = arith.constant 0 : index
    %c0_533 = arith.constant 0 : index
    %875 = vector.load %arg20[%c64, %c0_532, %c0_533] : memref<81x4x1xf32, #tpu.memory_space<vmem>>, vector<1x4x1xf32>
    %876 = vector.shape_cast %875 : vector<1x4x1xf32> to vector<4x1xf32>
    %877 = vector.broadcast %876 : vector<4x1xf32> to vector<4x256xf32>
    %878 = arith.mulf %874, %877 : vector<4x256xf32>
    %879 = arith.addf %869, %878 : vector<4x256xf32>
    %c30_i32_534 = arith.constant 30 : i32
    %880 = tpu.dynamic_rotate %762 by %c30_i32_534 dim 1 : vector<4x256xf32>, i32 -> vector<4x256xf32>
    %c11_535 = arith.constant 11 : index
    %c0_536 = arith.constant 0 : index
    %c0_537 = arith.constant 0 : index
    %881 = vector.load %arg11[%c11_535, %c0_536, %c0_537] : memref<27x1x256xf32, #tpu.memory_space<vmem>>, vector<1x1x256xf32>
    %882 = vector.shape_cast %881 : vector<1x1x256xf32> to vector<1x256xf32>
    %883 = vector.broadcast %882 : vector<1x256xf32> to vector<4x256xf32>
    %884 = arith.mulf %880, %883 : vector<4x256xf32>
    %c65 = arith.constant 65 : index
    %c0_538 = arith.constant 0 : index
    %c0_539 = arith.constant 0 : index
    %885 = vector.load %arg20[%c65, %c0_538, %c0_539] : memref<81x4x1xf32, #tpu.memory_space<vmem>>, vector<1x4x1xf32>
    %886 = vector.shape_cast %885 : vector<1x4x1xf32> to vector<4x1xf32>
    %887 = vector.broadcast %886 : vector<4x1xf32> to vector<4x256xf32>
    %888 = arith.mulf %884, %887 : vector<4x256xf32>
    %889 = arith.addf %879, %888 : vector<4x256xf32>
    %c2_i32_540 = arith.constant 2 : i32
    %890 = tpu.dynamic_rotate %762 by %c2_i32_540 dim 1 : vector<4x256xf32>, i32 -> vector<4x256xf32>
    %c12_541 = arith.constant 12 : index
    %c0_542 = arith.constant 0 : index
    %c0_543 = arith.constant 0 : index
    %891 = vector.load %arg11[%c12_541, %c0_542, %c0_543] : memref<27x1x256xf32, #tpu.memory_space<vmem>>, vector<1x1x256xf32>
    %892 = vector.shape_cast %891 : vector<1x1x256xf32> to vector<1x256xf32>
    %893 = vector.broadcast %892 : vector<1x256xf32> to vector<4x256xf32>
    %894 = arith.mulf %890, %893 : vector<4x256xf32>
    %c66 = arith.constant 66 : index
    %c0_544 = arith.constant 0 : index
    %c0_545 = arith.constant 0 : index
    %895 = vector.load %arg20[%c66, %c0_544, %c0_545] : memref<81x4x1xf32, #tpu.memory_space<vmem>>, vector<1x4x1xf32>
    %896 = vector.shape_cast %895 : vector<1x4x1xf32> to vector<4x1xf32>
    %897 = vector.broadcast %896 : vector<4x1xf32> to vector<4x256xf32>
    %898 = arith.mulf %894, %897 : vector<4x256xf32>
    %899 = arith.addf %889, %898 : vector<4x256xf32>
    %c13_546 = arith.constant 13 : index
    %c0_547 = arith.constant 0 : index
    %c0_548 = arith.constant 0 : index
    %900 = vector.load %arg11[%c13_546, %c0_547, %c0_548] : memref<27x1x256xf32, #tpu.memory_space<vmem>>, vector<1x1x256xf32>
    %901 = vector.shape_cast %900 : vector<1x1x256xf32> to vector<1x256xf32>
    %902 = vector.broadcast %901 : vector<1x256xf32> to vector<4x256xf32>
    %903 = arith.mulf %762, %902 : vector<4x256xf32>
    %c67 = arith.constant 67 : index
    %c0_549 = arith.constant 0 : index
    %c0_550 = arith.constant 0 : index
    %904 = vector.load %arg20[%c67, %c0_549, %c0_550] : memref<81x4x1xf32, #tpu.memory_space<vmem>>, vector<1x4x1xf32>
    %905 = vector.shape_cast %904 : vector<1x4x1xf32> to vector<4x1xf32>
    %906 = vector.broadcast %905 : vector<4x1xf32> to vector<4x256xf32>
    %907 = arith.mulf %903, %906 : vector<4x256xf32>
    %908 = arith.addf %899, %907 : vector<4x256xf32>
    %c254_i32_551 = arith.constant 254 : i32
    %909 = tpu.dynamic_rotate %762 by %c254_i32_551 dim 1 : vector<4x256xf32>, i32 -> vector<4x256xf32>
    %c14_552 = arith.constant 14 : index
    %c0_553 = arith.constant 0 : index
    %c0_554 = arith.constant 0 : index
    %910 = vector.load %arg11[%c14_552, %c0_553, %c0_554] : memref<27x1x256xf32, #tpu.memory_space<vmem>>, vector<1x1x256xf32>
    %911 = vector.shape_cast %910 : vector<1x1x256xf32> to vector<1x256xf32>
    %912 = vector.broadcast %911 : vector<1x256xf32> to vector<4x256xf32>
    %913 = arith.mulf %909, %912 : vector<4x256xf32>
    %c68 = arith.constant 68 : index
    %c0_555 = arith.constant 0 : index
    %c0_556 = arith.constant 0 : index
    %914 = vector.load %arg20[%c68, %c0_555, %c0_556] : memref<81x4x1xf32, #tpu.memory_space<vmem>>, vector<1x4x1xf32>
    %915 = vector.shape_cast %914 : vector<1x4x1xf32> to vector<4x1xf32>
    %916 = vector.broadcast %915 : vector<4x1xf32> to vector<4x256xf32>
    %917 = arith.mulf %913, %916 : vector<4x256xf32>
    %918 = arith.addf %908, %917 : vector<4x256xf32>
    %c226_i32_557 = arith.constant 226 : i32
    %919 = tpu.dynamic_rotate %762 by %c226_i32_557 dim 1 : vector<4x256xf32>, i32 -> vector<4x256xf32>
    %c15_558 = arith.constant 15 : index
    %c0_559 = arith.constant 0 : index
    %c0_560 = arith.constant 0 : index
    %920 = vector.load %arg11[%c15_558, %c0_559, %c0_560] : memref<27x1x256xf32, #tpu.memory_space<vmem>>, vector<1x1x256xf32>
    %921 = vector.shape_cast %920 : vector<1x1x256xf32> to vector<1x256xf32>
    %922 = vector.broadcast %921 : vector<1x256xf32> to vector<4x256xf32>
    %923 = arith.mulf %919, %922 : vector<4x256xf32>
    %c69 = arith.constant 69 : index
    %c0_561 = arith.constant 0 : index
    %c0_562 = arith.constant 0 : index
    %924 = vector.load %arg20[%c69, %c0_561, %c0_562] : memref<81x4x1xf32, #tpu.memory_space<vmem>>, vector<1x4x1xf32>
    %925 = vector.shape_cast %924 : vector<1x4x1xf32> to vector<4x1xf32>
    %926 = vector.broadcast %925 : vector<4x1xf32> to vector<4x256xf32>
    %927 = arith.mulf %923, %926 : vector<4x256xf32>
    %928 = arith.addf %918, %927 : vector<4x256xf32>
    %c224_i32_563 = arith.constant 224 : i32
    %929 = tpu.dynamic_rotate %762 by %c224_i32_563 dim 1 : vector<4x256xf32>, i32 -> vector<4x256xf32>
    %c16_564 = arith.constant 16 : index
    %c0_565 = arith.constant 0 : index
    %c0_566 = arith.constant 0 : index
    %930 = vector.load %arg11[%c16_564, %c0_565, %c0_566] : memref<27x1x256xf32, #tpu.memory_space<vmem>>, vector<1x1x256xf32>
    %931 = vector.shape_cast %930 : vector<1x1x256xf32> to vector<1x256xf32>
    %932 = vector.broadcast %931 : vector<1x256xf32> to vector<4x256xf32>
    %933 = arith.mulf %929, %932 : vector<4x256xf32>
    %c70 = arith.constant 70 : index
    %c0_567 = arith.constant 0 : index
    %c0_568 = arith.constant 0 : index
    %934 = vector.load %arg20[%c70, %c0_567, %c0_568] : memref<81x4x1xf32, #tpu.memory_space<vmem>>, vector<1x4x1xf32>
    %935 = vector.shape_cast %934 : vector<1x4x1xf32> to vector<4x1xf32>
    %936 = vector.broadcast %935 : vector<4x1xf32> to vector<4x256xf32>
    %937 = arith.mulf %933, %936 : vector<4x256xf32>
    %938 = arith.addf %928, %937 : vector<4x256xf32>
    %c222_i32_569 = arith.constant 222 : i32
    %939 = tpu.dynamic_rotate %762 by %c222_i32_569 dim 1 : vector<4x256xf32>, i32 -> vector<4x256xf32>
    %c17_570 = arith.constant 17 : index
    %c0_571 = arith.constant 0 : index
    %c0_572 = arith.constant 0 : index
    %940 = vector.load %arg11[%c17_570, %c0_571, %c0_572] : memref<27x1x256xf32, #tpu.memory_space<vmem>>, vector<1x1x256xf32>
    %941 = vector.shape_cast %940 : vector<1x1x256xf32> to vector<1x256xf32>
    %942 = vector.broadcast %941 : vector<1x256xf32> to vector<4x256xf32>
    %943 = arith.mulf %939, %942 : vector<4x256xf32>
    %c71 = arith.constant 71 : index
    %c0_573 = arith.constant 0 : index
    %c0_574 = arith.constant 0 : index
    %944 = vector.load %arg20[%c71, %c0_573, %c0_574] : memref<81x4x1xf32, #tpu.memory_space<vmem>>, vector<1x4x1xf32>
    %945 = vector.shape_cast %944 : vector<1x4x1xf32> to vector<4x1xf32>
    %946 = vector.broadcast %945 : vector<4x1xf32> to vector<4x256xf32>
    %947 = arith.mulf %943, %946 : vector<4x256xf32>
    %948 = arith.addf %938, %947 : vector<4x256xf32>
    %949 = arith.addf %850, %948 : vector<4x256xf32>
    %c7_575 = arith.constant 7 : index
    %c0_576 = arith.constant 0 : index
    %c0_577 = arith.constant 0 : index
    %950 = vector.load %arg22[%c7_575, %c0_576, %c0_577] : memref<9x4x1xf32, #tpu.memory_space<vmem>>, vector<1x4x1xf32>
    %951 = vector.shape_cast %950 : vector<1x4x1xf32> to vector<4x1xf32>
    %cst_578 = arith.constant 0.000000e+00 : f32
    %952 = vector.broadcast %cst_578 : f32 to vector<4x256xf32>
    %953 = arith.cmpf oge, %949, %952 : vector<4x256xf32>
    %954 = vector.broadcast %951 : vector<4x1xf32> to vector<4x256xf32>
    %955 = arith.mulf %949, %954 : vector<4x256xf32>
    %956 = arith.select %953, %949, %955 : vector<4x256xi1>, vector<4x256xf32>
    %c7_579 = arith.constant 7 : index
    %c0_580 = arith.constant 0 : index
    %c0_581 = arith.constant 0 : index
    %957 = vector.load %arg21[%c7_579, %c0_580, %c0_581] : memref<9x12x4xf32, #tpu.memory_space<vmem>>, vector<1x12x4xf32>
    %958 = vector.shape_cast %957 : vector<1x12x4xf32> to vector<12x4xf32>
    %cst_582 = arith.constant dense<0.000000e+00> : vector<12x256xf32>
    %959 = tpu.matmul %958, %956, %cst_582 {dimension_numbers = #tpu.dot_dimension_numbers<[1], [0], [0], [1], [0, 0, 1, 1], [], []>} : vector<12x4xf32>, vector<4x256xf32>, vector<12x256xf32> -> vector<12x256xf32>
    %960 = arith.addf %860, %959 : vector<12x256xf32>
    %c68_i32_583 = arith.constant 68 : i32
    %961 = tpu.dynamic_rotate %762 by %c68_i32_583 dim 1 : vector<4x256xf32>, i32 -> vector<4x256xf32>
    %c18_584 = arith.constant 18 : index
    %c0_585 = arith.constant 0 : index
    %c0_586 = arith.constant 0 : index
    %962 = vector.load %arg11[%c18_584, %c0_585, %c0_586] : memref<27x1x256xf32, #tpu.memory_space<vmem>>, vector<1x1x256xf32>
    %963 = vector.shape_cast %962 : vector<1x1x256xf32> to vector<1x256xf32>
    %964 = vector.broadcast %963 : vector<1x256xf32> to vector<4x256xf32>
    %965 = arith.mulf %961, %964 : vector<4x256xf32>
    %c72 = arith.constant 72 : index
    %c0_587 = arith.constant 0 : index
    %c0_588 = arith.constant 0 : index
    %966 = vector.load %arg20[%c72, %c0_587, %c0_588] : memref<81x4x1xf32, #tpu.memory_space<vmem>>, vector<1x4x1xf32>
    %967 = vector.shape_cast %966 : vector<1x4x1xf32> to vector<4x1xf32>
    %968 = vector.broadcast %967 : vector<4x1xf32> to vector<4x256xf32>
    %969 = arith.mulf %965, %968 : vector<4x256xf32>
    %c64_i32_589 = arith.constant 64 : i32
    %970 = tpu.dynamic_rotate %762 by %c64_i32_589 dim 1 : vector<4x256xf32>, i32 -> vector<4x256xf32>
    %c19_590 = arith.constant 19 : index
    %c0_591 = arith.constant 0 : index
    %c0_592 = arith.constant 0 : index
    %971 = vector.load %arg11[%c19_590, %c0_591, %c0_592] : memref<27x1x256xf32, #tpu.memory_space<vmem>>, vector<1x1x256xf32>
    %972 = vector.shape_cast %971 : vector<1x1x256xf32> to vector<1x256xf32>
    %973 = vector.broadcast %972 : vector<1x256xf32> to vector<4x256xf32>
    %974 = arith.mulf %970, %973 : vector<4x256xf32>
    %c73 = arith.constant 73 : index
    %c0_593 = arith.constant 0 : index
    %c0_594 = arith.constant 0 : index
    %975 = vector.load %arg20[%c73, %c0_593, %c0_594] : memref<81x4x1xf32, #tpu.memory_space<vmem>>, vector<1x4x1xf32>
    %976 = vector.shape_cast %975 : vector<1x4x1xf32> to vector<4x1xf32>
    %977 = vector.broadcast %976 : vector<4x1xf32> to vector<4x256xf32>
    %978 = arith.mulf %974, %977 : vector<4x256xf32>
    %979 = arith.addf %969, %978 : vector<4x256xf32>
    %c60_i32_595 = arith.constant 60 : i32
    %980 = tpu.dynamic_rotate %762 by %c60_i32_595 dim 1 : vector<4x256xf32>, i32 -> vector<4x256xf32>
    %c20_596 = arith.constant 20 : index
    %c0_597 = arith.constant 0 : index
    %c0_598 = arith.constant 0 : index
    %981 = vector.load %arg11[%c20_596, %c0_597, %c0_598] : memref<27x1x256xf32, #tpu.memory_space<vmem>>, vector<1x1x256xf32>
    %982 = vector.shape_cast %981 : vector<1x1x256xf32> to vector<1x256xf32>
    %983 = vector.broadcast %982 : vector<1x256xf32> to vector<4x256xf32>
    %984 = arith.mulf %980, %983 : vector<4x256xf32>
    %c74 = arith.constant 74 : index
    %c0_599 = arith.constant 0 : index
    %c0_600 = arith.constant 0 : index
    %985 = vector.load %arg20[%c74, %c0_599, %c0_600] : memref<81x4x1xf32, #tpu.memory_space<vmem>>, vector<1x4x1xf32>
    %986 = vector.shape_cast %985 : vector<1x4x1xf32> to vector<4x1xf32>
    %987 = vector.broadcast %986 : vector<4x1xf32> to vector<4x256xf32>
    %988 = arith.mulf %984, %987 : vector<4x256xf32>
    %989 = arith.addf %979, %988 : vector<4x256xf32>
    %c4_i32_601 = arith.constant 4 : i32
    %990 = tpu.dynamic_rotate %762 by %c4_i32_601 dim 1 : vector<4x256xf32>, i32 -> vector<4x256xf32>
    %c21_602 = arith.constant 21 : index
    %c0_603 = arith.constant 0 : index
    %c0_604 = arith.constant 0 : index
    %991 = vector.load %arg11[%c21_602, %c0_603, %c0_604] : memref<27x1x256xf32, #tpu.memory_space<vmem>>, vector<1x1x256xf32>
    %992 = vector.shape_cast %991 : vector<1x1x256xf32> to vector<1x256xf32>
    %993 = vector.broadcast %992 : vector<1x256xf32> to vector<4x256xf32>
    %994 = arith.mulf %990, %993 : vector<4x256xf32>
    %c75 = arith.constant 75 : index
    %c0_605 = arith.constant 0 : index
    %c0_606 = arith.constant 0 : index
    %995 = vector.load %arg20[%c75, %c0_605, %c0_606] : memref<81x4x1xf32, #tpu.memory_space<vmem>>, vector<1x4x1xf32>
    %996 = vector.shape_cast %995 : vector<1x4x1xf32> to vector<4x1xf32>
    %997 = vector.broadcast %996 : vector<4x1xf32> to vector<4x256xf32>
    %998 = arith.mulf %994, %997 : vector<4x256xf32>
    %999 = arith.addf %989, %998 : vector<4x256xf32>
    %c22_607 = arith.constant 22 : index
    %c0_608 = arith.constant 0 : index
    %c0_609 = arith.constant 0 : index
    %1000 = vector.load %arg11[%c22_607, %c0_608, %c0_609] : memref<27x1x256xf32, #tpu.memory_space<vmem>>, vector<1x1x256xf32>
    %1001 = vector.shape_cast %1000 : vector<1x1x256xf32> to vector<1x256xf32>
    %1002 = vector.broadcast %1001 : vector<1x256xf32> to vector<4x256xf32>
    %1003 = arith.mulf %762, %1002 : vector<4x256xf32>
    %c76 = arith.constant 76 : index
    %c0_610 = arith.constant 0 : index
    %c0_611 = arith.constant 0 : index
    %1004 = vector.load %arg20[%c76, %c0_610, %c0_611] : memref<81x4x1xf32, #tpu.memory_space<vmem>>, vector<1x4x1xf32>
    %1005 = vector.shape_cast %1004 : vector<1x4x1xf32> to vector<4x1xf32>
    %1006 = vector.broadcast %1005 : vector<4x1xf32> to vector<4x256xf32>
    %1007 = arith.mulf %1003, %1006 : vector<4x256xf32>
    %1008 = arith.addf %999, %1007 : vector<4x256xf32>
    %c252_i32_612 = arith.constant 252 : i32
    %1009 = tpu.dynamic_rotate %762 by %c252_i32_612 dim 1 : vector<4x256xf32>, i32 -> vector<4x256xf32>
    %c23_613 = arith.constant 23 : index
    %c0_614 = arith.constant 0 : index
    %c0_615 = arith.constant 0 : index
    %1010 = vector.load %arg11[%c23_613, %c0_614, %c0_615] : memref<27x1x256xf32, #tpu.memory_space<vmem>>, vector<1x1x256xf32>
    %1011 = vector.shape_cast %1010 : vector<1x1x256xf32> to vector<1x256xf32>
    %1012 = vector.broadcast %1011 : vector<1x256xf32> to vector<4x256xf32>
    %1013 = arith.mulf %1009, %1012 : vector<4x256xf32>
    %c77 = arith.constant 77 : index
    %c0_616 = arith.constant 0 : index
    %c0_617 = arith.constant 0 : index
    %1014 = vector.load %arg20[%c77, %c0_616, %c0_617] : memref<81x4x1xf32, #tpu.memory_space<vmem>>, vector<1x4x1xf32>
    %1015 = vector.shape_cast %1014 : vector<1x4x1xf32> to vector<4x1xf32>
    %1016 = vector.broadcast %1015 : vector<4x1xf32> to vector<4x256xf32>
    %1017 = arith.mulf %1013, %1016 : vector<4x256xf32>
    %1018 = arith.addf %1008, %1017 : vector<4x256xf32>
    %c196_i32_618 = arith.constant 196 : i32
    %1019 = tpu.dynamic_rotate %762 by %c196_i32_618 dim 1 : vector<4x256xf32>, i32 -> vector<4x256xf32>
    %c24_619 = arith.constant 24 : index
    %c0_620 = arith.constant 0 : index
    %c0_621 = arith.constant 0 : index
    %1020 = vector.load %arg11[%c24_619, %c0_620, %c0_621] : memref<27x1x256xf32, #tpu.memory_space<vmem>>, vector<1x1x256xf32>
    %1021 = vector.shape_cast %1020 : vector<1x1x256xf32> to vector<1x256xf32>
    %1022 = vector.broadcast %1021 : vector<1x256xf32> to vector<4x256xf32>
    %1023 = arith.mulf %1019, %1022 : vector<4x256xf32>
    %c78 = arith.constant 78 : index
    %c0_622 = arith.constant 0 : index
    %c0_623 = arith.constant 0 : index
    %1024 = vector.load %arg20[%c78, %c0_622, %c0_623] : memref<81x4x1xf32, #tpu.memory_space<vmem>>, vector<1x4x1xf32>
    %1025 = vector.shape_cast %1024 : vector<1x4x1xf32> to vector<4x1xf32>
    %1026 = vector.broadcast %1025 : vector<4x1xf32> to vector<4x256xf32>
    %1027 = arith.mulf %1023, %1026 : vector<4x256xf32>
    %1028 = arith.addf %1018, %1027 : vector<4x256xf32>
    %c192_i32_624 = arith.constant 192 : i32
    %1029 = tpu.dynamic_rotate %762 by %c192_i32_624 dim 1 : vector<4x256xf32>, i32 -> vector<4x256xf32>
    %c25_625 = arith.constant 25 : index
    %c0_626 = arith.constant 0 : index
    %c0_627 = arith.constant 0 : index
    %1030 = vector.load %arg11[%c25_625, %c0_626, %c0_627] : memref<27x1x256xf32, #tpu.memory_space<vmem>>, vector<1x1x256xf32>
    %1031 = vector.shape_cast %1030 : vector<1x1x256xf32> to vector<1x256xf32>
    %1032 = vector.broadcast %1031 : vector<1x256xf32> to vector<4x256xf32>
    %1033 = arith.mulf %1029, %1032 : vector<4x256xf32>
    %c79 = arith.constant 79 : index
    %c0_628 = arith.constant 0 : index
    %c0_629 = arith.constant 0 : index
    %1034 = vector.load %arg20[%c79, %c0_628, %c0_629] : memref<81x4x1xf32, #tpu.memory_space<vmem>>, vector<1x4x1xf32>
    %1035 = vector.shape_cast %1034 : vector<1x4x1xf32> to vector<4x1xf32>
    %1036 = vector.broadcast %1035 : vector<4x1xf32> to vector<4x256xf32>
    %1037 = arith.mulf %1033, %1036 : vector<4x256xf32>
    %1038 = arith.addf %1028, %1037 : vector<4x256xf32>
    %c188_i32_630 = arith.constant 188 : i32
    %1039 = tpu.dynamic_rotate %762 by %c188_i32_630 dim 1 : vector<4x256xf32>, i32 -> vector<4x256xf32>
    %c26_631 = arith.constant 26 : index
    %c0_632 = arith.constant 0 : index
    %c0_633 = arith.constant 0 : index
    %1040 = vector.load %arg11[%c26_631, %c0_632, %c0_633] : memref<27x1x256xf32, #tpu.memory_space<vmem>>, vector<1x1x256xf32>
    %1041 = vector.shape_cast %1040 : vector<1x1x256xf32> to vector<1x256xf32>
    %1042 = vector.broadcast %1041 : vector<1x256xf32> to vector<4x256xf32>
    %1043 = arith.mulf %1039, %1042 : vector<4x256xf32>
    %c80 = arith.constant 80 : index
    %c0_634 = arith.constant 0 : index
    %c0_635 = arith.constant 0 : index
    %1044 = vector.load %arg20[%c80, %c0_634, %c0_635] : memref<81x4x1xf32, #tpu.memory_space<vmem>>, vector<1x4x1xf32>
    %1045 = vector.shape_cast %1044 : vector<1x4x1xf32> to vector<4x1xf32>
    %1046 = vector.broadcast %1045 : vector<4x1xf32> to vector<4x256xf32>
    %1047 = arith.mulf %1043, %1046 : vector<4x256xf32>
    %1048 = arith.addf %1038, %1047 : vector<4x256xf32>
    %1049 = arith.addf %949, %1048 : vector<4x256xf32>
    %c8_636 = arith.constant 8 : index
    %c0_637 = arith.constant 0 : index
    %c0_638 = arith.constant 0 : index
    %1050 = vector.load %arg22[%c8_636, %c0_637, %c0_638] : memref<9x4x1xf32, #tpu.memory_space<vmem>>, vector<1x4x1xf32>
    %1051 = vector.shape_cast %1050 : vector<1x4x1xf32> to vector<4x1xf32>
    %cst_639 = arith.constant 0.000000e+00 : f32
    %1052 = vector.broadcast %cst_639 : f32 to vector<4x256xf32>
    %1053 = arith.cmpf oge, %1049, %1052 : vector<4x256xf32>
    %1054 = vector.broadcast %1051 : vector<4x1xf32> to vector<4x256xf32>
    %1055 = arith.mulf %1049, %1054 : vector<4x256xf32>
    %1056 = arith.select %1053, %1049, %1055 : vector<4x256xi1>, vector<4x256xf32>
    %c8_640 = arith.constant 8 : index
    %c0_641 = arith.constant 0 : index
    %c0_642 = arith.constant 0 : index
    %1057 = vector.load %arg21[%c8_640, %c0_641, %c0_642] : memref<9x12x4xf32, #tpu.memory_space<vmem>>, vector<1x12x4xf32>
    %1058 = vector.shape_cast %1057 : vector<1x12x4xf32> to vector<12x4xf32>
    %cst_643 = arith.constant dense<0.000000e+00> : vector<12x256xf32>
    %1059 = tpu.matmul %1058, %1056, %cst_643 {dimension_numbers = #tpu.dot_dimension_numbers<[1], [0], [0], [1], [0, 0, 1, 1], [], []>} : vector<12x4xf32>, vector<4x256xf32>, vector<12x256xf32> -> vector<12x256xf32>
    %1060 = arith.addf %960, %1059 : vector<12x256xf32>
    %1061 = arith.addf %1060, %752 : vector<12x256xf32>
    %c2_644 = arith.constant 2 : index
    %c0_645 = arith.constant 0 : index
    %c0_646 = arith.constant 0 : index
    %1062 = vector.load %arg23[%c2_644, %c0_645, %c0_646] : memref<3x12x1xf32, #tpu.memory_space<vmem>>, vector<1x12x1xf32>
    %1063 = vector.shape_cast %1062 : vector<1x12x1xf32> to vector<12x1xf32>
    %cst_647 = arith.constant 0.000000e+00 : f32
    %1064 = vector.broadcast %cst_647 : f32 to vector<12x256xf32>
    %1065 = arith.cmpf oge, %1061, %1064 : vector<12x256xf32>
    %1066 = vector.broadcast %1063 : vector<12x1xf32> to vector<12x256xf32>
    %1067 = arith.mulf %1061, %1066 : vector<12x256xf32>
    %1068 = arith.select %1065, %1061, %1067 : vector<12x256xi1>, vector<12x256xf32>
    %c17_i32_648 = arith.constant 17 : i32
    %1069 = tpu.dynamic_rotate %1068 by %c17_i32_648 dim 1 : vector<12x256xf32>, i32 -> vector<12x256xf32>
    %c0_649 = arith.constant 0 : index
    %c0_650 = arith.constant 0 : index
    %c0_651 = arith.constant 0 : index
    %1070 = vector.load %arg11[%c0_649, %c0_650, %c0_651] : memref<27x1x256xf32, #tpu.memory_space<vmem>>, vector<1x1x256xf32>
    %1071 = vector.shape_cast %1070 : vector<1x1x256xf32> to vector<1x256xf32>
    %1072 = vector.broadcast %1071 : vector<1x256xf32> to vector<12x256xf32>
    %1073 = arith.mulf %1069, %1072 : vector<12x256xf32>
    %c0_652 = arith.constant 0 : index
    %c0_653 = arith.constant 0 : index
    %c0_654 = arith.constant 0 : index
    %1074 = vector.load %arg15[%c0_652, %c0_653, %c0_654] : memref<9x12x1xf32, #tpu.memory_space<vmem>>, vector<1x12x1xf32>
    %1075 = vector.shape_cast %1074 : vector<1x12x1xf32> to vector<12x1xf32>
    %1076 = vector.broadcast %1075 : vector<12x1xf32> to vector<12x256xf32>
    %1077 = arith.mulf %1073, %1076 : vector<12x256xf32>
    %c16_i32_655 = arith.constant 16 : i32
    %1078 = tpu.dynamic_rotate %1068 by %c16_i32_655 dim 1 : vector<12x256xf32>, i32 -> vector<12x256xf32>
    %c1_656 = arith.constant 1 : index
    %c0_657 = arith.constant 0 : index
    %c0_658 = arith.constant 0 : index
    %1079 = vector.load %arg11[%c1_656, %c0_657, %c0_658] : memref<27x1x256xf32, #tpu.memory_space<vmem>>, vector<1x1x256xf32>
    %1080 = vector.shape_cast %1079 : vector<1x1x256xf32> to vector<1x256xf32>
    %1081 = vector.broadcast %1080 : vector<1x256xf32> to vector<12x256xf32>
    %1082 = arith.mulf %1078, %1081 : vector<12x256xf32>
    %c1_659 = arith.constant 1 : index
    %c0_660 = arith.constant 0 : index
    %c0_661 = arith.constant 0 : index
    %1083 = vector.load %arg15[%c1_659, %c0_660, %c0_661] : memref<9x12x1xf32, #tpu.memory_space<vmem>>, vector<1x12x1xf32>
    %1084 = vector.shape_cast %1083 : vector<1x12x1xf32> to vector<12x1xf32>
    %1085 = vector.broadcast %1084 : vector<12x1xf32> to vector<12x256xf32>
    %1086 = arith.mulf %1082, %1085 : vector<12x256xf32>
    %1087 = arith.addf %1077, %1086 : vector<12x256xf32>
    %c15_i32_662 = arith.constant 15 : i32
    %1088 = tpu.dynamic_rotate %1068 by %c15_i32_662 dim 1 : vector<12x256xf32>, i32 -> vector<12x256xf32>
    %c2_663 = arith.constant 2 : index
    %c0_664 = arith.constant 0 : index
    %c0_665 = arith.constant 0 : index
    %1089 = vector.load %arg11[%c2_663, %c0_664, %c0_665] : memref<27x1x256xf32, #tpu.memory_space<vmem>>, vector<1x1x256xf32>
    %1090 = vector.shape_cast %1089 : vector<1x1x256xf32> to vector<1x256xf32>
    %1091 = vector.broadcast %1090 : vector<1x256xf32> to vector<12x256xf32>
    %1092 = arith.mulf %1088, %1091 : vector<12x256xf32>
    %c2_666 = arith.constant 2 : index
    %c0_667 = arith.constant 0 : index
    %c0_668 = arith.constant 0 : index
    %1093 = vector.load %arg15[%c2_666, %c0_667, %c0_668] : memref<9x12x1xf32, #tpu.memory_space<vmem>>, vector<1x12x1xf32>
    %1094 = vector.shape_cast %1093 : vector<1x12x1xf32> to vector<12x1xf32>
    %1095 = vector.broadcast %1094 : vector<12x1xf32> to vector<12x256xf32>
    %1096 = arith.mulf %1092, %1095 : vector<12x256xf32>
    %1097 = arith.addf %1087, %1096 : vector<12x256xf32>
    %c1_i32_669 = arith.constant 1 : i32
    %1098 = tpu.dynamic_rotate %1068 by %c1_i32_669 dim 1 : vector<12x256xf32>, i32 -> vector<12x256xf32>
    %c3_670 = arith.constant 3 : index
    %c0_671 = arith.constant 0 : index
    %c0_672 = arith.constant 0 : index
    %1099 = vector.load %arg11[%c3_670, %c0_671, %c0_672] : memref<27x1x256xf32, #tpu.memory_space<vmem>>, vector<1x1x256xf32>
    %1100 = vector.shape_cast %1099 : vector<1x1x256xf32> to vector<1x256xf32>
    %1101 = vector.broadcast %1100 : vector<1x256xf32> to vector<12x256xf32>
    %1102 = arith.mulf %1098, %1101 : vector<12x256xf32>
    %c3_673 = arith.constant 3 : index
    %c0_674 = arith.constant 0 : index
    %c0_675 = arith.constant 0 : index
    %1103 = vector.load %arg15[%c3_673, %c0_674, %c0_675] : memref<9x12x1xf32, #tpu.memory_space<vmem>>, vector<1x12x1xf32>
    %1104 = vector.shape_cast %1103 : vector<1x12x1xf32> to vector<12x1xf32>
    %1105 = vector.broadcast %1104 : vector<12x1xf32> to vector<12x256xf32>
    %1106 = arith.mulf %1102, %1105 : vector<12x256xf32>
    %1107 = arith.addf %1097, %1106 : vector<12x256xf32>
    %c4_676 = arith.constant 4 : index
    %c0_677 = arith.constant 0 : index
    %c0_678 = arith.constant 0 : index
    %1108 = vector.load %arg11[%c4_676, %c0_677, %c0_678] : memref<27x1x256xf32, #tpu.memory_space<vmem>>, vector<1x1x256xf32>
    %1109 = vector.shape_cast %1108 : vector<1x1x256xf32> to vector<1x256xf32>
    %1110 = vector.broadcast %1109 : vector<1x256xf32> to vector<12x256xf32>
    %1111 = arith.mulf %1068, %1110 : vector<12x256xf32>
    %c4_679 = arith.constant 4 : index
    %c0_680 = arith.constant 0 : index
    %c0_681 = arith.constant 0 : index
    %1112 = vector.load %arg15[%c4_679, %c0_680, %c0_681] : memref<9x12x1xf32, #tpu.memory_space<vmem>>, vector<1x12x1xf32>
    %1113 = vector.shape_cast %1112 : vector<1x12x1xf32> to vector<12x1xf32>
    %1114 = vector.broadcast %1113 : vector<12x1xf32> to vector<12x256xf32>
    %1115 = arith.mulf %1111, %1114 : vector<12x256xf32>
    %1116 = arith.addf %1107, %1115 : vector<12x256xf32>
    %c255_i32_682 = arith.constant 255 : i32
    %1117 = tpu.dynamic_rotate %1068 by %c255_i32_682 dim 1 : vector<12x256xf32>, i32 -> vector<12x256xf32>
    %c5_683 = arith.constant 5 : index
    %c0_684 = arith.constant 0 : index
    %c0_685 = arith.constant 0 : index
    %1118 = vector.load %arg11[%c5_683, %c0_684, %c0_685] : memref<27x1x256xf32, #tpu.memory_space<vmem>>, vector<1x1x256xf32>
    %1119 = vector.shape_cast %1118 : vector<1x1x256xf32> to vector<1x256xf32>
    %1120 = vector.broadcast %1119 : vector<1x256xf32> to vector<12x256xf32>
    %1121 = arith.mulf %1117, %1120 : vector<12x256xf32>
    %c5_686 = arith.constant 5 : index
    %c0_687 = arith.constant 0 : index
    %c0_688 = arith.constant 0 : index
    %1122 = vector.load %arg15[%c5_686, %c0_687, %c0_688] : memref<9x12x1xf32, #tpu.memory_space<vmem>>, vector<1x12x1xf32>
    %1123 = vector.shape_cast %1122 : vector<1x12x1xf32> to vector<12x1xf32>
    %1124 = vector.broadcast %1123 : vector<12x1xf32> to vector<12x256xf32>
    %1125 = arith.mulf %1121, %1124 : vector<12x256xf32>
    %1126 = arith.addf %1116, %1125 : vector<12x256xf32>
    %c241_i32_689 = arith.constant 241 : i32
    %1127 = tpu.dynamic_rotate %1068 by %c241_i32_689 dim 1 : vector<12x256xf32>, i32 -> vector<12x256xf32>
    %c6_690 = arith.constant 6 : index
    %c0_691 = arith.constant 0 : index
    %c0_692 = arith.constant 0 : index
    %1128 = vector.load %arg11[%c6_690, %c0_691, %c0_692] : memref<27x1x256xf32, #tpu.memory_space<vmem>>, vector<1x1x256xf32>
    %1129 = vector.shape_cast %1128 : vector<1x1x256xf32> to vector<1x256xf32>
    %1130 = vector.broadcast %1129 : vector<1x256xf32> to vector<12x256xf32>
    %1131 = arith.mulf %1127, %1130 : vector<12x256xf32>
    %c6_693 = arith.constant 6 : index
    %c0_694 = arith.constant 0 : index
    %c0_695 = arith.constant 0 : index
    %1132 = vector.load %arg15[%c6_693, %c0_694, %c0_695] : memref<9x12x1xf32, #tpu.memory_space<vmem>>, vector<1x12x1xf32>
    %1133 = vector.shape_cast %1132 : vector<1x12x1xf32> to vector<12x1xf32>
    %1134 = vector.broadcast %1133 : vector<12x1xf32> to vector<12x256xf32>
    %1135 = arith.mulf %1131, %1134 : vector<12x256xf32>
    %1136 = arith.addf %1126, %1135 : vector<12x256xf32>
    %c240_i32_696 = arith.constant 240 : i32
    %1137 = tpu.dynamic_rotate %1068 by %c240_i32_696 dim 1 : vector<12x256xf32>, i32 -> vector<12x256xf32>
    %c7_697 = arith.constant 7 : index
    %c0_698 = arith.constant 0 : index
    %c0_699 = arith.constant 0 : index
    %1138 = vector.load %arg11[%c7_697, %c0_698, %c0_699] : memref<27x1x256xf32, #tpu.memory_space<vmem>>, vector<1x1x256xf32>
    %1139 = vector.shape_cast %1138 : vector<1x1x256xf32> to vector<1x256xf32>
    %1140 = vector.broadcast %1139 : vector<1x256xf32> to vector<12x256xf32>
    %1141 = arith.mulf %1137, %1140 : vector<12x256xf32>
    %c7_700 = arith.constant 7 : index
    %c0_701 = arith.constant 0 : index
    %c0_702 = arith.constant 0 : index
    %1142 = vector.load %arg15[%c7_700, %c0_701, %c0_702] : memref<9x12x1xf32, #tpu.memory_space<vmem>>, vector<1x12x1xf32>
    %1143 = vector.shape_cast %1142 : vector<1x12x1xf32> to vector<12x1xf32>
    %1144 = vector.broadcast %1143 : vector<12x1xf32> to vector<12x256xf32>
    %1145 = arith.mulf %1141, %1144 : vector<12x256xf32>
    %1146 = arith.addf %1136, %1145 : vector<12x256xf32>
    %c239_i32_703 = arith.constant 239 : i32
    %1147 = tpu.dynamic_rotate %1068 by %c239_i32_703 dim 1 : vector<12x256xf32>, i32 -> vector<12x256xf32>
    %c8_704 = arith.constant 8 : index
    %c0_705 = arith.constant 0 : index
    %c0_706 = arith.constant 0 : index
    %1148 = vector.load %arg11[%c8_704, %c0_705, %c0_706] : memref<27x1x256xf32, #tpu.memory_space<vmem>>, vector<1x1x256xf32>
    %1149 = vector.shape_cast %1148 : vector<1x1x256xf32> to vector<1x256xf32>
    %1150 = vector.broadcast %1149 : vector<1x256xf32> to vector<12x256xf32>
    %1151 = arith.mulf %1147, %1150 : vector<12x256xf32>
    %c8_707 = arith.constant 8 : index
    %c0_708 = arith.constant 0 : index
    %c0_709 = arith.constant 0 : index
    %1152 = vector.load %arg15[%c8_707, %c0_708, %c0_709] : memref<9x12x1xf32, #tpu.memory_space<vmem>>, vector<1x12x1xf32>
    %1153 = vector.shape_cast %1152 : vector<1x12x1xf32> to vector<12x1xf32>
    %1154 = vector.broadcast %1153 : vector<12x1xf32> to vector<12x256xf32>
    %1155 = arith.mulf %1151, %1154 : vector<12x256xf32>
    %1156 = arith.addf %1146, %1155 : vector<12x256xf32>
    %c0_710 = arith.constant 0 : index
    %c0_711 = arith.constant 0 : index
    %c0_712 = arith.constant 0 : index
    %1157 = vector.load %arg8[%c0_710, %c0_711, %c0_712] : memref<1x12x1xf32, #tpu.memory_space<vmem>>, vector<1x12x1xf32>
    %1158 = vector.shape_cast %1157 : vector<1x12x1xf32> to vector<12x1xf32>
    %1159 = vector.broadcast %1158 : vector<12x1xf32> to vector<12x256xf32>
    %1160 = arith.mulf %1156, %1159 : vector<12x256xf32>
    %c0_713 = arith.constant 0 : index
    %c0_714 = arith.constant 0 : index
    %1161 = vector.load %arg16[%c0_713, %c0_714] : memref<12x12xf32, #tpu.memory_space<vmem>>, vector<12x12xf32>
    %cst_715 = arith.constant dense<0.000000e+00> : vector<12x256xf32>
    %1162 = tpu.matmul %1161, %1160, %cst_715 {dimension_numbers = #tpu.dot_dimension_numbers<[1], [0], [0], [1], [0, 0, 1, 1], [], []>} : vector<12x12xf32>, vector<12x256xf32>, vector<12x256xf32> -> vector<12x256xf32>
    %c0_716 = arith.constant 0 : index
    %c0_717 = arith.constant 0 : index
    %c0_718 = arith.constant 0 : index
    %1163 = vector.load %arg9[%c0_716, %c0_717, %c0_718] : memref<1x12x1xf32, #tpu.memory_space<vmem>>, vector<1x12x1xf32>
    %1164 = vector.shape_cast %1163 : vector<1x12x1xf32> to vector<12x1xf32>
    %1165 = vector.broadcast %1164 : vector<12x1xf32> to vector<12x256xf32>
    %1166 = arith.mulf %1162, %1165 : vector<12x256xf32>
    %c0_719 = arith.constant 0 : index
    %c0_720 = arith.constant 0 : index
    %c0_721 = arith.constant 0 : index
    %1167 = vector.load %arg4[%c0_719, %c0_720, %c0_721] : memref<1x1x256xf32, #tpu.memory_space<vmem>>, vector<1x1x256xf32>
    %1168 = vector.shape_cast %1167 : vector<1x1x256xf32> to vector<1x256xf32>
    %1169 = vector.broadcast %1168 : vector<1x256xf32> to vector<12x256xf32>
    %1170 = arith.addf %1166, %1169 : vector<12x256xf32>
    %c0_722 = arith.constant 0 : index
    %c0_723 = arith.constant 0 : index
    %1171 = vector.load %arg17[%c0_722, %c0_723] : memref<12x1xf32, #tpu.memory_space<vmem>>, vector<12x1xf32>
    %1172 = vector.broadcast %1171 : vector<12x1xf32> to vector<12x256xf32>
    %1173 = arith.addf %1170, %1172 : vector<12x256xf32>
    %cst_724 = arith.constant 0.000000e+00 : f32
    %1174 = vector.broadcast %cst_724 : f32 to vector<12x256xf32>
    %1175 = arith.cmpf oge, %1173, %1174 : vector<12x256xf32>
    %cst_725 = arith.constant 2.000000e-01 : f32
    %1176 = vector.broadcast %cst_725 : f32 to vector<12x256xf32>
    %1177 = arith.mulf %1173, %1176 : vector<12x256xf32>
    %1178 = arith.select %1175, %1173, %1177 : vector<12x256xi1>, vector<12x256xf32>
    %cst_726 = arith.constant 1.41421354 : f32
    %1179 = vector.broadcast %cst_726 : f32 to vector<12x256xf32>
    %1180 = arith.mulf %1178, %1179 : vector<12x256xf32>
    %c0_727 = arith.constant 0 : index
    %c0_728 = arith.constant 0 : index
    %c0_729 = arith.constant 0 : index
    %1181 = vector.load %arg26[%c0_727, %c0_728, %c0_729] : memref<1x12x256xf32, #tpu.memory_space<vmem>>, vector<1x12x256xf32>
    %1182 = vector.shape_cast %1181 : vector<1x12x256xf32> to vector<12x256xf32>
    %1183 = vector.shape_cast %1180 : vector<12x256xf32> to vector<1x12x256xf32>
    tpu.vector_store %arg26[%c0_727, %c0_728, %c0_729], %1183 {strides = array<i32>} : memref<1x12x256xf32, #tpu.memory_space<vmem>>, vector<1x12x256xf32>,
    %c0_730 = arith.constant 0 : index
    %c0_731 = arith.constant 0 : index
    %1184 = vector.load %arg24[%c0_730, %c0_731] : memref<12x12xf32, #tpu.memory_space<vmem>>, vector<12x12xf32>
    %c0_732 = arith.constant 0 : index
    %c0_733 = arith.constant 0 : index
    %c0_734 = arith.constant 0 : index
    %1185 = vector.load %arg10[%c0_732, %c0_733, %c0_734] : memref<1x12x1xf32, #tpu.memory_space<vmem>>, vector<1x12x1xf32>
    %1186 = vector.shape_cast %1185 : vector<1x12x1xf32> to vector<12x1xf32>
    %1187 = vector.broadcast %1186 : vector<12x1xf32> to vector<12x256xf32>
    %1188 = arith.mulf %1180, %1187 : vector<12x256xf32>
    %cst_735 = arith.constant dense<0.000000e+00> : vector<12x256xf32>
    %1189 = tpu.matmul %1184, %1188, %cst_735 {dimension_numbers = #tpu.dot_dimension_numbers<[1], [0], [0], [1], [0, 0, 1, 1], [], []>} : vector<12x12xf32>, vector<12x256xf32>, vector<12x256xf32> -> vector<12x256xf32>
    %c0_736 = arith.constant 0 : index
    %c0_737 = arith.constant 0 : index
    %1190 = vector.load %arg25[%c0_736, %c0_737] : memref<12x1xf32, #tpu.memory_space<vmem>>, vector<12x1xf32>
    %1191 = vector.broadcast %1190 : vector<12x1xf32> to vector<12x256xf32>
    %1192 = arith.addf %1189, %1191 : vector<12x256xf32>
    %c0_738 = arith.constant 0 : index
    %c0_739 = arith.constant 0 : index
    %c0_740 = arith.constant 0 : index
    %1193 = vector.load %arg27[%c0_738, %c0_739, %c0_740] : memref<1x12x256xf32, #tpu.memory_space<vmem>>, vector<1x12x256xf32>
    %1194 = vector.shape_cast %1193 : vector<1x12x256xf32> to vector<12x256xf32>
    %1195 = vector.shape_cast %1192 : vector<12x256xf32> to vector<1x12x256xf32>
    tpu.vector_store %arg27[%c0_738, %c0_739, %c0_740], %1195 {strides = array<i32>} : memref<1x12x256xf32, #tpu.memory_space<vmem>>, vector<1x12x256xf32>,
    return
  }
  func.func @transform_0(%arg0: i32) -> (i32, i32, i32) {
    %c0_i32 = arith.constant 0 : i32
    %c0_i32_0 = arith.constant 0 : i32
    %c0_i32_1 = arith.constant 0 : i32
    return %arg0, %c0_i32, %c0_i32_0 : i32, i32, i32
  }
  func.func @transform_1(%arg0: i32) -> (i32, i32, i32) {
    %c0_i32 = arith.constant 0 : i32
    %c0_i32_0 = arith.constant 0 : i32
    %c0_i32_1 = arith.constant 0 : i32
    return %arg0, %c0_i32, %c0_i32_0 : i32, i32, i32
  }
  func.func @transform_2(%arg0: i32) -> (i32, i32, i32) {
    %c0_i32 = arith.constant 0 : i32
    %c0_i32_0 = arith.constant 0 : i32
    %c0_i32_1 = arith.constant 0 : i32
    return %arg0, %c0_i32, %c0_i32_0 : i32, i32, i32
  }
  func.func @transform_3(%arg0: i32) -> (i32, i32, i32) {
    %c0_i32 = arith.constant 0 : i32
    %c0_i32_0 = arith.constant 0 : i32
    %c0_i32_1 = arith.constant 0 : i32
    return %arg0, %c0_i32, %c0_i32_0 : i32, i32, i32
  }
  func.func @transform_4(%arg0: i32) -> (i32, i32, i32) {
    %c0_i32 = arith.constant 0 : i32
    %c0_i32_0 = arith.constant 0 : i32
    %c0_i32_1 = arith.constant 0 : i32
    return %arg0, %c0_i32, %c0_i32_0 : i32, i32, i32
  }
  func.func @transform_5(%arg0: i32) -> (i32, i32, i32) {
    %c0_i32 = arith.constant 0 : i32
    %c0_i32_0 = arith.constant 0 : i32
    %c0_i32_1 = arith.constant 0 : i32
    return %arg0, %c0_i32, %c0_i32_0 : i32, i32, i32
  }
  func.func @transform_6(%arg0: i32) -> (i32, i32, i32) {
    %c0_i32 = arith.constant 0 : i32
    %c0_i32_0 = arith.constant 0 : i32
    %c0_i32_1 = arith.constant 0 : i32
    return %arg0, %c0_i32, %c0_i32_0 : i32, i32, i32
  }
  func.func @transform_7(%arg0: i32) -> (i32, i32, i32) {
    %c0_i32 = arith.constant 0 : i32
    %c0_i32_0 = arith.constant 0 : i32
    %c0_i32_1 = arith.constant 0 : i32
    return %arg0, %c0_i32, %c0_i32_0 : i32, i32, i32
  }
  func.func @transform_8(%arg0: i32) -> (i32, i32, i32) {
    %c0_i32 = arith.constant 0 : i32
    %c0_i32_0 = arith.constant 0 : i32
    %c0_i32_1 = arith.constant 0 : i32
    return %arg0, %c0_i32, %c0_i32_0 : i32, i32, i32
  }
  func.func @transform_9(%arg0: i32) -> (i32, i32, i32) {
    %c0_i32 = arith.constant 0 : i32
    %c0_i32_0 = arith.constant 0 : i32
    %c0_i32_1 = arith.constant 0 : i32
    return %arg0, %c0_i32, %c0_i32_0 : i32, i32, i32
  }
  func.func @transform_10(%arg0: i32) -> (i32, i32, i32) {
    %c0_i32 = arith.constant 0 : i32
    %c0_i32_0 = arith.constant 0 : i32
    %c0_i32_1 = arith.constant 0 : i32
    %c0_i32_2 = arith.constant 0 : i32
    return %c0_i32, %c0_i32_0, %c0_i32_1 : i32, i32, i32
  }
  func.func @transform_11(%arg0: i32) -> (i32, i32, i32) {
    %c0_i32 = arith.constant 0 : i32
    %c0_i32_0 = arith.constant 0 : i32
    %c0_i32_1 = arith.constant 0 : i32
    %c0_i32_2 = arith.constant 0 : i32
    return %c0_i32, %c0_i32_0, %c0_i32_1 : i32, i32, i32
  }
  func.func @transform_12(%arg0: i32) -> (i32, i32) {
    %c0_i32 = arith.constant 0 : i32
    %c0_i32_0 = arith.constant 0 : i32
    %c0_i32_1 = arith.constant 0 : i32
    return %c0_i32, %c0_i32_0 : i32, i32
  }
  func.func @transform_13(%arg0: i32) -> (i32, i32) {
    %c0_i32 = arith.constant 0 : i32
    %c0_i32_0 = arith.constant 0 : i32
    %c0_i32_1 = arith.constant 0 : i32
    return %c0_i32, %c0_i32_0 : i32, i32
  }
  func.func @transform_14(%arg0: i32) -> (i32, i32, i32) {
    %c0_i32 = arith.constant 0 : i32
    %c0_i32_0 = arith.constant 0 : i32
    %c0_i32_1 = arith.constant 0 : i32
    %c0_i32_2 = arith.constant 0 : i32
    return %c0_i32, %c0_i32_0, %c0_i32_1 : i32, i32, i32
  }
  func.func @transform_15(%arg0: i32) -> (i32, i32) {
    %c0_i32 = arith.constant 0 : i32
    %c0_i32_0 = arith.constant 0 : i32
    %c0_i32_1 = arith.constant 0 : i32
    return %c0_i32, %c0_i32_0 : i32, i32
  }
  func.func @transform_16(%arg0: i32) -> (i32, i32) {
    %c0_i32 = arith.constant 0 : i32
    %c0_i32_0 = arith.constant 0 : i32
    %c0_i32_1 = arith.constant 0 : i32
    return %c0_i32, %c0_i32_0 : i32, i32
  }
  func.func @transform_17(%arg0: i32) -> (i32, i32, i32) {
    %c0_i32 = arith.constant 0 : i32
    %c0_i32_0 = arith.constant 0 : i32
    %c0_i32_1 = arith.constant 0 : i32
    %c0_i32_2 = arith.constant 0 : i32
    return %c0_i32, %c0_i32_0, %c0_i32_1 : i32, i32, i32
  }
  func.func @transform_18(%arg0: i32) -> (i32, i32, i32) {
    %c0_i32 = arith.constant 0 : i32
    %c0_i32_0 = arith.constant 0 : i32
    %c0_i32_1 = arith.constant 0 : i32
    %c0_i32_2 = arith.constant 0 : i32
    return %c0_i32, %c0_i32_0, %c0_i32_1 : i32, i32, i32
  }
  func.func @transform_19(%arg0: i32) -> (i32, i32, i32) {
    %c0_i32 = arith.constant 0 : i32
    %c0_i32_0 = arith.constant 0 : i32
    %c0_i32_1 = arith.constant 0 : i32
    %c0_i32_2 = arith.constant 0 : i32
    return %c0_i32, %c0_i32_0, %c0_i32_1 : i32, i32, i32
  }
  func.func @transform_20(%arg0: i32) -> (i32, i32, i32) {
    %c0_i32 = arith.constant 0 : i32
    %c0_i32_0 = arith.constant 0 : i32
    %c0_i32_1 = arith.constant 0 : i32
    %c0_i32_2 = arith.constant 0 : i32
    return %c0_i32, %c0_i32_0, %c0_i32_1 : i32, i32, i32
  }
  func.func @transform_21(%arg0: i32) -> (i32, i32, i32) {
    %c0_i32 = arith.constant 0 : i32
    %c0_i32_0 = arith.constant 0 : i32
    %c0_i32_1 = arith.constant 0 : i32
    %c0_i32_2 = arith.constant 0 : i32
    return %c0_i32, %c0_i32_0, %c0_i32_1 : i32, i32, i32
  }
  func.func @transform_22(%arg0: i32) -> (i32, i32, i32) {
    %c0_i32 = arith.constant 0 : i32
    %c0_i32_0 = arith.constant 0 : i32
    %c0_i32_1 = arith.constant 0 : i32
    %c0_i32_2 = arith.constant 0 : i32
    return %c0_i32, %c0_i32_0, %c0_i32_1 : i32, i32, i32
  }
  func.func @transform_23(%arg0: i32) -> (i32, i32) {
    %c0_i32 = arith.constant 0 : i32
    %c0_i32_0 = arith.constant 0 : i32
    %c0_i32_1 = arith.constant 0 : i32
    return %c0_i32, %c0_i32_0 : i32, i32
  }
  func.func @transform_24(%arg0: i32) -> (i32, i32) {
    %c0_i32 = arith.constant 0 : i32
    %c0_i32_0 = arith.constant 0 : i32
    %c0_i32_1 = arith.constant 0 : i32
    return %c0_i32, %c0_i32_0 : i32, i32
  }
  func.func @transform_25(%arg0: i32) -> (i32, i32, i32) {
    %c0_i32 = arith.constant 0 : i32
    %c0_i32_0 = arith.constant 0 : i32
    %c0_i32_1 = arith.constant 0 : i32
    return %arg0, %c0_i32, %c0_i32_0 : i32, i32, i32
  }
  func.func @transform_26(%arg0: i32) -> (i32, i32, i32) {
    %c0_i32 = arith.constant 0 : i32
    %c0_i32_0 = arith.constant 0 : i32
    %c0_i32_1 = arith.constant 0 : i32
    return %arg0, %c0_i32, %c0_i32_0 : i32, i32, i32
  }
}

</mosaic_0001>

<llo_original>
// kernel: integer_pow.11
$region0: #{integer_pow.11}
  #allocation0 [shape = 's32[1]{0}', space=sflag, size = 0x4, scoped, tag = 'scoped memory for integer_pow.11']
  %s0 = inlined_call_operand.vmem [shape: f32[12,12], index: 0, kind: input, shape index: {}, may-alias: {0,1}]
  %s1 = inlined_call_operand.vmem [shape: f32[12,12], index: 1, kind: input, shape index: {}, may-alias: {0,1}]
  %s2 = inlined_call_operand.vmem [shape: f32[12,12], index: 2, kind: output, shape index: {}]
  %v3 = vld [vmem:[%s0] sm:$0xff]
  %v4 = vld [vmem:[%s1] sm:$0xff]
  %5 = xla_tuple %v3, %v4
  %6 = xla_tuple %5
  %v7 = vmul.f32 %v3, %v4
  %8 = xla_tuple %v7
  %9 = vst [vmem:[%s2] sm:$0xff] %v7
  %s10 = scalar_lea.vmem %s0, 8
  %v11 = vld [vmem:[%s10] sm:$0xff]
  %s12 = scalar_lea.vmem %s1, 8
  %v13 = vld [vmem:[%s12] sm:$0xff]
  %14 = xla_tuple %v11, %v13
  %15 = xla_tuple %14
  %v16 = vmul.f32 %v11, %v13
  %17 = xla_tuple %v16
  %s18 = scalar_lea.vmem %s2, 8
  %19 = vst [vmem:[%s18] sm:$0xff] %v16

// kernel: integer_pow.8
$region0: #{integer_pow.8}
  #allocation0 [shape = 's32[1]{0}', space=sflag, size = 0x4, scoped, tag = 'scoped memory for integer_pow.8']
  %s0 = inlined_call_operand.vmem [shape: f32[12,2], index: 0, kind: input, shape index: {}, may-alias: {0,1}]
  %s1 = inlined_call_operand.vmem [shape: f32[12,2], index: 1, kind: input, shape index: {}, may-alias: {0,1}]
  %s2 = inlined_call_operand.vmem [shape: f32[12,2], index: 2, kind: output, shape index: {}]
  %v3 = vld [vmem:[%s0] sm:$0x3]
  %v4 = vld [vmem:[%s1] sm:$0x3]
  %5 = xla_tuple %v3, %v4
  %6 = xla_tuple %5
  %v7 = vmul.f32 %v3, %v4
  %8 = xla_tuple %v7
  %9 = vst [vmem:[%s2] sm:$0x3] %v7

// kernel: _lambda_.1
$region0: #{_lambda_.1}
  #allocation0 [shape = 'u32[]', space=smem, size = 0x4, offset = 0x4, fixed_abs, tag = 'smem constant byte address 0x4 - core index']
  #allocation1 [shape = 'u32[144,128]{1,0:T(1,128)}', space=vmem, size = 0x12000, scoped, tag = 'internal scratch']
  %s0 = inlined_call_operand.vmem [shape: f32[2,2,256], index: 0, kind: input, shape index: {}]
  %s1 = inlined_call_operand.vmem [shape: f32[2,12,256], index: 1, kind: input, shape index: {}]
  %s2 = inlined_call_operand.vmem [shape: f32[2,1,256], index: 2, kind: input, shape index: {}]
  %s3 = inlined_call_operand.vmem [shape: f32[2,1,256], index: 3, kind: input, shape index: {}]
  %s4 = inlined_call_operand.vmem [shape: f32[2,12,1], index: 4, kind: input, shape index: {}]
  %s5 = inlined_call_operand.vmem [shape: f32[2,2,1], index: 5, kind: input, shape index: {}]
  %s6 = inlined_call_operand.vmem [shape: f32[2,12,1], index: 6, kind: input, shape index: {}]
  %s7 = inlined_call_operand.vmem [shape: f32[2,12,1], index: 7, kind: input, shape index: {}]
  %s8 = inlined_call_operand.vmem [shape: f32[2,12,1], index: 8, kind: input, shape index: {}]
  %s9 = inlined_call_operand.vmem [shape: f32[2,12,1], index: 9, kind: input, shape index: {}]
  %s10 = inlined_call_operand.vmem [shape: f32[27,1,256], index: 10, kind: input, shape index: {}]
  %s11 = inlined_call_operand.vmem [shape: f32[9,2,1], index: 11, kind: input, shape index: {}]
  %s12 = inlined_call_operand.vmem [shape: f32[12,2], index: 12, kind: input, shape index: {}]
  %s13 = inlined_call_operand.vmem [shape: f32[12,1], index: 13, kind: input, shape index: {}]
  %s14 = inlined_call_operand.vmem [shape: f32[9,12,1], index: 14, kind: input, shape index: {}]
  %s15 = inlined_call_operand.vmem [shape: f32[12,12], index: 15, kind: input, shape index: {}]
  %s16 = inlined_call_operand.vmem [shape: f32[12,1], index: 16, kind: input, shape index: {}]
  %s17 = inlined_call_operand.vmem [shape: f32[3,4,12], index: 17, kind: input, shape index: {}]
  %s18 = inlined_call_operand.vmem [shape: f32[3,4,1], index: 18, kind: input, shape index: {}]
  %s19 = inlined_call_operand.vmem [shape: f32[81,4,1], index: 19, kind: input, shape index: {}]
  %s20 = inlined_call_operand.vmem [shape: f32[9,12,4], index: 20, kind: input, shape index: {}]
  %s21 = inlined_call_operand.vmem [shape: f32[9,4,1], index: 21, kind: input, shape index: {}]
  %s22 = inlined_call_operand.vmem [shape: f32[3,12,1], index: 22, kind: input, shape index: {}]
  %s23 = inlined_call_operand.vmem [shape: f32[12,12], index: 23, kind: input, shape index: {}]
  %s24 = inlined_call_operand.vmem [shape: f32[12,1], index: 24, kind: input, shape index: {}]
  %s25 = inlined_call_operand.vmem [shape: f32[2,12,256], index: 25, kind: output, shape index: {0}]
  %s26 = inlined_call_operand.vmem [shape: f32[2,12,256], index: 26, kind: output, shape index: {1}]
  %27 = xla_tuple %s25, %s26
  %s28 = sld [smem:[#allocation0]]
  $region141: #{_lambda_.1} parent=0
    _
  %s30 = ssub.s32 1, %s28
  %s31 = scalar_select 0, %s30, %s28
  loop: start=0, step=1, limit=4
  $region2: #{_lambda_.1} parent=0 // loop_pre_header
    _
  $region3: #{_lambda_.1} parent=0 // loop_header
    %s33 = sphi 0, %s37
    %p34 = scmp.ge.s32.totalorder %s33, 4
    %s43 = sphi 0, %s45
    %s46 = sphi 0, %s43
    %s47 = sphi 0, %s46
    %s63 = sphi 0, %s47
    %s69 = sphi 0, %s71
    %s72 = sphi 0, %s69
    %s73 = sphi 0, %s72
    %s89 = sphi 0, %s73
    %s95 = sphi 0, %s97
    %s98 = sphi 0, %s95
    %s99 = sphi 0, %s98
    %s115 = sphi 0, %s99
    %s121 = sphi 0, %s123
    %s124 = sphi 0, %s121
    %s125 = sphi 0, %s124
    %s141 = sphi 0, %s125
    %s147 = sphi 0, %s149
    %s150 = sphi 0, %s147
    %s151 = sphi 0, %s150
    %s167 = sphi 0, %s151
    %s173 = sphi 0, %s175
    %s176 = sphi 0, %s173
    %s177 = sphi 0, %s176
    %s193 = sphi 0, %s177
    %s199 = sphi 0, %s201
    %s202 = sphi 0, %s199
    %s203 = sphi 0, %s202
    %s219 = sphi 0, %s203
    %s225 = sphi 0, %s227
    %s228 = sphi 0, %s225
    %s229 = sphi 0, %s228
    %s245 = sphi 0, %s229
    %s251 = sphi 0, %s253
    %s254 = sphi 0, %s251
    %s255 = sphi 0, %s254
    %s271 = sphi 0, %s255
    %s277 = sphi 0, %s279
    %s280 = sphi 0, %s277
    %s281 = sphi 0, %s280
    %s297 = sphi 0, %s281
    %s301 = sphi 0, %s301
    %s303 = sphi 0, %s301
    %s304 = sphi 0, %s303
    %s318 = sphi 0, %s304
    %s322 = sphi 0, %s322
    %s324 = sphi 0, %s322
    %s325 = sphi 0, %s324
    %s339 = sphi 0, %s325
    %s343 = sphi 0, %s343
    %s345 = sphi 0, %s343
    %s346 = sphi 0, %s345
    %s360 = sphi 0, %s346
    %s364 = sphi 0, %s364
    %s366 = sphi 0, %s364
    %s367 = sphi 0, %s366
    %s381 = sphi 0, %s367
    %s385 = sphi 0, %s385
    %s387 = sphi 0, %s385
    %s388 = sphi 0, %s387
    %s402 = sphi 0, %s388
    %s406 = sphi 0, %s406
    %s408 = sphi 0, %s406
    %s409 = sphi 0, %s408
    %s423 = sphi 0, %s409
    %s427 = sphi 0, %s427
    %s429 = sphi 0, %s427
    %s430 = sphi 0, %s429
    %s444 = sphi 0, %s430
    %s448 = sphi 0, %s448
    %s450 = sphi 0, %s448
    %s451 = sphi 0, %s450
    %s465 = sphi 0, %s451
    %s469 = sphi 0, %s469
    %s471 = sphi 0, %s469
    %s472 = sphi 0, %s471
    %s486 = sphi 0, %s472
    %s490 = sphi 0, %s490
    %s492 = sphi 0, %s490
    %s493 = sphi 0, %s492
    %s507 = sphi 0, %s493
    %s511 = sphi 0, %s511
    %s513 = sphi 0, %s511
    %s514 = sphi 0, %s513
    %s528 = sphi 0, %s514
    %s532 = sphi 0, %s532
    %s534 = sphi 0, %s532
    %s535 = sphi 0, %s534
    %s549 = sphi 0, %s535
    %s553 = sphi 0, %s553
    %s555 = sphi 0, %s553
    %s556 = sphi 0, %s555
    %s570 = sphi 0, %s556
    %s574 = sphi 0, %s574
    %s576 = sphi 0, %s574
    %s577 = sphi 0, %s576
    %s591 = sphi 0, %s577
    %s595 = sphi 0, %s595
    %s597 = sphi 0, %s595
    %s598 = sphi 0, %s597
    %s612 = sphi 0, %s598
    %s618 = sphi 0, %s620
    %s621 = sphi 0, %s618
    %s622 = sphi 0, %s621
    %s638 = sphi 0, %s622
    %s644 = sphi 0, %s646
    %s647 = sphi 0, %s644
    %s648 = sphi 0, %s647
    %s664 = sphi 0, %s648
  $region4: #{_lambda_.1} parent=0 // loop_header_branch
    %36 = sbr.rel (%p34) target = $region8
  $region5: #{_lambda_.1} parent=0 // loop_body
    %s38 = ssub.s32 %s33, 1
    %s39 = ssub.s32 %s33, 2
    %s40 = sadd.s32 %s33, 1
    %s41 = ssub.s32 %s33, %s40
    %p42 = scmp.eq.s32.totalorder %s41, 0
    %s44 = sadd.s32 %s43, 1
    %s45 = scalar_select %p42, %s43, %s44
    %p48 = pneg %p42
    %p49 = scmp.eq.s32.totalorder %s33, 1
    %p50 = por %p48, %p49
    %p51 = scmp.ne.s32.totalorder %s43, %s46
    %p52 = scmp.eq.s32.totalorder %s33, 0
    %p53 = por %p51, %p52
    %p54 = scmp.ne.s32.totalorder %s43, %s46
    %p55 = scmp.eq.s32.totalorder %s38, 1
    %p56 = por %p54, %p55
    %p57 = scmp.ne.s32.totalorder %s46, %s47
    %p58 = scmp.eq.s32.totalorder %s38, 0
    %p59 = por %p57, %p58
    %p60 = scmp.ne.s32.totalorder %s46, %s47
    %p61 = scmp.eq.s32.totalorder %s39, 1
    %p62 = por %p60, %p61
    %p64 = scmp.ne.s32.totalorder %s47, %s63
    %p65 = scmp.eq.s32.totalorder %s39, 0
    %p66 = por %p64, %p65
    %s67 = ssub.s32 %s33, %s40
    %p68 = scmp.eq.s32.totalorder %s67, 0
    %s70 = sadd.s32 %s69, 1
    %s71 = scalar_select %p68, %s69, %s70
    %p74 = pneg %p68
    %p75 = scmp.eq.s32.totalorder %s33, 1
    %p76 = por %p74, %p75
    %p77 = scmp.ne.s32.totalorder %s69, %s72
    %p78 = scmp.eq.s32.totalorder %s33, 0
    %p79 = por %p77, %p78
    %p80 = scmp.ne.s32.totalorder %s69, %s72
    %p81 = scmp.eq.s32.totalorder %s38, 1
    %p82 = por %p80, %p81
    %p83 = scmp.ne.s32.totalorder %s72, %s73
    %p84 = scmp.eq.s32.totalorder %s38, 0
    %p85 = por %p83, %p84
    %p86 = scmp.ne.s32.totalorder %s72, %s73
    %p87 = scmp.eq.s32.totalorder %s39, 1
    %p88 = por %p86, %p87
    %p90 = scmp.ne.s32.totalorder %s73, %s89
    %p91 = scmp.eq.s32.totalorder %s39, 0
    %p92 = por %p90, %p91
    %s93 = ssub.s32 %s33, %s40
    %p94 = scmp.eq.s32.totalorder %s93, 0
    %s96 = sadd.s32 %s95, 1
    %s97 = scalar_select %p94, %s95, %s96
    %p100 = pneg %p94
    %p101 = scmp.eq.s32.totalorder %s33, 1
    %p102 = por %p100, %p101
    %p103 = scmp.ne.s32.totalorder %s95, %s98
    %p104 = scmp.eq.s32.totalorder %s33, 0
    %p105 = por %p103, %p104
    %p106 = scmp.ne.s32.totalorder %s95, %s98
    %p107 = scmp.eq.s32.totalorder %s38, 1
    %p108 = por %p106, %p107
    %p109 = scmp.ne.s32.totalorder %s98, %s99
    %p110 = scmp.eq.s32.totalorder %s38, 0
    %p111 = por %p109, %p110
    %p112 = scmp.ne.s32.totalorder %s98, %s99
    %p113 = scmp.eq.s32.totalorder %s39, 1
    %p114 = por %p112, %p113
    %p116 = scmp.ne.s32.totalorder %s99, %s115
    %p117 = scmp.eq.s32.totalorder %s39, 0
    %p118 = por %p116, %p117
    %s119 = ssub.s32 %s33, %s40
    %p120 = scmp.eq.s32.totalorder %s119, 0
    %s122 = sadd.s32 %s121, 1
    %s123 = scalar_select %p120, %s121, %s122
    %p126 = pneg %p120
    %p127 = scmp.eq.s32.totalorder %s33, 1
    %p128 = por %p126, %p127
    %p129 = scmp.ne.s32.totalorder %s121, %s124
    %p130 = scmp.eq.s32.totalorder %s33, 0
    %p131 = por %p129, %p130
    %p132 = scmp.ne.s32.totalorder %s121, %s124
    %p133 = scmp.eq.s32.totalorder %s38, 1
    %p134 = por %p132, %p133
    %p135 = scmp.ne.s32.totalorder %s124, %s125
    %p136 = scmp.eq.s32.totalorder %s38, 0
    %p137 = por %p135, %p136
    %p138 = scmp.ne.s32.totalorder %s124, %s125
    %p139 = scmp.eq.s32.totalorder %s39, 1
    %p140 = por %p138, %p139
    %p142 = scmp.ne.s32.totalorder %s125, %s141
    %p143 = scmp.eq.s32.totalorder %s39, 0
    %p144 = por %p142, %p143
    %s145 = ssub.s32 %s33, %s40
    %p146 = scmp.eq.s32.totalorder %s145, 0
    %s148 = sadd.s32 %s147, 1
    %s149 = scalar_select %p146, %s147, %s148
    %p152 = pneg %p146
    %p153 = scmp.eq.s32.totalorder %s33, 1
    %p154 = por %p152, %p153
    %p155 = scmp.ne.s32.totalorder %s147, %s150
    %p156 = scmp.eq.s32.totalorder %s33, 0
    %p157 = por %p155, %p156
    %p158 = scmp.ne.s32.totalorder %s147, %s150
    %p159 = scmp.eq.s32.totalorder %s38, 1
    %p160 = por %p158, %p159
    %p161 = scmp.ne.s32.totalorder %s150, %s151
    %p162 = scmp.eq.s32.totalorder %s38, 0
    %p163 = por %p161, %p162
    %p164 = scmp.ne.s32.totalorder %s150, %s151
    %p165 = scmp.eq.s32.totalorder %s39, 1
    %p166 = por %p164, %p165
    %p168 = scmp.ne.s32.totalorder %s151, %s167
    %p169 = scmp.eq.s32.totalorder %s39, 0
    %p170 = por %p168, %p169
    %s171 = ssub.s32 %s33, %s40
    %p172 = scmp.eq.s32.totalorder %s171, 0
    %s174 = sadd.s32 %s173, 1
    %s175 = scalar_select %p172, %s173, %s174
    %p178 = pneg %p172
    %p179 = scmp.eq.s32.totalorder %s33, 1
    %p180 = por %p178, %p179
    %p181 = scmp.ne.s32.totalorder %s173, %s176
    %p182 = scmp.eq.s32.totalorder %s33, 0
    %p183 = por %p181, %p182
    %p184 = scmp.ne.s32.totalorder %s173, %s176
    %p185 = scmp.eq.s32.totalorder %s38, 1
    %p186 = por %p184, %p185
    %p187 = scmp.ne.s32.totalorder %s176, %s177
    %p188 = scmp.eq.s32.totalorder %s38, 0
    %p189 = por %p187, %p188
    %p190 = scmp.ne.s32.totalorder %s176, %s177
    %p191 = scmp.eq.s32.totalorder %s39, 1
    %p192 = por %p190, %p191
    %p194 = scmp.ne.s32.totalorder %s177, %s193
    %p195 = scmp.eq.s32.totalorder %s39, 0
    %p196 = por %p194, %p195
    %s197 = ssub.s32 %s33, %s40
    %p198 = scmp.eq.s32.totalorder %s197, 0
    %s200 = sadd.s32 %s199, 1
    %s201 = scalar_select %p198, %s199, %s200
    %p204 = pneg %p198
    %p205 = scmp.eq.s32.totalorder %s33, 1
    %p206 = por %p204, %p205
    %p207 = scmp.ne.s32.totalorder %s199, %s202
    %p208 = scmp.eq.s32.totalorder %s33, 0
    %p209 = por %p207, %p208
    %p210 = scmp.ne.s32.totalorder %s199, %s202
    %p211 = scmp.eq.s32.totalorder %s38, 1
    %p212 = por %p210, %p211
    %p213 = scmp.ne.s32.totalorder %s202, %s203
    %p214 = scmp.eq.s32.totalorder %s38, 0
    %p215 = por %p213, %p214
    %p216 = scmp.ne.s32.totalorder %s202, %s203
    %p217 = scmp.eq.s32.totalorder %s39, 1
    %p218 = por %p216, %p217
    %p220 = scmp.ne.s32.totalorder %s203, %s219
    %p221 = scmp.eq.s32.totalorder %s39, 0
    %p222 = por %p220, %p221
    %s223 = ssub.s32 %s33, %s40
    %p224 = scmp.eq.s32.totalorder %s223, 0
    %s226 = sadd.s32 %s225, 1
    %s227 = scalar_select %p224, %s225, %s226
    %p230 = pneg %p224
    %p231 = scmp.eq.s32.totalorder %s33, 1
    %p232 = por %p230, %p231
    %p233 = scmp.ne.s32.totalorder %s225, %s228
    %p234 = scmp.eq.s32.totalorder %s33, 0
    %p235 = por %p233, %p234
    %p236 = scmp.ne.s32.totalorder %s225, %s228
    %p237 = scmp.eq.s32.totalorder %s38, 1
    %p238 = por %p236, %p237
    %p239 = scmp.ne.s32.totalorder %s228, %s229
    %p240 = scmp.eq.s32.totalorder %s38, 0
    %p241 = por %p239, %p240
    %p242 = scmp.ne.s32.totalorder %s228, %s229
    %p243 = scmp.eq.s32.totalorder %s39, 1
    %p244 = por %p242, %p243
    %p246 = scmp.ne.s32.totalorder %s229, %s245
    %p247 = scmp.eq.s32.totalorder %s39, 0
    %p248 = por %p246, %p247
    %s249 = ssub.s32 %s33, %s40
    %p250 = scmp.eq.s32.totalorder %s249, 0
    %s252 = sadd.s32 %s251, 1
    %s253 = scalar_select %p250, %s251, %s252
    %p256 = pneg %p250
    %p257 = scmp.eq.s32.totalorder %s33, 1
    %p258 = por %p256, %p257
    %p259 = scmp.ne.s32.totalorder %s251, %s254
    %p260 = scmp.eq.s32.totalorder %s33, 0
    %p261 = por %p259, %p260
    %p262 = scmp.ne.s32.totalorder %s251, %s254
    %p263 = scmp.eq.s32.totalorder %s38, 1
    %p264 = por %p262, %p263
    %p265 = scmp.ne.s32.totalorder %s254, %s255
    %p266 = scmp.eq.s32.totalorder %s38, 0
    %p267 = por %p265, %p266
    %p268 = scmp.ne.s32.totalorder %s254, %s255
    %p269 = scmp.eq.s32.totalorder %s39, 1
    %p270 = por %p268, %p269
    %p272 = scmp.ne.s32.totalorder %s255, %s271
    %p273 = scmp.eq.s32.totalorder %s39, 0
    %p274 = por %p272, %p273
    %s275 = ssub.s32 %s33, %s40
    %p276 = scmp.eq.s32.totalorder %s275, 0
    %s278 = sadd.s32 %s277, 1
    %s279 = scalar_select %p276, %s277, %s278
    %p282 = pneg %p276
    %p283 = scmp.eq.s32.totalorder %s33, 1
    %p284 = por %p282, %p283
    %p285 = scmp.ne.s32.totalorder %s277, %s280
    %p286 = scmp.eq.s32.totalorder %s33, 0
    %p287 = por %p285, %p286
    %p288 = scmp.ne.s32.totalorder %s277, %s280
    %p289 = scmp.eq.s32.totalorder %s38, 1
    %p290 = por %p288, %p289
    %p291 = scmp.ne.s32.totalorder %s280, %s281
    %p292 = scmp.eq.s32.totalorder %s38, 0
    %p293 = por %p291, %p292
    %p294 = scmp.ne.s32.totalorder %s280, %s281
    %p295 = scmp.eq.s32.totalorder %s39, 1
    %p296 = por %p294, %p295
    %p298 = scmp.ne.s32.totalorder %s281, %s297
    %p299 = scmp.eq.s32.totalorder %s39, 0
    %p300 = por %p298, %p299
    %s302 = sadd.s32 %s301, 1
    %p305 = scmp.eq.s32.totalorder %s33, 1
    %p306 = scmp.ne.s32.totalorder %s301, %s303
    %p307 = scmp.eq.s32.totalorder %s33, 0
    %p308 = por %p306, %p307
    %p309 = scmp.ne.s32.totalorder %s301, %s303
    %p310 = scmp.eq.s32.totalorder %s38, 1
    %p311 = por %p309, %p310
    %p312 = scmp.ne.s32.totalorder %s303, %s304
    %p313 = scmp.eq.s32.totalorder %s38, 0
    %p314 = por %p312, %p313
    %p315 = scmp.ne.s32.totalorder %s303, %s304
    %p316 = scmp.eq.s32.totalorder %s39, 1
    %p317 = por %p315, %p316
    %p319 = scmp.ne.s32.totalorder %s304, %s318
    %p320 = scmp.eq.s32.totalorder %s39, 0
    %p321 = por %p319, %p320
    %s323 = sadd.s32 %s322, 1
    %p326 = scmp.eq.s32.totalorder %s33, 1
    %p327 = scmp.ne.s32.totalorder %s322, %s324
    %p328 = scmp.eq.s32.totalorder %s33, 0
    %p329 = por %p327, %p328
    %p330 = scmp.ne.s32.totalorder %s322, %s324
    %p331 = scmp.eq.s32.totalorder %s38, 1
    %p332 = por %p330, %p331
    %p333 = scmp.ne.s32.totalorder %s324, %s325
    %p334 = scmp.eq.s32.totalorder %s38, 0
    %p335 = por %p333, %p334
    %p336 = scmp.ne.s32.totalorder %s324, %s325
    %p337 = scmp.eq.s32.totalorder %s39, 1
    %p338 = por %p336, %p337
    %p340 = scmp.ne.s32.totalorder %s325, %s339
    %p341 = scmp.eq.s32.totalorder %s39, 0
    %p342 = por %p340, %p341
    %s344 = sadd.s32 %s343, 1
    %p347 = scmp.eq.s32.totalorder %s33, 1
    %p348 = scmp.ne.s32.totalorder %s343, %s345
    %p349 = scmp.eq.s32.totalorder %s33, 0
    %p350 = por %p348, %p349
    %p351 = scmp.ne.s32.totalorder %s343, %s345
    %p352 = scmp.eq.s32.totalorder %s38, 1
    %p353 = por %p351, %p352
    %p354 = scmp.ne.s32.totalorder %s345, %s346
    %p355 = scmp.eq.s32.totalorder %s38, 0
    %p356 = por %p354, %p355
    %p357 = scmp.ne.s32.totalorder %s345, %s346
    %p358 = scmp.eq.s32.totalorder %s39, 1
    %p359 = por %p357, %p358
    %p361 = scmp.ne.s32.totalorder %s346, %s360
    %p362 = scmp.eq.s32.totalorder %s39, 0
    %p363 = por %p361, %p362
    %s365 = sadd.s32 %s364, 1
    %p368 = scmp.eq.s32.totalorder %s33, 1
    %p369 = scmp.ne.s32.totalorder %s364, %s366
    %p370 = scmp.eq.s32.totalorder %s33, 0
    %p371 = por %p369, %p370
    %p372 = scmp.ne.s32.totalorder %s364, %s366
    %p373 = scmp.eq.s32.totalorder %s38, 1
    %p374 = por %p372, %p373
    %p375 = scmp.ne.s32.totalorder %s366, %s367
    %p376 = scmp.eq.s32.totalorder %s38, 0
    %p377 = por %p375, %p376
    %p378 = scmp.ne.s32.totalorder %s366, %s367
    %p379 = scmp.eq.s32.totalorder %s39, 1
    %p380 = por %p378, %p379
    %p382 = scmp.ne.s32.totalorder %s367, %s381
    %p383 = scmp.eq.s32.totalorder %s39, 0
    %p384 = por %p382, %p383
    %s386 = sadd.s32 %s385, 1
    %p389 = scmp.eq.s32.totalorder %s33, 1
    %p390 = scmp.ne.s32.totalorder %s385, %s387
    %p391 = scmp.eq.s32.totalorder %s33, 0
    %p392 = por %p390, %p391
    %p393 = scmp.ne.s32.totalorder %s385, %s387
    %p394 = scmp.eq.s32.totalorder %s38, 1
    %p395 = por %p393, %p394
    %p396 = scmp.ne.s32.totalorder %s387, %s388
    %p397 = scmp.eq.s32.totalorder %s38, 0
    %p398 = por %p396, %p397
    %p399 = scmp.ne.s32.totalorder %s387, %s388
    %p400 = scmp.eq.s32.totalorder %s39, 1
    %p401 = por %p399, %p400
    %p403 = scmp.ne.s32.totalorder %s388, %s402
    %p404 = scmp.eq.s32.totalorder %s39, 0
    %p405 = por %p403, %p404
    %s407 = sadd.s32 %s406, 1
    %p410 = scmp.eq.s32.totalorder %s33, 1
    %p411 = scmp.ne.s32.totalorder %s406, %s408
    %p412 = scmp.eq.s32.totalorder %s33, 0
    %p413 = por %p411, %p412
    %p414 = scmp.ne.s32.totalorder %s406, %s408
    %p415 = scmp.eq.s32.totalorder %s38, 1
    %p416 = por %p414, %p415
    %p417 = scmp.ne.s32.totalorder %s408, %s409
    %p418 = scmp.eq.s32.totalorder %s38, 0
    %p419 = por %p417, %p418
    %p420 = scmp.ne.s32.totalorder %s408, %s409
    %p421 = scmp.eq.s32.totalorder %s39, 1
    %p422 = por %p420, %p421
    %p424 = scmp.ne.s32.totalorder %s409, %s423
    %p425 = scmp.eq.s32.totalorder %s39, 0
    %p426 = por %p424, %p425
    %s428 = sadd.s32 %s427, 1
    %p431 = scmp.eq.s32.totalorder %s33, 1
    %p432 = scmp.ne.s32.totalorder %s427, %s429
    %p433 = scmp.eq.s32.totalorder %s33, 0
    %p434 = por %p432, %p433
    %p435 = scmp.ne.s32.totalorder %s427, %s429
    %p436 = scmp.eq.s32.totalorder %s38, 1
    %p437 = por %p435, %p436
    %p438 = scmp.ne.s32.totalorder %s429, %s430
    %p439 = scmp.eq.s32.totalorder %s38, 0
    %p440 = por %p438, %p439
    %p441 = scmp.ne.s32.totalorder %s429, %s430
    %p442 = scmp.eq.s32.totalorder %s39, 1
    %p443 = por %p441, %p442
    %p445 = scmp.ne.s32.totalorder %s430, %s444
    %p446 = scmp.eq.s32.totalorder %s39, 0
    %p447 = por %p445, %p446
    %s449 = sadd.s32 %s448, 1
    %p452 = scmp.eq.s32.totalorder %s33, 1
    %p453 = scmp.ne.s32.totalorder %s448, %s450
    %p454 = scmp.eq.s32.totalorder %s33, 0
    %p455 = por %p453, %p454
    %p456 = scmp.ne.s32.totalorder %s448, %s450
    %p457 = scmp.eq.s32.totalorder %s38, 1
    %p458 = por %p456, %p457
    %p459 = scmp.ne.s32.totalorder %s450, %s451
    %p460 = scmp.eq.s32.totalorder %s38, 0
    %p461 = por %p459, %p460
    %p462 = scmp.ne.s32.totalorder %s450, %s451
    %p463 = scmp.eq.s32.totalorder %s39, 1
    %p464 = por %p462, %p463
    %p466 = scmp.ne.s32.totalorder %s451, %s465
    %p467 = scmp.eq.s32.totalorder %s39, 0
    %p468 = por %p466, %p467
    %s470 = sadd.s32 %s469, 1
    %p473 = scmp.eq.s32.totalorder %s33, 1
    %p474 = scmp.ne.s32.totalorder %s469, %s471
    %p475 = scmp.eq.s32.totalorder %s33, 0
    %p476 = por %p474, %p475
    %p477 = scmp.ne.s32.totalorder %s469, %s471
    %p478 = scmp.eq.s32.totalorder %s38, 1
    %p479 = por %p477, %p478
    %p480 = scmp.ne.s32.totalorder %s471, %s472
    %p481 = scmp.eq.s32.totalorder %s38, 0
    %p482 = por %p480, %p481
    %p483 = scmp.ne.s32.totalorder %s471, %s472
    %p484 = scmp.eq.s32.totalorder %s39, 1
    %p485 = por %p483, %p484
    %p487 = scmp.ne.s32.totalorder %s472, %s486
    %p488 = scmp.eq.s32.totalorder %s39, 0
    %p489 = por %p487, %p488
    %s491 = sadd.s32 %s490, 1
    %p494 = scmp.eq.s32.totalorder %s33, 1
    %p495 = scmp.ne.s32.totalorder %s490, %s492
    %p496 = scmp.eq.s32.totalorder %s33, 0
    %p497 = por %p495, %p496
    %p498 = scmp.ne.s32.totalorder %s490, %s492
    %p499 = scmp.eq.s32.totalorder %s38, 1
    %p500 = por %p498, %p499
    %p501 = scmp.ne.s32.totalorder %s492, %s493
    %p502 = scmp.eq.s32.totalorder %s38, 0
    %p503 = por %p501, %p502
    %p504 = scmp.ne.s32.totalorder %s492, %s493
    %p505 = scmp.eq.s32.totalorder %s39, 1
    %p506 = por %p504, %p505
    %p508 = scmp.ne.s32.totalorder %s493, %s507
    %p509 = scmp.eq.s32.totalorder %s39, 0
    %p510 = por %p508, %p509
    %s512 = sadd.s32 %s511, 1
    %p515 = scmp.eq.s32.totalorder %s33, 1
    %p516 = scmp.ne.s32.totalorder %s511, %s513
    %p517 = scmp.eq.s32.totalorder %s33, 0
    %p518 = por %p516, %p517
    %p519 = scmp.ne.s32.totalorder %s511, %s513
    %p520 = scmp.eq.s32.totalorder %s38, 1
    %p521 = por %p519, %p520
    %p522 = scmp.ne.s32.totalorder %s513, %s514
    %p523 = scmp.eq.s32.totalorder %s38, 0
    %p524 = por %p522, %p523
    %p525 = scmp.ne.s32.totalorder %s513, %s514
    %p526 = scmp.eq.s32.totalorder %s39, 1
    %p527 = por %p525, %p526
    %p529 = scmp.ne.s32.totalorder %s514, %s528
    %p530 = scmp.eq.s32.totalorder %s39, 0
    %p531 = por %p529, %p530
    %s533 = sadd.s32 %s532, 1
    %p536 = scmp.eq.s32.totalorder %s33, 1
    %p537 = scmp.ne.s32.totalorder %s532, %s534
    %p538 = scmp.eq.s32.totalorder %s33, 0
    %p539 = por %p537, %p538
    %p540 = scmp.ne.s32.totalorder %s532, %s534
    %p541 = scmp.eq.s32.totalorder %s38, 1
    %p542 = por %p540, %p541
    %p543 = scmp.ne.s32.totalorder %s534, %s535
    %p544 = scmp.eq.s32.totalorder %s38, 0
    %p545 = por %p543, %p544
    %p546 = scmp.ne.s32.totalorder %s534, %s535
    %p547 = scmp.eq.s32.totalorder %s39, 1
    %p548 = por %p546, %p547
    %p550 = scmp.ne.s32.totalorder %s535, %s549
    %p551 = scmp.eq.s32.totalorder %s39, 0
    %p552 = por %p550, %p551
    %s554 = sadd.s32 %s553, 1
    %p557 = scmp.eq.s32.totalorder %s33, 1
    %p558 = scmp.ne.s32.totalorder %s553, %s555
    %p559 = scmp.eq.s32.totalorder %s33, 0
    %p560 = por %p558, %p559
    %p561 = scmp.ne.s32.totalorder %s553, %s555
    %p562 = scmp.eq.s32.totalorder %s38, 1
    %p563 = por %p561, %p562
    %p564 = scmp.ne.s32.totalorder %s555, %s556
    %p565 = scmp.eq.s32.totalorder %s38, 0
    %p566 = por %p564, %p565
    %p567 = scmp.ne.s32.totalorder %s555, %s556
    %p568 = scmp.eq.s32.totalorder %s39, 1
    %p569 = por %p567, %p568
    %p571 = scmp.ne.s32.totalorder %s556, %s570
    %p572 = scmp.eq.s32.totalorder %s39, 0
    %p573 = por %p571, %p572
    %s575 = sadd.s32 %s574, 1
    %p578 = scmp.eq.s32.totalorder %s33, 1
    %p579 = scmp.ne.s32.totalorder %s574, %s576
    %p580 = scmp.eq.s32.totalorder %s33, 0
    %p581 = por %p579, %p580
    %p582 = scmp.ne.s32.totalorder %s574, %s576
    %p583 = scmp.eq.s32.totalorder %s38, 1
    %p584 = por %p582, %p583
    %p585 = scmp.ne.s32.totalorder %s576, %s577
    %p586 = scmp.eq.s32.totalorder %s38, 0
    %p587 = por %p585, %p586
    %p588 = scmp.ne.s32.totalorder %s576, %s577
    %p589 = scmp.eq.s32.totalorder %s39, 1
    %p590 = por %p588, %p589
    %p592 = scmp.ne.s32.totalorder %s577, %s591
    %p593 = scmp.eq.s32.totalorder %s39, 0
    %p594 = por %p592, %p593
    %s596 = sadd.s32 %s595, 1
    %p599 = scmp.eq.s32.totalorder %s33, 1
    %p600 = scmp.ne.s32.totalorder %s595, %s597
    %p601 = scmp.eq.s32.totalorder %s33, 0
    %p602 = por %p600, %p601
    %p603 = scmp.ne.s32.totalorder %s595, %s597
    %p604 = scmp.eq.s32.totalorder %s38, 1
    %p605 = por %p603, %p604
    %p606 = scmp.ne.s32.totalorder %s597, %s598
    %p607 = scmp.eq.s32.totalorder %s38, 0
    %p608 = por %p606, %p607
    %p609 = scmp.ne.s32.totalorder %s597, %s598
    %p610 = scmp.eq.s32.totalorder %s39, 1
    %p611 = por %p609, %p610
    %p613 = scmp.ne.s32.totalorder %s598, %s612
    %p614 = scmp.eq.s32.totalorder %s39, 0
    %p615 = por %p613, %p614
    %s616 = ssub.s32 %s33, %s40
    %p617 = scmp.eq.s32.totalorder %s616, 0
    %s619 = sadd.s32 %s618, 1
    %s620 = scalar_select %p617, %s618, %s619
    %p623 = pneg %p617
    %p624 = scmp.eq.s32.totalorder %s33, 1
    %p625 = por %p623, %p624
    %p626 = scmp.ne.s32.totalorder %s618, %s621
    %p627 = scmp.eq.s32.totalorder %s33, 0
    %p628 = por %p626, %p627
    %p629 = scmp.ne.s32.totalorder %s618, %s621
    %p630 = scmp.eq.s32.totalorder %s38, 1
    %p631 = por %p629, %p630
    %p632 = scmp.ne.s32.totalorder %s621, %s622
    %p633 = scmp.eq.s32.totalorder %s38, 0
    %p634 = por %p632, %p633
    %p635 = scmp.ne.s32.totalorder %s621, %s622
    %p636 = scmp.eq.s32.totalorder %s39, 1
    %p637 = por %p635, %p636
    %p639 = scmp.ne.s32.totalorder %s622, %s638
    %p640 = scmp.eq.s32.totalorder %s39, 0
    %p641 = por %p639, %p640
    %s642 = ssub.s32 %s33, %s40
    %p643 = scmp.eq.s32.totalorder %s642, 0
    %s645 = sadd.s32 %s644, 1
    %s646 = scalar_select %p643, %s644, %s645
    %p649 = pneg %p643
    %p650 = scmp.eq.s32.totalorder %s33, 1
    %p651 = por %p649, %p650
    %p652 = scmp.ne.s32.totalorder %s644, %s647
    %p653 = scmp.eq.s32.totalorder %s33, 0
    %p654 = por %p652, %p653
    %p655 = scmp.ne.s32.totalorder %s644, %s647
    %p656 = scmp.eq.s32.totalorder %s38, 1
    %p657 = por %p655, %p656
    %p658 = scmp.ne.s32.totalorder %s647, %s648
    %p659 = scmp.eq.s32.totalorder %s38, 0
    %p660 = por %p658, %p659
    %p661 = scmp.ne.s32.totalorder %s647, %s648
    %p662 = scmp.eq.s32.totalorder %s39, 1
    %p663 = por %p661, %p662
    %p665 = scmp.ne.s32.totalorder %s648, %s664
    %p666 = scmp.eq.s32.totalorder %s39, 0
    %p667 = por %p665, %p666
    %p668 = scmp.le.s32.totalorder 1, %s33
    %p669 = scmp.lt.s32.totalorder %s33, 3
    %p670 = pnand %p668, %p669
    %p671 = pneg %p670
    // Predicated region
    $region9: #{_lambda_.1} parent=5 // pred_check
      _
    $region10: #{_lambda_.1} parent=5 // pred_check_branch
      %673 = sbr.rel (%p670) target = $region12
    $region11: #{_lambda_.1} parent=5 // pred_region
      %s674 = ssub.s32 %s33, 1
      // Predicated region
      $region13: #{_lambda_.1} parent=11 // pred_check
        %p675 = pneg %p314
      $region14: #{_lambda_.1} parent=11 // pred_check_branch
        %677 = sbr.rel (%p675) target = $region16
      $region15: #{_lambda_.1} parent=11 // pred_region
        _
      $region16: #{_lambda_.1} parent=11 // pred_fallthru
        _
      // Predicated region
      $region17: #{_lambda_.1} parent=11 // pred_check
        %p678 = pneg %p335
      $region18: #{_lambda_.1} parent=11 // pred_check_branch
        %680 = sbr.rel (%p678) target = $region20
      $region19: #{_lambda_.1} parent=11 // pred_region
        _
      $region20: #{_lambda_.1} parent=11 // pred_fallthru
        _
      // Predicated region
      $region21: #{_lambda_.1} parent=11 // pred_check
        %p681 = pneg %p356
      $region22: #{_lambda_.1} parent=11 // pred_check_branch
        %683 = sbr.rel (%p681) target = $region24
      $region23: #{_lambda_.1} parent=11 // pred_region
        _
      $region24: #{_lambda_.1} parent=11 // pred_fallthru
        _
      // Predicated region
      $region25: #{_lambda_.1} parent=11 // pred_check
        %p684 = pneg %p377
      $region26: #{_lambda_.1} parent=11 // pred_check_branch
        %686 = sbr.rel (%p684) target = $region28
      $region27: #{_lambda_.1} parent=11 // pred_region
        _
      $region28: #{_lambda_.1} parent=11 // pred_fallthru
        _
      // Predicated region
      $region29: #{_lambda_.1} parent=11 // pred_check
        %p687 = pneg %p398
      $region30: #{_lambda_.1} parent=11 // pred_check_branch
        %689 = sbr.rel (%p687) target = $region32
      $region31: #{_lambda_.1} parent=11 // pred_region
        _
      $region32: #{_lambda_.1} parent=11 // pred_fallthru
        _
      // Predicated region
      $region33: #{_lambda_.1} parent=11 // pred_check
        %p690 = pneg %p419
      $region34: #{_lambda_.1} parent=11 // pred_check_branch
        %692 = sbr.rel (%p690) target = $region36
      $region35: #{_lambda_.1} parent=11 // pred_region
        _
      $region36: #{_lambda_.1} parent=11 // pred_fallthru
        _
      // Predicated region
      $region37: #{_lambda_.1} parent=11 // pred_check
        %p693 = pneg %p440
      $region38: #{_lambda_.1} parent=11 // pred_check_branch
        %695 = sbr.rel (%p693) target = $region40
      $region39: #{_lambda_.1} parent=11 // pred_region
        _
      $region40: #{_lambda_.1} parent=11 // pred_fallthru
        _
      // Predicated region
      $region41: #{_lambda_.1} parent=11 // pred_check
        %p696 = pneg %p461
      $region42: #{_lambda_.1} parent=11 // pred_check_branch
        %698 = sbr.rel (%p696) target = $region44
      $region43: #{_lambda_.1} parent=11 // pred_region
        _
      $region44: #{_lambda_.1} parent=11 // pred_fallthru
        _
      // Predicated region
      $region45: #{_lambda_.1} parent=11 // pred_check
        %p699 = pneg %p482
      $region46: #{_lambda_.1} parent=11 // pred_check_branch
        %701 = sbr.rel (%p699) target = $region48
      $region47: #{_lambda_.1} parent=11 // pred_region
        _
      $region48: #{_lambda_.1} parent=11 // pred_fallthru
        _
      // Predicated region
      $region49: #{_lambda_.1} parent=11 // pred_check
        %p702 = pneg %p503
      $region50: #{_lambda_.1} parent=11 // pred_check_branch
        %704 = sbr.rel (%p702) target = $region52
      $region51: #{_lambda_.1} parent=11 // pred_region
        _
      $region52: #{_lambda_.1} parent=11 // pred_fallthru
        _
      // Predicated region
      $region53: #{_lambda_.1} parent=11 // pred_check
        %p705 = pneg %p524
      $region54: #{_lambda_.1} parent=11 // pred_check_branch
        %707 = sbr.rel (%p705) target = $region56
      $region55: #{_lambda_.1} parent=11 // pred_region
        _
      $region56: #{_lambda_.1} parent=11 // pred_fallthru
        _
      // Predicated region
      $region57: #{_lambda_.1} parent=11 // pred_check
        %p708 = pneg %p545
      $region58: #{_lambda_.1} parent=11 // pred_check_branch
        %710 = sbr.rel (%p708) target = $region60
      $region59: #{_lambda_.1} parent=11 // pred_region
        _
      $region60: #{_lambda_.1} parent=11 // pred_fallthru
        _
      // Predicated region
      $region61: #{_lambda_.1} parent=11 // pred_check
        %p711 = pneg %p566
      $region62: #{_lambda_.1} parent=11 // pred_check_branch
        %713 = sbr.rel (%p711) target = $region64
      $region63: #{_lambda_.1} parent=11 // pred_region
        _
      $region64: #{_lambda_.1} parent=11 // pred_fallthru
        _
      // Predicated region
      $region65: #{_lambda_.1} parent=11 // pred_check
        %p714 = pneg %p587
      $region66: #{_lambda_.1} parent=11 // pred_check_branch
        %716 = sbr.rel (%p714) target = $region68
      $region67: #{_lambda_.1} parent=11 // pred_region
        _
      $region68: #{_lambda_.1} parent=11 // pred_fallthru
        _
      // Predicated region
      $region69: #{_lambda_.1} parent=11 // pred_check
        %p717 = pneg %p608
      $region70: #{_lambda_.1} parent=11 // pred_check_branch
        %719 = sbr.rel (%p717) target = $region72
      $region71: #{_lambda_.1} parent=11 // pred_region
        _
      $region72: #{_lambda_.1} parent=11 // pred_fallthru
        _
    $region12: #{_lambda_.1} parent=5 // pred_fallthru
      _
    %p720 = scmp.lt.s32.totalorder %s33, 2
    // Predicated region
    $region73: #{_lambda_.1} parent=5 // pred_check
      %p721 = pneg %p720
    $region74: #{_lambda_.1} parent=5 // pred_check_branch
      %723 = sbr.rel (%p721) target = $region76
    $region75: #{_lambda_.1} parent=5 // pred_region
      // Predicated region
      $region77: #{_lambda_.1} parent=75 // pred_check
        %p724 = pneg %p53
      $region78: #{_lambda_.1} parent=75 // pred_check_branch
        %726 = sbr.rel (%p724) target = $region80
      $region79: #{_lambda_.1} parent=75 // pred_region
        %p727 = scmp.lt.s32.totalorder %s33, 1
        %s728 = scalar_select %p727, %s33, 1
        %s729 = smul.addr %s728, 2
        %s730 = smul.addr %s729, 2
        %s731 = scalar_lea.vmem %s0, %s730
      $region80: #{_lambda_.1} parent=75 // pred_fallthru
        _
      // Predicated region
      $region81: #{_lambda_.1} parent=75 // pred_check
        %p732 = pneg %p79
      $region82: #{_lambda_.1} parent=75 // pred_check_branch
        %734 = sbr.rel (%p732) target = $region84
      $region83: #{_lambda_.1} parent=75 // pred_region
        %p735 = scmp.lt.s32.totalorder %s33, 1
        %s736 = scalar_select %p735, %s33, 1
        %s737 = smul.addr %s736, 4
        %s738 = smul.addr %s737, 8
        %s739 = scalar_lea.vmem %s1, %s738
      $region84: #{_lambda_.1} parent=75 // pred_fallthru
        _
      // Predicated region
      $region85: #{_lambda_.1} parent=75 // pred_check
        %p740 = pneg %p105
      $region86: #{_lambda_.1} parent=75 // pred_check_branch
        %742 = sbr.rel (%p740) target = $region88
      $region87: #{_lambda_.1} parent=75 // pred_region
        %p743 = scmp.lt.s32.totalorder %s33, 1
        %s744 = scalar_select %p743, %s33, 1
        %s745 = smul.addr %s744, 2
        %s746 = scalar_lea.vmem %s2, %s745
      $region88: #{_lambda_.1} parent=75 // pred_fallthru
        _
      // Predicated region
      $region89: #{_lambda_.1} parent=75 // pred_check
        %p747 = pneg %p131
      $region90: #{_lambda_.1} parent=75 // pred_check_branch
        %749 = sbr.rel (%p747) target = $region92
      $region91: #{_lambda_.1} parent=75 // pred_region
        %p750 = scmp.lt.s32.totalorder %s33, 1
        %s751 = scalar_select %p750, %s33, 1
        %s752 = smul.addr %s751, 2
        %s753 = scalar_lea.vmem %s3, %s752
      $region92: #{_lambda_.1} parent=75 // pred_fallthru
        _
      // Predicated region
      $region93: #{_lambda_.1} parent=75 // pred_check
        %p754 = pneg %p157
      $region94: #{_lambda_.1} parent=75 // pred_check_branch
        %756 = sbr.rel (%p754) target = $region96
      $region95: #{_lambda_.1} parent=75 // pred_region
        %p757 = scmp.lt.s32.totalorder %s33, 1
        %s758 = scalar_select %p757, %s33, 1
        %s759 = smul.addr %s758, 2
        %s760 = smul.addr %s759, 8
        %s761 = scalar_lea.vmem %s4, %s760
      $region96: #{_lambda_.1} parent=75 // pred_fallthru
        _
      // Predicated region
      $region97: #{_lambda_.1} parent=75 // pred_check
        %p762 = pneg %p183
      $region98: #{_lambda_.1} parent=75 // pred_check_branch
        %764 = sbr.rel (%p762) target = $region100
      $region99: #{_lambda_.1} parent=75 // pred_region
        %p765 = scmp.lt.s32.totalorder %s33, 1
        %s766 = scalar_select %p765, %s33, 1
        %s767 = smul.addr %s766, 2
        %s768 = scalar_lea.vmem %s5, %s767
      $region100: #{_lambda_.1} parent=75 // pred_fallthru
        _
      // Predicated region
      $region101: #{_lambda_.1} parent=75 // pred_check
        %p769 = pneg %p209
      $region102: #{_lambda_.1} parent=75 // pred_check_branch
        %771 = sbr.rel (%p769) target = $region104
      $region103: #{_lambda_.1} parent=75 // pred_region
        %p772 = scmp.lt.s32.totalorder %s33, 1
        %s773 = scalar_select %p772, %s33, 1
        %s774 = smul.addr %s773, 2
        %s775 = smul.addr %s774, 8
        %s776 = scalar_lea.vmem %s6, %s775
      $region104: #{_lambda_.1} parent=75 // pred_fallthru
        _
      // Predicated region
      $region105: #{_lambda_.1} parent=75 // pred_check
        %p777 = pneg %p235
      $region106: #{_lambda_.1} parent=75 // pred_check_branch
        %779 = sbr.rel (%p777) target = $region108
      $region107: #{_lambda_.1} parent=75 // pred_region
        %p780 = scmp.lt.s32.totalorder %s33, 1
        %s781 = scalar_select %p780, %s33, 1
        %s782 = smul.addr %s781, 2
        %s783 = smul.addr %s782, 8
        %s784 = scalar_lea.vmem %s7, %s783
      $region108: #{_lambda_.1} parent=75 // pred_fallthru
        _
      // Predicated region
      $region109: #{_lambda_.1} parent=75 // pred_check
        %p785 = pneg %p261
      $region110: #{_lambda_.1} parent=75 // pred_check_branch
        %787 = sbr.rel (%p785) target = $region112
      $region111: #{_lambda_.1} parent=75 // pred_region
        %p788 = scmp.lt.s32.totalorder %s33, 1
        %s789 = scalar_select %p788, %s33, 1
        %s790 = smul.addr %s789, 2
        %s791 = smul.addr %s790, 8
        %s792 = scalar_lea.vmem %s8, %s791
      $region112: #{_lambda_.1} parent=75 // pred_fallthru
        _
      // Predicated region
      $region113: #{_lambda_.1} parent=75 // pred_check
        %p793 = pneg %p287
      $region114: #{_lambda_.1} parent=75 // pred_check_branch
        %795 = sbr.rel (%p793) target = $region116
      $region115: #{_lambda_.1} parent=75 // pred_region
        %p796 = scmp.lt.s32.totalorder %s33, 1
        %s797 = scalar_select %p796, %s33, 1
        %s798 = smul.addr %s797, 2
        %s799 = smul.addr %s798, 8
        %s800 = scalar_lea.vmem %s9, %s799
      $region116: #{_lambda_.1} parent=75 // pred_fallthru
        _
    $region76: #{_lambda_.1} parent=5 // pred_fallthru
      _
    %p801 = scmp.le.s32.totalorder 1, %s33
    %p802 = scmp.lt.s32.totalorder %s33, 3
    %p803 = pnand %p801, %p802
    %p804 = pneg %p803
    // Predicated region
    $region117: #{_lambda_.1} parent=5 // pred_check
      _
    $region118: #{_lambda_.1} parent=5 // pred_check_branch
      %806 = sbr.rel (%p803) target = $region120
    $region119: #{_lambda_.1} parent=5 // pred_region
      %s807 = ssub.s32 %s33, 1
      %p808 = scmp.lt.s32.totalorder %s38, 1
      %s809 = scalar_select %p808, %s38, 1
      %s810 = smul.addr %s809, 2
      %s811 = smul.addr %s810, 2
      %s812 = scalar_lea.vmem %s0, %s811
      %p813 = pneg %p59
      %p814 = pneg %p56
      %p815 = scmp.lt.s32.totalorder %s38, 1
      %s816 = scalar_select %p815, %s38, 1
      %s817 = smul.addr %s816, 4
      %s818 = smul.addr %s817, 8
      %s819 = scalar_lea.vmem %s1, %s818
      %p820 = pneg %p85
      %p821 = pneg %p82
      %p822 = scmp.lt.s32.totalorder %s38, 1
      %s823 = scalar_select %p822, %s38, 1
      %s824 = smul.addr %s823, 2
      %s825 = scalar_lea.vmem %s2, %s824
      %p826 = pneg %p111
      %p827 = pneg %p108
      %p828 = scmp.lt.s32.totalorder %s38, 1
      %s829 = scalar_select %p828, %s38, 1
      %s830 = smul.addr %s829, 2
      %s831 = scalar_lea.vmem %s3, %s830
      %p832 = pneg %p137
      %p833 = pneg %p134
      %p834 = scmp.lt.s32.totalorder %s38, 1
      %s835 = scalar_select %p834, %s38, 1
      %s836 = smul.addr %s835, 2
      %s837 = smul.addr %s836, 8
      %s838 = scalar_lea.vmem %s4, %s837
      %p839 = pneg %p163
      %p840 = pneg %p160
      %p841 = scmp.lt.s32.totalorder %s38, 1
      %s842 = scalar_select %p841, %s38, 1
      %s843 = smul.addr %s842, 2
      %s844 = scalar_lea.vmem %s5, %s843
      %p845 = pneg %p189
      %p846 = pneg %p186
      %p847 = scmp.lt.s32.totalorder %s38, 1
      %s848 = scalar_select %p847, %s38, 1
      %s849 = smul.addr %s848, 2
      %s850 = smul.addr %s849, 8
      %s851 = scalar_lea.vmem %s6, %s850
      %p852 = pneg %p215
      %p853 = pneg %p212
      %p854 = scmp.lt.s32.totalorder %s38, 1
      %s855 = scalar_select %p854, %s38, 1
      %s856 = smul.addr %s855, 2
      %s857 = smul.addr %s856, 8
      %s858 = scalar_lea.vmem %s7, %s857
      %p859 = pneg %p241
      %p860 = pneg %p238
      %p861 = scmp.lt.s32.totalorder %s38, 1
      %s862 = scalar_select %p861, %s38, 1
      %s863 = smul.addr %s862, 2
      %s864 = smul.addr %s863, 8
      %s865 = scalar_lea.vmem %s8, %s864
      %p866 = pneg %p267
      %p867 = pneg %p264
      %p868 = scmp.lt.s32.totalorder %s38, 1
      %s869 = scalar_select %p868, %s38, 1
      %s870 = smul.addr %s869, 2
      %s871 = smul.addr %s870, 8
      %s872 = scalar_lea.vmem %s9, %s871
      %p873 = pneg %p293
      %p874 = pneg %p290
      %p875 = pneg %p314
      %p876 = pneg %p311
      %p877 = pneg %p335
      %p878 = pneg %p332
      %p879 = pneg %p356
      %p880 = pneg %p353
      %p881 = pneg %p377
      %p882 = pneg %p374
      %p883 = pneg %p398
      %p884 = pneg %p395
      %p885 = pneg %p419
      %p886 = pneg %p416
      %p887 = pneg %p440
      %p888 = pneg %p437
      %p889 = pneg %p461
      %p890 = pneg %p458
      %p891 = pneg %p482
      %p892 = pneg %p479
      %p893 = pneg %p503
      %p894 = pneg %p500
      %p895 = pneg %p524
      %p896 = pneg %p521
      %p897 = pneg %p545
      %p898 = pneg %p542
      %p899 = pneg %p566
      %p900 = pneg %p563
      %p901 = pneg %p587
      %p902 = pneg %p584
      %p903 = pneg %p608
      %p904 = pneg %p605
      %p905 = pneg %p634
      %p906 = pneg %p631
      %p907 = scmp.lt.s32.totalorder %s38, 1
      %s908 = scalar_select %p907, %s38, 1
      %s909 = smul.addr %s908, 4
      %s910 = smul.addr %s909, 8
      %s911 = scalar_lea.vmem %s25, %s910
      %p912 = pneg %p660
      %p913 = pneg %p657
      %p914 = scmp.lt.s32.totalorder %s38, 1
      %s915 = scalar_select %p914, %s38, 1
      %s916 = smul.addr %s915, 4
      %s917 = smul.addr %s916, 8
      %s918 = scalar_lea.vmem %s26, %s917
      %p919 = scmp.lt.s32.totalorder %s38, 1
      %s920 = scalar_select %p919, %s38, 1
      %s921 = smul.addr %s920, 2
      %s922 = smul.addr %s921, 2
      %s923 = scalar_lea.vmem %s0, %s922
      %p924 = scmp.lt.s32.totalorder %s38, 1
      %s925 = scalar_select %p924, %s38, 1
      %s926 = smul.addr %s925, 4
      %s927 = smul.addr %s926, 8
      %s928 = scalar_lea.vmem %s1, %s927
      %p929 = scmp.lt.s32.totalorder %s38, 1
      %s930 = scalar_select %p929, %s38, 1
      %s931 = smul.addr %s930, 2
      %s932 = scalar_lea.vmem %s2, %s931
      %p933 = scmp.lt.s32.totalorder %s38, 1
      %s934 = scalar_select %p933, %s38, 1
      %s935 = smul.addr %s934, 2
      %s936 = scalar_lea.vmem %s3, %s935
      %p937 = scmp.lt.s32.totalorder %s38, 1
      %s938 = scalar_select %p937, %s38, 1
      %s939 = smul.addr %s938, 2
      %s940 = smul.addr %s939, 8
      %s941 = scalar_lea.vmem %s4, %s940
      %p942 = scmp.lt.s32.totalorder %s38, 1
      %s943 = scalar_select %p942, %s38, 1
      %s944 = smul.addr %s943, 2
      %s945 = scalar_lea.vmem %s5, %s944
      %p946 = scmp.lt.s32.totalorder %s38, 1
      %s947 = scalar_select %p946, %s38, 1
      %s948 = smul.addr %s947, 2
      %s949 = smul.addr %s948, 8
      %s950 = scalar_lea.vmem %s6, %s949
      %p951 = scmp.lt.s32.totalorder %s38, 1
      %s952 = scalar_select %p951, %s38, 1
      %s953 = smul.addr %s952, 2
      %s954 = smul.addr %s953, 8
      %s955 = scalar_lea.vmem %s7, %s954
      %p956 = scmp.lt.s32.totalorder %s38, 1
      %s957 = scalar_select %p956, %s38, 1
      %s958 = smul.addr %s957, 2
      %s959 = smul.addr %s958, 8
      %s960 = scalar_lea.vmem %s8, %s959
      %p961 = scmp.lt.s32.totalorder %s38, 1
      %s962 = scalar_select %p961, %s38, 1
      %s963 = smul.addr %s962, 2
      %s964 = smul.addr %s963, 8
      %s965 = scalar_lea.vmem %s9, %s964
      %p966 = scmp.lt.s32.totalorder %s38, 1
      %s967 = scalar_select %p966, %s38, 1
      %s968 = smul.addr %s967, 4
      %s969 = smul.addr %s968, 8
      %s970 = scalar_lea.vmem %s25, %s969
      %p971 = scmp.lt.s32.totalorder %s38, 1
      %s972 = scalar_select %p971, %s38, 1
      %s973 = smul.addr %s972, 4
      %s974 = smul.addr %s973, 8
      %s975 = scalar_lea.vmem %s26, %s974
      %v976 = vld [vmem:[%s923] sm:$0xf]
      %v979 = vunpack.c.l.s4 1983009808
      %v980 = vunpack.c.0.s8 %v979
      %v981 = vlaneseq
      %v982 = vshrl.u32 %v981, 7
      %v983 = vsub.s32 %v980, %v982
      %v984 = vrot.slane %v976, %v983
      %v985 = vcombine.high %v984, %v984
      %988 = vrot.lane.b32.xlu0 %v984, 17
      %v989 = vpop.permute.xlu0 %988
      %990 = vrot.lane.b32.xlu0 %v985, 17
      %v991 = vpop.permute.xlu0 %990
      %v992 = vlaneseq
      %v993 = vand.u32 %v992, 127
      %vm994 = vcmp.lt.s32.totalorder %v993, 17
      %v995 = vsel %vm994, %v989, %v991
      %v996 = vsel %vm994, %v991, %v989
      %v997 = vld [vmem:[%s10] sm:$0x3]
      %v999 = vlaneseq
      %v1000 = vshrl.u32 %v999, 7
      %v1001 = vsub.s32 0, %v1000
      %v1002 = vrot.slane %v997, %v1001
      %v1003 = vlaneseq
      %v1004 = vshrl.u32 %v1003, 7
      %v1005 = vsub.s32 1, %v1004
      %v1006 = vrot.slane %v997, %v1005
      %v1009 = vmul.f32 %v996, %v1002
      %v1010 = vmul.f32 %v995, %v1006
      %v1011 = vld [vmem:[%s11] sm:$0x3]
      %1013 = vset.pattern.permute.xlu0 0
      %1014 = vperm.xlu0 %1013, %v1011
      %v1015 = vpop.permute.xlu0 %1014
      %v1017 = vmul.f32 %v1009, %v1015
      %v1018 = vmul.f32 %v1010, %v1015
      %1019 = vrot.lane.b32.xlu0 %v984, 16
      %v1020 = vpop.permute.xlu0 %1019
      %1021 = vrot.lane.b32.xlu0 %v985, 16
      %v1022 = vpop.permute.xlu0 %1021
      %vm1023 = vcmp.lt.s32.totalorder %v993, 16
      %v1024 = vsel %vm1023, %v1020, %v1022
      %v1025 = vsel %vm1023, %v1022, %v1020
      %s1026 = scalar_lea.vmem %s10, 2
      %v1027 = vld [vmem:[%s1026] sm:$0x3]
      %v1029 = vlaneseq
      %v1030 = vshrl.u32 %v1029, 7
      %v1031 = vsub.s32 0, %v1030
      %v1032 = vrot.slane %v1027, %v1031
      %v1033 = vlaneseq
      %v1034 = vshrl.u32 %v1033, 7
      %v1035 = vsub.s32 1, %v1034
      %v1036 = vrot.slane %v1027, %v1035
      %v1039 = vmul.f32 %v1025, %v1032
      %v1040 = vmul.f32 %v1024, %v1036
      %s1041 = scalar_lea.vmem %s11, 2
      %v1042 = vld [vmem:[%s1041] sm:$0x3]
      %1044 = vset.pattern.permute.xlu0 0
      %1045 = vperm.xlu0 %1044, %v1042
      %v1046 = vpop.permute.xlu0 %1045
      %v1048 = vmul.f32 %v1039, %v1046
      %v1049 = vmul.f32 %v1040, %v1046
      %v1050 = vadd.f32 %v1017, %v1048
      %v1051 = vadd.f32 %v1018, %v1049
      %1052 = vrot.lane.b32.xlu0 %v984, 15
      %v1053 = vpop.permute.xlu0 %1052
      %1054 = vrot.lane.b32.xlu0 %v985, 15
      %v1055 = vpop.permute.xlu0 %1054
      %vm1056 = vcmp.lt.s32.totalorder %v993, 15
      %v1057 = vsel %vm1056, %v1053, %v1055
      %v1058 = vsel %vm1056, %v1055, %v1053
      %s1059 = scalar_lea.vmem %s10, 4
      %v1060 = vld [vmem:[%s1059] sm:$0x3]
      %v1062 = vlaneseq
      %v1063 = vshrl.u32 %v1062, 7
      %v1064 = vsub.s32 0, %v1063
      %v1065 = vrot.slane %v1060, %v1064
      %v1066 = vlaneseq
      %v1067 = vshrl.u32 %v1066, 7
      %v1068 = vsub.s32 1, %v1067
      %v1069 = vrot.slane %v1060, %v1068
      %v1072 = vmul.f32 %v1058, %v1065
      %v1073 = vmul.f32 %v1057, %v1069
      %s1074 = scalar_lea.vmem %s11, 4
      %v1075 = vld [vmem:[%s1074] sm:$0x3]
      %1077 = vset.pattern.permute.xlu0 0
      %1078 = vperm.xlu0 %1077, %v1075
      %v1079 = vpop.permute.xlu0 %1078
      %v1081 = vmul.f32 %v1072, %v1079
      %v1082 = vmul.f32 %v1073, %v1079
      %v1083 = vadd.f32 %v1050, %v1081
      %v1084 = vadd.f32 %v1051, %v1082
      %1085 = vrot.lane.b32.xlu0 %v984, 1
      %v1086 = vpop.permute.xlu0 %1085
      %1087 = vrot.lane.b32.xlu0 %v985, 1
      %v1088 = vpop.permute.xlu0 %1087
      %vm1089 = vcmp.lt.s32.totalorder %v993, 1
      %v1090 = vsel %vm1089, %v1086, %v1088
      %v1091 = vsel %vm1089, %v1088, %v1086
      %s1092 = scalar_lea.vmem %s10, 6
      %v1093 = vld [vmem:[%s1092] sm:$0x3]
      %v1095 = vlaneseq
      %v1096 = vshrl.u32 %v1095, 7
      %v1097 = vsub.s32 0, %v1096
      %v1098 = vrot.slane %v1093, %v1097
      %v1099 = vlaneseq
      %v1100 = vshrl.u32 %v1099, 7
      %v1101 = vsub.s32 1, %v1100
      %v1102 = vrot.slane %v1093, %v1101
      %v1105 = vmul.f32 %v1091, %v1098
      %v1106 = vmul.f32 %v1090, %v1102
      %s1107 = scalar_lea.vmem %s11, 6
      %v1108 = vld [vmem:[%s1107] sm:$0x3]
      %1110 = vset.pattern.permute.xlu0 0
      %1111 = vperm.xlu0 %1110, %v1108
      %v1112 = vpop.permute.xlu0 %1111
      %v1114 = vmul.f32 %v1105, %v1112
      %v1115 = vmul.f32 %v1106, %v1112
      %v1116 = vadd.f32 %v1083, %v1114
      %v1117 = vadd.f32 %v1084, %v1115
      %s1118 = scalar_lea.vmem %s10, 8
      %v1119 = vld [vmem:[%s1118] sm:$0x3]
      %v1121 = vlaneseq
      %v1122 = vshrl.u32 %v1121, 7
      %v1123 = vsub.s32 0, %v1122
      %v1124 = vrot.slane %v1119, %v1123
      %v1125 = vlaneseq
      %v1126 = vshrl.u32 %v1125, 7
      %v1127 = vsub.s32 1, %v1126
      %v1128 = vrot.slane %v1119, %v1127
      %v1129 = vcombine.low %v1124, %v1128
      %v1131 = vunpack.c.l.s4 1983009808
      %v1132 = vunpack.c.0.s8 %v1131
      %v1133 = vlaneseq
      %v1134 = vshrl.u32 %v1133, 7
      %v1135 = vsub.s32 %v1132, %v1134
      %v1136 = vrot.slane %v1129, %v1135
      %v1138 = vmul.f32 %v976, %v1136
      %s1139 = scalar_lea.vmem %s11, 8
      %v1140 = vld [vmem:[%s1139] sm:$0x3]
      %1142 = vset.pattern.permute.xlu0 0
      %1143 = vperm.xlu0 %1142, %v1140
      %v1144 = vpop.permute.xlu0 %1143
      %v1146 = vunpack.c.l.s4 269488144
      %v1147 = vunpack.c.0.s8 %v1146
      %v1148 = vlaneseq
      %v1149 = vshrl.u32 %v1148, 7
      %v1150 = vsub.s32 %v1147, %v1149
      %v1151 = vrot.slane %v1144, %v1150
      %v1153 = vmul.f32 %v1138, %v1151
      %v1156 = vunpack.c.l.s4 1983009808
      %v1157 = vunpack.c.0.s8 %v1156
      %v1158 = vlaneseq
      %v1159 = vshrl.u32 %v1158, 7
      %v1160 = vsub.s32 %v1157, %v1159
      %v1161 = vrot.slane %v1153, %v1160
      %v1162 = vcombine.high %v1161, %v1161
      %v1165 = vadd.f32 %v1116, %v1161
      %v1166 = vadd.f32 %v1117, %v1162
      %1167 = vrot.lane.b32.xlu0 %v984, 127
      %v1168 = vpop.permute.xlu0 %1167
      %1169 = vrot.lane.b32.xlu0 %v985, 127
      %v1170 = vpop.permute.xlu0 %1169
      %vm1171 = vcmp.lt.s32.totalorder %v993, 127
      %v1172 = vsel %vm1171, %v1168, %v1170
      %v1173 = vsel %vm1171, %v1170, %v1168
      %s1174 = scalar_lea.vmem %s10, 10
      %v1175 = vld [vmem:[%s1174] sm:$0x3]
      %v1177 = vlaneseq
      %v1178 = vshrl.u32 %v1177, 7
      %v1179 = vsub.s32 0, %v1178
      %v1180 = vrot.slane %v1175, %v1179
      %v1181 = vlaneseq
      %v1182 = vshrl.u32 %v1181, 7
      %v1183 = vsub.s32 1, %v1182
      %v1184 = vrot.slane %v1175, %v1183
      %v1187 = vmul.f32 %v1172, %v1180
      %v1188 = vmul.f32 %v1173, %v1184
      %s1189 = scalar_lea.vmem %s11, 10
      %v1190 = vld [vmem:[%s1189] sm:$0x3]
      %1192 = vset.pattern.permute.xlu0 0
      %1193 = vperm.xlu0 %1192, %v1190
      %v1194 = vpop.permute.xlu0 %1193
      %v1196 = vmul.f32 %v1187, %v1194
      %v1197 = vmul.f32 %v1188, %v1194
      %v1198 = vadd.f32 %v1165, %v1196
      %v1199 = vadd.f32 %v1166, %v1197
      %1200 = vrot.lane.b32.xlu0 %v984, 113
      %v1201 = vpop.permute.xlu0 %1200
      %1202 = vrot.lane.b32.xlu0 %v985, 113
      %v1203 = vpop.permute.xlu0 %1202
      %vm1204 = vcmp.lt.s32.totalorder %v993, 113
      %v1205 = vsel %vm1204, %v1201, %v1203
      %v1206 = vsel %vm1204, %v1203, %v1201
      %s1207 = scalar_lea.vmem %s10, 12
      %v1208 = vld [vmem:[%s1207] sm:$0x3]
      %v1210 = vlaneseq
      %v1211 = vshrl.u32 %v1210, 7
      %v1212 = vsub.s32 0, %v1211
      %v1213 = vrot.slane %v1208, %v1212
      %v1214 = vlaneseq
      %v1215 = vshrl.u32 %v1214, 7
      %v1216 = vsub.s32 1, %v1215
      %v1217 = vrot.slane %v1208, %v1216
      %v1220 = vmul.f32 %v1205, %v1213
      %v1221 = vmul.f32 %v1206, %v1217
      %s1222 = scalar_lea.vmem %s11, 12
      %v1223 = vld [vmem:[%s1222] sm:$0x3]
      %1225 = vset.pattern.permute.xlu0 0
      %1226 = vperm.xlu0 %1225, %v1223
      %v1227 = vpop.permute.xlu0 %1226
      %v1229 = vmul.f32 %v1220, %v1227
      %v1230 = vmul.f32 %v1221, %v1227
      %v1231 = vadd.f32 %v1198, %v1229
      %v1232 = vadd.f32 %v1199, %v1230
      %1233 = vrot.lane.b32.xlu0 %v984, 112
      %v1234 = vpop.permute.xlu0 %1233
      %1235 = vrot.lane.b32.xlu0 %v985, 112
      %v1236 = vpop.permute.xlu0 %1235
      %vm1237 = vcmp.lt.s32.totalorder %v993, 112
      %v1238 = vsel %vm1237, %v1234, %v1236
      %v1239 = vsel %vm1237, %v1236, %v1234
      %s1240 = scalar_lea.vmem %s10, 14
      %v1241 = vld [vmem:[%s1240] sm:$0x3]
      %v1243 = vlaneseq
      %v1244 = vshrl.u32 %v1243, 7
      %v1245 = vsub.s32 0, %v1244
      %v1246 = vrot.slane %v1241, %v1245
      %v1247 = vlaneseq
      %v1248 = vshrl.u32 %v1247, 7
      %v1249 = vsub.s32 1, %v1248
      %v1250 = vrot.slane %v1241, %v1249
      %v1253 = vmul.f32 %v1238, %v1246
      %v1254 = vmul.f32 %v1239, %v1250
      %s1255 = scalar_lea.vmem %s11, 14
      %v1256 = vld [vmem:[%s1255] sm:$0x3]
      %1258 = vset.pattern.permute.xlu0 0
      %1259 = vperm.xlu0 %1258, %v1256
      %v1260 = vpop.permute.xlu0 %1259
      %v1262 = vmul.f32 %v1253, %v1260
      %v1263 = vmul.f32 %v1254, %v1260
      %v1264 = vadd.f32 %v1231, %v1262
      %v1265 = vadd.f32 %v1232, %v1263
      %1266 = vrot.lane.b32.xlu0 %v984, 111
      %v1267 = vpop.permute.xlu0 %1266
      %1268 = vrot.lane.b32.xlu0 %v985, 111
      %v1269 = vpop.permute.xlu0 %1268
      %vm1270 = vcmp.lt.s32.totalorder %v993, 111
      %v1271 = vsel %vm1270, %v1267, %v1269
      %v1272 = vsel %vm1270, %v1269, %v1267
      %s1273 = scalar_lea.vmem %s10, 16
      %v1274 = vld [vmem:[%s1273] sm:$0x3]
      %v1276 = vlaneseq
      %v1277 = vshrl.u32 %v1276, 7
      %v1278 = vsub.s32 0, %v1277
      %v1279 = vrot.slane %v1274, %v1278
      %v1280 = vlaneseq
      %v1281 = vshrl.u32 %v1280, 7
      %v1282 = vsub.s32 1, %v1281
      %v1283 = vrot.slane %v1274, %v1282
      %v1286 = vmul.f32 %v1271, %v1279
      %v1287 = vmul.f32 %v1272, %v1283
      %s1288 = scalar_lea.vmem %s11, 16
      %v1289 = vld [vmem:[%s1288] sm:$0x3]
      %1291 = vset.pattern.permute.xlu0 0
      %1292 = vperm.xlu0 %1291, %v1289
      %v1293 = vpop.permute.xlu0 %1292
      %v1295 = vmul.f32 %v1286, %v1293
      %v1296 = vmul.f32 %v1287, %v1293
      %v1297 = vadd.f32 %v1264, %v1295
      %v1298 = vadd.f32 %v1265, %v1296
      %v1299 = vld [vmem:[%s945] sm:$0x3]
      %1301 = vset.pattern.permute.xlu0 0
      %1302 = vperm.xlu0 %1301, %v1299
      %v1303 = vpop.permute.xlu0 %1302
      %v1305 = vmul.f32 %v1297, %v1303
      %v1306 = vmul.f32 %v1298, %v1303
      %v1307 = vld [vmem:[%s12] sm:$0xff]
      %v1308 = vld [vmem:[%s12 + $0x8] sm:$0xf]
      %vm1309 = vcmask 15360
      %v1311 = vsel %vm1309, %v1307, 0
      %v1314 = vsel %vm1309, %v1308, 0
      %vm1316 = vcmask 1041408
      %v1318 = vsel %vm1316, %v1305, 0
      %v1321 = vsel %vm1316, %v1306, 0
      %1323 = vmatprep.subr.mxu0 %v1321
      %1324 = vmatpush1.msra.mxu0 %v1318
      %1325 = vmatprep.subr.mxu0 0.0
      %1326 = vmatpush1.msra.mxu0 0.0
      %1327 = vmatprep.subr.mxu0 0.0
      %1328 = vmatpush1.msra.mxu0 0.0
      %1329 = vmatprep.subr.mxu0 0.0
      %1330 = vmatpush1.msra.mxu0 0.0
      %1331 = vmatprep.subr.mxu0 0.0
      %1332 = vmatpush1.msra.mxu0 0.0
      %1333 = vmatprep.subr.mxu0 0.0
      %1334 = vmatpush1.msra.mxu0 0.0
      %1335 = vmatprep.subr.mxu0 0.0
      %1336 = vmatpush1.msra.mxu0 0.0
      %1337 = vmatprep.subr.mxu0 0.0
      %1338 = vmatpush1.msra.mxu0 0.0
      %1339 = vmatprep.subr.mxu0 0.0
      %1340 = vmatpush1.msra.mxu0 0.0
      %1341 = vmatprep.subr.mxu0 0.0
      %1342 = vmatpush1.msra.mxu0 0.0
      %1343 = vmatprep.subr.mxu0 0.0
      %1344 = vmatpush1.msra.mxu0 0.0
      %1345 = vmatprep.subr.mxu0 0.0
      %1346 = vmatpush1.msra.mxu0 0.0
      %1347 = vmatprep.subr.mxu0 0.0
      %1348 = vmatpush1.msra.mxu0 0.0
      %1349 = vmatprep.subr.mxu0 0.0
      %1350 = vmatpush1.msra.mxu0 0.0
      %1351 = vmatprep.subr.mxu0 0.0
      %1352 = vmatpush1.msra.mxu0 0.0
      %1353 = vmatprep.subr.mxu0 0.0
      %1354 = vmatpush1.msra.mxu0 0.0
      %1355 = vmatprep.subr.mxu0 0.0
      %1356 = vmatpush1.msra.mxu0 0.0
      %1357 = vmatprep.subr.mxu0 0.0
      %1358 = vmatpush1.msra.mxu0 0.0
      %1359 = vmatprep.subr.mxu0 0.0
      %1360 = vmatpush1.msra.mxu0 0.0
      %1361 = vmatprep.subr.mxu0 0.0
      %1362 = vmatpush1.msra.mxu0 0.0
      %1363 = vmatprep.subr.mxu0 0.0
      %1364 = vmatpush1.msra.mxu0 0.0
      %1365 = vmatprep.subr.mxu0 0.0
      %1366 = vmatpush1.msra.mxu0 0.0
      %1367 = vmatprep.subr.mxu0 0.0
      %1368 = vmatpush1.msra.mxu0 0.0
      %1369 = vmatprep.subr.mxu0 0.0
      %1370 = vmatpush1.msra.mxu0 0.0
      %1371 = vmatprep.subr.mxu0 0.0
      %1372 = vmatpush1.msra.mxu0 0.0
      %1373 = vmatprep.subr.mxu0 0.0
      %1374 = vmatpush1.msra.mxu0 0.0
      %1375 = vmatprep.subr.mxu0 0.0
      %1376 = vmatpush1.msra.mxu0 0.0
      %1377 = vmatprep.subr.mxu0 0.0
      %1378 = vmatpush1.msra.mxu0 0.0
      %1379 = vmatprep.subr.mxu0 0.0
      %1380 = vmatpush1.msra.mxu0 0.0
      %1381 = vmatprep.subr.mxu0 0.0
      %1382 = vmatpush1.msra.mxu0 0.0
      %1383 = vmatprep.subr.mxu0 0.0
      %1384 = vmatpush1.msra.mxu0 0.0
      %1385 = vmatprep.subr.mxu0 0.0
      %1386 = vmatpush1.msra.mxu0 0.0
      %1387 = vmatprep.mubr.f32.mxu0 0.0
      %1388 = vmatmul.mubr.f32.gmra.mrb[0].mxu0 %v1311
      %v1389 = vpop.f32.mrb[0].mxu0
      %v1390 = vadd.f32 0.0, %v1389
      %v1391 = vpop.f32.mrb[0].mxu0
      %v1392 = vadd.f32 0.0, %v1391
      %1393 = vmatprep.mubr.f32.mxu0 0.0
      %1394 = vmatmul.mubr.f32.gmra.mrb[0].mxu0 %v1314
      %v1395 = vpop.f32.mrb[0].mxu0
      %v1396 = vadd.f32 0.0, %v1395
      %v1397 = vpop.f32.mrb[0].mxu0
      %v1398 = vadd.f32 0.0, %v1397
      %1399 = vdwg.mxu0
      %v1400 = vld [vmem:[%s950] sm:$0xff]
      %v1401 = vld [vmem:[%s950 + $0x8] sm:$0xf]
      %1403 = vset.pattern.permute.xlu0 0
      %1404 = vperm.xlu0 %1403, %v1400
      %v1405 = vpop.permute.xlu0 %1404
      %1408 = vset.pattern.permute.xlu0 0
      %1409 = vperm.xlu0 %1408, %v1401
      %v1410 = vpop.permute.xlu0 %1409
      %v1412 = vmul.f32 %v1390, %v1405
      %v1413 = vmul.f32 %v1392, %v1405
      %v1414 = vmul.f32 %v1396, %v1410
      %v1415 = vmul.f32 %v1398, %v1410
      %v1416 = vld [vmem:[%s932] sm:$0x3]
      %v1418 = vlaneseq
      %v1419 = vshrl.u32 %v1418, 7
      %v1420 = vsub.s32 0, %v1419
      %v1421 = vrot.slane %v1416, %v1420
      %v1422 = vlaneseq
      %v1423 = vshrl.u32 %v1422, 7
      %v1424 = vsub.s32 1, %v1423
      %v1425 = vrot.slane %v1416, %v1424
      %v1428 = vadd.f32 %v1412, %v1421
      %v1429 = vadd.f32 %v1413, %v1425
      %v1430 = vadd.f32 %v1414, %v1421
      %v1431 = vadd.f32 %v1415, %v1425
      %v1432 = vld [vmem:[%s13] sm:$0xff]
      %v1433 = vld [vmem:[%s13 + $0x8] sm:$0xf]
      %1435 = vset.pattern.permute.xlu0 0
      %1436 = vperm.xlu0 %1435, %v1432
      %v1437 = vpop.permute.xlu0 %1436
      %1440 = vset.pattern.permute.xlu0 0
      %1441 = vperm.xlu0 %1440, %v1433
      %v1442 = vpop.permute.xlu0 %1441
      %v1444 = vadd.f32 %v1428, %v1437
      %v1445 = vadd.f32 %v1429, %v1437
      %v1446 = vadd.f32 %v1430, %v1442
      %v1447 = vadd.f32 %v1431, %v1442
      %vm1448 = vcmp.ge.f32.partialorder %v1444, 0.0
      %vm1449 = vcmp.ge.f32.partialorder %v1445, 0.0
      %vm1450 = vcmp.ge.f32.partialorder %v1446, 0.0
      %vm1451 = vcmp.ge.f32.partialorder %v1447, 0.0
      %v1452 = vmul.f32 %v1444, 0.2
      %v1453 = vmul.f32 %v1445, 0.2
      %v1454 = vmul.f32 %v1446, 0.2
      %v1455 = vmul.f32 %v1447, 0.2
      %v1456 = vsel %vm1448, %v1444, %v1452
      %v1457 = vsel %vm1449, %v1445, %v1453
      %v1458 = vsel %vm1450, %v1446, %v1454
      %v1459 = vsel %vm1451, %v1447, %v1455
      %v1460 = vmul.f32 %v1456, 1.4142135
      %v1461 = vmul.f32 %v1457, 1.4142135
      %v1462 = vmul.f32 %v1458, 1.4142135
      %v1463 = vmul.f32 %v1459, 1.4142135
      %v1464 = vld [vmem:[%s928] sm:$0xff]
      %v1465 = vld [vmem:[%s928 + $0x8] sm:$0xff]
      %v1466 = vld [vmem:[%s928 + $0x10] sm:$0xf]
      %v1467 = vld [vmem:[%s928 + $0x18] sm:$0xf]
      %v1468 = vld [vmem:[%s941] sm:$0xff]
      %v1469 = vld [vmem:[%s941 + $0x8] sm:$0xf]
      %1471 = vset.pattern.permute.xlu0 0
      %1472 = vperm.xlu0 %1471, %v1468
      %v1473 = vpop.permute.xlu0 %1472
      %1476 = vset.pattern.permute.xlu0 0
      %1477 = vperm.xlu0 %1476, %v1469
      %v1478 = vpop.permute.xlu0 %1477
      %v1480 = vmul.f32 %v1464, %v1473
      %v1481 = vmul.f32 %v1465, %v1473
      %v1482 = vmul.f32 %v1466, %v1478
      %v1483 = vmul.f32 %v1467, %v1478
      %v1484 = vadd.f32 %v1460, %v1480
      %v1485 = vadd.f32 %v1461, %v1481
      %v1486 = vadd.f32 %v1462, %v1482
      %v1487 = vadd.f32 %v1463, %v1483
      %v1488 = vld [vmem:[%s17] sm:$0xf]
      %vm1489 = vcmask 97280
      %v1491 = vsel %vm1489, %v1488, 0
      %vm1493 = vcmask 1043456
      %v1495 = vsel %vm1493, %v1486, 0
      %v1498 = vsel %vm1493, %v1487, 0
      %1500 = vmatprep.subr.mxu0 %v1485
      %1501 = vmatpush1.msra.mxu0 %v1484
      %1502 = vmatprep.subr.mxu0 %v1498
      %1503 = vmatpush1.msra.mxu0 %v1495
      %1504 = vmatprep.subr.mxu0 0.0
      %1505 = vmatpush1.msra.mxu0 0.0
      %1506 = vmatprep.subr.mxu0 0.0
      %1507 = vmatpush1.msra.mxu0 0.0
      %1508 = vmatprep.subr.mxu0 0.0
      %1509 = vmatpush1.msra.mxu0 0.0
      %1510 = vmatprep.subr.mxu0 0.0
      %1511 = vmatpush1.msra.mxu0 0.0
      %1512 = vmatprep.subr.mxu0 0.0
      %1513 = vmatpush1.msra.mxu0 0.0
      %1514 = vmatprep.subr.mxu0 0.0
      %1515 = vmatpush1.msra.mxu0 0.0
      %1516 = vmatprep.subr.mxu0 0.0
      %1517 = vmatpush1.msra.mxu0 0.0
      %1518 = vmatprep.subr.mxu0 0.0
      %1519 = vmatpush1.msra.mxu0 0.0
      %1520 = vmatprep.subr.mxu0 0.0
      %1521 = vmatpush1.msra.mxu0 0.0
      %1522 = vmatprep.subr.mxu0 0.0
      %1523 = vmatpush1.msra.mxu0 0.0
      %1524 = vmatprep.subr.mxu0 0.0
      %1525 = vmatpush1.msra.mxu0 0.0
      %1526 = vmatprep.subr.mxu0 0.0
      %1527 = vmatpush1.msra.mxu0 0.0
      %1528 = vmatprep.subr.mxu0 0.0
      %1529 = vmatpush1.msra.mxu0 0.0
      %1530 = vmatprep.subr.mxu0 0.0
      %1531 = vmatpush1.msra.mxu0 0.0
      %1532 = vmatprep.subr.mxu0 0.0
      %1533 = vmatpush1.msra.mxu0 0.0
      %1534 = vmatprep.subr.mxu0 0.0
      %1535 = vmatpush1.msra.mxu0 0.0
      %1536 = vmatprep.subr.mxu0 0.0
      %1537 = vmatpush1.msra.mxu0 0.0
      %1538 = vmatprep.subr.mxu0 0.0
      %1539 = vmatpush1.msra.mxu0 0.0
      %1540 = vmatprep.subr.mxu0 0.0
      %1541 = vmatpush1.msra.mxu0 0.0
      %1542 = vmatprep.subr.mxu0 0.0
      %1543 = vmatpush1.msra.mxu0 0.0
      %1544 = vmatprep.subr.mxu0 0.0
      %1545 = vmatpush1.msra.mxu0 0.0
      %1546 = vmatprep.subr.mxu0 0.0
      %1547 = vmatpush1.msra.mxu0 0.0
      %1548 = vmatprep.subr.mxu0 0.0
      %1549 = vmatpush1.msra.mxu0 0.0
      %1550 = vmatprep.subr.mxu0 0.0
      %1551 = vmatpush1.msra.mxu0 0.0
      %1552 = vmatprep.subr.mxu0 0.0
      %1553 = vmatpush1.msra.mxu0 0.0
      %1554 = vmatprep.subr.mxu0 0.0
      %1555 = vmatpush1.msra.mxu0 0.0
      %1556 = vmatprep.subr.mxu0 0.0
      %1557 = vmatpush1.msra.mxu0 0.0
      %1558 = vmatprep.subr.mxu0 0.0
      %1559 = vmatpush1.msra.mxu0 0.0
      %1560 = vmatprep.subr.mxu0 0.0
      %1561 = vmatpush1.msra.mxu0 0.0
      %1562 = vmatprep.subr.mxu0 0.0
      %1563 = vmatpush1.msra.mxu0 0.0
      %1564 = vmatprep.mubr.f32.mxu0 0.0
      %1565 = vmatmul.mubr.f32.gmra.mrb[0].mxu0 %v1491
      %v1566 = vpop.f32.mrb[0].mxu0
      %v1567 = vadd.f32 0.0, %v1566
      %v1568 = vpop.f32.mrb[0].mxu0
      %v1569 = vadd.f32 0.0, %v1568
      %1570 = vdwg.mxu0
      %v1571 = vld [vmem:[%s18] sm:$0xf]
      %vm1572 = vcmp.ge.f32.partialorder %v1567, 0.0
      %vm1573 = vcmp.ge.f32.partialorder %v1569, 0.0
      %1575 = vset.pattern.permute.xlu0 0
      %1576 = vperm.xlu0 %1575, %v1571
      %v1577 = vpop.permute.xlu0 %1576
      %v1579 = vmul.f32 %v1567, %v1577
      %v1580 = vmul.f32 %v1569, %v1577
      %v1581 = vsel %vm1572, %v1567, %v1579
      %v1582 = vsel %vm1573, %v1569, %v1580
      %1583 = vrot.lane.b32.xlu0 %v1581, 17
      %v1584 = vpop.permute.xlu0 %1583
      %1585 = vrot.lane.b32.xlu0 %v1582, 17
      %v1586 = vpop.permute.xlu0 %1585
      %v1587 = vsel %vm994, %v1584, %v1586
      %v1588 = vsel %vm994, %v1586, %v1584
      %v1589 = vmul.f32 %v1588, %v1002
      %v1590 = vmul.f32 %v1587, %v1006
      %v1591 = vld [vmem:[%s19] sm:$0xf]
      %1593 = vset.pattern.permute.xlu0 0
      %1594 = vperm.xlu0 %1593, %v1591
      %v1595 = vpop.permute.xlu0 %1594
      %v1597 = vmul.f32 %v1589, %v1595
      %v1598 = vmul.f32 %v1590, %v1595
      %1599 = vrot.lane.b32.xlu0 %v1581, 16
      %v1600 = vpop.permute.xlu0 %1599
      %1601 = vrot.lane.b32.xlu0 %v1582, 16
      %v1602 = vpop.permute.xlu0 %1601
      %v1603 = vsel %vm1023, %v1600, %v1602
      %v1604 = vsel %vm1023, %v1602, %v1600
      %v1605 = vmul.f32 %v1604, %v1032
      %v1606 = vmul.f32 %v1603, %v1036
      %s1607 = scalar_lea.vmem %s19, 4
      %v1608 = vld [vmem:[%s1607] sm:$0xf]
      %1610 = vset.pattern.permute.xlu0 0
      %1611 = vperm.xlu0 %1610, %v1608
      %v1612 = vpop.permute.xlu0 %1611
      %v1614 = vmul.f32 %v1605, %v1612
      %v1615 = vmul.f32 %v1606, %v1612
      %v1616 = vadd.f32 %v1597, %v1614
      %v1617 = vadd.f32 %v1598, %v1615
      %1618 = vrot.lane.b32.xlu0 %v1581, 15
      %v1619 = vpop.permute.xlu0 %1618
      %1620 = vrot.lane.b32.xlu0 %v1582, 15
      %v1621 = vpop.permute.xlu0 %1620
      %v1622 = vsel %vm1056, %v1619, %v1621
      %v1623 = vsel %vm1056, %v1621, %v1619
      %v1624 = vmul.f32 %v1623, %v1065
      %v1625 = vmul.f32 %v1622, %v1069
      %s1626 = scalar_lea.vmem %s19, 8
      %v1627 = vld [vmem:[%s1626] sm:$0xf]
      %1629 = vset.pattern.permute.xlu0 0
      %1630 = vperm.xlu0 %1629, %v1627
      %v1631 = vpop.permute.xlu0 %1630
      %v1633 = vmul.f32 %v1624, %v1631
      %v1634 = vmul.f32 %v1625, %v1631
      %v1635 = vadd.f32 %v1616, %v1633
      %v1636 = vadd.f32 %v1617, %v1634
      %1637 = vrot.lane.b32.xlu0 %v1581, 1
      %v1638 = vpop.permute.xlu0 %1637
      %1639 = vrot.lane.b32.xlu0 %v1582, 1
      %v1640 = vpop.permute.xlu0 %1639
      %v1641 = vsel %vm1089, %v1638, %v1640
      %v1642 = vsel %vm1089, %v1640, %v1638
      %v1643 = vmul.f32 %v1642, %v1098
      %v1644 = vmul.f32 %v1641, %v1102
      %s1645 = scalar_lea.vmem %s19, 12
      %v1646 = vld [vmem:[%s1645] sm:$0xf]
      %1648 = vset.pattern.permute.xlu0 0
      %1649 = vperm.xlu0 %1648, %v1646
      %v1650 = vpop.permute.xlu0 %1649
      %v1652 = vmul.f32 %v1643, %v1650
      %v1653 = vmul.f32 %v1644, %v1650
      %v1654 = vadd.f32 %v1635, %v1652
      %v1655 = vadd.f32 %v1636, %v1653
      %v1658 = vmul.f32 %v1581, %v1124
      %v1659 = vmul.f32 %v1582, %v1128
      %s1660 = scalar_lea.vmem %s19, 16
      %v1661 = vld [vmem:[%s1660] sm:$0xf]
      %1663 = vset.pattern.permute.xlu0 0
      %1664 = vperm.xlu0 %1663, %v1661
      %v1665 = vpop.permute.xlu0 %1664
      %v1667 = vmul.f32 %v1658, %v1665
      %v1668 = vmul.f32 %v1659, %v1665
      %v1669 = vadd.f32 %v1654, %v1667
      %v1670 = vadd.f32 %v1655, %v1668
      %1671 = vrot.lane.b32.xlu0 %v1581, 127
      %v1672 = vpop.permute.xlu0 %1671
      %1673 = vrot.lane.b32.xlu0 %v1582, 127
      %v1674 = vpop.permute.xlu0 %1673
      %v1675 = vsel %vm1171, %v1672, %v1674
      %v1676 = vsel %vm1171, %v1674, %v1672
      %v1677 = vmul.f32 %v1675, %v1180
      %v1678 = vmul.f32 %v1676, %v1184
      %s1679 = scalar_lea.vmem %s19, 20
      %v1680 = vld [vmem:[%s1679] sm:$0xf]
      %1682 = vset.pattern.permute.xlu0 0
      %1683 = vperm.xlu0 %1682, %v1680
      %v1684 = vpop.permute.xlu0 %1683
      %v1686 = vmul.f32 %v1677, %v1684
      %v1687 = vmul.f32 %v1678, %v1684
      %v1688 = vadd.f32 %v1669, %v1686
      %v1689 = vadd.f32 %v1670, %v1687
      %1690 = vrot.lane.b32.xlu0 %v1581, 113
      %v1691 = vpop.permute.xlu0 %1690
      %1692 = vrot.lane.b32.xlu0 %v1582, 113
      %v1693 = vpop.permute.xlu0 %1692
      %v1694 = vsel %vm1204, %v1691, %v1693
      %v1695 = vsel %vm1204, %v1693, %v1691
      %v1696 = vmul.f32 %v1694, %v1213
      %v1697 = vmul.f32 %v1695, %v1217
      %s1698 = scalar_lea.vmem %s19, 24
      %v1699 = vld [vmem:[%s1698] sm:$0xf]
      %1701 = vset.pattern.permute.xlu0 0
      %1702 = vperm.xlu0 %1701, %v1699
      %v1703 = vpop.permute.xlu0 %1702
      %v1705 = vmul.f32 %v1696, %v1703
      %v1706 = vmul.f32 %v1697, %v1703
      %v1707 = vadd.f32 %v1688, %v1705
      %v1708 = vadd.f32 %v1689, %v1706
      %1709 = vrot.lane.b32.xlu0 %v1581, 112
      %v1710 = vpop.permute.xlu0 %1709
      %1711 = vrot.lane.b32.xlu0 %v1582, 112
      %v1712 = vpop.permute.xlu0 %1711
      %v1713 = vsel %vm1237, %v1710, %v1712
      %v1714 = vsel %vm1237, %v1712, %v1710
      %v1715 = vmul.f32 %v1713, %v1246
      %v1716 = vmul.f32 %v1714, %v1250
      %s1717 = scalar_lea.vmem %s19, 28
      %v1718 = vld [vmem:[%s1717] sm:$0xf]
      %1720 = vset.pattern.permute.xlu0 0
      %1721 = vperm.xlu0 %1720, %v1718
      %v1722 = vpop.permute.xlu0 %1721
      %v1724 = vmul.f32 %v1715, %v1722
      %v1725 = vmul.f32 %v1716, %v1722
      %v1726 = vadd.f32 %v1707, %v1724
      %v1727 = vadd.f32 %v1708, %v1725
      %1728 = vrot.lane.b32.xlu0 %v1581, 111
      %v1729 = vpop.permute.xlu0 %1728
      %1730 = vrot.lane.b32.xlu0 %v1582, 111
      %v1731 = vpop.permute.xlu0 %1730
      %v1732 = vsel %vm1270, %v1729, %v1731
      %v1733 = vsel %vm1270, %v1731, %v1729
      %v1734 = vmul.f32 %v1732, %v1279
      %v1735 = vmul.f32 %v1733, %v1283
      %s1736 = scalar_lea.vmem %s19, 32
      %v1737 = vld [vmem:[%s1736] sm:$0xf]
      %1739 = vset.pattern.permute.xlu0 0
      %1740 = vperm.xlu0 %1739, %v1737
      %v1741 = vpop.permute.xlu0 %1740
      %v1743 = vmul.f32 %v1734, %v1741
      %v1744 = vmul.f32 %v1735, %v1741
      %v1745 = vadd.f32 %v1726, %v1743
      %v1746 = vadd.f32 %v1727, %v1744
      %v1747 = vld [vmem:[%s21] sm:$0xf]
      %vm1748 = vcmp.ge.f32.partialorder %v1745, 0.0
      %vm1749 = vcmp.ge.f32.partialorder %v1746, 0.0
      %1751 = vset.pattern.permute.xlu0 0
      %1752 = vperm.xlu0 %1751, %v1747
      %v1753 = vpop.permute.xlu0 %1752
      %v1755 = vmul.f32 %v1745, %v1753
      %v1756 = vmul.f32 %v1746, %v1753
      %v1757 = vsel %vm1748, %v1745, %v1755
      %v1758 = vsel %vm1749, %v1746, %v1756
      %v1759 = vld [vmem:[%s20] sm:$0xff]
      %v1760 = vld [vmem:[%s20 + $0x8] sm:$0xf]
      %1761 = vrot.lane.b32.xlu0 %v1581, 34
      %v1762 = vpop.permute.xlu0 %1761
      %1763 = vrot.lane.b32.xlu0 %v1582, 34
      %v1764 = vpop.permute.xlu0 %1763
      %vm1765 = vcmp.lt.s32.totalorder %v993, 34
      %v1766 = vsel %vm1765, %v1762, %v1764
      %v1767 = vsel %vm1765, %v1764, %v1762
      %s1768 = scalar_lea.vmem %s10, 18
      %v1769 = vld [vmem:[%s1768] sm:$0x3]
      %v1771 = vlaneseq
      %v1772 = vshrl.u32 %v1771, 7
      %v1773 = vsub.s32 0, %v1772
      %v1774 = vrot.slane %v1769, %v1773
      %v1775 = vlaneseq
      %v1776 = vshrl.u32 %v1775, 7
      %v1777 = vsub.s32 1, %v1776
      %v1778 = vrot.slane %v1769, %v1777
      %v1781 = vmul.f32 %v1767, %v1774
      %v1782 = vmul.f32 %v1766, %v1778
      %s1783 = scalar_lea.vmem %s19, 36
      %v1784 = vld [vmem:[%s1783] sm:$0xf]
      %1786 = vset.pattern.permute.xlu0 0
      %1787 = vperm.xlu0 %1786, %v1784
      %v1788 = vpop.permute.xlu0 %1787
      %v1790 = vmul.f32 %v1781, %v1788
      %v1791 = vmul.f32 %v1782, %v1788
      %1792 = vrot.lane.b32.xlu0 %v1581, 32
      %v1793 = vpop.permute.xlu0 %1792
      %1794 = vrot.lane.b32.xlu0 %v1582, 32
      %v1795 = vpop.permute.xlu0 %1794
      %vm1796 = vcmp.lt.s32.totalorder %v993, 32
      %v1797 = vsel %vm1796, %v1793, %v1795
      %v1798 = vsel %vm1796, %v1795, %v1793
      %s1799 = scalar_lea.vmem %s10, 20
      %v1800 = vld [vmem:[%s1799] sm:$0x3]
      %v1802 = vlaneseq
      %v1803 = vshrl.u32 %v1802, 7
      %v1804 = vsub.s32 0, %v1803
      %v1805 = vrot.slane %v1800, %v1804
      %v1806 = vlaneseq
      %v1807 = vshrl.u32 %v1806, 7
      %v1808 = vsub.s32 1, %v1807
      %v1809 = vrot.slane %v1800, %v1808
      %v1812 = vmul.f32 %v1798, %v1805
      %v1813 = vmul.f32 %v1797, %v1809
      %s1814 = scalar_lea.vmem %s19, 40
      %v1815 = vld [vmem:[%s1814] sm:$0xf]
      %1817 = vset.pattern.permute.xlu0 0
      %1818 = vperm.xlu0 %1817, %v1815
      %v1819 = vpop.permute.xlu0 %1818
      %v1821 = vmul.f32 %v1812, %v1819
      %v1822 = vmul.f32 %v1813, %v1819
      %v1823 = vadd.f32 %v1790, %v1821
      %v1824 = vadd.f32 %v1791, %v1822
      %1825 = vrot.lane.b32.xlu0 %v1581, 30
      %v1826 = vpop.permute.xlu0 %1825
      %1827 = vrot.lane.b32.xlu0 %v1582, 30
      %v1828 = vpop.permute.xlu0 %1827
      %vm1829 = vcmp.lt.s32.totalorder %v993, 30
      %v1830 = vsel %vm1829, %v1826, %v1828
      %v1831 = vsel %vm1829, %v1828, %v1826
      %s1832 = scalar_lea.vmem %s10, 22
      %v1833 = vld [vmem:[%s1832] sm:$0x3]
      %v1835 = vlaneseq
      %v1836 = vshrl.u32 %v1835, 7
      %v1837 = vsub.s32 0, %v1836
      %v1838 = vrot.slane %v1833, %v1837
      %v1839 = vlaneseq
      %v1840 = vshrl.u32 %v1839, 7
      %v1841 = vsub.s32 1, %v1840
      %v1842 = vrot.slane %v1833, %v1841
      %v1845 = vmul.f32 %v1831, %v1838
      %v1846 = vmul.f32 %v1830, %v1842
      %s1847 = scalar_lea.vmem %s19, 44
      %v1848 = vld [vmem:[%s1847] sm:$0xf]
      %1850 = vset.pattern.permute.xlu0 0
      %1851 = vperm.xlu0 %1850, %v1848
      %v1852 = vpop.permute.xlu0 %1851
      %v1854 = vmul.f32 %v1845, %v1852
      %v1855 = vmul.f32 %v1846, %v1852
      %v1856 = vadd.f32 %v1823, %v1854
      %v1857 = vadd.f32 %v1824, %v1855
      %1858 = vrot.lane.b32.xlu0 %v1581, 2
      %v1859 = vpop.permute.xlu0 %1858
      %1860 = vrot.lane.b32.xlu0 %v1582, 2
      %v1861 = vpop.permute.xlu0 %1860
      %vm1862 = vcmp.lt.s32.totalorder %v993, 2
      %v1863 = vsel %vm1862, %v1859, %v1861
      %v1864 = vsel %vm1862, %v1861, %v1859
      %s1865 = scalar_lea.vmem %s10, 24
      %v1866 = vld [vmem:[%s1865] sm:$0x3]
      %v1868 = vlaneseq
      %v1869 = vshrl.u32 %v1868, 7
      %v1870 = vsub.s32 0, %v1869
      %v1871 = vrot.slane %v1866, %v1870
      %v1872 = vlaneseq
      %v1873 = vshrl.u32 %v1872, 7
      %v1874 = vsub.s32 1, %v1873
      %v1875 = vrot.slane %v1866, %v1874
      %v1878 = vmul.f32 %v1864, %v1871
      %v1879 = vmul.f32 %v1863, %v1875
      %s1880 = scalar_lea.vmem %s19, 48
      %v1881 = vld [vmem:[%s1880] sm:$0xf]
      %1883 = vset.pattern.permute.xlu0 0
      %1884 = vperm.xlu0 %1883, %v1881
      %v1885 = vpop.permute.xlu0 %1884
      %v1887 = vmul.f32 %v1878, %v1885
      %v1888 = vmul.f32 %v1879, %v1885
      %v1889 = vadd.f32 %v1856, %v1887
      %v1890 = vadd.f32 %v1857, %v1888
      %s1891 = scalar_lea.vmem %s10, 26
      %v1892 = vld [vmem:[%s1891] sm:$0x3]
      %v1894 = vlaneseq
      %v1895 = vshrl.u32 %v1894, 7
      %v1896 = vsub.s32 0, %v1895
      %v1897 = vrot.slane %v1892, %v1896
      %v1898 = vlaneseq
      %v1899 = vshrl.u32 %v1898, 7
      %v1900 = vsub.s32 1, %v1899
      %v1901 = vrot.slane %v1892, %v1900
      %v1904 = vmul.f32 %v1581, %v1897
      %v1905 = vmul.f32 %v1582, %v1901
      %s1906 = scalar_lea.vmem %s19, 52
      %v1907 = vld [vmem:[%s1906] sm:$0xf]
      %1909 = vset.pattern.permute.xlu0 0
      %1910 = vperm.xlu0 %1909, %v1907
      %v1911 = vpop.permute.xlu0 %1910
      %v1913 = vmul.f32 %v1904, %v1911
      %v1914 = vmul.f32 %v1905, %v1911
      %v1915 = vadd.f32 %v1889, %v1913
      %v1916 = vadd.f32 %v1890, %v1914
      %1917 = vrot.lane.b32.xlu0 %v1581, 126
      %v1918 = vpop.permute.xlu0 %1917
      %1919 = vrot.lane.b32.xlu0 %v1582, 126
      %v1920 = vpop.permute.xlu0 %1919
      %vm1921 = vcmp.lt.s32.totalorder %v993, 126
      %v1922 = vsel %vm1921, %v1918, %v1920
      %v1923 = vsel %vm1921, %v1920, %v1918
      %s1924 = scalar_lea.vmem %s10, 28
      %v1925 = vld [vmem:[%s1924] sm:$0x3]
      %v1927 = vlaneseq
      %v1928 = vshrl.u32 %v1927, 7
      %v1929 = vsub.s32 0, %v1928
      %v1930 = vrot.slane %v1925, %v1929
      %v1931 = vlaneseq
      %v1932 = vshrl.u32 %v1931, 7
      %v1933 = vsub.s32 1, %v1932
      %v1934 = vrot.slane %v1925, %v1933
      %v1937 = vmul.f32 %v1922, %v1930
      %v1938 = vmul.f32 %v1923, %v1934
      %s1939 = scalar_lea.vmem %s19, 56
      %v1940 = vld [vmem:[%s1939] sm:$0xf]
      %1942 = vset.pattern.permute.xlu0 0
      %1943 = vperm.xlu0 %1942, %v1940
      %v1944 = vpop.permute.xlu0 %1943
      %v1946 = vmul.f32 %v1937, %v1944
      %v1947 = vmul.f32 %v1938, %v1944
      %v1948 = vadd.f32 %v1915, %v1946
      %v1949 = vadd.f32 %v1916, %v1947
      %1950 = vrot.lane.b32.xlu0 %v1581, 98
      %v1951 = vpop.permute.xlu0 %1950
      %1952 = vrot.lane.b32.xlu0 %v1582, 98
      %v1953 = vpop.permute.xlu0 %1952
      %vm1954 = vcmp.lt.s32.totalorder %v993, 98
      %v1955 = vsel %vm1954, %v1951, %v1953
      %v1956 = vsel %vm1954, %v1953, %v1951
      %s1957 = scalar_lea.vmem %s10, 30
      %v1958 = vld [vmem:[%s1957] sm:$0x3]
      %v1960 = vlaneseq
      %v1961 = vshrl.u32 %v1960, 7
      %v1962 = vsub.s32 0, %v1961
      %v1963 = vrot.slane %v1958, %v1962
      %v1964 = vlaneseq
      %v1965 = vshrl.u32 %v1964, 7
      %v1966 = vsub.s32 1, %v1965
      %v1967 = vrot.slane %v1958, %v1966
      %v1970 = vmul.f32 %v1955, %v1963
      %v1971 = vmul.f32 %v1956, %v1967
      %s1972 = scalar_lea.vmem %s19, 60
      %v1973 = vld [vmem:[%s1972] sm:$0xf]
      %1975 = vset.pattern.permute.xlu0 0
      %1976 = vperm.xlu0 %1975, %v1973
      %v1977 = vpop.permute.xlu0 %1976
      %v1979 = vmul.f32 %v1970, %v1977
      %v1980 = vmul.f32 %v1971, %v1977
      %v1981 = vadd.f32 %v1948, %v1979
      %v1982 = vadd.f32 %v1949, %v1980
      %1983 = vrot.lane.b32.xlu0 %v1581, 96
      %v1984 = vpop.permute.xlu0 %1983
      %1985 = vrot.lane.b32.xlu0 %v1582, 96
      %v1986 = vpop.permute.xlu0 %1985
      %vm1987 = vcmp.lt.s32.totalorder %v993, 96
      %v1988 = vsel %vm1987, %v1984, %v1986
      %v1989 = vsel %vm1987, %v1986, %v1984
      %s1990 = scalar_lea.vmem %s10, 32
      %v1991 = vld [vmem:[%s1990] sm:$0x3]
      %v1993 = vlaneseq
      %v1994 = vshrl.u32 %v1993, 7
      %v1995 = vsub.s32 0, %v1994
      %v1996 = vrot.slane %v1991, %v1995
      %v1997 = vlaneseq
      %v1998 = vshrl.u32 %v1997, 7
      %v1999 = vsub.s32 1, %v1998
      %v2000 = vrot.slane %v1991, %v1999
      %v2003 = vmul.f32 %v1988, %v1996
      %v2004 = vmul.f32 %v1989, %v2000
      %s2005 = scalar_lea.vmem %s19, 64
      %v2006 = vld [vmem:[%s2005] sm:$0xf]
      %2008 = vset.pattern.permute.xlu0 0
      %2009 = vperm.xlu0 %2008, %v2006
      %v2010 = vpop.permute.xlu0 %2009
      %v2012 = vmul.f32 %v2003, %v2010
      %v2013 = vmul.f32 %v2004, %v2010
      %v2014 = vadd.f32 %v1981, %v2012
      %v2015 = vadd.f32 %v1982, %v2013
      %2016 = vrot.lane.b32.xlu0 %v1581, 94
      %v2017 = vpop.permute.xlu0 %2016
      %2018 = vrot.lane.b32.xlu0 %v1582, 94
      %v2019 = vpop.permute.xlu0 %2018
      %vm2020 = vcmp.lt.s32.totalorder %v993, 94
      %v2021 = vsel %vm2020, %v2017, %v2019
      %v2022 = vsel %vm2020, %v2019, %v2017
      %s2023 = scalar_lea.vmem %s10, 34
      %v2024 = vld [vmem:[%s2023] sm:$0x3]
      %v2026 = vlaneseq
      %v2027 = vshrl.u32 %v2026, 7
      %v2028 = vsub.s32 0, %v2027
      %v2029 = vrot.slane %v2024, %v2028
      %v2030 = vlaneseq
      %v2031 = vshrl.u32 %v2030, 7
      %v2032 = vsub.s32 1, %v2031
      %v2033 = vrot.slane %v2024, %v2032
      %v2036 = vmul.f32 %v2021, %v2029
      %v2037 = vmul.f32 %v2022, %v2033
      %s2038 = scalar_lea.vmem %s19, 68
      %v2039 = vld [vmem:[%s2038] sm:$0xf]
      %2041 = vset.pattern.permute.xlu0 0
      %2042 = vperm.xlu0 %2041, %v2039
      %v2043 = vpop.permute.xlu0 %2042
      %v2045 = vmul.f32 %v2036, %v2043
      %v2046 = vmul.f32 %v2037, %v2043
      %v2047 = vadd.f32 %v2014, %v2045
      %v2048 = vadd.f32 %v2015, %v2046
      %v2049 = vadd.f32 %v1745, %v2047
      %v2050 = vadd.f32 %v1746, %v2048
      %s2051 = scalar_lea.vmem %s21, 4
      %v2052 = vld [vmem:[%s2051] sm:$0xf]
      %vm2053 = vcmp.ge.f32.partialorder %v2049, 0.0
      %vm2054 = vcmp.ge.f32.partialorder %v2050, 0.0
      %2056 = vset.pattern.permute.xlu0 0
      %2057 = vperm.xlu0 %2056, %v2052
      %v2058 = vpop.permute.xlu0 %2057
      %v2060 = vmul.f32 %v2049, %v2058
      %v2061 = vmul.f32 %v2050, %v2058
      %v2062 = vsel %vm2053, %v2049, %v2060
      %v2063 = vsel %vm2054, %v2050, %v2061
      %s2064 = scalar_lea.vmem %s20, 16
      %v2065 = vld [vmem:[%s2064] sm:$0xff]
      %v2066 = vld [vmem:[%s2064 + $0x8] sm:$0xf]
      %vm2067 = vcmask 31744
      %v2069 = vsel %vm2067, %v2065, 0
      %v2072 = vsel %vm2067, %v2066, 0
      %v2075 = vsel %vm1493, %v2062, 0
      %v2078 = vsel %vm1493, %v2063, 0
      %2080 = vmatprep.subr.mxu0 %v2078
      %2081 = vmatpush1.msra.mxu0 %v2075
      %2082 = vmatprep.subr.mxu0 0.0
      %2083 = vmatpush1.msra.mxu0 0.0
      %2084 = vmatprep.subr.mxu0 0.0
      %2085 = vmatpush1.msra.mxu0 0.0
      %2086 = vmatprep.subr.mxu0 0.0
      %2087 = vmatpush1.msra.mxu0 0.0
      %2088 = vmatprep.subr.mxu0 0.0
      %2089 = vmatpush1.msra.mxu0 0.0
      %2090 = vmatprep.subr.mxu0 0.0
      %2091 = vmatpush1.msra.mxu0 0.0
      %2092 = vmatprep.subr.mxu0 0.0
      %2093 = vmatpush1.msra.mxu0 0.0
      %2094 = vmatprep.subr.mxu0 0.0
      %2095 = vmatpush1.msra.mxu0 0.0
      %2096 = vmatprep.subr.mxu0 0.0
      %2097 = vmatpush1.msra.mxu0 0.0
      %2098 = vmatprep.subr.mxu0 0.0
      %2099 = vmatpush1.msra.mxu0 0.0
      %2100 = vmatprep.subr.mxu0 0.0
      %2101 = vmatpush1.msra.mxu0 0.0
      %2102 = vmatprep.subr.mxu0 0.0
      %2103 = vmatpush1.msra.mxu0 0.0
      %2104 = vmatprep.subr.mxu0 0.0
      %2105 = vmatpush1.msra.mxu0 0.0
      %2106 = vmatprep.subr.mxu0 0.0
      %2107 = vmatpush1.msra.mxu0 0.0
      %2108 = vmatprep.subr.mxu0 0.0
      %2109 = vmatpush1.msra.mxu0 0.0
      %2110 = vmatprep.subr.mxu0 0.0
      %2111 = vmatpush1.msra.mxu0 0.0
      %2112 = vmatprep.subr.mxu0 0.0
      %2113 = vmatpush1.msra.mxu0 0.0
      %2114 = vmatprep.subr.mxu0 0.0
      %2115 = vmatpush1.msra.mxu0 0.0
      %2116 = vmatprep.subr.mxu0 0.0
      %2117 = vmatpush1.msra.mxu0 0.0
      %2118 = vmatprep.subr.mxu0 0.0
      %2119 = vmatpush1.msra.mxu0 0.0
      %2120 = vmatprep.subr.mxu0 0.0
      %2121 = vmatpush1.msra.mxu0 0.0
      %2122 = vmatprep.subr.mxu0 0.0
      %2123 = vmatpush1.msra.mxu0 0.0
      %2124 = vmatprep.subr.mxu0 0.0
      %2125 = vmatpush1.msra.mxu0 0.0
      %2126 = vmatprep.subr.mxu0 0.0
      %2127 = vmatpush1.msra.mxu0 0.0
      %2128 = vmatprep.subr.mxu0 0.0
      %2129 = vmatpush1.msra.mxu0 0.0
      %2130 = vmatprep.subr.mxu0 0.0
      %2131 = vmatpush1.msra.mxu0 0.0
      %2132 = vmatprep.subr.mxu0 0.0
      %2133 = vmatpush1.msra.mxu0 0.0
      %2134 = vmatprep.subr.mxu0 0.0
      %2135 = vmatpush1.msra.mxu0 0.0
      %2136 = vmatprep.subr.mxu0 0.0
      %2137 = vmatpush1.msra.mxu0 0.0
      %2138 = vmatprep.subr.mxu0 0.0
      %2139 = vmatpush1.msra.mxu0 0.0
      %2140 = vmatprep.subr.mxu0 0.0
      %2141 = vmatpush1.msra.mxu0 0.0
      %2142 = vmatprep.subr.mxu0 0.0
      %2143 = vmatpush1.msra.mxu0 0.0
      %2144 = vmatprep.mubr.f32.mxu0 0.0
      %2145 = vmatmul.mubr.f32.gmra.mrb[0].mxu0 %v2069
      %v2146 = vpop.f32.mrb[0].mxu0
      %v2147 = vadd.f32 0.0, %v2146
      %v2148 = vpop.f32.mrb[0].mxu0
      %v2149 = vadd.f32 0.0, %v2148
      %2150 = vmatprep.mubr.f32.mxu0 0.0
      %2151 = vmatmul.mubr.f32.gmra.mrb[0].mxu0 %v2072
      %v2152 = vpop.f32.mrb[0].mxu0
      %v2153 = vadd.f32 0.0, %v2152
      %v2154 = vpop.f32.mrb[0].mxu0
      %v2155 = vadd.f32 0.0, %v2154
      %2156 = vdwg.mxu0
      %v2158 = vsel %vm2067, %v1759, 0
      %v2161 = vsel %vm2067, %v1760, 0
      %v2164 = vsel %vm1493, %v1757, 0
      %v2167 = vsel %vm1493, %v1758, 0
      %2169 = vmatprep.subr.mxu0 %v2167
      %2170 = vmatpush1.msra.mxu0 %v2164
      %2171 = vmatprep.subr.mxu0 0.0
      %2172 = vmatpush1.msra.mxu0 0.0
      %2173 = vmatprep.subr.mxu0 0.0
      %2174 = vmatpush1.msra.mxu0 0.0
      %2175 = vmatprep.subr.mxu0 0.0
      %2176 = vmatpush1.msra.mxu0 0.0
      %2177 = vmatprep.subr.mxu0 0.0
      %2178 = vmatpush1.msra.mxu0 0.0
      %2179 = vmatprep.subr.mxu0 0.0
      %2180 = vmatpush1.msra.mxu0 0.0
      %2181 = vmatprep.subr.mxu0 0.0
      %2182 = vmatpush1.msra.mxu0 0.0
      %2183 = vmatprep.subr.mxu0 0.0
      %2184 = vmatpush1.msra.mxu0 0.0
      %2185 = vmatprep.subr.mxu0 0.0
      %2186 = vmatpush1.msra.mxu0 0.0
      %2187 = vmatprep.subr.mxu0 0.0
      %2188 = vmatpush1.msra.mxu0 0.0
      %2189 = vmatprep.subr.mxu0 0.0
      %2190 = vmatpush1.msra.mxu0 0.0
      %2191 = vmatprep.subr.mxu0 0.0
      %2192 = vmatpush1.msra.mxu0 0.0
      %2193 = vmatprep.subr.mxu0 0.0
      %2194 = vmatpush1.msra.mxu0 0.0
      %2195 = vmatprep.subr.mxu0 0.0
      %2196 = vmatpush1.msra.mxu0 0.0
      %2197 = vmatprep.subr.mxu0 0.0
      %2198 = vmatpush1.msra.mxu0 0.0
      %2199 = vmatprep.subr.mxu0 0.0
      %2200 = vmatpush1.msra.mxu0 0.0
      %2201 = vmatprep.subr.mxu0 0.0
      %2202 = vmatpush1.msra.mxu0 0.0
      %2203 = vmatprep.subr.mxu0 0.0
      %2204 = vmatpush1.msra.mxu0 0.0
      %2205 = vmatprep.subr.mxu0 0.0
      %2206 = vmatpush1.msra.mxu0 0.0
      %2207 = vmatprep.subr.mxu0 0.0
      %2208 = vmatpush1.msra.mxu0 0.0
      %2209 = vmatprep.subr.mxu0 0.0
      %2210 = vmatpush1.msra.mxu0 0.0
      %2211 = vmatprep.subr.mxu0 0.0
      %2212 = vmatpush1.msra.mxu0 0.0
      %2213 = vmatprep.subr.mxu0 0.0
      %2214 = vmatpush1.msra.mxu0 0.0
      %2215 = vmatprep.subr.mxu0 0.0
      %2216 = vmatpush1.msra.mxu0 0.0
      %2217 = vmatprep.subr.mxu0 0.0
      %2218 = vmatpush1.msra.mxu0 0.0
      %2219 = vmatprep.subr.mxu0 0.0
      %2220 = vmatpush1.msra.mxu0 0.0
      %2221 = vmatprep.subr.mxu0 0.0
      %2222 = vmatpush1.msra.mxu0 0.0
      %2223 = vmatprep.subr.mxu0 0.0
      %2224 = vmatpush1.msra.mxu0 0.0
      %2225 = vmatprep.subr.mxu0 0.0
      %2226 = vmatpush1.msra.mxu0 0.0
      %2227 = vmatprep.subr.mxu0 0.0
      %2228 = vmatpush1.msra.mxu0 0.0
      %2229 = vmatprep.subr.mxu0 0.0
      %2230 = vmatpush1.msra.mxu0 0.0
      %2231 = vmatprep.subr.mxu0 0.0
      %2232 = vmatpush1.msra.mxu0 0.0
      %2233 = vmatprep.mubr.f32.mxu0 0.0
      %2234 = vmatmul.mubr.f32.gmra.mrb[0].mxu0 %v2158
      %v2235 = vpop.f32.mrb[0].mxu0
      %v2236 = vadd.f32 %v2147, %v2235
      %v2237 = vpop.f32.mrb[0].mxu0
      %v2238 = vadd.f32 %v2149, %v2237
      %2239 = vmatprep.mubr.f32.mxu0 0.0
      %2240 = vmatmul.mubr.f32.gmra.mrb[0].mxu0 %v2161
      %v2241 = vpop.f32.mrb[0].mxu0
      %v2242 = vadd.f32 %v2153, %v2241
      %v2243 = vpop.f32.mrb[0].mxu0
      %v2244 = vadd.f32 %v2155, %v2243
      %2245 = vdwg.mxu0
      %2246 = vrot.lane.b32.xlu0 %v1581, 68
      %v2247 = vpop.permute.xlu0 %2246
      %2248 = vrot.lane.b32.xlu0 %v1582, 68
      %v2249 = vpop.permute.xlu0 %2248
      %vm2250 = vcmp.lt.s32.totalorder %v993, 68
      %v2251 = vsel %vm2250, %v2247, %v2249
      %v2252 = vsel %vm2250, %v2249, %v2247
      %s2253 = scalar_lea.vmem %s10, 36
      %v2254 = vld [vmem:[%s2253] sm:$0x3]
      %v2256 = vlaneseq
      %v2257 = vshrl.u32 %v2256, 7
      %v2258 = vsub.s32 0, %v2257
      %v2259 = vrot.slane %v2254, %v2258
      %v2260 = vlaneseq
      %v2261 = vshrl.u32 %v2260, 7
      %v2262 = vsub.s32 1, %v2261
      %v2263 = vrot.slane %v2254, %v2262
      %v2266 = vmul.f32 %v2252, %v2259
      %v2267 = vmul.f32 %v2251, %v2263
      %s2268 = scalar_lea.vmem %s19, 72
      %v2269 = vld [vmem:[%s2268] sm:$0xf]
      %2271 = vset.pattern.permute.xlu0 0
      %2272 = vperm.xlu0 %2271, %v2269
      %v2273 = vpop.permute.xlu0 %2272
      %v2275 = vmul.f32 %v2266, %v2273
      %v2276 = vmul.f32 %v2267, %v2273
      %2277 = vrot.lane.b32.xlu0 %v1581, 64
      %v2278 = vpop.permute.xlu0 %2277
      %2279 = vrot.lane.b32.xlu0 %v1582, 64
      %v2280 = vpop.permute.xlu0 %2279
      %vm2281 = vcmp.lt.s32.totalorder %v993, 64
      %v2282 = vsel %vm2281, %v2278, %v2280
      %v2283 = vsel %vm2281, %v2280, %v2278
      %s2284 = scalar_lea.vmem %s10, 38
      %v2285 = vld [vmem:[%s2284] sm:$0x3]
      %v2287 = vlaneseq
      %v2288 = vshrl.u32 %v2287, 7
      %v2289 = vsub.s32 0, %v2288
      %v2290 = vrot.slane %v2285, %v2289
      %v2291 = vlaneseq
      %v2292 = vshrl.u32 %v2291, 7
      %v2293 = vsub.s32 1, %v2292
      %v2294 = vrot.slane %v2285, %v2293
      %v2297 = vmul.f32 %v2283, %v2290
      %v2298 = vmul.f32 %v2282, %v2294
      %s2299 = scalar_lea.vmem %s19, 76
      %v2300 = vld [vmem:[%s2299] sm:$0xf]
      %2302 = vset.pattern.permute.xlu0 0
      %2303 = vperm.xlu0 %2302, %v2300
      %v2304 = vpop.permute.xlu0 %2303
      %v2306 = vmul.f32 %v2297, %v2304
      %v2307 = vmul.f32 %v2298, %v2304
      %v2308 = vadd.f32 %v2275, %v2306
      %v2309 = vadd.f32 %v2276, %v2307
      %2310 = vrot.lane.b32.xlu0 %v1581, 60
      %v2311 = vpop.permute.xlu0 %2310
      %2312 = vrot.lane.b32.xlu0 %v1582, 60
      %v2313 = vpop.permute.xlu0 %2312
      %vm2314 = vcmp.lt.s32.totalorder %v993, 60
      %v2315 = vsel %vm2314, %v2311, %v2313
      %v2316 = vsel %vm2314, %v2313, %v2311
      %s2317 = scalar_lea.vmem %s10, 40
      %v2318 = vld [vmem:[%s2317] sm:$0x3]
      %v2320 = vlaneseq
      %v2321 = vshrl.u32 %v2320, 7
      %v2322 = vsub.s32 0, %v2321
      %v2323 = vrot.slane %v2318, %v2322
      %v2324 = vlaneseq
      %v2325 = vshrl.u32 %v2324, 7
      %v2326 = vsub.s32 1, %v2325
      %v2327 = vrot.slane %v2318, %v2326
      %v2330 = vmul.f32 %v2316, %v2323
      %v2331 = vmul.f32 %v2315, %v2327
      %s2332 = scalar_lea.vmem %s19, 80
      %v2333 = vld [vmem:[%s2332] sm:$0xf]
      %2335 = vset.pattern.permute.xlu0 0
      %2336 = vperm.xlu0 %2335, %v2333
      %v2337 = vpop.permute.xlu0 %2336
      %v2339 = vmul.f32 %v2330, %v2337
      %v2340 = vmul.f32 %v2331, %v2337
      %v2341 = vadd.f32 %v2308, %v2339
      %v2342 = vadd.f32 %v2309, %v2340
      %2343 = vrot.lane.b32.xlu0 %v1581, 4
      %v2344 = vpop.permute.xlu0 %2343
      %2345 = vrot.lane.b32.xlu0 %v1582, 4
      %v2346 = vpop.permute.xlu0 %2345
      %vm2347 = vcmp.lt.s32.totalorder %v993, 4
      %v2348 = vsel %vm2347, %v2344, %v2346
      %v2349 = vsel %vm2347, %v2346, %v2344
      %s2350 = scalar_lea.vmem %s10, 42
      %v2351 = vld [vmem:[%s2350] sm:$0x3]
      %v2353 = vlaneseq
      %v2354 = vshrl.u32 %v2353, 7
      %v2355 = vsub.s32 0, %v2354
      %v2356 = vrot.slane %v2351, %v2355
      %v2357 = vlaneseq
      %v2358 = vshrl.u32 %v2357, 7
      %v2359 = vsub.s32 1, %v2358
      %v2360 = vrot.slane %v2351, %v2359
      %v2363 = vmul.f32 %v2349, %v2356
      %v2364 = vmul.f32 %v2348, %v2360
      %s2365 = scalar_lea.vmem %s19, 84
      %v2366 = vld [vmem:[%s2365] sm:$0xf]
      %2368 = vset.pattern.permute.xlu0 0
      %2369 = vperm.xlu0 %2368, %v2366
      %v2370 = vpop.permute.xlu0 %2369
      %v2372 = vmul.f32 %v2363, %v2370
      %v2373 = vmul.f32 %v2364, %v2370
      %v2374 = vadd.f32 %v2341, %v2372
      %v2375 = vadd.f32 %v2342, %v2373
      %s2376 = scalar_lea.vmem %s10, 44
      %v2377 = vld [vmem:[%s2376] sm:$0x3]
      %v2379 = vlaneseq
      %v2380 = vshrl.u32 %v2379, 7
      %v2381 = vsub.s32 0, %v2380
      %v2382 = vrot.slane %v2377, %v2381
      %v2383 = vlaneseq
      %v2384 = vshrl.u32 %v2383, 7
      %v2385 = vsub.s32 1, %v2384
      %v2386 = vrot.slane %v2377, %v2385
      %v2389 = vmul.f32 %v1581, %v2382
      %v2390 = vmul.f32 %v1582, %v2386
      %s2391 = scalar_lea.vmem %s19, 88
      %v2392 = vld [vmem:[%s2391] sm:$0xf]
      %2394 = vset.pattern.permute.xlu0 0
      %2395 = vperm.xlu0 %2394, %v2392
      %v2396 = vpop.permute.xlu0 %2395
      %v2398 = vmul.f32 %v2389, %v2396
      %v2399 = vmul.f32 %v2390, %v2396
      %v2400 = vadd.f32 %v2374, %v2398
      %v2401 = vadd.f32 %v2375, %v2399
      %2402 = vrot.lane.b32.xlu0 %v1581, 124
      %v2403 = vpop.permute.xlu0 %2402
      %2404 = vrot.lane.b32.xlu0 %v1582, 124
      %v2405 = vpop.permute.xlu0 %2404
      %vm2406 = vcmp.lt.s32.totalorder %v993, 124
      %v2407 = vsel %vm2406, %v2403, %v2405
      %v2408 = vsel %vm2406, %v2405, %v2403
      %s2409 = scalar_lea.vmem %s10, 46
      %v2410 = vld [vmem:[%s2409] sm:$0x3]
      %v2412 = vlaneseq
      %v2413 = vshrl.u32 %v2412, 7
      %v2414 = vsub.s32 0, %v2413
      %v2415 = vrot.slane %v2410, %v2414
      %v2416 = vlaneseq
      %v2417 = vshrl.u32 %v2416, 7
      %v2418 = vsub.s32 1, %v2417
      %v2419 = vrot.slane %v2410, %v2418
      %v2422 = vmul.f32 %v2407, %v2415
      %v2423 = vmul.f32 %v2408, %v2419
      %s2424 = scalar_lea.vmem %s19, 92
      %v2425 = vld [vmem:[%s2424] sm:$0xf]
      %2427 = vset.pattern.permute.xlu0 0
      %2428 = vperm.xlu0 %2427, %v2425
      %v2429 = vpop.permute.xlu0 %2428
      %v2431 = vmul.f32 %v2422, %v2429
      %v2432 = vmul.f32 %v2423, %v2429
      %v2433 = vadd.f32 %v2400, %v2431
      %v2434 = vadd.f32 %v2401, %v2432
      %s2435 = scalar_lea.vmem %s10, 48
      %v2436 = vld [vmem:[%s2435] sm:$0x3]
      %v2438 = vlaneseq
      %v2439 = vshrl.u32 %v2438, 7
      %v2440 = vsub.s32 0, %v2439
      %v2441 = vrot.slane %v2436, %v2440
      %v2442 = vlaneseq
      %v2443 = vshrl.u32 %v2442, 7
      %v2444 = vsub.s32 1, %v2443
      %v2445 = vrot.slane %v2436, %v2444
      %v2448 = vmul.f32 %v2251, %v2441
      %v2449 = vmul.f32 %v2252, %v2445
      %s2450 = scalar_lea.vmem %s19, 96
      %v2451 = vld [vmem:[%s2450] sm:$0xf]
      %2453 = vset.pattern.permute.xlu0 0
      %2454 = vperm.xlu0 %2453, %v2451
      %v2455 = vpop.permute.xlu0 %2454
      %v2457 = vmul.f32 %v2448, %v2455
      %v2458 = vmul.f32 %v2449, %v2455
      %v2459 = vadd.f32 %v2433, %v2457
      %v2460 = vadd.f32 %v2434, %v2458
      %s2461 = scalar_lea.vmem %s10, 50
      %v2462 = vld [vmem:[%s2461] sm:$0x3]
      %v2464 = vlaneseq
      %v2465 = vshrl.u32 %v2464, 7
      %v2466 = vsub.s32 0, %v2465
      %v2467 = vrot.slane %v2462, %v2466
      %v2468 = vlaneseq
      %v2469 = vshrl.u32 %v2468, 7
      %v2470 = vsub.s32 1, %v2469
      %v2471 = vrot.slane %v2462, %v2470
      %v2474 = vmul.f32 %v2282, %v2467
      %v2475 = vmul.f32 %v2283, %v2471
      %s2476 = scalar_lea.vmem %s19, 100
      %v2477 = vld [vmem:[%s2476] sm:$0xf]
      %2479 = vset.pattern.permute.xlu0 0
      %2480 = vperm.xlu0 %2479, %v2477
      %v2481 = vpop.permute.xlu0 %2480
      %v2483 = vmul.f32 %v2474, %v2481
      %v2484 = vmul.f32 %v2475, %v2481
      %v2485 = vadd.f32 %v2459, %v2483
      %v2486 = vadd.f32 %v2460, %v2484
      %s2487 = scalar_lea.vmem %s10, 52
      %v2488 = vld [vmem:[%s2487] sm:$0x3]
      %v2490 = vlaneseq
      %v2491 = vshrl.u32 %v2490, 7
      %v2492 = vsub.s32 0, %v2491
      %v2493 = vrot.slane %v2488, %v2492
      %v2494 = vlaneseq
      %v2495 = vshrl.u32 %v2494, 7
      %v2496 = vsub.s32 1, %v2495
      %v2497 = vrot.slane %v2488, %v2496
      %v2500 = vmul.f32 %v2315, %v2493
      %v2501 = vmul.f32 %v2316, %v2497
      %s2502 = scalar_lea.vmem %s19, 104
      %v2503 = vld [vmem:[%s2502] sm:$0xf]
      %2505 = vset.pattern.permute.xlu0 0
      %2506 = vperm.xlu0 %2505, %v2503
      %v2507 = vpop.permute.xlu0 %2506
      %v2509 = vmul.f32 %v2500, %v2507
      %v2510 = vmul.f32 %v2501, %v2507
      %v2511 = vadd.f32 %v2485, %v2509
      %v2512 = vadd.f32 %v2486, %v2510
      %v2513 = vadd.f32 %v2049, %v2511
      %v2514 = vadd.f32 %v2050, %v2512
      %s2515 = scalar_lea.vmem %s21, 8
      %v2516 = vld [vmem:[%s2515] sm:$0xf]
      %vm2517 = vcmp.ge.f32.partialorder %v2513, 0.0
      %vm2518 = vcmp.ge.f32.partialorder %v2514, 0.0
      %2520 = vset.pattern.permute.xlu0 0
      %2521 = vperm.xlu0 %2520, %v2516
      %v2522 = vpop.permute.xlu0 %2521
      %v2524 = vmul.f32 %v2513, %v2522
      %v2525 = vmul.f32 %v2514, %v2522
      %v2526 = vsel %vm2517, %v2513, %v2524
      %v2527 = vsel %vm2518, %v2514, %v2525
      %s2528 = scalar_lea.vmem %s20, 32
      %v2529 = vld [vmem:[%s2528] sm:$0xff]
      %v2530 = vld [vmem:[%s2528 + $0x8] sm:$0xf]
      %v2532 = vsel %vm2067, %v2529, 0
      %v2535 = vsel %vm2067, %v2530, 0
      %v2538 = vsel %vm1493, %v2526, 0
      %v2541 = vsel %vm1493, %v2527, 0
      %2543 = vmatprep.subr.mxu0 %v2541
      %2544 = vmatpush1.msra.mxu0 %v2538
      %2545 = vmatprep.subr.mxu0 0.0
      %2546 = vmatpush1.msra.mxu0 0.0
      %2547 = vmatprep.subr.mxu0 0.0
      %2548 = vmatpush1.msra.mxu0 0.0
      %2549 = vmatprep.subr.mxu0 0.0
      %2550 = vmatpush1.msra.mxu0 0.0
      %2551 = vmatprep.subr.mxu0 0.0
      %2552 = vmatpush1.msra.mxu0 0.0
      %2553 = vmatprep.subr.mxu0 0.0
      %2554 = vmatpush1.msra.mxu0 0.0
      %2555 = vmatprep.subr.mxu0 0.0
      %2556 = vmatpush1.msra.mxu0 0.0
      %2557 = vmatprep.subr.mxu0 0.0
      %2558 = vmatpush1.msra.mxu0 0.0
      %2559 = vmatprep.subr.mxu0 0.0
      %2560 = vmatpush1.msra.mxu0 0.0
      %2561 = vmatprep.subr.mxu0 0.0
      %2562 = vmatpush1.msra.mxu0 0.0
      %2563 = vmatprep.subr.mxu0 0.0
      %2564 = vmatpush1.msra.mxu0 0.0
      %2565 = vmatprep.subr.mxu0 0.0
      %2566 = vmatpush1.msra.mxu0 0.0
      %2567 = vmatprep.subr.mxu0 0.0
      %2568 = vmatpush1.msra.mxu0 0.0
      %2569 = vmatprep.subr.mxu0 0.0
      %2570 = vmatpush1.msra.mxu0 0.0
      %2571 = vmatprep.subr.mxu0 0.0
      %2572 = vmatpush1.msra.mxu0 0.0
      %2573 = vmatprep.subr.mxu0 0.0
      %2574 = vmatpush1.msra.mxu0 0.0
      %2575 = vmatprep.subr.mxu0 0.0
      %2576 = vmatpush1.msra.mxu0 0.0
      %2577 = vmatprep.subr.mxu0 0.0
      %2578 = vmatpush1.msra.mxu0 0.0
      %2579 = vmatprep.subr.mxu0 0.0
      %2580 = vmatpush1.msra.mxu0 0.0
      %2581 = vmatprep.subr.mxu0 0.0
      %2582 = vmatpush1.msra.mxu0 0.0
      %2583 = vmatprep.subr.mxu0 0.0
      %2584 = vmatpush1.msra.mxu0 0.0
      %2585 = vmatprep.subr.mxu0 0.0
      %2586 = vmatpush1.msra.mxu0 0.0
      %2587 = vmatprep.subr.mxu0 0.0
      %2588 = vmatpush1.msra.mxu0 0.0
      %2589 = vmatprep.subr.mxu0 0.0
      %2590 = vmatpush1.msra.mxu0 0.0
      %2591 = vmatprep.subr.mxu0 0.0
      %2592 = vmatpush1.msra.mxu0 0.0
      %2593 = vmatprep.subr.mxu0 0.0
      %2594 = vmatpush1.msra.mxu0 0.0
      %2595 = vmatprep.subr.mxu0 0.0
      %2596 = vmatpush1.msra.mxu0 0.0
      %2597 = vmatprep.subr.mxu0 0.0
      %2598 = vmatpush1.msra.mxu0 0.0
      %2599 = vmatprep.subr.mxu0 0.0
      %2600 = vmatpush1.msra.mxu0 0.0
      %2601 = vmatprep.subr.mxu0 0.0
      %2602 = vmatpush1.msra.mxu0 0.0
      %2603 = vmatprep.subr.mxu0 0.0
      %2604 = vmatpush1.msra.mxu0 0.0
      %2605 = vmatprep.subr.mxu0 0.0
      %2606 = vmatpush1.msra.mxu0 0.0
      %2607 = vmatprep.mubr.f32.mxu0 0.0
      %2608 = vmatmul.mubr.f32.gmra.mrb[0].mxu0 %v2532
      %v2609 = vpop.f32.mrb[0].mxu0
      %v2610 = vadd.f32 0.0, %v2609
      %v2611 = vpop.f32.mrb[0].mxu0
      %v2612 = vadd.f32 0.0, %v2611
      %2613 = vmatprep.mubr.f32.mxu0 0.0
      %2614 = vmatmul.mubr.f32.gmra.mrb[0].mxu0 %v2535
      %v2615 = vpop.f32.mrb[0].mxu0
      %v2616 = vadd.f32 0.0, %v2615
      %v2617 = vpop.f32.mrb[0].mxu0
      %v2618 = vadd.f32 0.0, %v2617
      %2619 = vdwg.mxu0
      %v2620 = vadd.f32 %v2236, %v2610
      %v2621 = vadd.f32 %v2238, %v2612
      %v2622 = vadd.f32 %v2242, %v2616
      %v2623 = vadd.f32 %v2244, %v2618
      %v2624 = vadd.f32 %v2620, %v1484
      %v2625 = vadd.f32 %v2621, %v1485
      %v2626 = vadd.f32 %v2622, %v1486
      %v2627 = vadd.f32 %v2623, %v1487
      %v2628 = vld [vmem:[%s22] sm:$0xff]
      %v2629 = vld [vmem:[%s22 + $0x8] sm:$0xf]
      %vm2630 = vcmp.ge.f32.partialorder %v2624, 0.0
      %vm2631 = vcmp.ge.f32.partialorder %v2625, 0.0
      %vm2632 = vcmp.ge.f32.partialorder %v2626, 0.0
      %vm2633 = vcmp.ge.f32.partialorder %v2627, 0.0
      %2635 = vset.pattern.permute.xlu0 0
      %2636 = vperm.xlu0 %2635, %v2628
      %v2637 = vpop.permute.xlu0 %2636
      %2640 = vset.pattern.permute.xlu0 0
      %2641 = vperm.xlu0 %2640, %v2629
      %v2642 = vpop.permute.xlu0 %2641
      %v2644 = vmul.f32 %v2624, %v2637
      %v2645 = vmul.f32 %v2625, %v2637
      %v2646 = vmul.f32 %v2626, %v2642
      %v2647 = vmul.f32 %v2627, %v2642
      %v2648 = vsel %vm2630, %v2624, %v2644
      %v2649 = vsel %vm2631, %v2625, %v2645
      %v2650 = vsel %vm2632, %v2626, %v2646
      %v2651 = vsel %vm2633, %v2627, %v2647
      %s2652 = scalar_lea.vmem %s17, 4
      %v2653 = vld [vmem:[%s2652] sm:$0xf]
      %v2655 = vsel %vm1489, %v2653, 0
      %v2658 = vsel %vm1493, %v2650, 0
      %v2661 = vsel %vm1493, %v2651, 0
      %2663 = vmatprep.subr.mxu0 %v2649
      %2664 = vmatpush1.msra.mxu0 %v2648
      %2665 = vmatprep.subr.mxu0 %v2661
      %2666 = vmatpush1.msra.mxu0 %v2658
      %2667 = vmatprep.subr.mxu0 0.0
      %2668 = vmatpush1.msra.mxu0 0.0
      %2669 = vmatprep.subr.mxu0 0.0
      %2670 = vmatpush1.msra.mxu0 0.0
      %2671 = vmatprep.subr.mxu0 0.0
      %2672 = vmatpush1.msra.mxu0 0.0
      %2673 = vmatprep.subr.mxu0 0.0
      %2674 = vmatpush1.msra.mxu0 0.0
      %2675 = vmatprep.subr.mxu0 0.0
      %2676 = vmatpush1.msra.mxu0 0.0
      %2677 = vmatprep.subr.mxu0 0.0
      %2678 = vmatpush1.msra.mxu0 0.0
      %2679 = vmatprep.subr.mxu0 0.0
      %2680 = vmatpush1.msra.mxu0 0.0
      %2681 = vmatprep.subr.mxu0 0.0
      %2682 = vmatpush1.msra.mxu0 0.0
      %2683 = vmatprep.subr.mxu0 0.0
      %2684 = vmatpush1.msra.mxu0 0.0
      %2685 = vmatprep.subr.mxu0 0.0
      %2686 = vmatpush1.msra.mxu0 0.0
      %2687 = vmatprep.subr.mxu0 0.0
      %2688 = vmatpush1.msra.mxu0 0.0
      %2689 = vmatprep.subr.mxu0 0.0
      %2690 = vmatpush1.msra.mxu0 0.0
      %2691 = vmatprep.subr.mxu0 0.0
      %2692 = vmatpush1.msra.mxu0 0.0
      %2693 = vmatprep.subr.mxu0 0.0
      %2694 = vmatpush1.msra.mxu0 0.0
      %2695 = vmatprep.subr.mxu0 0.0
      %2696 = vmatpush1.msra.mxu0 0.0
      %2697 = vmatprep.subr.mxu0 0.0
      %2698 = vmatpush1.msra.mxu0 0.0
      %2699 = vmatprep.subr.mxu0 0.0
      %2700 = vmatpush1.msra.mxu0 0.0
      %2701 = vmatprep.subr.mxu0 0.0
      %2702 = vmatpush1.msra.mxu0 0.0
      %2703 = vmatprep.subr.mxu0 0.0
      %2704 = vmatpush1.msra.mxu0 0.0
      %2705 = vmatprep.subr.mxu0 0.0
      %2706 = vmatpush1.msra.mxu0 0.0
      %2707 = vmatprep.subr.mxu0 0.0
      %2708 = vmatpush1.msra.mxu0 0.0
      %2709 = vmatprep.subr.mxu0 0.0
      %2710 = vmatpush1.msra.mxu0 0.0
      %2711 = vmatprep.subr.mxu0 0.0
      %2712 = vmatpush1.msra.mxu0 0.0
      %2713 = vmatprep.subr.mxu0 0.0
      %2714 = vmatpush1.msra.mxu0 0.0
      %2715 = vmatprep.subr.mxu0 0.0
      %2716 = vmatpush1.msra.mxu0 0.0
      %2717 = vmatprep.subr.mxu0 0.0
      %2718 = vmatpush1.msra.mxu0 0.0
      %2719 = vmatprep.subr.mxu0 0.0
      %2720 = vmatpush1.msra.mxu0 0.0
      %2721 = vmatprep.subr.mxu0 0.0
      %2722 = vmatpush1.msra.mxu0 0.0
      %2723 = vmatprep.subr.mxu0 0.0
      %2724 = vmatpush1.msra.mxu0 0.0
      %2725 = vmatprep.subr.mxu0 0.0
      %2726 = vmatpush1.msra.mxu0 0.0
      %2727 = vmatprep.mubr.f32.mxu0 0.0
      %2728 = vmatmul.mubr.f32.gmra.mrb[0].mxu0 %v2655
      %v2729 = vpop.f32.mrb[0].mxu0
      %v2730 = vadd.f32 0.0, %v2729
      %v2731 = vpop.f32.mrb[0].mxu0
      %v2732 = vadd.f32 0.0, %v2731
      %2733 = vdwg.mxu0
      %s2734 = scalar_lea.vmem %s18, 4
      %v2735 = vld [vmem:[%s2734] sm:$0xf]
      %vm2736 = vcmp.ge.f32.partialorder %v2730, 0.0
      %vm2737 = vcmp.ge.f32.partialorder %v2732, 0.0
      %2739 = vset.pattern.permute.xlu0 0
      %2740 = vperm.xlu0 %2739, %v2735
      %v2741 = vpop.permute.xlu0 %2740
      %v2743 = vmul.f32 %v2730, %v2741
      %v2744 = vmul.f32 %v2732, %v2741
      %v2745 = vsel %vm2736, %v2730, %v2743
      %v2746 = vsel %vm2737, %v2732, %v2744
      %2747 = vrot.lane.b32.xlu0 %v2745, 17
      %v2748 = vpop.permute.xlu0 %2747
      %2749 = vrot.lane.b32.xlu0 %v2746, 17
      %v2750 = vpop.permute.xlu0 %2749
      %v2751 = vsel %vm994, %v2748, %v2750
      %v2752 = vsel %vm994, %v2750, %v2748
      %v2753 = vmul.f32 %v2752, %v1002
      %v2754 = vmul.f32 %v2751, %v1006
      %s2755 = scalar_lea.vmem %s19, 108
      %v2756 = vld [vmem:[%s2755] sm:$0xf]
      %2758 = vset.pattern.permute.xlu0 0
      %2759 = vperm.xlu0 %2758, %v2756
      %v2760 = vpop.permute.xlu0 %2759
      %v2762 = vmul.f32 %v2753, %v2760
      %v2763 = vmul.f32 %v2754, %v2760
      %2764 = vrot.lane.b32.xlu0 %v2745, 16
      %v2765 = vpop.permute.xlu0 %2764
      %2766 = vrot.lane.b32.xlu0 %v2746, 16
      %v2767 = vpop.permute.xlu0 %2766
      %v2768 = vsel %vm1023, %v2765, %v2767
      %v2769 = vsel %vm1023, %v2767, %v2765
      %v2770 = vmul.f32 %v2769, %v1032
      %v2771 = vmul.f32 %v2768, %v1036
      %s2772 = scalar_lea.vmem %s19, 112
      %v2773 = vld [vmem:[%s2772] sm:$0xf]
      %2775 = vset.pattern.permute.xlu0 0
      %2776 = vperm.xlu0 %2775, %v2773
      %v2777 = vpop.permute.xlu0 %2776
      %v2779 = vmul.f32 %v2770, %v2777
      %v2780 = vmul.f32 %v2771, %v2777
      %v2781 = vadd.f32 %v2762, %v2779
      %v2782 = vadd.f32 %v2763, %v2780
      %2783 = vrot.lane.b32.xlu0 %v2745, 15
      %v2784 = vpop.permute.xlu0 %2783
      %2785 = vrot.lane.b32.xlu0 %v2746, 15
      %v2786 = vpop.permute.xlu0 %2785
      %v2787 = vsel %vm1056, %v2784, %v2786
      %v2788 = vsel %vm1056, %v2786, %v2784
      %v2789 = vmul.f32 %v2788, %v1065
      %v2790 = vmul.f32 %v2787, %v1069
      %s2791 = scalar_lea.vmem %s19, 116
      %v2792 = vld [vmem:[%s2791] sm:$0xf]
      %2794 = vset.pattern.permute.xlu0 0
      %2795 = vperm.xlu0 %2794, %v2792
      %v2796 = vpop.permute.xlu0 %2795
      %v2798 = vmul.f32 %v2789, %v2796
      %v2799 = vmul.f32 %v2790, %v2796
      %v2800 = vadd.f32 %v2781, %v2798
      %v2801 = vadd.f32 %v2782, %v2799
      %2802 = vrot.lane.b32.xlu0 %v2745, 1
      %v2803 = vpop.permute.xlu0 %2802
      %2804 = vrot.lane.b32.xlu0 %v2746, 1
      %v2805 = vpop.permute.xlu0 %2804
      %v2806 = vsel %vm1089, %v2803, %v2805
      %v2807 = vsel %vm1089, %v2805, %v2803
      %v2808 = vmul.f32 %v2807, %v1098
      %v2809 = vmul.f32 %v2806, %v1102
      %s2810 = scalar_lea.vmem %s19, 120
      %v2811 = vld [vmem:[%s2810] sm:$0xf]
      %2813 = vset.pattern.permute.xlu0 0
      %2814 = vperm.xlu0 %2813, %v2811
      %v2815 = vpop.permute.xlu0 %2814
      %v2817 = vmul.f32 %v2808, %v2815
      %v2818 = vmul.f32 %v2809, %v2815
      %v2819 = vadd.f32 %v2800, %v2817
      %v2820 = vadd.f32 %v2801, %v2818
      %v2821 = vmul.f32 %v2745, %v1124
      %v2822 = vmul.f32 %v2746, %v1128
      %s2823 = scalar_lea.vmem %s19, 124
      %v2824 = vld [vmem:[%s2823] sm:$0xf]
      %2826 = vset.pattern.permute.xlu0 0
      %2827 = vperm.xlu0 %2826, %v2824
      %v2828 = vpop.permute.xlu0 %2827
      %v2830 = vmul.f32 %v2821, %v2828
      %v2831 = vmul.f32 %v2822, %v2828
      %v2832 = vadd.f32 %v2819, %v2830
      %v2833 = vadd.f32 %v2820, %v2831
      %2834 = vrot.lane.b32.xlu0 %v2745, 127
      %v2835 = vpop.permute.xlu0 %2834
      %2836 = vrot.lane.b32.xlu0 %v2746, 127
      %v2837 = vpop.permute.xlu0 %2836
      %v2838 = vsel %vm1171, %v2835, %v2837
      %v2839 = vsel %vm1171, %v2837, %v2835
      %v2840 = vmul.f32 %v2838, %v1180
      %v2841 = vmul.f32 %v2839, %v1184
      %s2842 = scalar_lea.vmem %s19, 128
      %v2843 = vld [vmem:[%s2842] sm:$0xf]
      %2845 = vset.pattern.permute.xlu0 0
      %2846 = vperm.xlu0 %2845, %v2843
      %v2847 = vpop.permute.xlu0 %2846
      %v2849 = vmul.f32 %v2840, %v2847
      %v2850 = vmul.f32 %v2841, %v2847
      %v2851 = vadd.f32 %v2832, %v2849
      %v2852 = vadd.f32 %v2833, %v2850
      %2853 = vrot.lane.b32.xlu0 %v2745, 113
      %v2854 = vpop.permute.xlu0 %2853
      %2855 = vrot.lane.b32.xlu0 %v2746, 113
      %v2856 = vpop.permute.xlu0 %2855
      %v2857 = vsel %vm1204, %v2854, %v2856
      %v2858 = vsel %vm1204, %v2856, %v2854
      %v2859 = vmul.f32 %v2857, %v1213
      %v2860 = vmul.f32 %v2858, %v1217
      %s2861 = scalar_lea.vmem %s19, 132
      %v2862 = vld [vmem:[%s2861] sm:$0xf]
      %2864 = vset.pattern.permute.xlu0 0
      %2865 = vperm.xlu0 %2864, %v2862
      %v2866 = vpop.permute.xlu0 %2865
      %v2868 = vmul.f32 %v2859, %v2866
      %v2869 = vmul.f32 %v2860, %v2866
      %v2870 = vadd.f32 %v2851, %v2868
      %v2871 = vadd.f32 %v2852, %v2869
      %2872 = vrot.lane.b32.xlu0 %v2745, 112
      %v2873 = vpop.permute.xlu0 %2872
      %2874 = vrot.lane.b32.xlu0 %v2746, 112
      %v2875 = vpop.permute.xlu0 %2874
      %v2876 = vsel %vm1237, %v2873, %v2875
      %v2877 = vsel %vm1237, %v2875, %v2873
      %v2878 = vmul.f32 %v2876, %v1246
      %v2879 = vmul.f32 %v2877, %v1250
      %s2880 = scalar_lea.vmem %s19, 136
      %v2881 = vld [vmem:[%s2880] sm:$0xf]
      %2883 = vset.pattern.permute.xlu0 0
      %2884 = vperm.xlu0 %2883, %v2881
      %v2885 = vpop.permute.xlu0 %2884
      %v2887 = vmul.f32 %v2878, %v2885
      %v2888 = vmul.f32 %v2879, %v2885
      %v2889 = vadd.f32 %v2870, %v2887
      %v2890 = vadd.f32 %v2871, %v2888
      %2891 = vrot.lane.b32.xlu0 %v2745, 111
      %v2892 = vpop.permute.xlu0 %2891
      %2893 = vrot.lane.b32.xlu0 %v2746, 111
      %v2894 = vpop.permute.xlu0 %2893
      %v2895 = vsel %vm1270, %v2892, %v2894
      %v2896 = vsel %vm1270, %v2894, %v2892
      %v2897 = vmul.f32 %v2895, %v1279
      %v2898 = vmul.f32 %v2896, %v1283
      %s2899 = scalar_lea.vmem %s19, 140
      %v2900 = vld [vmem:[%s2899] sm:$0xf]
      %2902 = vset.pattern.permute.xlu0 0
      %2903 = vperm.xlu0 %2902, %v2900
      %v2904 = vpop.permute.xlu0 %2903
      %v2906 = vmul.f32 %v2897, %v2904
      %v2907 = vmul.f32 %v2898, %v2904
      %v2908 = vadd.f32 %v2889, %v2906
      %v2909 = vadd.f32 %v2890, %v2907
      %s2910 = scalar_lea.vmem %s21, 12
      %v2911 = vld [vmem:[%s2910] sm:$0xf]
      %vm2912 = vcmp.ge.f32.partialorder %v2908, 0.0
      %vm2913 = vcmp.ge.f32.partialorder %v2909, 0.0
      %2915 = vset.pattern.permute.xlu0 0
      %2916 = vperm.xlu0 %2915, %v2911
      %v2917 = vpop.permute.xlu0 %2916
      %v2919 = vmul.f32 %v2908, %v2917
      %v2920 = vmul.f32 %v2909, %v2917
      %v2921 = vsel %vm2912, %v2908, %v2919
      %v2922 = vsel %vm2913, %v2909, %v2920
      %s2923 = scalar_lea.vmem %s20, 48
      %v2924 = vld [vmem:[%s2923] sm:$0xff]
      %v2925 = vld [vmem:[%s2923 + $0x8] sm:$0xf]
      %2926 = vrot.lane.b32.xlu0 %v2745, 34
      %v2927 = vpop.permute.xlu0 %2926
      %2928 = vrot.lane.b32.xlu0 %v2746, 34
      %v2929 = vpop.permute.xlu0 %2928
      %v2930 = vsel %vm1765, %v2927, %v2929
      %v2931 = vsel %vm1765, %v2929, %v2927
      %v2932 = vmul.f32 %v2931, %v1774
      %v2933 = vmul.f32 %v2930, %v1778
      %s2934 = scalar_lea.vmem %s19, 144
      %v2935 = vld [vmem:[%s2934] sm:$0xf]
      %2937 = vset.pattern.permute.xlu0 0
      %2938 = vperm.xlu0 %2937, %v2935
      %v2939 = vpop.permute.xlu0 %2938
      %v2941 = vmul.f32 %v2932, %v2939
      %v2942 = vmul.f32 %v2933, %v2939
      %2943 = vrot.lane.b32.xlu0 %v2745, 32
      %v2944 = vpop.permute.xlu0 %2943
      %2945 = vrot.lane.b32.xlu0 %v2746, 32
      %v2946 = vpop.permute.xlu0 %2945
      %v2947 = vsel %vm1796, %v2944, %v2946
      %v2948 = vsel %vm1796, %v2946, %v2944
      %v2949 = vmul.f32 %v2948, %v1805
      %v2950 = vmul.f32 %v2947, %v1809
      %s2951 = scalar_lea.vmem %s19, 148
      %v2952 = vld [vmem:[%s2951] sm:$0xf]
      %2954 = vset.pattern.permute.xlu0 0
      %2955 = vperm.xlu0 %2954, %v2952
      %v2956 = vpop.permute.xlu0 %2955
      %v2958 = vmul.f32 %v2949, %v2956
      %v2959 = vmul.f32 %v2950, %v2956
      %v2960 = vadd.f32 %v2941, %v2958
      %v2961 = vadd.f32 %v2942, %v2959
      %2962 = vrot.lane.b32.xlu0 %v2745, 30
      %v2963 = vpop.permute.xlu0 %2962
      %2964 = vrot.lane.b32.xlu0 %v2746, 30
      %v2965 = vpop.permute.xlu0 %2964
      %v2966 = vsel %vm1829, %v2963, %v2965
      %v2967 = vsel %vm1829, %v2965, %v2963
      %v2968 = vmul.f32 %v2967, %v1838
      %v2969 = vmul.f32 %v2966, %v1842
      %s2970 = scalar_lea.vmem %s19, 152
      %v2971 = vld [vmem:[%s2970] sm:$0xf]
      %2973 = vset.pattern.permute.xlu0 0
      %2974 = vperm.xlu0 %2973, %v2971
      %v2975 = vpop.permute.xlu0 %2974
      %v2977 = vmul.f32 %v2968, %v2975
      %v2978 = vmul.f32 %v2969, %v2975
      %v2979 = vadd.f32 %v2960, %v2977
      %v2980 = vadd.f32 %v2961, %v2978
      %2981 = vrot.lane.b32.xlu0 %v2745, 2
      %v2982 = vpop.permute.xlu0 %2981
      %2983 = vrot.lane.b32.xlu0 %v2746, 2
      %v2984 = vpop.permute.xlu0 %2983
      %v2985 = vsel %vm1862, %v2982, %v2984
      %v2986 = vsel %vm1862, %v2984, %v2982
      %v2987 = vmul.f32 %v2986, %v1871
      %v2988 = vmul.f32 %v2985, %v1875
      %s2989 = scalar_lea.vmem %s19, 156
      %v2990 = vld [vmem:[%s2989] sm:$0xf]
      %2992 = vset.pattern.permute.xlu0 0
      %2993 = vperm.xlu0 %2992, %v2990
      %v2994 = vpop.permute.xlu0 %2993
      %v2996 = vmul.f32 %v2987, %v2994
      %v2997 = vmul.f32 %v2988, %v2994
      %v2998 = vadd.f32 %v2979, %v2996
      %v2999 = vadd.f32 %v2980, %v2997
      %v3000 = vmul.f32 %v2745, %v1897
      %v3001 = vmul.f32 %v2746, %v1901
      %s3002 = scalar_lea.vmem %s19, 160
      %v3003 = vld [vmem:[%s3002] sm:$0xf]
      %3005 = vset.pattern.permute.xlu0 0
      %3006 = vperm.xlu0 %3005, %v3003
      %v3007 = vpop.permute.xlu0 %3006
      %v3009 = vmul.f32 %v3000, %v3007
      %v3010 = vmul.f32 %v3001, %v3007
      %v3011 = vadd.f32 %v2998, %v3009
      %v3012 = vadd.f32 %v2999, %v3010
      %3013 = vrot.lane.b32.xlu0 %v2745, 126
      %v3014 = vpop.permute.xlu0 %3013
      %3015 = vrot.lane.b32.xlu0 %v2746, 126
      %v3016 = vpop.permute.xlu0 %3015
      %v3017 = vsel %vm1921, %v3014, %v3016
      %v3018 = vsel %vm1921, %v3016, %v3014
      %v3019 = vmul.f32 %v3017, %v1930
      %v3020 = vmul.f32 %v3018, %v1934
      %s3021 = scalar_lea.vmem %s19, 164
      %v3022 = vld [vmem:[%s3021] sm:$0xf]
      %3024 = vset.pattern.permute.xlu0 0
      %3025 = vperm.xlu0 %3024, %v3022
      %v3026 = vpop.permute.xlu0 %3025
      %v3028 = vmul.f32 %v3019, %v3026
      %v3029 = vmul.f32 %v3020, %v3026
      %v3030 = vadd.f32 %v3011, %v3028
      %v3031 = vadd.f32 %v3012, %v3029
      %3032 = vrot.lane.b32.xlu0 %v2745, 98
      %v3033 = vpop.permute.xlu0 %3032
      %3034 = vrot.lane.b32.xlu0 %v2746, 98
      %v3035 = vpop.permute.xlu0 %3034
      %v3036 = vsel %vm1954, %v3033, %v3035
      %v3037 = vsel %vm1954, %v3035, %v3033
      %v3038 = vmul.f32 %v3036, %v1963
      %v3039 = vmul.f32 %v3037, %v1967
      %s3040 = scalar_lea.vmem %s19, 168
      %v3041 = vld [vmem:[%s3040] sm:$0xf]
      %3043 = vset.pattern.permute.xlu0 0
      %3044 = vperm.xlu0 %3043, %v3041
      %v3045 = vpop.permute.xlu0 %3044
      %v3047 = vmul.f32 %v3038, %v3045
      %v3048 = vmul.f32 %v3039, %v3045
      %v3049 = vadd.f32 %v3030, %v3047
      %v3050 = vadd.f32 %v3031, %v3048
      %3051 = vrot.lane.b32.xlu0 %v2745, 96
      %v3052 = vpop.permute.xlu0 %3051
      %3053 = vrot.lane.b32.xlu0 %v2746, 96
      %v3054 = vpop.permute.xlu0 %3053
      %v3055 = vsel %vm1987, %v3052, %v3054
      %v3056 = vsel %vm1987, %v3054, %v3052
      %v3057 = vmul.f32 %v3055, %v1996
      %v3058 = vmul.f32 %v3056, %v2000
      %s3059 = scalar_lea.vmem %s19, 172
      %v3060 = vld [vmem:[%s3059] sm:$0xf]
      %3062 = vset.pattern.permute.xlu0 0
      %3063 = vperm.xlu0 %3062, %v3060
      %v3064 = vpop.permute.xlu0 %3063
      %v3066 = vmul.f32 %v3057, %v3064
      %v3067 = vmul.f32 %v3058, %v3064
      %v3068 = vadd.f32 %v3049, %v3066
      %v3069 = vadd.f32 %v3050, %v3067
      %3070 = vrot.lane.b32.xlu0 %v2745, 94
      %v3071 = vpop.permute.xlu0 %3070
      %3072 = vrot.lane.b32.xlu0 %v2746, 94
      %v3073 = vpop.permute.xlu0 %3072
      %v3074 = vsel %vm2020, %v3071, %v3073
      %v3075 = vsel %vm2020, %v3073, %v3071
      %v3076 = vmul.f32 %v3074, %v2029
      %v3077 = vmul.f32 %v3075, %v2033
      %s3078 = scalar_lea.vmem %s19, 176
      %v3079 = vld [vmem:[%s3078] sm:$0xf]
      %3081 = vset.pattern.permute.xlu0 0
      %3082 = vperm.xlu0 %3081, %v3079
      %v3083 = vpop.permute.xlu0 %3082
      %v3085 = vmul.f32 %v3076, %v3083
      %v3086 = vmul.f32 %v3077, %v3083
      %v3087 = vadd.f32 %v3068, %v3085
      %v3088 = vadd.f32 %v3069, %v3086
      %v3089 = vadd.f32 %v2908, %v3087
      %v3090 = vadd.f32 %v2909, %v3088
      %s3091 = scalar_lea.vmem %s21, 16
      %v3092 = vld [vmem:[%s3091] sm:$0xf]
      %vm3093 = vcmp.ge.f32.partialorder %v3089, 0.0
      %vm3094 = vcmp.ge.f32.partialorder %v3090, 0.0
      %3096 = vset.pattern.permute.xlu0 0
      %3097 = vperm.xlu0 %3096, %v3092
      %v3098 = vpop.permute.xlu0 %3097
      %v3100 = vmul.f32 %v3089, %v3098
      %v3101 = vmul.f32 %v3090, %v3098
      %v3102 = vsel %vm3093, %v3089, %v3100
      %v3103 = vsel %vm3094, %v3090, %v3101
      %s3104 = scalar_lea.vmem %s20, 64
      %v3105 = vld [vmem:[%s3104] sm:$0xff]
      %v3106 = vld [vmem:[%s3104 + $0x8] sm:$0xf]
      %v3108 = vsel %vm2067, %v3105, 0
      %v3111 = vsel %vm2067, %v3106, 0
      %v3114 = vsel %vm1493, %v3102, 0
      %v3117 = vsel %vm1493, %v3103, 0
      %3119 = vmatprep.subr.mxu0 %v3117
      %3120 = vmatpush1.msra.mxu0 %v3114
      %3121 = vmatprep.subr.mxu0 0.0
      %3122 = vmatpush1.msra.mxu0 0.0
      %3123 = vmatprep.subr.mxu0 0.0
      %3124 = vmatpush1.msra.mxu0 0.0
      %3125 = vmatprep.subr.mxu0 0.0
      %3126 = vmatpush1.msra.mxu0 0.0
      %3127 = vmatprep.subr.mxu0 0.0
      %3128 = vmatpush1.msra.mxu0 0.0
      %3129 = vmatprep.subr.mxu0 0.0
      %3130 = vmatpush1.msra.mxu0 0.0
      %3131 = vmatprep.subr.mxu0 0.0
      %3132 = vmatpush1.msra.mxu0 0.0
      %3133 = vmatprep.subr.mxu0 0.0
      %3134 = vmatpush1.msra.mxu0 0.0
      %3135 = vmatprep.subr.mxu0 0.0
      %3136 = vmatpush1.msra.mxu0 0.0
      %3137 = vmatprep.subr.mxu0 0.0
      %3138 = vmatpush1.msra.mxu0 0.0
      %3139 = vmatprep.subr.mxu0 0.0
      %3140 = vmatpush1.msra.mxu0 0.0
      %3141 = vmatprep.subr.mxu0 0.0
      %3142 = vmatpush1.msra.mxu0 0.0
      %3143 = vmatprep.subr.mxu0 0.0
      %3144 = vmatpush1.msra.mxu0 0.0
      %3145 = vmatprep.subr.mxu0 0.0
      %3146 = vmatpush1.msra.mxu0 0.0
      %3147 = vmatprep.subr.mxu0 0.0
      %3148 = vmatpush1.msra.mxu0 0.0
      %3149 = vmatprep.subr.mxu0 0.0
      %3150 = vmatpush1.msra.mxu0 0.0
      %3151 = vmatprep.subr.mxu0 0.0
      %3152 = vmatpush1.msra.mxu0 0.0
      %3153 = vmatprep.subr.mxu0 0.0
      %3154 = vmatpush1.msra.mxu0 0.0
      %3155 = vmatprep.subr.mxu0 0.0
      %3156 = vmatpush1.msra.mxu0 0.0
      %3157 = vmatprep.subr.mxu0 0.0
      %3158 = vmatpush1.msra.mxu0 0.0
      %3159 = vmatprep.subr.mxu0 0.0
      %3160 = vmatpush1.msra.mxu0 0.0
      %3161 = vmatprep.subr.mxu0 0.0
      %3162 = vmatpush1.msra.mxu0 0.0
      %3163 = vmatprep.subr.mxu0 0.0
      %3164 = vmatpush1.msra.mxu0 0.0
      %3165 = vmatprep.subr.mxu0 0.0
      %3166 = vmatpush1.msra.mxu0 0.0
      %3167 = vmatprep.subr.mxu0 0.0
      %3168 = vmatpush1.msra.mxu0 0.0
      %3169 = vmatprep.subr.mxu0 0.0
      %3170 = vmatpush1.msra.mxu0 0.0
      %3171 = vmatprep.subr.mxu0 0.0
      %3172 = vmatpush1.msra.mxu0 0.0
      %3173 = vmatprep.subr.mxu0 0.0
      %3174 = vmatpush1.msra.mxu0 0.0
      %3175 = vmatprep.subr.mxu0 0.0
      %3176 = vmatpush1.msra.mxu0 0.0
      %3177 = vmatprep.subr.mxu0 0.0
      %3178 = vmatpush1.msra.mxu0 0.0
      %3179 = vmatprep.subr.mxu0 0.0
      %3180 = vmatpush1.msra.mxu0 0.0
      %3181 = vmatprep.subr.mxu0 0.0
      %3182 = vmatpush1.msra.mxu0 0.0
      %3183 = vmatprep.mubr.f32.mxu0 0.0
      %3184 = vmatmul.mubr.f32.gmra.mrb[0].mxu0 %v3108
      %v3185 = vpop.f32.mrb[0].mxu0
      %v3186 = vadd.f32 0.0, %v3185
      %v3187 = vpop.f32.mrb[0].mxu0
      %v3188 = vadd.f32 0.0, %v3187
      %3189 = vmatprep.mubr.f32.mxu0 0.0
      %3190 = vmatmul.mubr.f32.gmra.mrb[0].mxu0 %v3111
      %v3191 = vpop.f32.mrb[0].mxu0
      %v3192 = vadd.f32 0.0, %v3191
      %v3193 = vpop.f32.mrb[0].mxu0
      %v3194 = vadd.f32 0.0, %v3193
      %3195 = vdwg.mxu0
      %v3197 = vsel %vm2067, %v2924, 0
      %v3200 = vsel %vm2067, %v2925, 0
      %v3203 = vsel %vm1493, %v2921, 0
      %v3206 = vsel %vm1493, %v2922, 0
      %3208 = vmatprep.subr.mxu0 %v3206
      %3209 = vmatpush1.msra.mxu0 %v3203
      %3210 = vmatprep.subr.mxu0 0.0
      %3211 = vmatpush1.msra.mxu0 0.0
      %3212 = vmatprep.subr.mxu0 0.0
      %3213 = vmatpush1.msra.mxu0 0.0
      %3214 = vmatprep.subr.mxu0 0.0
      %3215 = vmatpush1.msra.mxu0 0.0
      %3216 = vmatprep.subr.mxu0 0.0
      %3217 = vmatpush1.msra.mxu0 0.0
      %3218 = vmatprep.subr.mxu0 0.0
      %3219 = vmatpush1.msra.mxu0 0.0
      %3220 = vmatprep.subr.mxu0 0.0
      %3221 = vmatpush1.msra.mxu0 0.0
      %3222 = vmatprep.subr.mxu0 0.0
      %3223 = vmatpush1.msra.mxu0 0.0
      %3224 = vmatprep.subr.mxu0 0.0
      %3225 = vmatpush1.msra.mxu0 0.0
      %3226 = vmatprep.subr.mxu0 0.0
      %3227 = vmatpush1.msra.mxu0 0.0
      %3228 = vmatprep.subr.mxu0 0.0
      %3229 = vmatpush1.msra.mxu0 0.0
      %3230 = vmatprep.subr.mxu0 0.0
      %3231 = vmatpush1.msra.mxu0 0.0
      %3232 = vmatprep.subr.mxu0 0.0
      %3233 = vmatpush1.msra.mxu0 0.0
      %3234 = vmatprep.subr.mxu0 0.0
      %3235 = vmatpush1.msra.mxu0 0.0
      %3236 = vmatprep.subr.mxu0 0.0
      %3237 = vmatpush1.msra.mxu0 0.0
      %3238 = vmatprep.subr.mxu0 0.0
      %3239 = vmatpush1.msra.mxu0 0.0
      %3240 = vmatprep.subr.mxu0 0.0
      %3241 = vmatpush1.msra.mxu0 0.0
      %3242 = vmatprep.subr.mxu0 0.0
      %3243 = vmatpush1.msra.mxu0 0.0
      %3244 = vmatprep.subr.mxu0 0.0
      %3245 = vmatpush1.msra.mxu0 0.0
      %3246 = vmatprep.subr.mxu0 0.0
      %3247 = vmatpush1.msra.mxu0 0.0
      %3248 = vmatprep.subr.mxu0 0.0
      %3249 = vmatpush1.msra.mxu0 0.0
      %3250 = vmatprep.subr.mxu0 0.0
      %3251 = vmatpush1.msra.mxu0 0.0
      %3252 = vmatprep.subr.mxu0 0.0
      %3253 = vmatpush1.msra.mxu0 0.0
      %3254 = vmatprep.subr.mxu0 0.0
      %3255 = vmatpush1.msra.mxu0 0.0
      %3256 = vmatprep.subr.mxu0 0.0
      %3257 = vmatpush1.msra.mxu0 0.0
      %3258 = vmatprep.subr.mxu0 0.0
      %3259 = vmatpush1.msra.mxu0 0.0
      %3260 = vmatprep.subr.mxu0 0.0
      %3261 = vmatpush1.msra.mxu0 0.0
      %3262 = vmatprep.subr.mxu0 0.0
      %3263 = vmatpush1.msra.mxu0 0.0
      %3264 = vmatprep.subr.mxu0 0.0
      %3265 = vmatpush1.msra.mxu0 0.0
      %3266 = vmatprep.subr.mxu0 0.0
      %3267 = vmatpush1.msra.mxu0 0.0
      %3268 = vmatprep.subr.mxu0 0.0
      %3269 = vmatpush1.msra.mxu0 0.0
      %3270 = vmatprep.subr.mxu0 0.0
      %3271 = vmatpush1.msra.mxu0 0.0
      %3272 = vmatprep.mubr.f32.mxu0 0.0
      %3273 = vmatmul.mubr.f32.gmra.mrb[0].mxu0 %v3197
      %v3274 = vpop.f32.mrb[0].mxu0
      %v3275 = vadd.f32 %v3186, %v3274
      %v3276 = vpop.f32.mrb[0].mxu0
      %v3277 = vadd.f32 %v3188, %v3276
      %3278 = vmatprep.mubr.f32.mxu0 0.0
      %3279 = vmatmul.mubr.f32.gmra.mrb[0].mxu0 %v3200
      %v3280 = vpop.f32.mrb[0].mxu0
      %v3281 = vadd.f32 %v3192, %v3280
      %v3282 = vpop.f32.mrb[0].mxu0
      %v3283 = vadd.f32 %v3194, %v3282
      %3284 = vdwg.mxu0
      %3285 = vrot.lane.b32.xlu0 %v2745, 68
      %v3286 = vpop.permute.xlu0 %3285
      %3287 = vrot.lane.b32.xlu0 %v2746, 68
      %v3288 = vpop.permute.xlu0 %3287
      %v3289 = vsel %vm2250, %v3286, %v3288
      %v3290 = vsel %vm2250, %v3288, %v3286
      %v3291 = vmul.f32 %v3290, %v2259
      %v3292 = vmul.f32 %v3289, %v2263
      %s3293 = scalar_lea.vmem %s19, 180
      %v3294 = vld [vmem:[%s3293] sm:$0xf]
      %3296 = vset.pattern.permute.xlu0 0
      %3297 = vperm.xlu0 %3296, %v3294
      %v3298 = vpop.permute.xlu0 %3297
      %v3300 = vmul.f32 %v3291, %v3298
      %v3301 = vmul.f32 %v3292, %v3298
      %3302 = vrot.lane.b32.xlu0 %v2745, 64
      %v3303 = vpop.permute.xlu0 %3302
      %3304 = vrot.lane.b32.xlu0 %v2746, 64
      %v3305 = vpop.permute.xlu0 %3304
      %v3306 = vsel %vm2281, %v3303, %v3305
      %v3307 = vsel %vm2281, %v3305, %v3303
      %v3308 = vmul.f32 %v3307, %v2290
      %v3309 = vmul.f32 %v3306, %v2294
      %s3310 = scalar_lea.vmem %s19, 184
      %v3311 = vld [vmem:[%s3310] sm:$0xf]
      %3313 = vset.pattern.permute.xlu0 0
      %3314 = vperm.xlu0 %3313, %v3311
      %v3315 = vpop.permute.xlu0 %3314
      %v3317 = vmul.f32 %v3308, %v3315
      %v3318 = vmul.f32 %v3309, %v3315
      %v3319 = vadd.f32 %v3300, %v3317
      %v3320 = vadd.f32 %v3301, %v3318
      %3321 = vrot.lane.b32.xlu0 %v2745, 60
      %v3322 = vpop.permute.xlu0 %3321
      %3323 = vrot.lane.b32.xlu0 %v2746, 60
      %v3324 = vpop.permute.xlu0 %3323
      %v3325 = vsel %vm2314, %v3322, %v3324
      %v3326 = vsel %vm2314, %v3324, %v3322
      %v3327 = vmul.f32 %v3326, %v2323
      %v3328 = vmul.f32 %v3325, %v2327
      %s3329 = scalar_lea.vmem %s19, 188
      %v3330 = vld [vmem:[%s3329] sm:$0xf]
      %3332 = vset.pattern.permute.xlu0 0
      %3333 = vperm.xlu0 %3332, %v3330
      %v3334 = vpop.permute.xlu0 %3333
      %v3336 = vmul.f32 %v3327, %v3334
      %v3337 = vmul.f32 %v3328, %v3334
      %v3338 = vadd.f32 %v3319, %v3336
      %v3339 = vadd.f32 %v3320, %v3337
      %3340 = vrot.lane.b32.xlu0 %v2745, 4
      %v3341 = vpop.permute.xlu0 %3340
      %3342 = vrot.lane.b32.xlu0 %v2746, 4
      %v3343 = vpop.permute.xlu0 %3342
      %v3344 = vsel %vm2347, %v3341, %v3343
      %v3345 = vsel %vm2347, %v3343, %v3341
      %v3346 = vmul.f32 %v3345, %v2356
      %v3347 = vmul.f32 %v3344, %v2360
      %s3348 = scalar_lea.vmem %s19, 192
      %v3349 = vld [vmem:[%s3348] sm:$0xf]
      %3351 = vset.pattern.permute.xlu0 0
      %3352 = vperm.xlu0 %3351, %v3349
      %v3353 = vpop.permute.xlu0 %3352
      %v3355 = vmul.f32 %v3346, %v3353
      %v3356 = vmul.f32 %v3347, %v3353
      %v3357 = vadd.f32 %v3338, %v3355
      %v3358 = vadd.f32 %v3339, %v3356
      %v3359 = vmul.f32 %v2745, %v2382
      %v3360 = vmul.f32 %v2746, %v2386
      %s3361 = scalar_lea.vmem %s19, 196
      %v3362 = vld [vmem:[%s3361] sm:$0xf]
      %3364 = vset.pattern.permute.xlu0 0
      %3365 = vperm.xlu0 %3364, %v3362
      %v3366 = vpop.permute.xlu0 %3365
      %v3368 = vmul.f32 %v3359, %v3366
      %v3369 = vmul.f32 %v3360, %v3366
      %v3370 = vadd.f32 %v3357, %v3368
      %v3371 = vadd.f32 %v3358, %v3369
      %3372 = vrot.lane.b32.xlu0 %v2745, 124
      %v3373 = vpop.permute.xlu0 %3372
      %3374 = vrot.lane.b32.xlu0 %v2746, 124
      %v3375 = vpop.permute.xlu0 %3374
      %v3376 = vsel %vm2406, %v3373, %v3375
      %v3377 = vsel %vm2406, %v3375, %v3373
      %v3378 = vmul.f32 %v3376, %v2415
      %v3379 = vmul.f32 %v3377, %v2419
      %s3380 = scalar_lea.vmem %s19, 200
      %v3381 = vld [vmem:[%s3380] sm:$0xf]
      %3383 = vset.pattern.permute.xlu0 0
      %3384 = vperm.xlu0 %3383, %v3381
      %v3385 = vpop.permute.xlu0 %3384
      %v3387 = vmul.f32 %v3378, %v3385
      %v3388 = vmul.f32 %v3379, %v3385
      %v3389 = vadd.f32 %v3370, %v3387
      %v3390 = vadd.f32 %v3371, %v3388
      %v3391 = vmul.f32 %v3289, %v2441
      %v3392 = vmul.f32 %v3290, %v2445
      %s3393 = scalar_lea.vmem %s19, 204
      %v3394 = vld [vmem:[%s3393] sm:$0xf]
      %3396 = vset.pattern.permute.xlu0 0
      %3397 = vperm.xlu0 %3396, %v3394
      %v3398 = vpop.permute.xlu0 %3397
      %v3400 = vmul.f32 %v3391, %v3398
      %v3401 = vmul.f32 %v3392, %v3398
      %v3402 = vadd.f32 %v3389, %v3400
      %v3403 = vadd.f32 %v3390, %v3401
      %v3404 = vmul.f32 %v3306, %v2467
      %v3405 = vmul.f32 %v3307, %v2471
      %s3406 = scalar_lea.vmem %s19, 208
      %v3407 = vld [vmem:[%s3406] sm:$0xf]
      %3409 = vset.pattern.permute.xlu0 0
      %3410 = vperm.xlu0 %3409, %v3407
      %v3411 = vpop.permute.xlu0 %3410
      %v3413 = vmul.f32 %v3404, %v3411
      %v3414 = vmul.f32 %v3405, %v3411
      %v3415 = vadd.f32 %v3402, %v3413
      %v3416 = vadd.f32 %v3403, %v3414
      %v3417 = vmul.f32 %v3325, %v2493
      %v3418 = vmul.f32 %v3326, %v2497
      %s3419 = scalar_lea.vmem %s19, 212
      %v3420 = vld [vmem:[%s3419] sm:$0xf]
      %3422 = vset.pattern.permute.xlu0 0
      %3423 = vperm.xlu0 %3422, %v3420
      %v3424 = vpop.permute.xlu0 %3423
      %v3426 = vmul.f32 %v3417, %v3424
      %v3427 = vmul.f32 %v3418, %v3424
      %v3428 = vadd.f32 %v3415, %v3426
      %v3429 = vadd.f32 %v3416, %v3427
      %v3430 = vadd.f32 %v3089, %v3428
      %v3431 = vadd.f32 %v3090, %v3429
      %s3432 = scalar_lea.vmem %s21, 20
      %v3433 = vld [vmem:[%s3432] sm:$0xf]
      %vm3434 = vcmp.ge.f32.partialorder %v3430, 0.0
      %vm3435 = vcmp.ge.f32.partialorder %v3431, 0.0
      %3437 = vset.pattern.permute.xlu0 0
      %3438 = vperm.xlu0 %3437, %v3433
      %v3439 = vpop.permute.xlu0 %3438
      %v3441 = vmul.f32 %v3430, %v3439
      %v3442 = vmul.f32 %v3431, %v3439
      %v3443 = vsel %vm3434, %v3430, %v3441
      %v3444 = vsel %vm3435, %v3431, %v3442
      %s3445 = scalar_lea.vmem %s20, 80
      %v3446 = vld [vmem:[%s3445] sm:$0xff]
      %v3447 = vld [vmem:[%s3445 + $0x8] sm:$0xf]
      %v3449 = vsel %vm2067, %v3446, 0
      %v3452 = vsel %vm2067, %v3447, 0
      %v3455 = vsel %vm1493, %v3443, 0
      %v3458 = vsel %vm1493, %v3444, 0
      %3460 = vmatprep.subr.mxu0 %v3458
      %3461 = vmatpush1.msra.mxu0 %v3455
      %3462 = vmatprep.subr.mxu0 0.0
      %3463 = vmatpush1.msra.mxu0 0.0
      %3464 = vmatprep.subr.mxu0 0.0
      %3465 = vmatpush1.msra.mxu0 0.0
      %3466 = vmatprep.subr.mxu0 0.0
      %3467 = vmatpush1.msra.mxu0 0.0
      %3468 = vmatprep.subr.mxu0 0.0
      %3469 = vmatpush1.msra.mxu0 0.0
      %3470 = vmatprep.subr.mxu0 0.0
      %3471 = vmatpush1.msra.mxu0 0.0
      %3472 = vmatprep.subr.mxu0 0.0
      %3473 = vmatpush1.msra.mxu0 0.0
      %3474 = vmatprep.subr.mxu0 0.0
      %3475 = vmatpush1.msra.mxu0 0.0
      %3476 = vmatprep.subr.mxu0 0.0
      %3477 = vmatpush1.msra.mxu0 0.0
      %3478 = vmatprep.subr.mxu0 0.0
      %3479 = vmatpush1.msra.mxu0 0.0
      %3480 = vmatprep.subr.mxu0 0.0
      %3481 = vmatpush1.msra.mxu0 0.0
      %3482 = vmatprep.subr.mxu0 0.0
      %3483 = vmatpush1.msra.mxu0 0.0
      %3484 = vmatprep.subr.mxu0 0.0
      %3485 = vmatpush1.msra.mxu0 0.0
      %3486 = vmatprep.subr.mxu0 0.0
      %3487 = vmatpush1.msra.mxu0 0.0
      %3488 = vmatprep.subr.mxu0 0.0
      %3489 = vmatpush1.msra.mxu0 0.0
      %3490 = vmatprep.subr.mxu0 0.0
      %3491 = vmatpush1.msra.mxu0 0.0
      %3492 = vmatprep.subr.mxu0 0.0
      %3493 = vmatpush1.msra.mxu0 0.0
      %3494 = vmatprep.subr.mxu0 0.0
      %3495 = vmatpush1.msra.mxu0 0.0
      %3496 = vmatprep.subr.mxu0 0.0
      %3497 = vmatpush1.msra.mxu0 0.0
      %3498 = vmatprep.subr.mxu0 0.0
      %3499 = vmatpush1.msra.mxu0 0.0
      %3500 = vmatprep.subr.mxu0 0.0
      %3501 = vmatpush1.msra.mxu0 0.0
      %3502 = vmatprep.subr.mxu0 0.0
      %3503 = vmatpush1.msra.mxu0 0.0
      %3504 = vmatprep.subr.mxu0 0.0
      %3505 = vmatpush1.msra.mxu0 0.0
      %3506 = vmatprep.subr.mxu0 0.0
      %3507 = vmatpush1.msra.mxu0 0.0
      %3508 = vmatprep.subr.mxu0 0.0
      %3509 = vmatpush1.msra.mxu0 0.0
      %3510 = vmatprep.subr.mxu0 0.0
      %3511 = vmatpush1.msra.mxu0 0.0
      %3512 = vmatprep.subr.mxu0 0.0
      %3513 = vmatpush1.msra.mxu0 0.0
      %3514 = vmatprep.subr.mxu0 0.0
      %3515 = vmatpush1.msra.mxu0 0.0
      %3516 = vmatprep.subr.mxu0 0.0
      %3517 = vmatpush1.msra.mxu0 0.0
      %3518 = vmatprep.subr.mxu0 0.0
      %3519 = vmatpush1.msra.mxu0 0.0
      %3520 = vmatprep.subr.mxu0 0.0
      %3521 = vmatpush1.msra.mxu0 0.0
      %3522 = vmatprep.subr.mxu0 0.0
      %3523 = vmatpush1.msra.mxu0 0.0
      %3524 = vmatprep.mubr.f32.mxu0 0.0
      %3525 = vmatmul.mubr.f32.gmra.mrb[0].mxu0 %v3449
      %v3526 = vpop.f32.mrb[0].mxu0
      %v3527 = vadd.f32 0.0, %v3526
      %v3528 = vpop.f32.mrb[0].mxu0
      %v3529 = vadd.f32 0.0, %v3528
      %3530 = vmatprep.mubr.f32.mxu0 0.0
      %3531 = vmatmul.mubr.f32.gmra.mrb[0].mxu0 %v3452
      %v3532 = vpop.f32.mrb[0].mxu0
      %v3533 = vadd.f32 0.0, %v3532
      %v3534 = vpop.f32.mrb[0].mxu0
      %v3535 = vadd.f32 0.0, %v3534
      %3536 = vdwg.mxu0
      %v3537 = vadd.f32 %v3275, %v3527
      %v3538 = vadd.f32 %v3277, %v3529
      %v3539 = vadd.f32 %v3281, %v3533
      %v3540 = vadd.f32 %v3283, %v3535
      %v3541 = vadd.f32 %v3537, %v2648
      %v3542 = vadd.f32 %v3538, %v2649
      %v3543 = vadd.f32 %v3539, %v2650
      %v3544 = vadd.f32 %v3540, %v2651
      %s3545 = scalar_lea.vmem %s22, 16
      %v3546 = vld [vmem:[%s3545] sm:$0xff]
      %v3547 = vld [vmem:[%s3545 + $0x8] sm:$0xf]
      %vm3548 = vcmp.ge.f32.partialorder %v3541, 0.0
      %vm3549 = vcmp.ge.f32.partialorder %v3542, 0.0
      %vm3550 = vcmp.ge.f32.partialorder %v3543, 0.0
      %vm3551 = vcmp.ge.f32.partialorder %v3544, 0.0
      %3553 = vset.pattern.permute.xlu0 0
      %3554 = vperm.xlu0 %3553, %v3546
      %v3555 = vpop.permute.xlu0 %3554
      %3558 = vset.pattern.permute.xlu0 0
      %3559 = vperm.xlu0 %3558, %v3547
      %v3560 = vpop.permute.xlu0 %3559
      %v3562 = vmul.f32 %v3541, %v3555
      %v3563 = vmul.f32 %v3542, %v3555
      %v3564 = vmul.f32 %v3543, %v3560
      %v3565 = vmul.f32 %v3544, %v3560
      %v3566 = vsel %vm3548, %v3541, %v3562
      %v3567 = vsel %vm3549, %v3542, %v3563
      %v3568 = vsel %vm3550, %v3543, %v3564
      %v3569 = vsel %vm3551, %v3544, %v3565
      %s3570 = scalar_lea.vmem %s17, 8
      %v3571 = vld [vmem:[%s3570] sm:$0xf]
      %v3573 = vsel %vm1489, %v3571, 0
      %v3576 = vsel %vm1493, %v3568, 0
      %v3579 = vsel %vm1493, %v3569, 0
      %3581 = vmatprep.subr.mxu0 %v3567
      %3582 = vmatpush1.msra.mxu0 %v3566
      %3583 = vmatprep.subr.mxu0 %v3579
      %3584 = vmatpush1.msra.mxu0 %v3576
      %3585 = vmatprep.subr.mxu0 0.0
      %3586 = vmatpush1.msra.mxu0 0.0
      %3587 = vmatprep.subr.mxu0 0.0
      %3588 = vmatpush1.msra.mxu0 0.0
      %3589 = vmatprep.subr.mxu0 0.0
      %3590 = vmatpush1.msra.mxu0 0.0
      %3591 = vmatprep.subr.mxu0 0.0
      %3592 = vmatpush1.msra.mxu0 0.0
      %3593 = vmatprep.subr.mxu0 0.0
      %3594 = vmatpush1.msra.mxu0 0.0
      %3595 = vmatprep.subr.mxu0 0.0
      %3596 = vmatpush1.msra.mxu0 0.0
      %3597 = vmatprep.subr.mxu0 0.0
      %3598 = vmatpush1.msra.mxu0 0.0
      %3599 = vmatprep.subr.mxu0 0.0
      %3600 = vmatpush1.msra.mxu0 0.0
      %3601 = vmatprep.subr.mxu0 0.0
      %3602 = vmatpush1.msra.mxu0 0.0
      %3603 = vmatprep.subr.mxu0 0.0
      %3604 = vmatpush1.msra.mxu0 0.0
      %3605 = vmatprep.subr.mxu0 0.0
      %3606 = vmatpush1.msra.mxu0 0.0
      %3607 = vmatprep.subr.mxu0 0.0
      %3608 = vmatpush1.msra.mxu0 0.0
      %3609 = vmatprep.subr.mxu0 0.0
      %3610 = vmatpush1.msra.mxu0 0.0
      %3611 = vmatprep.subr.mxu0 0.0
      %3612 = vmatpush1.msra.mxu0 0.0
      %3613 = vmatprep.subr.mxu0 0.0
      %3614 = vmatpush1.msra.mxu0 0.0
      %3615 = vmatprep.subr.mxu0 0.0
      %3616 = vmatpush1.msra.mxu0 0.0
      %3617 = vmatprep.subr.mxu0 0.0
      %3618 = vmatpush1.msra.mxu0 0.0
      %3619 = vmatprep.subr.mxu0 0.0
      %3620 = vmatpush1.msra.mxu0 0.0
      %3621 = vmatprep.subr.mxu0 0.0
      %3622 = vmatpush1.msra.mxu0 0.0
      %3623 = vmatprep.subr.mxu0 0.0
      %3624 = vmatpush1.msra.mxu0 0.0
      %3625 = vmatprep.subr.mxu0 0.0
      %3626 = vmatpush1.msra.mxu0 0.0
      %3627 = vmatprep.subr.mxu0 0.0
      %3628 = vmatpush1.msra.mxu0 0.0
      %3629 = vmatprep.subr.mxu0 0.0
      %3630 = vmatpush1.msra.mxu0 0.0
      %3631 = vmatprep.subr.mxu0 0.0
      %3632 = vmatpush1.msra.mxu0 0.0
      %3633 = vmatprep.subr.mxu0 0.0
      %3634 = vmatpush1.msra.mxu0 0.0
      %3635 = vmatprep.subr.mxu0 0.0
      %3636 = vmatpush1.msra.mxu0 0.0
      %3637 = vmatprep.subr.mxu0 0.0
      %3638 = vmatpush1.msra.mxu0 0.0
      %3639 = vmatprep.subr.mxu0 0.0
      %3640 = vmatpush1.msra.mxu0 0.0
      %3641 = vmatprep.subr.mxu0 0.0
      %3642 = vmatpush1.msra.mxu0 0.0
      %3643 = vmatprep.subr.mxu0 0.0
      %3644 = vmatpush1.msra.mxu0 0.0
      %3645 = vmatprep.mubr.f32.mxu0 0.0
      %3646 = vmatmul.mubr.f32.gmra.mrb[0].mxu0 %v3573
      %v3647 = vpop.f32.mrb[0].mxu0
      %v3648 = vadd.f32 0.0, %v3647
      %v3649 = vpop.f32.mrb[0].mxu0
      %v3650 = vadd.f32 0.0, %v3649
      %3651 = vdwg.mxu0
      %s3652 = scalar_lea.vmem %s18, 8
      %v3653 = vld [vmem:[%s3652] sm:$0xf]
      %vm3654 = vcmp.ge.f32.partialorder %v3648, 0.0
      %vm3655 = vcmp.ge.f32.partialorder %v3650, 0.0
      %3657 = vset.pattern.permute.xlu0 0
      %3658 = vperm.xlu0 %3657, %v3653
      %v3659 = vpop.permute.xlu0 %3658
      %v3661 = vmul.f32 %v3648, %v3659
      %v3662 = vmul.f32 %v3650, %v3659
      %v3663 = vsel %vm3654, %v3648, %v3661
      %v3664 = vsel %vm3655, %v3650, %v3662
      %3665 = vrot.lane.b32.xlu0 %v3663, 17
      %v3666 = vpop.permute.xlu0 %3665
      %3667 = vrot.lane.b32.xlu0 %v3664, 17
      %v3668 = vpop.permute.xlu0 %3667
      %v3669 = vsel %vm994, %v3666, %v3668
      %v3670 = vsel %vm994, %v3668, %v3666
      %v3671 = vmul.f32 %v3670, %v1002
      %v3672 = vmul.f32 %v3669, %v1006
      %s3673 = scalar_lea.vmem %s19, 216
      %v3674 = vld [vmem:[%s3673] sm:$0xf]
      %3676 = vset.pattern.permute.xlu0 0
      %3677 = vperm.xlu0 %3676, %v3674
      %v3678 = vpop.permute.xlu0 %3677
      %v3680 = vmul.f32 %v3671, %v3678
      %v3681 = vmul.f32 %v3672, %v3678
      %3682 = vrot.lane.b32.xlu0 %v3663, 16
      %v3683 = vpop.permute.xlu0 %3682
      %3684 = vrot.lane.b32.xlu0 %v3664, 16
      %v3685 = vpop.permute.xlu0 %3684
      %v3686 = vsel %vm1023, %v3683, %v3685
      %v3687 = vsel %vm1023, %v3685, %v3683
      %v3688 = vmul.f32 %v3687, %v1032
      %v3689 = vmul.f32 %v3686, %v1036
      %s3690 = scalar_lea.vmem %s19, 220
      %v3691 = vld [vmem:[%s3690] sm:$0xf]
      %3693 = vset.pattern.permute.xlu0 0
      %3694 = vperm.xlu0 %3693, %v3691
      %v3695 = vpop.permute.xlu0 %3694
      %v3697 = vmul.f32 %v3688, %v3695
      %v3698 = vmul.f32 %v3689, %v3695
      %v3699 = vadd.f32 %v3680, %v3697
      %v3700 = vadd.f32 %v3681, %v3698
      %3701 = vrot.lane.b32.xlu0 %v3663, 15
      %v3702 = vpop.permute.xlu0 %3701
      %3703 = vrot.lane.b32.xlu0 %v3664, 15
      %v3704 = vpop.permute.xlu0 %3703
      %v3705 = vsel %vm1056, %v3702, %v3704
      %v3706 = vsel %vm1056, %v3704, %v3702
      %v3707 = vmul.f32 %v3706, %v1065
      %v3708 = vmul.f32 %v3705, %v1069
      %s3709 = scalar_lea.vmem %s19, 224
      %v3710 = vld [vmem:[%s3709] sm:$0xf]
      %3712 = vset.pattern.permute.xlu0 0
      %3713 = vperm.xlu0 %3712, %v3710
      %v3714 = vpop.permute.xlu0 %3713
      %v3716 = vmul.f32 %v3707, %v3714
      %v3717 = vmul.f32 %v3708, %v3714
      %v3718 = vadd.f32 %v3699, %v3716
      %v3719 = vadd.f32 %v3700, %v3717
      %3720 = vrot.lane.b32.xlu0 %v3663, 1
      %v3721 = vpop.permute.xlu0 %3720
      %3722 = vrot.lane.b32.xlu0 %v3664, 1
      %v3723 = vpop.permute.xlu0 %3722
      %v3724 = vsel %vm1089, %v3721, %v3723
      %v3725 = vsel %vm1089, %v3723, %v3721
      %v3726 = vmul.f32 %v3725, %v1098
      %v3727 = vmul.f32 %v3724, %v1102
      %s3728 = scalar_lea.vmem %s19, 228
      %v3729 = vld [vmem:[%s3728] sm:$0xf]
      %3731 = vset.pattern.permute.xlu0 0
      %3732 = vperm.xlu0 %3731, %v3729
      %v3733 = vpop.permute.xlu0 %3732
      %v3735 = vmul.f32 %v3726, %v3733
      %v3736 = vmul.f32 %v3727, %v3733
      %v3737 = vadd.f32 %v3718, %v3735
      %v3738 = vadd.f32 %v3719, %v3736
      %v3739 = vmul.f32 %v3663, %v1124
      %v3740 = vmul.f32 %v3664, %v1128
      %s3741 = scalar_lea.vmem %s19, 232
      %v3742 = vld [vmem:[%s3741] sm:$0xf]
      %3744 = vset.pattern.permute.xlu0 0
      %3745 = vperm.xlu0 %3744, %v3742
      %v3746 = vpop.permute.xlu0 %3745
      %v3748 = vmul.f32 %v3739, %v3746
      %v3749 = vmul.f32 %v3740, %v3746
      %v3750 = vadd.f32 %v3737, %v3748
      %v3751 = vadd.f32 %v3738, %v3749
      %3752 = vrot.lane.b32.xlu0 %v3663, 127
      %v3753 = vpop.permute.xlu0 %3752
      %3754 = vrot.lane.b32.xlu0 %v3664, 127
      %v3755 = vpop.permute.xlu0 %3754
      %v3756 = vsel %vm1171, %v3753, %v3755
      %v3757 = vsel %vm1171, %v3755, %v3753
      %v3758 = vmul.f32 %v3756, %v1180
      %v3759 = vmul.f32 %v3757, %v1184
      %s3760 = scalar_lea.vmem %s19, 236
      %v3761 = vld [vmem:[%s3760] sm:$0xf]
      %3763 = vset.pattern.permute.xlu0 0
      %3764 = vperm.xlu0 %3763, %v3761
      %v3765 = vpop.permute.xlu0 %3764
      %v3767 = vmul.f32 %v3758, %v3765
      %v3768 = vmul.f32 %v3759, %v3765
      %v3769 = vadd.f32 %v3750, %v3767
      %v3770 = vadd.f32 %v3751, %v3768
      %3771 = vrot.lane.b32.xlu0 %v3663, 113
      %v3772 = vpop.permute.xlu0 %3771
      %3773 = vrot.lane.b32.xlu0 %v3664, 113
      %v3774 = vpop.permute.xlu0 %3773
      %v3775 = vsel %vm1204, %v3772, %v3774
      %v3776 = vsel %vm1204, %v3774, %v3772
      %v3777 = vmul.f32 %v3775, %v1213
      %v3778 = vmul.f32 %v3776, %v1217
      %s3779 = scalar_lea.vmem %s19, 240
      %v3780 = vld [vmem:[%s3779] sm:$0xf]
      %3782 = vset.pattern.permute.xlu0 0
      %3783 = vperm.xlu0 %3782, %v3780
      %v3784 = vpop.permute.xlu0 %3783
      %v3786 = vmul.f32 %v3777, %v3784
      %v3787 = vmul.f32 %v3778, %v3784
      %v3788 = vadd.f32 %v3769, %v3786
      %v3789 = vadd.f32 %v3770, %v3787
      %3790 = vrot.lane.b32.xlu0 %v3663, 112
      %v3791 = vpop.permute.xlu0 %3790
      %3792 = vrot.lane.b32.xlu0 %v3664, 112
      %v3793 = vpop.permute.xlu0 %3792
      %v3794 = vsel %vm1237, %v3791, %v3793
      %v3795 = vsel %vm1237, %v3793, %v3791
      %v3796 = vmul.f32 %v3794, %v1246
      %v3797 = vmul.f32 %v3795, %v1250
      %s3798 = scalar_lea.vmem %s19, 244
      %v3799 = vld [vmem:[%s3798] sm:$0xf]
      %3801 = vset.pattern.permute.xlu0 0
      %3802 = vperm.xlu0 %3801, %v3799
      %v3803 = vpop.permute.xlu0 %3802
      %v3805 = vmul.f32 %v3796, %v3803
      %v3806 = vmul.f32 %v3797, %v3803
      %v3807 = vadd.f32 %v3788, %v3805
      %v3808 = vadd.f32 %v3789, %v3806
      %3809 = vrot.lane.b32.xlu0 %v3663, 111
      %v3810 = vpop.permute.xlu0 %3809
      %3811 = vrot.lane.b32.xlu0 %v3664, 111
      %v3812 = vpop.permute.xlu0 %3811
      %v3813 = vsel %vm1270, %v3810, %v3812
      %v3814 = vsel %vm1270, %v3812, %v3810
      %v3815 = vmul.f32 %v3813, %v1279
      %v3816 = vmul.f32 %v3814, %v1283
      %s3817 = scalar_lea.vmem %s19, 248
      %v3818 = vld [vmem:[%s3817] sm:$0xf]
      %3820 = vset.pattern.permute.xlu0 0
      %3821 = vperm.xlu0 %3820, %v3818
      %v3822 = vpop.permute.xlu0 %3821
      %v3824 = vmul.f32 %v3815, %v3822
      %v3825 = vmul.f32 %v3816, %v3822
      %v3826 = vadd.f32 %v3807, %v3824
      %v3827 = vadd.f32 %v3808, %v3825
      %s3828 = scalar_lea.vmem %s21, 24
      %v3829 = vld [vmem:[%s3828] sm:$0xf]
      %vm3830 = vcmp.ge.f32.partialorder %v3826, 0.0
      %vm3831 = vcmp.ge.f32.partialorder %v3827, 0.0
      %3833 = vset.pattern.permute.xlu0 0
      %3834 = vperm.xlu0 %3833, %v3829
      %v3835 = vpop.permute.xlu0 %3834
      %v3837 = vmul.f32 %v3826, %v3835
      %v3838 = vmul.f32 %v3827, %v3835
      %v3839 = vsel %vm3830, %v3826, %v3837
      %v3840 = vsel %vm3831, %v3827, %v3838
      %s3841 = scalar_lea.vmem %s20, 96
      %v3842 = vld [vmem:[%s3841] sm:$0xff]
      %v3843 = vld [vmem:[%s3841 + $0x8] sm:$0xf]
      %3844 = vrot.lane.b32.xlu0 %v3663, 34
      %v3845 = vpop.permute.xlu0 %3844
      %3846 = vrot.lane.b32.xlu0 %v3664, 34
      %v3847 = vpop.permute.xlu0 %3846
      %v3848 = vsel %vm1765, %v3845, %v3847
      %v3849 = vsel %vm1765, %v3847, %v3845
      %v3850 = vmul.f32 %v3849, %v1774
      %v3851 = vmul.f32 %v3848, %v1778
      %s3852 = scalar_lea.vmem %s19, 252
      %v3853 = vld [vmem:[%s3852] sm:$0xf]
      %3855 = vset.pattern.permute.xlu0 0
      %3856 = vperm.xlu0 %3855, %v3853
      %v3857 = vpop.permute.xlu0 %3856
      %v3859 = vmul.f32 %v3850, %v3857
      %v3860 = vmul.f32 %v3851, %v3857
      %3861 = vrot.lane.b32.xlu0 %v3663, 32
      %v3862 = vpop.permute.xlu0 %3861
      %3863 = vrot.lane.b32.xlu0 %v3664, 32
      %v3864 = vpop.permute.xlu0 %3863
      %v3865 = vsel %vm1796, %v3862, %v3864
      %v3866 = vsel %vm1796, %v3864, %v3862
      %v3867 = vmul.f32 %v3866, %v1805
      %v3868 = vmul.f32 %v3865, %v1809
      %s3869 = scalar_lea.vmem %s19, 256
      %v3870 = vld [vmem:[%s3869] sm:$0xf]
      %3872 = vset.pattern.permute.xlu0 0
      %3873 = vperm.xlu0 %3872, %v3870
      %v3874 = vpop.permute.xlu0 %3873
      %v3876 = vmul.f32 %v3867, %v3874
      %v3877 = vmul.f32 %v3868, %v3874
      %v3878 = vadd.f32 %v3859, %v3876
      %v3879 = vadd.f32 %v3860, %v3877
      %3880 = vrot.lane.b32.xlu0 %v3663, 30
      %v3881 = vpop.permute.xlu0 %3880
      %3882 = vrot.lane.b32.xlu0 %v3664, 30
      %v3883 = vpop.permute.xlu0 %3882
      %v3884 = vsel %vm1829, %v3881, %v3883
      %v3885 = vsel %vm1829, %v3883, %v3881
      %v3886 = vmul.f32 %v3885, %v1838
      %v3887 = vmul.f32 %v3884, %v1842
      %s3888 = scalar_lea.vmem %s19, 260
      %v3889 = vld [vmem:[%s3888] sm:$0xf]
      %3891 = vset.pattern.permute.xlu0 0
      %3892 = vperm.xlu0 %3891, %v3889
      %v3893 = vpop.permute.xlu0 %3892
      %v3895 = vmul.f32 %v3886, %v3893
      %v3896 = vmul.f32 %v3887, %v3893
      %v3897 = vadd.f32 %v3878, %v3895
      %v3898 = vadd.f32 %v3879, %v3896
      %3899 = vrot.lane.b32.xlu0 %v3663, 2
      %v3900 = vpop.permute.xlu0 %3899
      %3901 = vrot.lane.b32.xlu0 %v3664, 2
      %v3902 = vpop.permute.xlu0 %3901
      %v3903 = vsel %vm1862, %v3900, %v3902
      %v3904 = vsel %vm1862, %v3902, %v3900
      %v3905 = vmul.f32 %v3904, %v1871
      %v3906 = vmul.f32 %v3903, %v1875
      %s3907 = scalar_lea.vmem %s19, 264
      %v3908 = vld [vmem:[%s3907] sm:$0xf]
      %3910 = vset.pattern.permute.xlu0 0
      %3911 = vperm.xlu0 %3910, %v3908
      %v3912 = vpop.permute.xlu0 %3911
      %v3914 = vmul.f32 %v3905, %v3912
      %v3915 = vmul.f32 %v3906, %v3912
      %v3916 = vadd.f32 %v3897, %v3914
      %v3917 = vadd.f32 %v3898, %v3915
      %v3918 = vmul.f32 %v3663, %v1897
      %v3919 = vmul.f32 %v3664, %v1901
      %s3920 = scalar_lea.vmem %s19, 268
      %v3921 = vld [vmem:[%s3920] sm:$0xf]
      %3923 = vset.pattern.permute.xlu0 0
      %3924 = vperm.xlu0 %3923, %v3921
      %v3925 = vpop.permute.xlu0 %3924
      %v3927 = vmul.f32 %v3918, %v3925
      %v3928 = vmul.f32 %v3919, %v3925
      %v3929 = vadd.f32 %v3916, %v3927
      %v3930 = vadd.f32 %v3917, %v3928
      %3931 = vrot.lane.b32.xlu0 %v3663, 126
      %v3932 = vpop.permute.xlu0 %3931
      %3933 = vrot.lane.b32.xlu0 %v3664, 126
      %v3934 = vpop.permute.xlu0 %3933
      %v3935 = vsel %vm1921, %v3932, %v3934
      %v3936 = vsel %vm1921, %v3934, %v3932
      %v3937 = vmul.f32 %v3935, %v1930
      %v3938 = vmul.f32 %v3936, %v1934
      %s3939 = scalar_lea.vmem %s19, 272
      %v3940 = vld [vmem:[%s3939] sm:$0xf]
      %3942 = vset.pattern.permute.xlu0 0
      %3943 = vperm.xlu0 %3942, %v3940
      %v3944 = vpop.permute.xlu0 %3943
      %v3946 = vmul.f32 %v3937, %v3944
      %v3947 = vmul.f32 %v3938, %v3944
      %v3948 = vadd.f32 %v3929, %v3946
      %v3949 = vadd.f32 %v3930, %v3947
      %3950 = vrot.lane.b32.xlu0 %v3663, 98
      %v3951 = vpop.permute.xlu0 %3950
      %3952 = vrot.lane.b32.xlu0 %v3664, 98
      %v3953 = vpop.permute.xlu0 %3952
      %v3954 = vsel %vm1954, %v3951, %v3953
      %v3955 = vsel %vm1954, %v3953, %v3951
      %v3956 = vmul.f32 %v3954, %v1963
      %v3957 = vmul.f32 %v3955, %v1967
      %s3958 = scalar_lea.vmem %s19, 276
      %v3959 = vld [vmem:[%s3958] sm:$0xf]
      %3961 = vset.pattern.permute.xlu0 0
      %3962 = vperm.xlu0 %3961, %v3959
      %v3963 = vpop.permute.xlu0 %3962
      %v3965 = vmul.f32 %v3956, %v3963
      %v3966 = vmul.f32 %v3957, %v3963
      %v3967 = vadd.f32 %v3948, %v3965
      %v3968 = vadd.f32 %v3949, %v3966
      %3969 = vrot.lane.b32.xlu0 %v3663, 96
      %v3970 = vpop.permute.xlu0 %3969
      %3971 = vrot.lane.b32.xlu0 %v3664, 96
      %v3972 = vpop.permute.xlu0 %3971
      %v3973 = vsel %vm1987, %v3970, %v3972
      %v3974 = vsel %vm1987, %v3972, %v3970
      %v3975 = vmul.f32 %v3973, %v1996
      %v3976 = vmul.f32 %v3974, %v2000
      %s3977 = scalar_lea.vmem %s19, 280
      %v3978 = vld [vmem:[%s3977] sm:$0xf]
      %3980 = vset.pattern.permute.xlu0 0
      %3981 = vperm.xlu0 %3980, %v3978
      %v3982 = vpop.permute.xlu0 %3981
      %v3984 = vmul.f32 %v3975, %v3982
      %v3985 = vmul.f32 %v3976, %v3982
      %v3986 = vadd.f32 %v3967, %v3984
      %v3987 = vadd.f32 %v3968, %v3985
      %3988 = vrot.lane.b32.xlu0 %v3663, 94
      %v3989 = vpop.permute.xlu0 %3988
      %3990 = vrot.lane.b32.xlu0 %v3664, 94
      %v3991 = vpop.permute.xlu0 %3990
      %v3992 = vsel %vm2020, %v3989, %v3991
      %v3993 = vsel %vm2020, %v3991, %v3989
      %v3994 = vmul.f32 %v3992, %v2029
      %v3995 = vmul.f32 %v3993, %v2033
      %s3996 = scalar_lea.vmem %s19, 284
      %v3997 = vld [vmem:[%s3996] sm:$0xf]
      %3999 = vset.pattern.permute.xlu0 0
      %4000 = vperm.xlu0 %3999, %v3997
      %v4001 = vpop.permute.xlu0 %4000
      %v4003 = vmul.f32 %v3994, %v4001
      %v4004 = vmul.f32 %v3995, %v4001
      %v4005 = vadd.f32 %v3986, %v4003
      %v4006 = vadd.f32 %v3987, %v4004
      %v4007 = vadd.f32 %v3826, %v4005
      %v4008 = vadd.f32 %v3827, %v4006
      %s4009 = scalar_lea.vmem %s21, 28
      %v4010 = vld [vmem:[%s4009] sm:$0xf]
      %vm4011 = vcmp.ge.f32.partialorder %v4007, 0.0
      %vm4012 = vcmp.ge.f32.partialorder %v4008, 0.0
      %4014 = vset.pattern.permute.xlu0 0
      %4015 = vperm.xlu0 %4014, %v4010
      %v4016 = vpop.permute.xlu0 %4015
      %v4018 = vmul.f32 %v4007, %v4016
      %v4019 = vmul.f32 %v4008, %v4016
      %v4020 = vsel %vm4011, %v4007, %v4018
      %v4021 = vsel %vm4012, %v4008, %v4019
      %s4022 = scalar_lea.vmem %s20, 112
      %v4023 = vld [vmem:[%s4022] sm:$0xff]
      %v4024 = vld [vmem:[%s4022 + $0x8] sm:$0xf]
      %v4026 = vsel %vm2067, %v4023, 0
      %v4029 = vsel %vm2067, %v4024, 0
      %v4032 = vsel %vm1493, %v4020, 0
      %v4035 = vsel %vm1493, %v4021, 0
      %4037 = vmatprep.subr.mxu0 %v4035
      %4038 = vmatpush1.msra.mxu0 %v4032
      %4039 = vmatprep.subr.mxu0 0.0
      %4040 = vmatpush1.msra.mxu0 0.0
      %4041 = vmatprep.subr.mxu0 0.0
      %4042 = vmatpush1.msra.mxu0 0.0
      %4043 = vmatprep.subr.mxu0 0.0
      %4044 = vmatpush1.msra.mxu0 0.0
      %4045 = vmatprep.subr.mxu0 0.0
      %4046 = vmatpush1.msra.mxu0 0.0
      %4047 = vmatprep.subr.mxu0 0.0
      %4048 = vmatpush1.msra.mxu0 0.0
      %4049 = vmatprep.subr.mxu0 0.0
      %4050 = vmatpush1.msra.mxu0 0.0
      %4051 = vmatprep.subr.mxu0 0.0
      %4052 = vmatpush1.msra.mxu0 0.0
      %4053 = vmatprep.subr.mxu0 0.0
      %4054 = vmatpush1.msra.mxu0 0.0
      %4055 = vmatprep.subr.mxu0 0.0
      %4056 = vmatpush1.msra.mxu0 0.0
      %4057 = vmatprep.subr.mxu0 0.0
      %4058 = vmatpush1.msra.mxu0 0.0
      %4059 = vmatprep.subr.mxu0 0.0
      %4060 = vmatpush1.msra.mxu0 0.0
      %4061 = vmatprep.subr.mxu0 0.0
      %4062 = vmatpush1.msra.mxu0 0.0
      %4063 = vmatprep.subr.mxu0 0.0
      %4064 = vmatpush1.msra.mxu0 0.0
      %4065 = vmatprep.subr.mxu0 0.0
      %4066 = vmatpush1.msra.mxu0 0.0
      %4067 = vmatprep.subr.mxu0 0.0
      %4068 = vmatpush1.msra.mxu0 0.0
      %4069 = vmatprep.subr.mxu0 0.0
      %4070 = vmatpush1.msra.mxu0 0.0
      %4071 = vmatprep.subr.mxu0 0.0
      %4072 = vmatpush1.msra.mxu0 0.0
      %4073 = vmatprep.subr.mxu0 0.0
      %4074 = vmatpush1.msra.mxu0 0.0
      %4075 = vmatprep.subr.mxu0 0.0
      %4076 = vmatpush1.msra.mxu0 0.0
      %4077 = vmatprep.subr.mxu0 0.0
      %4078 = vmatpush1.msra.mxu0 0.0
      %4079 = vmatprep.subr.mxu0 0.0
      %4080 = vmatpush1.msra.mxu0 0.0
      %4081 = vmatprep.subr.mxu0 0.0
      %4082 = vmatpush1.msra.mxu0 0.0
      %4083 = vmatprep.subr.mxu0 0.0
      %4084 = vmatpush1.msra.mxu0 0.0
      %4085 = vmatprep.subr.mxu0 0.0
      %4086 = vmatpush1.msra.mxu0 0.0
      %4087 = vmatprep.subr.mxu0 0.0
      %4088 = vmatpush1.msra.mxu0 0.0
      %4089 = vmatprep.subr.mxu0 0.0
      %4090 = vmatpush1.msra.mxu0 0.0
      %4091 = vmatprep.subr.mxu0 0.0
      %4092 = vmatpush1.msra.mxu0 0.0
      %4093 = vmatprep.subr.mxu0 0.0
      %4094 = vmatpush1.msra.mxu0 0.0
      %4095 = vmatprep.subr.mxu0 0.0
      %4096 = vmatpush1.msra.mxu0 0.0
      %4097 = vmatprep.subr.mxu0 0.0
      %4098 = vmatpush1.msra.mxu0 0.0
      %4099 = vmatprep.subr.mxu0 0.0
      %4100 = vmatpush1.msra.mxu0 0.0
      %4101 = vmatprep.mubr.f32.mxu0 0.0
      %4102 = vmatmul.mubr.f32.gmra.mrb[0].mxu0 %v4026
      %v4103 = vpop.f32.mrb[0].mxu0
      %v4104 = vadd.f32 0.0, %v4103
      %v4105 = vpop.f32.mrb[0].mxu0
      %v4106 = vadd.f32 0.0, %v4105
      %4107 = vmatprep.mubr.f32.mxu0 0.0
      %4108 = vmatmul.mubr.f32.gmra.mrb[0].mxu0 %v4029
      %v4109 = vpop.f32.mrb[0].mxu0
      %v4110 = vadd.f32 0.0, %v4109
      %v4111 = vpop.f32.mrb[0].mxu0
      %v4112 = vadd.f32 0.0, %v4111
      %4113 = vdwg.mxu0
      %v4115 = vsel %vm2067, %v3842, 0
      %v4118 = vsel %vm2067, %v3843, 0
      %v4121 = vsel %vm1493, %v3839, 0
      %v4124 = vsel %vm1493, %v3840, 0
      %4126 = vmatprep.subr.mxu0 %v4124
      %4127 = vmatpush1.msra.mxu0 %v4121
      %4128 = vmatprep.subr.mxu0 0.0
      %4129 = vmatpush1.msra.mxu0 0.0
      %4130 = vmatprep.subr.mxu0 0.0
      %4131 = vmatpush1.msra.mxu0 0.0
      %4132 = vmatprep.subr.mxu0 0.0
      %4133 = vmatpush1.msra.mxu0 0.0
      %4134 = vmatprep.subr.mxu0 0.0
      %4135 = vmatpush1.msra.mxu0 0.0
      %4136 = vmatprep.subr.mxu0 0.0
      %4137 = vmatpush1.msra.mxu0 0.0
      %4138 = vmatprep.subr.mxu0 0.0
      %4139 = vmatpush1.msra.mxu0 0.0
      %4140 = vmatprep.subr.mxu0 0.0
      %4141 = vmatpush1.msra.mxu0 0.0
      %4142 = vmatprep.subr.mxu0 0.0
      %4143 = vmatpush1.msra.mxu0 0.0
      %4144 = vmatprep.subr.mxu0 0.0
      %4145 = vmatpush1.msra.mxu0 0.0
      %4146 = vmatprep.subr.mxu0 0.0
      %4147 = vmatpush1.msra.mxu0 0.0
      %4148 = vmatprep.subr.mxu0 0.0
      %4149 = vmatpush1.msra.mxu0 0.0
      %4150 = vmatprep.subr.mxu0 0.0
      %4151 = vmatpush1.msra.mxu0 0.0
      %4152 = vmatprep.subr.mxu0 0.0
      %4153 = vmatpush1.msra.mxu0 0.0
      %4154 = vmatprep.subr.mxu0 0.0
      %4155 = vmatpush1.msra.mxu0 0.0
      %4156 = vmatprep.subr.mxu0 0.0
      %4157 = vmatpush1.msra.mxu0 0.0
      %4158 = vmatprep.subr.mxu0 0.0
      %4159 = vmatpush1.msra.mxu0 0.0
      %4160 = vmatprep.subr.mxu0 0.0
      %4161 = vmatpush1.msra.mxu0 0.0
      %4162 = vmatprep.subr.mxu0 0.0
      %4163 = vmatpush1.msra.mxu0 0.0
      %4164 = vmatprep.subr.mxu0 0.0
      %4165 = vmatpush1.msra.mxu0 0.0
      %4166 = vmatprep.subr.mxu0 0.0
      %4167 = vmatpush1.msra.mxu0 0.0
      %4168 = vmatprep.subr.mxu0 0.0
      %4169 = vmatpush1.msra.mxu0 0.0
      %4170 = vmatprep.subr.mxu0 0.0
      %4171 = vmatpush1.msra.mxu0 0.0
      %4172 = vmatprep.subr.mxu0 0.0
      %4173 = vmatpush1.msra.mxu0 0.0
      %4174 = vmatprep.subr.mxu0 0.0
      %4175 = vmatpush1.msra.mxu0 0.0
      %4176 = vmatprep.subr.mxu0 0.0
      %4177 = vmatpush1.msra.mxu0 0.0
      %4178 = vmatprep.subr.mxu0 0.0
      %4179 = vmatpush1.msra.mxu0 0.0
      %4180 = vmatprep.subr.mxu0 0.0
      %4181 = vmatpush1.msra.mxu0 0.0
      %4182 = vmatprep.subr.mxu0 0.0
      %4183 = vmatpush1.msra.mxu0 0.0
      %4184 = vmatprep.subr.mxu0 0.0
      %4185 = vmatpush1.msra.mxu0 0.0
      %4186 = vmatprep.subr.mxu0 0.0
      %4187 = vmatpush1.msra.mxu0 0.0
      %4188 = vmatprep.subr.mxu0 0.0
      %4189 = vmatpush1.msra.mxu0 0.0
      %4190 = vmatprep.mubr.f32.mxu0 0.0
      %4191 = vmatmul.mubr.f32.gmra.mrb[0].mxu0 %v4115
      %v4192 = vpop.f32.mrb[0].mxu0
      %v4193 = vadd.f32 %v4104, %v4192
      %v4194 = vpop.f32.mrb[0].mxu0
      %v4195 = vadd.f32 %v4106, %v4194
      %4196 = vmatprep.mubr.f32.mxu0 0.0
      %4197 = vmatmul.mubr.f32.gmra.mrb[0].mxu0 %v4118
      %v4198 = vpop.f32.mrb[0].mxu0
      %v4199 = vadd.f32 %v4110, %v4198
      %v4200 = vpop.f32.mrb[0].mxu0
      %v4201 = vadd.f32 %v4112, %v4200
      %4202 = vdwg.mxu0
      %4203 = vrot.lane.b32.xlu0 %v3663, 68
      %v4204 = vpop.permute.xlu0 %4203
      %4205 = vrot.lane.b32.xlu0 %v3664, 68
      %v4206 = vpop.permute.xlu0 %4205
      %v4207 = vsel %vm2250, %v4204, %v4206
      %v4208 = vsel %vm2250, %v4206, %v4204
      %v4209 = vmul.f32 %v4208, %v2259
      %v4210 = vmul.f32 %v4207, %v2263
      %s4211 = scalar_lea.vmem %s19, 288
      %v4212 = vld [vmem:[%s4211] sm:$0xf]
      %4214 = vset.pattern.permute.xlu0 0
      %4215 = vperm.xlu0 %4214, %v4212
      %v4216 = vpop.permute.xlu0 %4215
      %v4218 = vmul.f32 %v4209, %v4216
      %v4219 = vmul.f32 %v4210, %v4216
      %4220 = vrot.lane.b32.xlu0 %v3663, 64
      %v4221 = vpop.permute.xlu0 %4220
      %4222 = vrot.lane.b32.xlu0 %v3664, 64
      %v4223 = vpop.permute.xlu0 %4222
      %v4224 = vsel %vm2281, %v4221, %v4223
      %v4225 = vsel %vm2281, %v4223, %v4221
      %v4226 = vmul.f32 %v4225, %v2290
      %v4227 = vmul.f32 %v4224, %v2294
      %s4228 = scalar_lea.vmem %s19, 292
      %v4229 = vld [vmem:[%s4228] sm:$0xf]
      %4231 = vset.pattern.permute.xlu0 0
      %4232 = vperm.xlu0 %4231, %v4229
      %v4233 = vpop.permute.xlu0 %4232
      %v4235 = vmul.f32 %v4226, %v4233
      %v4236 = vmul.f32 %v4227, %v4233
      %v4237 = vadd.f32 %v4218, %v4235
      %v4238 = vadd.f32 %v4219, %v4236
      %4239 = vrot.lane.b32.xlu0 %v3663, 60
      %v4240 = vpop.permute.xlu0 %4239
      %4241 = vrot.lane.b32.xlu0 %v3664, 60
      %v4242 = vpop.permute.xlu0 %4241
      %v4243 = vsel %vm2314, %v4240, %v4242
      %v4244 = vsel %vm2314, %v4242, %v4240
      %v4245 = vmul.f32 %v4244, %v2323
      %v4246 = vmul.f32 %v4243, %v2327
      %s4247 = scalar_lea.vmem %s19, 296
      %v4248 = vld [vmem:[%s4247] sm:$0xf]
      %4250 = vset.pattern.permute.xlu0 0
      %4251 = vperm.xlu0 %4250, %v4248
      %v4252 = vpop.permute.xlu0 %4251
      %v4254 = vmul.f32 %v4245, %v4252
      %v4255 = vmul.f32 %v4246, %v4252
      %v4256 = vadd.f32 %v4237, %v4254
      %v4257 = vadd.f32 %v4238, %v4255
      %4258 = vrot.lane.b32.xlu0 %v3663, 4
      %v4259 = vpop.permute.xlu0 %4258
      %4260 = vrot.lane.b32.xlu0 %v3664, 4
      %v4261 = vpop.permute.xlu0 %4260
      %v4262 = vsel %vm2347, %v4259, %v4261
      %v4263 = vsel %vm2347, %v4261, %v4259
      %v4264 = vmul.f32 %v4263, %v2356
      %v4265 = vmul.f32 %v4262, %v2360
      %s4266 = scalar_lea.vmem %s19, 300
      %v4267 = vld [vmem:[%s4266] sm:$0xf]
      %4269 = vset.pattern.permute.xlu0 0
      %4270 = vperm.xlu0 %4269, %v4267
      %v4271 = vpop.permute.xlu0 %4270
      %v4273 = vmul.f32 %v4264, %v4271
      %v4274 = vmul.f32 %v4265, %v4271
      %v4275 = vadd.f32 %v4256, %v4273
      %v4276 = vadd.f32 %v4257, %v4274
      %v4277 = vmul.f32 %v3663, %v2382
      %v4278 = vmul.f32 %v3664, %v2386
      %s4279 = scalar_lea.vmem %s19, 304
      %v4280 = vld [vmem:[%s4279] sm:$0xf]
      %4282 = vset.pattern.permute.xlu0 0
      %4283 = vperm.xlu0 %4282, %v4280
      %v4284 = vpop.permute.xlu0 %4283
      %v4286 = vmul.f32 %v4277, %v4284
      %v4287 = vmul.f32 %v4278, %v4284
      %v4288 = vadd.f32 %v4275, %v4286
      %v4289 = vadd.f32 %v4276, %v4287
      %4290 = vrot.lane.b32.xlu0 %v3663, 124
      %v4291 = vpop.permute.xlu0 %4290
      %4292 = vrot.lane.b32.xlu0 %v3664, 124
      %v4293 = vpop.permute.xlu0 %4292
      %v4294 = vsel %vm2406, %v4291, %v4293
      %v4295 = vsel %vm2406, %v4293, %v4291
      %v4296 = vmul.f32 %v4294, %v2415
      %v4297 = vmul.f32 %v4295, %v2419
      %s4298 = scalar_lea.vmem %s19, 308
      %v4299 = vld [vmem:[%s4298] sm:$0xf]
      %4301 = vset.pattern.permute.xlu0 0
      %4302 = vperm.xlu0 %4301, %v4299
      %v4303 = vpop.permute.xlu0 %4302
      %v4305 = vmul.f32 %v4296, %v4303
      %v4306 = vmul.f32 %v4297, %v4303
      %v4307 = vadd.f32 %v4288, %v4305
      %v4308 = vadd.f32 %v4289, %v4306
      %v4309 = vmul.f32 %v4207, %v2441
      %v4310 = vmul.f32 %v4208, %v2445
      %s4311 = scalar_lea.vmem %s19, 312
      %v4312 = vld [vmem:[%s4311] sm:$0xf]
      %4314 = vset.pattern.permute.xlu0 0
      %4315 = vperm.xlu0 %4314, %v4312
      %v4316 = vpop.permute.xlu0 %4315
      %v4318 = vmul.f32 %v4309, %v4316
      %v4319 = vmul.f32 %v4310, %v4316
      %v4320 = vadd.f32 %v4307, %v4318
      %v4321 = vadd.f32 %v4308, %v4319
      %v4322 = vmul.f32 %v4224, %v2467
      %v4323 = vmul.f32 %v4225, %v2471
      %s4324 = scalar_lea.vmem %s19, 316
      %v4325 = vld [vmem:[%s4324] sm:$0xf]
      %4327 = vset.pattern.permute.xlu0 0
      %4328 = vperm.xlu0 %4327, %v4325
      %v4329 = vpop.permute.xlu0 %4328
      %v4331 = vmul.f32 %v4322, %v4329
      %v4332 = vmul.f32 %v4323, %v4329
      %v4333 = vadd.f32 %v4320, %v4331
      %v4334 = vadd.f32 %v4321, %v4332
      %v4335 = vmul.f32 %v4243, %v2493
      %v4336 = vmul.f32 %v4244, %v2497
      %s4337 = scalar_lea.vmem %s19, 320
      %v4338 = vld [vmem:[%s4337] sm:$0xf]
      %4340 = vset.pattern.permute.xlu0 0
      %4341 = vperm.xlu0 %4340, %v4338
      %v4342 = vpop.permute.xlu0 %4341
      %v4344 = vmul.f32 %v4335, %v4342
      %v4345 = vmul.f32 %v4336, %v4342
      %v4346 = vadd.f32 %v4333, %v4344
      %v4347 = vadd.f32 %v4334, %v4345
      %v4348 = vadd.f32 %v4007, %v4346
      %v4349 = vadd.f32 %v4008, %v4347
      %s4350 = scalar_lea.vmem %s21, 32
      %v4351 = vld [vmem:[%s4350] sm:$0xf]
      %vm4352 = vcmp.ge.f32.partialorder %v4348, 0.0
      %vm4353 = vcmp.ge.f32.partialorder %v4349, 0.0
      %4355 = vset.pattern.permute.xlu0 0
      %4356 = vperm.xlu0 %4355, %v4351
      %v4357 = vpop.permute.xlu0 %4356
      %v4359 = vmul.f32 %v4348, %v4357
      %v4360 = vmul.f32 %v4349, %v4357
      %v4361 = vsel %vm4352, %v4348, %v4359
      %v4362 = vsel %vm4353, %v4349, %v4360
      %s4363 = scalar_lea.vmem %s20, 128
      %v4364 = vld [vmem:[%s4363] sm:$0xff]
      %v4365 = vld [vmem:[%s4363 + $0x8] sm:$0xf]
      %v4367 = vsel %vm2067, %v4364, 0
      %v4370 = vsel %vm2067, %v4365, 0
      %v4373 = vsel %vm1493, %v4361, 0
      %v4376 = vsel %vm1493, %v4362, 0
      %4378 = vmatprep.subr.mxu0 %v4376
      %4379 = vmatpush1.msra.mxu0 %v4373
      %4380 = vmatprep.subr.mxu0 0.0
      %4381 = vmatpush1.msra.mxu0 0.0
      %4382 = vmatprep.subr.mxu0 0.0
      %4383 = vmatpush1.msra.mxu0 0.0
      %4384 = vmatprep.subr.mxu0 0.0
      %4385 = vmatpush1.msra.mxu0 0.0
      %4386 = vmatprep.subr.mxu0 0.0
      %4387 = vmatpush1.msra.mxu0 0.0
      %4388 = vmatprep.subr.mxu0 0.0
      %4389 = vmatpush1.msra.mxu0 0.0
      %4390 = vmatprep.subr.mxu0 0.0
      %4391 = vmatpush1.msra.mxu0 0.0
      %4392 = vmatprep.subr.mxu0 0.0
      %4393 = vmatpush1.msra.mxu0 0.0
      %4394 = vmatprep.subr.mxu0 0.0
      %4395 = vmatpush1.msra.mxu0 0.0
      %4396 = vmatprep.subr.mxu0 0.0
      %4397 = vmatpush1.msra.mxu0 0.0
      %4398 = vmatprep.subr.mxu0 0.0
      %4399 = vmatpush1.msra.mxu0 0.0
      %4400 = vmatprep.subr.mxu0 0.0
      %4401 = vmatpush1.msra.mxu0 0.0
      %4402 = vmatprep.subr.mxu0 0.0
      %4403 = vmatpush1.msra.mxu0 0.0
      %4404 = vmatprep.subr.mxu0 0.0
      %4405 = vmatpush1.msra.mxu0 0.0
      %4406 = vmatprep.subr.mxu0 0.0
      %4407 = vmatpush1.msra.mxu0 0.0
      %4408 = vmatprep.subr.mxu0 0.0
      %4409 = vmatpush1.msra.mxu0 0.0
      %4410 = vmatprep.subr.mxu0 0.0
      %4411 = vmatpush1.msra.mxu0 0.0
      %4412 = vmatprep.subr.mxu0 0.0
      %4413 = vmatpush1.msra.mxu0 0.0
      %4414 = vmatprep.subr.mxu0 0.0
      %4415 = vmatpush1.msra.mxu0 0.0
      %4416 = vmatprep.subr.mxu0 0.0
      %4417 = vmatpush1.msra.mxu0 0.0
      %4418 = vmatprep.subr.mxu0 0.0
      %4419 = vmatpush1.msra.mxu0 0.0
      %4420 = vmatprep.subr.mxu0 0.0
      %4421 = vmatpush1.msra.mxu0 0.0
      %4422 = vmatprep.subr.mxu0 0.0
      %4423 = vmatpush1.msra.mxu0 0.0
      %4424 = vmatprep.subr.mxu0 0.0
      %4425 = vmatpush1.msra.mxu0 0.0
      %4426 = vmatprep.subr.mxu0 0.0
      %4427 = vmatpush1.msra.mxu0 0.0
      %4428 = vmatprep.subr.mxu0 0.0
      %4429 = vmatpush1.msra.mxu0 0.0
      %4430 = vmatprep.subr.mxu0 0.0
      %4431 = vmatpush1.msra.mxu0 0.0
      %4432 = vmatprep.subr.mxu0 0.0
      %4433 = vmatpush1.msra.mxu0 0.0
      %4434 = vmatprep.subr.mxu0 0.0
      %4435 = vmatpush1.msra.mxu0 0.0
      %4436 = vmatprep.subr.mxu0 0.0
      %4437 = vmatpush1.msra.mxu0 0.0
      %4438 = vmatprep.subr.mxu0 0.0
      %4439 = vmatpush1.msra.mxu0 0.0
      %4440 = vmatprep.subr.mxu0 0.0
      %4441 = vmatpush1.msra.mxu0 0.0
      %4442 = vmatprep.mubr.f32.mxu0 0.0
      %4443 = vmatmul.mubr.f32.gmra.mrb[0].mxu0 %v4367
      %v4444 = vpop.f32.mrb[0].mxu0
      %v4445 = vadd.f32 0.0, %v4444
      %v4446 = vpop.f32.mrb[0].mxu0
      %v4447 = vadd.f32 0.0, %v4446
      %4448 = vmatprep.mubr.f32.mxu0 0.0
      %4449 = vmatmul.mubr.f32.gmra.mrb[0].mxu0 %v4370
      %v4450 = vpop.f32.mrb[0].mxu0
      %v4451 = vadd.f32 0.0, %v4450
      %v4452 = vpop.f32.mrb[0].mxu0
      %v4453 = vadd.f32 0.0, %v4452
      %4454 = vdwg.mxu0
      %v4455 = vadd.f32 %v4193, %v4445
      %v4456 = vadd.f32 %v4195, %v4447
      %v4457 = vadd.f32 %v4199, %v4451
      %v4458 = vadd.f32 %v4201, %v4453
      %v4459 = vadd.f32 %v4455, %v3566
      %v4460 = vadd.f32 %v4456, %v3567
      %v4461 = vadd.f32 %v4457, %v3568
      %v4462 = vadd.f32 %v4458, %v3569
      %s4463 = scalar_lea.vmem %s22, 32
      %v4464 = vld [vmem:[%s4463] sm:$0xff]
      %v4465 = vld [vmem:[%s4463 + $0x8] sm:$0xf]
      %vm4466 = vcmp.ge.f32.partialorder %v4459, 0.0
      %vm4467 = vcmp.ge.f32.partialorder %v4460, 0.0
      %vm4468 = vcmp.ge.f32.partialorder %v4461, 0.0
      %vm4469 = vcmp.ge.f32.partialorder %v4462, 0.0
      %4471 = vset.pattern.permute.xlu0 0
      %4472 = vperm.xlu0 %4471, %v4464
      %v4473 = vpop.permute.xlu0 %4472
      %4476 = vset.pattern.permute.xlu0 0
      %4477 = vperm.xlu0 %4476, %v4465
      %v4478 = vpop.permute.xlu0 %4477
      %v4480 = vmul.f32 %v4459, %v4473
      %v4481 = vmul.f32 %v4460, %v4473
      %v4482 = vmul.f32 %v4461, %v4478
      %v4483 = vmul.f32 %v4462, %v4478
      %v4484 = vsel %vm4466, %v4459, %v4480
      %v4485 = vsel %vm4467, %v4460, %v4481
      %v4486 = vsel %vm4468, %v4461, %v4482
      %v4487 = vsel %vm4469, %v4462, %v4483
      %4488 = vrot.lane.b32.xlu0 %v4484, 17
      %v4489 = vpop.permute.xlu0 %4488
      %4490 = vrot.lane.b32.xlu0 %v4486, 17
      %v4491 = vpop.permute.xlu0 %4490
      %4492 = vrot.lane.b32.xlu0 %v4485, 17
      %v4493 = vpop.permute.xlu0 %4492
      %4494 = vrot.lane.b32.xlu0 %v4487, 17
      %v4495 = vpop.permute.xlu0 %4494
      %v4496 = vsel %vm994, %v4489, %v4493
      %v4497 = vsel %vm994, %v4491, %v4495
      %v4498 = vsel %vm994, %v4493, %v4489
      %v4499 = vsel %vm994, %v4495, %v4491
      %v4500 = vmul.f32 %v4498, %v1002
      %v4501 = vmul.f32 %v4496, %v1006
      %v4502 = vmul.f32 %v4499, %v1002
      %v4503 = vmul.f32 %v4497, %v1006
      %v4504 = vld [vmem:[%s14] sm:$0xff]
      %v4505 = vld [vmem:[%s14 + $0x8] sm:$0xf]
      %4507 = vset.pattern.permute.xlu0 0
      %4508 = vperm.xlu0 %4507, %v4504
      %v4509 = vpop.permute.xlu0 %4508
      %4512 = vset.pattern.permute.xlu0 0
      %4513 = vperm.xlu0 %4512, %v4505
      %v4514 = vpop.permute.xlu0 %4513
      %v4516 = vmul.f32 %v4500, %v4509
      %v4517 = vmul.f32 %v4501, %v4509
      %v4518 = vmul.f32 %v4502, %v4514
      %v4519 = vmul.f32 %v4503, %v4514
      %4520 = vrot.lane.b32.xlu0 %v4484, 16
      %v4521 = vpop.permute.xlu0 %4520
      %4522 = vrot.lane.b32.xlu0 %v4486, 16
      %v4523 = vpop.permute.xlu0 %4522
      %4524 = vrot.lane.b32.xlu0 %v4485, 16
      %v4525 = vpop.permute.xlu0 %4524
      %4526 = vrot.lane.b32.xlu0 %v4487, 16
      %v4527 = vpop.permute.xlu0 %4526
      %v4528 = vsel %vm1023, %v4521, %v4525
      %v4529 = vsel %vm1023, %v4523, %v4527
      %v4530 = vsel %vm1023, %v4525, %v4521
      %v4531 = vsel %vm1023, %v4527, %v4523
      %v4532 = vmul.f32 %v4530, %v1032
      %v4533 = vmul.f32 %v4528, %v1036
      %v4534 = vmul.f32 %v4531, %v1032
      %v4535 = vmul.f32 %v4529, %v1036
      %s4536 = scalar_lea.vmem %s14, 16
      %v4537 = vld [vmem:[%s4536] sm:$0xff]
      %v4538 = vld [vmem:[%s4536 + $0x8] sm:$0xf]
      %4540 = vset.pattern.permute.xlu0 0
      %4541 = vperm.xlu0 %4540, %v4537
      %v4542 = vpop.permute.xlu0 %4541
      %4545 = vset.pattern.permute.xlu0 0
      %4546 = vperm.xlu0 %4545, %v4538
      %v4547 = vpop.permute.xlu0 %4546
      %v4549 = vmul.f32 %v4532, %v4542
      %v4550 = vmul.f32 %v4533, %v4542
      %v4551 = vmul.f32 %v4534, %v4547
      %v4552 = vmul.f32 %v4535, %v4547
      %v4553 = vadd.f32 %v4516, %v4549
      %v4554 = vadd.f32 %v4517, %v4550
      %v4555 = vadd.f32 %v4518, %v4551
      %v4556 = vadd.f32 %v4519, %v4552
      %4557 = vrot.lane.b32.xlu0 %v4484, 15
      %v4558 = vpop.permute.xlu0 %4557
      %4559 = vrot.lane.b32.xlu0 %v4486, 15
      %v4560 = vpop.permute.xlu0 %4559
      %4561 = vrot.lane.b32.xlu0 %v4485, 15
      %v4562 = vpop.permute.xlu0 %4561
      %4563 = vrot.lane.b32.xlu0 %v4487, 15
      %v4564 = vpop.permute.xlu0 %4563
      %v4565 = vsel %vm1056, %v4558, %v4562
      %v4566 = vsel %vm1056, %v4560, %v4564
      %v4567 = vsel %vm1056, %v4562, %v4558
      %v4568 = vsel %vm1056, %v4564, %v4560
      %v4569 = vmul.f32 %v4567, %v1065
      %v4570 = vmul.f32 %v4565, %v1069
      %v4571 = vmul.f32 %v4568, %v1065
      %v4572 = vmul.f32 %v4566, %v1069
      %s4573 = scalar_lea.vmem %s14, 32
      %v4574 = vld [vmem:[%s4573] sm:$0xff]
      %v4575 = vld [vmem:[%s4573 + $0x8] sm:$0xf]
      %4577 = vset.pattern.permute.xlu0 0
      %4578 = vperm.xlu0 %4577, %v4574
      %v4579 = vpop.permute.xlu0 %4578
      %4582 = vset.pattern.permute.xlu0 0
      %4583 = vperm.xlu0 %4582, %v4575
      %v4584 = vpop.permute.xlu0 %4583
      %v4586 = vmul.f32 %v4569, %v4579
      %v4587 = vmul.f32 %v4570, %v4579
      %v4588 = vmul.f32 %v4571, %v4584
      %v4589 = vmul.f32 %v4572, %v4584
      %v4590 = vadd.f32 %v4553, %v4586
      %v4591 = vadd.f32 %v4554, %v4587
      %v4592 = vadd.f32 %v4555, %v4588
      %v4593 = vadd.f32 %v4556, %v4589
      %4594 = vrot.lane.b32.xlu0 %v4484, 1
      %v4595 = vpop.permute.xlu0 %4594
      %4596 = vrot.lane.b32.xlu0 %v4486, 1
      %v4597 = vpop.permute.xlu0 %4596
      %4598 = vrot.lane.b32.xlu0 %v4485, 1
      %v4599 = vpop.permute.xlu0 %4598
      %4600 = vrot.lane.b32.xlu0 %v4487, 1
      %v4601 = vpop.permute.xlu0 %4600
      %v4602 = vsel %vm1089, %v4595, %v4599
      %v4603 = vsel %vm1089, %v4597, %v4601
      %v4604 = vsel %vm1089, %v4599, %v4595
      %v4605 = vsel %vm1089, %v4601, %v4597
      %v4606 = vmul.f32 %v4604, %v1098
      %v4607 = vmul.f32 %v4602, %v1102
      %v4608 = vmul.f32 %v4605, %v1098
      %v4609 = vmul.f32 %v4603, %v1102
      %s4610 = scalar_lea.vmem %s14, 48
      %v4611 = vld [vmem:[%s4610] sm:$0xff]
      %v4612 = vld [vmem:[%s4610 + $0x8] sm:$0xf]
      %4614 = vset.pattern.permute.xlu0 0
      %4615 = vperm.xlu0 %4614, %v4611
      %v4616 = vpop.permute.xlu0 %4615
      %4619 = vset.pattern.permute.xlu0 0
      %4620 = vperm.xlu0 %4619, %v4612
      %v4621 = vpop.permute.xlu0 %4620
      %v4623 = vmul.f32 %v4606, %v4616
      %v4624 = vmul.f32 %v4607, %v4616
      %v4625 = vmul.f32 %v4608, %v4621
      %v4626 = vmul.f32 %v4609, %v4621
      %v4627 = vadd.f32 %v4590, %v4623
      %v4628 = vadd.f32 %v4591, %v4624
      %v4629 = vadd.f32 %v4592, %v4625
      %v4630 = vadd.f32 %v4593, %v4626
      %v4631 = vmul.f32 %v4484, %v1124
      %v4632 = vmul.f32 %v4485, %v1128
      %v4633 = vmul.f32 %v4486, %v1124
      %v4634 = vmul.f32 %v4487, %v1128
      %s4635 = scalar_lea.vmem %s14, 64
      %v4636 = vld [vmem:[%s4635] sm:$0xff]
      %v4637 = vld [vmem:[%s4635 + $0x8] sm:$0xf]
      %4639 = vset.pattern.permute.xlu0 0
      %4640 = vperm.xlu0 %4639, %v4636
      %v4641 = vpop.permute.xlu0 %4640
      %4644 = vset.pattern.permute.xlu0 0
      %4645 = vperm.xlu0 %4644, %v4637
      %v4646 = vpop.permute.xlu0 %4645
      %v4648 = vmul.f32 %v4631, %v4641
      %v4649 = vmul.f32 %v4632, %v4641
      %v4650 = vmul.f32 %v4633, %v4646
      %v4651 = vmul.f32 %v4634, %v4646
      %v4652 = vadd.f32 %v4627, %v4648
      %v4653 = vadd.f32 %v4628, %v4649
      %v4654 = vadd.f32 %v4629, %v4650
      %v4655 = vadd.f32 %v4630, %v4651
      %4656 = vrot.lane.b32.xlu0 %v4484, 127
      %v4657 = vpop.permute.xlu0 %4656
      %4658 = vrot.lane.b32.xlu0 %v4486, 127
      %v4659 = vpop.permute.xlu0 %4658
      %4660 = vrot.lane.b32.xlu0 %v4485, 127
      %v4661 = vpop.permute.xlu0 %4660
      %4662 = vrot.lane.b32.xlu0 %v4487, 127
      %v4663 = vpop.permute.xlu0 %4662
      %v4664 = vsel %vm1171, %v4657, %v4661
      %v4665 = vsel %vm1171, %v4659, %v4663
      %v4666 = vsel %vm1171, %v4661, %v4657
      %v4667 = vsel %vm1171, %v4663, %v4659
      %v4668 = vmul.f32 %v4664, %v1180
      %v4669 = vmul.f32 %v4666, %v1184
      %v4670 = vmul.f32 %v4665, %v1180
      %v4671 = vmul.f32 %v4667, %v1184
      %s4672 = scalar_lea.vmem %s14, 80
      %v4673 = vld [vmem:[%s4672] sm:$0xff]
      %v4674 = vld [vmem:[%s4672 + $0x8] sm:$0xf]
      %4676 = vset.pattern.permute.xlu0 0
      %4677 = vperm.xlu0 %4676, %v4673
      %v4678 = vpop.permute.xlu0 %4677
      %4681 = vset.pattern.permute.xlu0 0
      %4682 = vperm.xlu0 %4681, %v4674
      %v4683 = vpop.permute.xlu0 %4682
      %v4685 = vmul.f32 %v4668, %v4678
      %v4686 = vmul.f32 %v4669, %v4678
      %v4687 = vmul.f32 %v4670, %v4683
      %v4688 = vmul.f32 %v4671, %v4683
      %v4689 = vadd.f32 %v4652, %v4685
      %v4690 = vadd.f32 %v4653, %v4686
      %v4691 = vadd.f32 %v4654, %v4687
      %v4692 = vadd.f32 %v4655, %v4688
      %4693 = vrot.lane.b32.xlu0 %v4484, 113
      %v4694 = vpop.permute.xlu0 %4693
      %4695 = vrot.lane.b32.xlu0 %v4486, 113
      %v4696 = vpop.permute.xlu0 %4695
      %4697 = vrot.lane.b32.xlu0 %v4485, 113
      %v4698 = vpop.permute.xlu0 %4697
      %4699 = vrot.lane.b32.xlu0 %v4487, 113
      %v4700 = vpop.permute.xlu0 %4699
      %v4701 = vsel %vm1204, %v4694, %v4698
      %v4702 = vsel %vm1204, %v4696, %v4700
      %v4703 = vsel %vm1204, %v4698, %v4694
      %v4704 = vsel %vm1204, %v4700, %v4696
      %v4705 = vmul.f32 %v4701, %v1213
      %v4706 = vmul.f32 %v4703, %v1217
      %v4707 = vmul.f32 %v4702, %v1213
      %v4708 = vmul.f32 %v4704, %v1217
      %s4709 = scalar_lea.vmem %s14, 96
      %v4710 = vld [vmem:[%s4709] sm:$0xff]
      %v4711 = vld [vmem:[%s4709 + $0x8] sm:$0xf]
      %4713 = vset.pattern.permute.xlu0 0
      %4714 = vperm.xlu0 %4713, %v4710
      %v4715 = vpop.permute.xlu0 %4714
      %4718 = vset.pattern.permute.xlu0 0
      %4719 = vperm.xlu0 %4718, %v4711
      %v4720 = vpop.permute.xlu0 %4719
      %v4722 = vmul.f32 %v4705, %v4715
      %v4723 = vmul.f32 %v4706, %v4715
      %v4724 = vmul.f32 %v4707, %v4720
      %v4725 = vmul.f32 %v4708, %v4720
      %v4726 = vadd.f32 %v4689, %v4722
      %v4727 = vadd.f32 %v4690, %v4723
      %v4728 = vadd.f32 %v4691, %v4724
      %v4729 = vadd.f32 %v4692, %v4725
      %4730 = vrot.lane.b32.xlu0 %v4484, 112
      %v4731 = vpop.permute.xlu0 %4730
      %4732 = vrot.lane.b32.xlu0 %v4486, 112
      %v4733 = vpop.permute.xlu0 %4732
      %4734 = vrot.lane.b32.xlu0 %v4485, 112
      %v4735 = vpop.permute.xlu0 %4734
      %4736 = vrot.lane.b32.xlu0 %v4487, 112
      %v4737 = vpop.permute.xlu0 %4736
      %v4738 = vsel %vm1237, %v4731, %v4735
      %v4739 = vsel %vm1237, %v4733, %v4737
      %v4740 = vsel %vm1237, %v4735, %v4731
      %v4741 = vsel %vm1237, %v4737, %v4733
      %v4742 = vmul.f32 %v4738, %v1246
      %v4743 = vmul.f32 %v4740, %v1250
      %v4744 = vmul.f32 %v4739, %v1246
      %v4745 = vmul.f32 %v4741, %v1250
      %s4746 = scalar_lea.vmem %s14, 112
      %v4747 = vld [vmem:[%s4746] sm:$0xff]
      %v4748 = vld [vmem:[%s4746 + $0x8] sm:$0xf]
      %4750 = vset.pattern.permute.xlu0 0
      %4751 = vperm.xlu0 %4750, %v4747
      %v4752 = vpop.permute.xlu0 %4751
      %4755 = vset.pattern.permute.xlu0 0
      %4756 = vperm.xlu0 %4755, %v4748
      %v4757 = vpop.permute.xlu0 %4756
      %v4759 = vmul.f32 %v4742, %v4752
      %v4760 = vmul.f32 %v4743, %v4752
      %v4761 = vmul.f32 %v4744, %v4757
      %v4762 = vmul.f32 %v4745, %v4757
      %v4763 = vadd.f32 %v4726, %v4759
      %v4764 = vadd.f32 %v4727, %v4760
      %v4765 = vadd.f32 %v4728, %v4761
      %v4766 = vadd.f32 %v4729, %v4762
      %4767 = vrot.lane.b32.xlu0 %v4484, 111
      %v4768 = vpop.permute.xlu0 %4767
      %4769 = vrot.lane.b32.xlu0 %v4486, 111
      %v4770 = vpop.permute.xlu0 %4769
      %4771 = vrot.lane.b32.xlu0 %v4485, 111
      %v4772 = vpop.permute.xlu0 %4771
      %4773 = vrot.lane.b32.xlu0 %v4487, 111
      %v4774 = vpop.permute.xlu0 %4773
      %v4775 = vsel %vm1270, %v4768, %v4772
      %v4776 = vsel %vm1270, %v4770, %v4774
      %v4777 = vsel %vm1270, %v4772, %v4768
      %v4778 = vsel %vm1270, %v4774, %v4770
      %v4779 = vmul.f32 %v4775, %v1279
      %v4780 = vmul.f32 %v4777, %v1283
      %v4781 = vmul.f32 %v4776, %v1279
      %v4782 = vmul.f32 %v4778, %v1283
      %s4783 = scalar_lea.vmem %s14, 128
      %v4784 = vld [vmem:[%s4783] sm:$0xff]
      %v4785 = vld [vmem:[%s4783 + $0x8] sm:$0xf]
      %4787 = vset.pattern.permute.xlu0 0
      %4788 = vperm.xlu0 %4787, %v4784
      %v4789 = vpop.permute.xlu0 %4788
      %4792 = vset.pattern.permute.xlu0 0
      %4793 = vperm.xlu0 %4792, %v4785
      %v4794 = vpop.permute.xlu0 %4793
      %v4796 = vmul.f32 %v4779, %v4789
      %v4797 = vmul.f32 %v4780, %v4789
      %v4798 = vmul.f32 %v4781, %v4794
      %v4799 = vmul.f32 %v4782, %v4794
      %v4800 = vadd.f32 %v4763, %v4796
      %v4801 = vadd.f32 %v4764, %v4797
      %v4802 = vadd.f32 %v4765, %v4798
      %v4803 = vadd.f32 %v4766, %v4799
      %v4804 = vld [vmem:[%s955] sm:$0xff]
      %v4805 = vld [vmem:[%s955 + $0x8] sm:$0xf]
      %4807 = vset.pattern.permute.xlu0 0
      %4808 = vperm.xlu0 %4807, %v4804
      %v4809 = vpop.permute.xlu0 %4808
      %4812 = vset.pattern.permute.xlu0 0
      %4813 = vperm.xlu0 %4812, %v4805
      %v4814 = vpop.permute.xlu0 %4813
      %v4816 = vmul.f32 %v4800, %v4809
      %v4817 = vmul.f32 %v4801, %v4809
      %v4818 = vmul.f32 %v4802, %v4814
      %v4819 = vmul.f32 %v4803, %v4814
      %v4820 = vld [vmem:[%s15] sm:$0xff]
      %v4821 = vld [vmem:[%s15 + $0x8] sm:$0xf]
      %v4823 = vsel %vm1489, %v4820, 0
      %v4826 = vsel %vm1489, %v4821, 0
      %v4829 = vsel %vm1493, %v4818, 0
      %v4832 = vsel %vm1493, %v4819, 0
      %4834 = vmatprep.subr.mxu0 %v4817
      %4835 = vmatpush1.msra.mxu0 %v4816
      %4836 = vmatprep.subr.mxu0 %v4832
      %4837 = vmatpush1.msra.mxu0 %v4829
      %4838 = vmatprep.subr.mxu0 0.0
      %4839 = vmatpush1.msra.mxu0 0.0
      %4840 = vmatprep.subr.mxu0 0.0
      %4841 = vmatpush1.msra.mxu0 0.0
      %4842 = vmatprep.subr.mxu0 0.0
      %4843 = vmatpush1.msra.mxu0 0.0
      %4844 = vmatprep.subr.mxu0 0.0
      %4845 = vmatpush1.msra.mxu0 0.0
      %4846 = vmatprep.subr.mxu0 0.0
      %4847 = vmatpush1.msra.mxu0 0.0
      %4848 = vmatprep.subr.mxu0 0.0
      %4849 = vmatpush1.msra.mxu0 0.0
      %4850 = vmatprep.subr.mxu0 0.0
      %4851 = vmatpush1.msra.mxu0 0.0
      %4852 = vmatprep.subr.mxu0 0.0
      %4853 = vmatpush1.msra.mxu0 0.0
      %4854 = vmatprep.subr.mxu0 0.0
      %4855 = vmatpush1.msra.mxu0 0.0
      %4856 = vmatprep.subr.mxu0 0.0
      %4857 = vmatpush1.msra.mxu0 0.0
      %4858 = vmatprep.subr.mxu0 0.0
      %4859 = vmatpush1.msra.mxu0 0.0
      %4860 = vmatprep.subr.mxu0 0.0
      %4861 = vmatpush1.msra.mxu0 0.0
      %4862 = vmatprep.subr.mxu0 0.0
      %4863 = vmatpush1.msra.mxu0 0.0
      %4864 = vmatprep.subr.mxu0 0.0
      %4865 = vmatpush1.msra.mxu0 0.0
      %4866 = vmatprep.subr.mxu0 0.0
      %4867 = vmatpush1.msra.mxu0 0.0
      %4868 = vmatprep.subr.mxu0 0.0
      %4869 = vmatpush1.msra.mxu0 0.0
      %4870 = vmatprep.subr.mxu0 0.0
      %4871 = vmatpush1.msra.mxu0 0.0
      %4872 = vmatprep.subr.mxu0 0.0
      %4873 = vmatpush1.msra.mxu0 0.0
      %4874 = vmatprep.subr.mxu0 0.0
      %4875 = vmatpush1.msra.mxu0 0.0
      %4876 = vmatprep.subr.mxu0 0.0
      %4877 = vmatpush1.msra.mxu0 0.0
      %4878 = vmatprep.subr.mxu0 0.0
      %4879 = vmatpush1.msra.mxu0 0.0
      %4880 = vmatprep.subr.mxu0 0.0
      %4881 = vmatpush1.msra.mxu0 0.0
      %4882 = vmatprep.subr.mxu0 0.0
      %4883 = vmatpush1.msra.mxu0 0.0
      %4884 = vmatprep.subr.mxu0 0.0
      %4885 = vmatpush1.msra.mxu0 0.0
      %4886 = vmatprep.subr.mxu0 0.0
      %4887 = vmatpush1.msra.mxu0 0.0
      %4888 = vmatprep.subr.mxu0 0.0
      %4889 = vmatpush1.msra.mxu0 0.0
      %4890 = vmatprep.subr.mxu0 0.0
      %4891 = vmatpush1.msra.mxu0 0.0
      %4892 = vmatprep.subr.mxu0 0.0
      %4893 = vmatpush1.msra.mxu0 0.0
      %4894 = vmatprep.subr.mxu0 0.0
      %4895 = vmatpush1.msra.mxu0 0.0
      %4896 = vmatprep.subr.mxu0 0.0
      %4897 = vmatpush1.msra.mxu0 0.0
      %4898 = vmatprep.mubr.f32.mxu0 0.0
      %4899 = vmatmul.mubr.f32.gmra.mrb[0].mxu0 %v4823
      %v4900 = vpop.f32.mrb[0].mxu0
      %v4901 = vadd.f32 0.0, %v4900
      %v4902 = vpop.f32.mrb[0].mxu0
      %v4903 = vadd.f32 0.0, %v4902
      %4904 = vmatprep.mubr.f32.mxu0 0.0
      %4905 = vmatmul.mubr.f32.gmra.mrb[0].mxu0 %v4826
      %v4906 = vpop.f32.mrb[0].mxu0
      %v4907 = vadd.f32 0.0, %v4906
      %v4908 = vpop.f32.mrb[0].mxu0
      %v4909 = vadd.f32 0.0, %v4908
      %4910 = vdwg.mxu0
      %v4911 = vld [vmem:[%s960] sm:$0xff]
      %v4912 = vld [vmem:[%s960 + $0x8] sm:$0xf]
      %4914 = vset.pattern.permute.xlu0 0
      %4915 = vperm.xlu0 %4914, %v4911
      %v4916 = vpop.permute.xlu0 %4915
      %4919 = vset.pattern.permute.xlu0 0
      %4920 = vperm.xlu0 %4919, %v4912
      %v4921 = vpop.permute.xlu0 %4920
      %v4923 = vmul.f32 %v4901, %v4916
      %v4924 = vmul.f32 %v4903, %v4916
      %v4925 = vmul.f32 %v4907, %v4921
      %v4926 = vmul.f32 %v4909, %v4921
      %v4927 = vld [vmem:[%s936] sm:$0x3]
      %v4929 = vlaneseq
      %v4930 = vshrl.u32 %v4929, 7
      %v4931 = vsub.s32 0, %v4930
      %v4932 = vrot.slane %v4927, %v4931
      %v4933 = vlaneseq
      %v4934 = vshrl.u32 %v4933, 7
      %v4935 = vsub.s32 1, %v4934
      %v4936 = vrot.slane %v4927, %v4935
      %v4939 = vadd.f32 %v4923, %v4932
      %v4940 = vadd.f32 %v4924, %v4936
      %v4941 = vadd.f32 %v4925, %v4932
      %v4942 = vadd.f32 %v4926, %v4936
      %v4943 = vld [vmem:[%s16] sm:$0xff]
      %v4944 = vld [vmem:[%s16 + $0x8] sm:$0xf]
      %4946 = vset.pattern.permute.xlu0 0
      %4947 = vperm.xlu0 %4946, %v4943
      %v4948 = vpop.permute.xlu0 %4947
      %4951 = vset.pattern.permute.xlu0 0
      %4952 = vperm.xlu0 %4951, %v4944
      %v4953 = vpop.permute.xlu0 %4952
      %v4955 = vadd.f32 %v4939, %v4948
      %v4956 = vadd.f32 %v4940, %v4948
      %v4957 = vadd.f32 %v4941, %v4953
      %v4958 = vadd.f32 %v4942, %v4953
      %vm4959 = vcmp.ge.f32.partialorder %v4955, 0.0
      %vm4960 = vcmp.ge.f32.partialorder %v4956, 0.0
      %vm4961 = vcmp.ge.f32.partialorder %v4957, 0.0
      %vm4962 = vcmp.ge.f32.partialorder %v4958, 0.0
      %v4963 = vmul.f32 %v4955, 0.2
      %v4964 = vmul.f32 %v4956, 0.2
      %v4965 = vmul.f32 %v4957, 0.2
      %v4966 = vmul.f32 %v4958, 0.2
      %v4967 = vsel %vm4959, %v4955, %v4963
      %v4968 = vsel %vm4960, %v4956, %v4964
      %v4969 = vsel %vm4961, %v4957, %v4965
      %v4970 = vsel %vm4962, %v4958, %v4966
      %v4971 = vmul.f32 %v4967, 1.4142135
      %v4972 = vmul.f32 %v4968, 1.4142135
      %v4973 = vmul.f32 %v4969, 1.4142135
      %v4974 = vmul.f32 %v4970, 1.4142135
      %4975 = vst [vmem:[%s970] sm:$0xff] %v4971
      %4976 = vst [vmem:[%s970 + $0x8] sm:$0xff] %v4972
      %4977 = vst [vmem:[%s970 + $0x10] sm:$0xf] %v4973
      %4978 = vst [vmem:[%s970 + $0x18] sm:$0xf] %v4974
      %v4979 = vld [vmem:[%s23] sm:$0xff]
      %v4980 = vld [vmem:[%s23 + $0x8] sm:$0xf]
      %v4981 = vld [vmem:[%s965] sm:$0xff]
      %v4982 = vld [vmem:[%s965 + $0x8] sm:$0xf]
      %4984 = vset.pattern.permute.xlu0 0
      %4985 = vperm.xlu0 %4984, %v4981
      %v4986 = vpop.permute.xlu0 %4985
      %4989 = vset.pattern.permute.xlu0 0
      %4990 = vperm.xlu0 %4989, %v4982
      %v4991 = vpop.permute.xlu0 %4990
      %v4993 = vmul.f32 %v4971, %v4986
      %v4994 = vmul.f32 %v4972, %v4986
      %v4995 = vmul.f32 %v4973, %v4991
      %v4996 = vmul.f32 %v4974, %v4991
      %v4997 = vld [vmem:[%s24] sm:$0xff]
      %v4998 = vld [vmem:[%s24 + $0x8] sm:$0xf]
      %5000 = vset.pattern.permute.xlu0 0
      %5001 = vperm.xlu0 %5000, %v4997
      %v5002 = vpop.permute.xlu0 %5001
      %5005 = vset.pattern.permute.xlu0 0
      %5006 = vperm.xlu0 %5005, %v4998
      %v5007 = vpop.permute.xlu0 %5006
      %v5010 = vsel %vm1489, %v4979, 0
      %v5013 = vsel %vm1489, %v4980, 0
      %v5016 = vsel %vm1493, %v4995, 0
      %v5019 = vsel %vm1493, %v4996, 0
      %5021 = vmatprep.subr.mxu0 %v4994
      %5022 = vmatpush1.msra.mxu0 %v4993
      %5023 = vmatprep.subr.mxu0 %v5019
      %5024 = vmatpush1.msra.mxu0 %v5016
      %5025 = vmatprep.subr.mxu0 0.0
      %5026 = vmatpush1.msra.mxu0 0.0
      %5027 = vmatprep.subr.mxu0 0.0
      %5028 = vmatpush1.msra.mxu0 0.0
      %5029 = vmatprep.subr.mxu0 0.0
      %5030 = vmatpush1.msra.mxu0 0.0
      %5031 = vmatprep.subr.mxu0 0.0
      %5032 = vmatpush1.msra.mxu0 0.0
      %5033 = vmatprep.subr.mxu0 0.0
      %5034 = vmatpush1.msra.mxu0 0.0
      %5035 = vmatprep.subr.mxu0 0.0
      %5036 = vmatpush1.msra.mxu0 0.0
      %5037 = vmatprep.subr.mxu0 0.0
      %5038 = vmatpush1.msra.mxu0 0.0
      %5039 = vmatprep.subr.mxu0 0.0
      %5040 = vmatpush1.msra.mxu0 0.0
      %5041 = vmatprep.subr.mxu0 0.0
      %5042 = vmatpush1.msra.mxu0 0.0
      %5043 = vmatprep.subr.mxu0 0.0
      %5044 = vmatpush1.msra.mxu0 0.0
      %5045 = vmatprep.subr.mxu0 0.0
      %5046 = vmatpush1.msra.mxu0 0.0
      %5047 = vmatprep.subr.mxu0 0.0
      %5048 = vmatpush1.msra.mxu0 0.0
      %5049 = vmatprep.subr.mxu0 0.0
      %5050 = vmatpush1.msra.mxu0 0.0
      %5051 = vmatprep.subr.mxu0 0.0
      %5052 = vmatpush1.msra.mxu0 0.0
      %5053 = vmatprep.subr.mxu0 0.0
      %5054 = vmatpush1.msra.mxu0 0.0
      %5055 = vmatprep.subr.mxu0 0.0
      %5056 = vmatpush1.msra.mxu0 0.0
      %5057 = vmatprep.subr.mxu0 0.0
      %5058 = vmatpush1.msra.mxu0 0.0
      %5059 = vmatprep.subr.mxu0 0.0
      %5060 = vmatpush1.msra.mxu0 0.0
      %5061 = vmatprep.subr.mxu0 0.0
      %5062 = vmatpush1.msra.mxu0 0.0
      %5063 = vmatprep.subr.mxu0 0.0
      %5064 = vmatpush1.msra.mxu0 0.0
      %5065 = vmatprep.subr.mxu0 0.0
      %5066 = vmatpush1.msra.mxu0 0.0
      %5067 = vmatprep.subr.mxu0 0.0
      %5068 = vmatpush1.msra.mxu0 0.0
      %5069 = vmatprep.subr.mxu0 0.0
      %5070 = vmatpush1.msra.mxu0 0.0
      %5071 = vmatprep.subr.mxu0 0.0
      %5072 = vmatpush1.msra.mxu0 0.0
      %5073 = vmatprep.subr.mxu0 0.0
      %5074 = vmatpush1.msra.mxu0 0.0
      %5075 = vmatprep.subr.mxu0 0.0
      %5076 = vmatpush1.msra.mxu0 0.0
      %5077 = vmatprep.subr.mxu0 0.0
      %5078 = vmatpush1.msra.mxu0 0.0
      %5079 = vmatprep.subr.mxu0 0.0
      %5080 = vmatpush1.msra.mxu0 0.0
      %5081 = vmatprep.subr.mxu0 0.0
      %5082 = vmatpush1.msra.mxu0 0.0
      %5083 = vmatprep.subr.mxu0 0.0
      %5084 = vmatpush1.msra.mxu0 0.0
      %5085 = vmatprep.mubr.f32.mxu0 0.0
      %5086 = vmatmul.mubr.f32.gmra.mrb[0].mxu0 %v5010
      %v5087 = vpop.f32.mrb[0].mxu0
      %v5088 = vadd.f32 %v5002, %v5087
      %v5089 = vpop.f32.mrb[0].mxu0
      %v5090 = vadd.f32 %v5002, %v5089
      %5091 = vmatprep.mubr.f32.mxu0 0.0
      %5092 = vmatmul.mubr.f32.gmra.mrb[0].mxu0 %v5013
      %v5093 = vpop.f32.mrb[0].mxu0
      %v5094 = vadd.f32 %v5007, %v5093
      %v5095 = vpop.f32.mrb[0].mxu0
      %v5096 = vadd.f32 %v5007, %v5095
      %5097 = vdwg.mxu0
      %5098 = vst [vmem:[%s975] sm:$0xff] %v5088
      %5099 = vst [vmem:[%s975 + $0x8] sm:$0xff] %v5090
      %5100 = vst [vmem:[%s975 + $0x10] sm:$0xf] %v5094
      %5101 = vst [vmem:[%s975 + $0x18] sm:$0xf] %v5096
      %p5102 = scmp.lt.s32.totalorder %s38, 1
      %s5103 = scalar_select %p5102, %s38, 1
      %s5104 = smul.addr %s5103, 4
      %s5105 = smul.addr %s5104, 8
      %s5106 = scalar_lea.vmem %s25, %s5105
      %p5107 = scmp.lt.s32.totalorder %s38, 1
      %s5108 = scalar_select %p5107, %s38, 1
      %s5109 = smul.addr %s5108, 4
      %s5110 = smul.addr %s5109, 8
      %s5111 = scalar_lea.vmem %s26, %s5110
      // Predicated region
      $region121: #{_lambda_.1} parent=119 // pred_check
        %p5112 = pneg %p631
      $region122: #{_lambda_.1} parent=119 // pred_check_branch
        %5114 = sbr.rel (%p5112) target = $region124
      $region123: #{_lambda_.1} parent=119 // pred_region
        _
      $region124: #{_lambda_.1} parent=119 // pred_fallthru
        _
      // Predicated region
      $region125: #{_lambda_.1} parent=119 // pred_check
        %p5115 = pneg %p657
      $region126: #{_lambda_.1} parent=119 // pred_check_branch
        %5117 = sbr.rel (%p5115) target = $region128
      $region127: #{_lambda_.1} parent=119 // pred_region
        _
      $region128: #{_lambda_.1} parent=119 // pred_fallthru
        _
    $region120: #{_lambda_.1} parent=5 // pred_fallthru
      _
    %p5118 = scmp.le.s32.totalorder 2, %s33
    // Predicated region
    $region129: #{_lambda_.1} parent=5 // pred_check
      %p5119 = pneg %p5118
    $region130: #{_lambda_.1} parent=5 // pred_check_branch
      %5121 = sbr.rel (%p5119) target = $region132
    $region131: #{_lambda_.1} parent=5 // pred_region
      %s5122 = ssub.s32 %s33, 2
      // Predicated region
      $region133: #{_lambda_.1} parent=131 // pred_check
        %p5123 = pneg %p637
      $region134: #{_lambda_.1} parent=131 // pred_check_branch
        %5125 = sbr.rel (%p5123) target = $region136
      $region135: #{_lambda_.1} parent=131 // pred_region
        %p5126 = scmp.lt.s32.totalorder %s39, 1
        %s5127 = scalar_select %p5126, %s39, 1
        %s5128 = smul.addr %s5127, 4
        %s5129 = smul.addr %s5128, 8
        %s5130 = scalar_lea.vmem %s25, %s5129
      $region136: #{_lambda_.1} parent=131 // pred_fallthru
        _
      // Predicated region
      $region137: #{_lambda_.1} parent=131 // pred_check
        %p5131 = pneg %p663
      $region138: #{_lambda_.1} parent=131 // pred_check_branch
        %5133 = sbr.rel (%p5131) target = $region140
      $region139: #{_lambda_.1} parent=131 // pred_region
        %p5134 = scmp.lt.s32.totalorder %s39, 1
        %s5135 = scalar_select %p5134, %s39, 1
        %s5136 = smul.addr %s5135, 4
        %s5137 = smul.addr %s5136, 8
        %s5138 = scalar_lea.vmem %s26, %s5137
      $region140: #{_lambda_.1} parent=131 // pred_fallthru
        _
    $region132: #{_lambda_.1} parent=5 // pred_fallthru
      _
  $region6: #{_lambda_.1} parent=0 // loop_footer
    %s37 = sadd.s32 1, %s33
  $region7: #{_lambda_.1} parent=0 // loop_footer_branch
    %32 = sbr.rel target = $region3
  $region8: #{_lambda_.1} parent=0 // loop_exit
    _

</llo_original>
